<compile_context>
chip_gen: v6e
topology: v6e:2x2x1
jax: 0.10.0
libtpu: 0.0.40
codegen_flags: <defaults>
</compile_context>

<pallas_src>
import jax
import jax.numpy as jnp
from jax.experimental import pallas as pl
from jax.experimental.pallas import tpu as pltpu

N0 = 7200
N1 = 1000
N2 = 1000
Nout = 5

# ---- padded / tiled sizes (TPU friendly; weights padded once at init) ------
TK1 = 2432                    # fc1 K tile (multiple of 128): 3 steps over K1P
TN1 = 512                     # fc1 N tile: 2 independent tiles -> megacore on v7x
K1P = 3 * TK1                 # 7296 = round_up(7200, 2432): only 96 zero rows
N1P = 1024                    # fc1 out / fc2 in, padded to 128
N2P = 1024                    # fc2 out / fc3 in, padded to 128
NOUTP = 128                   # fc3 out, padded to 128
VMEM_LIMIT = 32 * 1024 * 1024  # actual live VMEM ~10 MB; << v7x's 64 MiB


def _round_up(x, m):
    return (x + m - 1) // m * m


# ---------------------------------------------------------------------------
# fc1: y = relu(x @ W1 + b1), grid = (N tiles [parallel], K tiles [reduction])
# Accumulates directly into the resident f32 output block (no scratch).
# ---------------------------------------------------------------------------
def _fc1_kernel(x_ref, w_ref, b_ref, o_ref):
    k = pl.program_id(1)

    @pl.when(k == 0)
    def _():
        o_ref[...] = jnp.zeros_like(o_ref)

    o_ref[...] += jnp.dot(
        x_ref[...], w_ref[...], preferred_element_type=jnp.float32
    )

    @pl.when(k == pl.num_programs(1) - 1)
    def _():
        o_ref[...] = jnp.maximum(o_ref[...] + b_ref[...], 0.0)


def _fc1(xp, w1p, b1p):
    Bp = xp.shape[0]
    return pl.pallas_call(
        _fc1_kernel,
        out_shape=jax.ShapeDtypeStruct((Bp, N1P), jnp.float32),
        grid_spec=pltpu.PrefetchScalarGridSpec(
            num_scalar_prefetch=0,
            grid=(N1P // TN1, K1P // TK1),
            in_specs=[
                pl.BlockSpec((Bp, TK1), lambda n, k: (0, k)),    # x: K tiles
                pl.BlockSpec((TK1, TN1), lambda n, k: (k, n)),   # W1: (K, N) tiles
                pl.BlockSpec((1, TN1), lambda n, k: (0, n)),     # b1: N tile
            ],
            out_specs=pl.BlockSpec((Bp, TN1), lambda n, k: (0, n)),
        ),
        compiler_params=pltpu.CompilerParams(
            dimension_semantics=("parallel", "arbitrary"),
            vmem_limit_bytes=VMEM_LIMIT,
        ),
    )(xp, w1p, b1p)


# ---------------------------------------------------------------------------
# fc2 + fc3 fused: y = relu(h @ W2 + b2) @ W3 + b3
# Both weights (4 MB + 0.5 MB) are fully resident in VMEM; single grid step.
# ---------------------------------------------------------------------------
def _fc23_kernel(h_ref, w2_ref, b2_ref, w3_ref, b3_ref, o_ref):
    h2 = jnp.maximum(
        jnp.dot(h_ref[...], w2_ref[...], preferred_element_type=jnp.float32)
        + b2_ref[...],
        0.0,
    )
    o_ref[...] = (
        jnp.dot(h2, w3_ref[...], preferred_element_type=jnp.float32)
        + b3_ref[...]
    ).astype(o_ref.dtype)


def _fc23(h, w2p, b2p, w3p, b3p):
    Bp = h.shape[0]
    return pl.pallas_call(
        _fc23_kernel,
        out_shape=jax.ShapeDtypeStruct((Bp, NOUTP), jnp.float32),
        grid_spec=pltpu.PrefetchScalarGridSpec(
            num_scalar_prefetch=0,
            grid=(1,),
            in_specs=[
                pl.BlockSpec((Bp, N1P), lambda i: (0, 0)),
                pl.BlockSpec((N1P, N2P), lambda i: (0, 0)),
                pl.BlockSpec((1, N2P), lambda i: (0, 0)),
                pl.BlockSpec((N2P, NOUTP), lambda i: (0, 0)),
                pl.BlockSpec((1, NOUTP), lambda i: (0, 0)),
            ],
            out_specs=pl.BlockSpec((Bp, NOUTP), lambda i: (0, 0)),
        ),
        compiler_params=pltpu.CompilerParams(
            dimension_semantics=("arbitrary",),
            vmem_limit_bytes=VMEM_LIMIT,
        ),
    )(h, w2p, b2p, w3p, b3p)


# ---------------------------------------------------------------------------
# Parameter init / one-time padding (hoisted out of the forward pass)
# ---------------------------------------------------------------------------
def init_params(key):
    """Deterministic init matching nn.Linear's U(-1/sqrt(fan_in), 1/sqrt(fan_in)).

    Weights are stored as (in_features, out_features) == PyTorch weight.T.
    """
    params = {}
    dims = [(N0, N1, "fc1"), (N1, N2, "fc2"), (N2, Nout, "fc3")]
    for fan_in, fan_out, name in dims:
        key, kw, kb = jax.random.split(key, 3)
        bound = 1.0 / (fan_in ** 0.5)
        params[name + "_w"] = jax.random.uniform(
            kw, (fan_in, fan_out), jnp.float32, -bound, bound
        )
        params[name + "_b"] = jax.random.uniform(
            kb, (fan_out,), jnp.float32, -bound, bound
        )
    return params


def _pad2d(w, rows, cols):
    return jnp.zeros((rows, cols), w.dtype).at[: w.shape[0], : w.shape[1]].set(w)


def _pad_bias(b, cols):
    return jnp.zeros((1, cols), b.dtype).at[0, : b.shape[0]].set(b)


def pad_params(params):
    """Pad weights/biases to TPU-friendly shapes ONCE (zeros are inert:
    padded input lanes are zero, padded hidden lanes stay zero through ReLU,
    padded output lanes are sliced off)."""
    return {
        "fc1_w": _pad2d(params["fc1_w"], K1P, N1P),
        "fc1_b": _pad_bias(params["fc1_b"], N1P),
        "fc2_w": _pad2d(params["fc2_w"], N1P, N2P),
        "fc2_b": _pad_bias(params["fc2_b"], N2P),
        "fc3_w": _pad2d(params["fc3_w"], N2P, NOUTP),
        "fc3_b": _pad_bias(params["fc3_b"], NOUTP),
    }


# ---------------------------------------------------------------------------
# Forward pass
# ---------------------------------------------------------------------------
@jax.jit
def net_forward(padded_params, x):
    B, K = x.shape
    Bp = max(_round_up(B, 8), 8)
    # Only the (tiny) activation is padded per call; weights are pre-padded.
    xp = jnp.zeros((Bp, K1P), x.dtype).at[:B, :K].set(x)

    h = _fc1(xp, padded_params["fc1_w"], padded_params["fc1_b"])
    y = _fc23(
        h,
        padded_params["fc2_w"],
        padded_params["fc2_b"],
        padded_params["fc3_w"],
        padded_params["fc3_b"],
    )
    # TODO(synk): the PyTorch forward does `print(x.data)` (debug print); omitted.
    return y[:B, :Nout]


def net_forward_ref(params, x):
    h = jnp.maximum(x @ params["fc1_w"] + params["fc1_b"], 0.0)
    h = jnp.maximum(h @ params["fc2_w"] + params["fc2_b"], 0.0)
    return h @ params["fc3_w"] + params["fc3_b"]


if __name__ == "__main__":
    key = jax.random.PRNGKey(0)
    key, kx = jax.random.split(key)
    batch = 2
    x = jax.random.normal(kx, (batch, N0), jnp.float32)

    params = init_params(key)
    padded = pad_params(params)  # one-time padding, hoisted out of the forward

    y = net_forward(padded, x)
    y = jax.block_until_ready(y)

    y_ref = net_forward_ref(params, x)
    assert y.shape == (batch, Nout), y.shape
    assert jnp.allclose(y, y_ref, atol=1e-3, rtol=1e-3), "mismatch vs reference"

    print("KERNEL_OK")
</pallas_src>

<mosaic_0001>
module attributes {stable_mosaic.version = 11 : i64} {
  func.func @_fc23_kernel(%arg0: i32, %arg1: memref<8x1024xf32, #tpu.memory_space<vmem>>, %arg2: memref<1024x1024xf32, #tpu.memory_space<vmem>>, %arg3: memref<1x1024xf32, #tpu.memory_space<vmem>>, %arg4: memref<1024x128xf32, #tpu.memory_space<vmem>>, %arg5: memref<1x128xf32, #tpu.memory_space<vmem>>, %arg6: memref<8x128xf32, #tpu.memory_space<vmem>>) attributes {dimension_semantics = [#tpu.dimension_semantics<arbitrary>], iteration_bounds = array<i64: 1>, scalar_prefetch = 0 : i64, scratch_operands = 0 : i64, tpu.core_type = #tpu.core_type<tc>, window_params = [{pipeline_mode = #tpu.pipeline_mode<synchronous>, transform_indices = @transform_0, window_bounds = array<i64: 8, 1024>}, {pipeline_mode = #tpu.pipeline_mode<synchronous>, transform_indices = @transform_1, window_bounds = array<i64: 1024, 1024>}, {pipeline_mode = #tpu.pipeline_mode<synchronous>, transform_indices = @transform_2, window_bounds = array<i64: 1, 1024>}, {pipeline_mode = #tpu.pipeline_mode<synchronous>, transform_indices = @transform_3, window_bounds = array<i64: 1024, 128>}, {pipeline_mode = #tpu.pipeline_mode<synchronous>, transform_indices = @transform_4, window_bounds = array<i64: 1, 128>}, {pipeline_mode = #tpu.pipeline_mode<synchronous>, transform_indices = @transform_5, window_bounds = array<i64: 8, 128>}]} {
    %c0 = arith.constant 0 : index
    %c0_0 = arith.constant 0 : index
    %0 = vector.load %arg1[%c0, %c0_0] : memref<8x1024xf32, #tpu.memory_space<vmem>>, vector<8x1024xf32>
    %c0_1 = arith.constant 0 : index
    %c0_2 = arith.constant 0 : index
    %1 = vector.load %arg2[%c0_1, %c0_2] : memref<1024x1024xf32, #tpu.memory_space<vmem>>, vector<1024x1024xf32>
    %cst = arith.constant dense<0.000000e+00> : vector<8x1024xf32>
    %2 = tpu.matmul %0, %1, %cst {dimension_numbers = #tpu.dot_dimension_numbers<[1], [0], [0], [1], [0, 0, 1, 1], [], []>} : vector<8x1024xf32>, vector<1024x1024xf32>, vector<8x1024xf32> -> vector<8x1024xf32>
    %c0_3 = arith.constant 0 : index
    %c0_4 = arith.constant 0 : index
    %3 = vector.load %arg3[%c0_3, %c0_4] : memref<1x1024xf32, #tpu.memory_space<vmem>>, vector<1x1024xf32>
    %4 = vector.broadcast %3 : vector<1x1024xf32> to vector<8x1024xf32>
    %5 = arith.addf %2, %4 : vector<8x1024xf32>
    %cst_5 = arith.constant 0.000000e+00 : f32
    %6 = vector.broadcast %cst_5 : f32 to vector<8x1024xf32>
    %7 = arith.maximumf %5, %6 : vector<8x1024xf32>
    %c0_6 = arith.constant 0 : index
    %c0_7 = arith.constant 0 : index
    %8 = vector.load %arg4[%c0_6, %c0_7] : memref<1024x128xf32, #tpu.memory_space<vmem>>, vector<1024x128xf32>
    %cst_8 = arith.constant dense<0.000000e+00> : vector<8x128xf32>
    %9 = tpu.matmul %7, %8, %cst_8 {dimension_numbers = #tpu.dot_dimension_numbers<[1], [0], [0], [1], [0, 0, 1, 1], [], []>} : vector<8x1024xf32>, vector<1024x128xf32>, vector<8x128xf32> -> vector<8x128xf32>
    %c0_9 = arith.constant 0 : index
    %c0_10 = arith.constant 0 : index
    %10 = vector.load %arg5[%c0_9, %c0_10] : memref<1x128xf32, #tpu.memory_space<vmem>>, vector<1x128xf32>
    %11 = vector.broadcast %10 : vector<1x128xf32> to vector<8x128xf32>
    %12 = arith.addf %9, %11 : vector<8x128xf32>
    %c0_11 = arith.constant 0 : index
    %c0_12 = arith.constant 0 : index
    %13 = vector.load %arg6[%c0_11, %c0_12] : memref<8x128xf32, #tpu.memory_space<vmem>>, vector<8x128xf32>
    tpu.vector_store %arg6[%c0_11, %c0_12], %12 {strides = array<i32>} : memref<8x128xf32, #tpu.memory_space<vmem>>, vector<8x128xf32>,
    return
  }
  func.func @transform_0(%arg0: i32) -> (i32, i32) {
    %c0_i32 = arith.constant 0 : i32
    %c0_i32_0 = arith.constant 0 : i32
    %c0_i32_1 = arith.constant 0 : i32
    return %c0_i32, %c0_i32_0 : i32, i32
  }
  func.func @transform_1(%arg0: i32) -> (i32, i32) {
    %c0_i32 = arith.constant 0 : i32
    %c0_i32_0 = arith.constant 0 : i32
    %c0_i32_1 = arith.constant 0 : i32
    return %c0_i32, %c0_i32_0 : i32, i32
  }
  func.func @transform_2(%arg0: i32) -> (i32, i32) {
    %c0_i32 = arith.constant 0 : i32
    %c0_i32_0 = arith.constant 0 : i32
    %c0_i32_1 = arith.constant 0 : i32
    return %c0_i32, %c0_i32_0 : i32, i32
  }
  func.func @transform_3(%arg0: i32) -> (i32, i32) {
    %c0_i32 = arith.constant 0 : i32
    %c0_i32_0 = arith.constant 0 : i32
    %c0_i32_1 = arith.constant 0 : i32
    return %c0_i32, %c0_i32_0 : i32, i32
  }
  func.func @transform_4(%arg0: i32) -> (i32, i32) {
    %c0_i32 = arith.constant 0 : i32
    %c0_i32_0 = arith.constant 0 : i32
    %c0_i32_1 = arith.constant 0 : i32
    return %c0_i32, %c0_i32_0 : i32, i32
  }
  func.func @transform_5(%arg0: i32) -> (i32, i32) {
    %c0_i32 = arith.constant 0 : i32
    %c0_i32_0 = arith.constant 0 : i32
    %c0_i32_1 = arith.constant 0 : i32
    return %c0_i32, %c0_i32_0 : i32, i32
  }
}

module attributes {stable_mosaic.version = 11 : i64} {
  func.func @_fc1_kernel(%arg0: i32, %arg1: i32, %arg2: memref<8x2432xf32, #tpu.memory_space<vmem>>, %arg3: memref<2432x512xf32, #tpu.memory_space<vmem>>, %arg4: memref<1x512xf32, #tpu.memory_space<vmem>>, %arg5: memref<8x512xf32, #tpu.memory_space<vmem>>) attributes {dimension_semantics = [#tpu.dimension_semantics<parallel>, #tpu.dimension_semantics<arbitrary>], iteration_bounds = array<i64: 2, 3>, scalar_prefetch = 0 : i64, scratch_operands = 0 : i64, tpu.core_type = #tpu.core_type<tc>, window_params = [{transform_indices = @transform_0, window_bounds = array<i64: 8, 2432>}, {transform_indices = @transform_1, window_bounds = array<i64: 2432, 512>}, {transform_indices = @transform_2, window_bounds = array<i64: 1, 512>}, {transform_indices = @transform_3, window_bounds = array<i64: 8, 512>}]} {
    %c0_i32 = arith.constant 0 : i32
    %0 = arith.cmpi eq, %arg1, %c0_i32 : i32
    %1 = arith.extui %0 : i1 to i32
    %c0_i32_0 = arith.constant 0 : i32
    %2 = arith.cmpi ne, %1, %c0_i32_0 : i32
    scf.if %2 {
      %cst_9 = arith.constant 0.000000e+00 : f32
      %12 = vector.broadcast %cst_9 : f32 to vector<8x512xf32>
      %c0_10 = arith.constant 0 : index
      %c0_11 = arith.constant 0 : index
      %13 = vector.load %arg5[%c0_10, %c0_11] : memref<8x512xf32, #tpu.memory_space<vmem>>, vector<8x512xf32>
      tpu.vector_store %arg5[%c0_10, %c0_11], %12 {strides = array<i32>} : memref<8x512xf32, #tpu.memory_space<vmem>>, vector<8x512xf32>,
    } else {
    }
    %c0 = arith.constant 0 : index
    %c0_1 = arith.constant 0 : index
    %3 = vector.load %arg5[%c0, %c0_1] : memref<8x512xf32, #tpu.memory_space<vmem>>, vector<8x512xf32>
    %c0_2 = arith.constant 0 : index
    %c0_3 = arith.constant 0 : index
    %4 = vector.load %arg2[%c0_2, %c0_3] : memref<8x2432xf32, #tpu.memory_space<vmem>>, vector<8x2432xf32>
    %c0_4 = arith.constant 0 : index
    %c0_5 = arith.constant 0 : index
    %5 = vector.load %arg3[%c0_4, %c0_5] : memref<2432x512xf32, #tpu.memory_space<vmem>>, vector<2432x512xf32>
    %cst = arith.constant dense<0.000000e+00> : vector<8x512xf32>
    %6 = tpu.matmul %4, %5, %cst {dimension_numbers = #tpu.dot_dimension_numbers<[1], [0], [0], [1], [0, 0, 1, 1], [], []>} : vector<8x2432xf32>, vector<2432x512xf32>, vector<8x512xf32> -> vector<8x512xf32>
    %7 = arith.addf %3, %6 : vector<8x512xf32>
    %c0_6 = arith.constant 0 : index
    %c0_7 = arith.constant 0 : index
    %8 = vector.load %arg5[%c0_6, %c0_7] : memref<8x512xf32, #tpu.memory_space<vmem>>, vector<8x512xf32>
    tpu.vector_store %arg5[%c0_6, %c0_7], %7 {strides = array<i32>} : memref<8x512xf32, #tpu.memory_space<vmem>>, vector<8x512xf32>,
    %c2_i32 = arith.constant 2 : i32
    %9 = arith.cmpi eq, %arg1, %c2_i32 : i32
    %10 = arith.extui %9 : i1 to i32
    %c0_i32_8 = arith.constant 0 : i32
    %11 = arith.cmpi ne, %10, %c0_i32_8 : i32
    scf.if %11 {
      %c0_9 = arith.constant 0 : index
      %c0_10 = arith.constant 0 : index
      %12 = vector.load %arg5[%c0_9, %c0_10] : memref<8x512xf32, #tpu.memory_space<vmem>>, vector<8x512xf32>
      %c0_11 = arith.constant 0 : index
      %c0_12 = arith.constant 0 : index
      %13 = vector.load %arg4[%c0_11, %c0_12] : memref<1x512xf32, #tpu.memory_space<vmem>>, vector<1x512xf32>
      %14 = vector.broadcast %13 : vector<1x512xf32> to vector<8x512xf32>
      %15 = arith.addf %12, %14 : vector<8x512xf32>
      %cst_13 = arith.constant 0.000000e+00 : f32
      %16 = vector.broadcast %cst_13 : f32 to vector<8x512xf32>
      %17 = arith.maximumf %15, %16 : vector<8x512xf32>
      %c0_14 = arith.constant 0 : index
      %c0_15 = arith.constant 0 : index
      %18 = vector.load %arg5[%c0_14, %c0_15] : memref<8x512xf32, #tpu.memory_space<vmem>>, vector<8x512xf32>
      tpu.vector_store %arg5[%c0_14, %c0_15], %17 {strides = array<i32>} : memref<8x512xf32, #tpu.memory_space<vmem>>, vector<8x512xf32>,
    } else {
    }
    return
  }
  func.func @transform_0(%arg0: i32, %arg1: i32) -> (i32, i32) {
    %c0_i32 = arith.constant 0 : i32
    %c0_i32_0 = arith.constant 0 : i32
    return %c0_i32, %arg1 : i32, i32
  }
  func.func @transform_1(%arg0: i32, %arg1: i32) -> (i32, i32) {
    %c0_i32 = arith.constant 0 : i32
    return %arg1, %arg0 : i32, i32
  }
  func.func @transform_2(%arg0: i32, %arg1: i32) -> (i32, i32) {
    %c0_i32 = arith.constant 0 : i32
    %c0_i32_0 = arith.constant 0 : i32
    return %c0_i32, %arg0 : i32, i32
  }
  func.func @transform_3(%arg0: i32, %arg1: i32) -> (i32, i32) {
    %c0_i32 = arith.constant 0 : i32
    %c0_i32_0 = arith.constant 0 : i32
    return %c0_i32, %arg0 : i32, i32
  }
}

</mosaic_0001>

<llo_original>
// kernel: net_forward.3
$region0: #{net_forward.3}
  #allocation0 [shape = 'u32[]', space=smem, size = 0x4, offset = 0x4, fixed_abs, tag = 'smem constant byte address 0x4 - core index']
  #allocation1 [shape = 'u32[144,128]{1,0:T(1,128)}', space=vmem, size = 0x12000, scoped, tag = 'internal scratch']
  %s0 = inlined_call_operand.vmem [shape: f32[8,1024], index: 0, kind: input, shape index: {}]
  %s1 = inlined_call_operand.vmem [shape: f32[1024,1024], index: 1, kind: input, shape index: {}]
  %s2 = inlined_call_operand.vmem [shape: f32[1,1024], index: 2, kind: input, shape index: {}]
  %s3 = inlined_call_operand.vmem [shape: f32[1024,128], index: 3, kind: input, shape index: {}]
  %s4 = inlined_call_operand.vmem [shape: f32[1,128], index: 4, kind: input, shape index: {}]
  %s5 = inlined_call_operand.vmem [shape: f32[8,128], index: 5, kind: output, shape index: {}]
  %s6 = sld [smem:[#allocation0]]
  $region30: #{net_forward.3} parent=0
    _
  %s8 = ssub.s32 1, %s6
  %s9 = scalar_select 0, %s8, %s6
  // Predicated region
  $region2: #{net_forward.3} parent=0 // pred_check
    _
  $region3: #{net_forward.3} parent=0 // pred_check_branch
    %11 = sbr.rel (0) target = $region5
  $region4: #{net_forward.3} parent=0 // pred_region
    _
  $region5: #{net_forward.3} parent=0 // pred_fallthru
    _
  // Predicated region
  $region6: #{net_forward.3} parent=0 // pred_check
    _
  $region7: #{net_forward.3} parent=0 // pred_check_branch
    %13 = sbr.rel (0) target = $region9
  $region8: #{net_forward.3} parent=0 // pred_region
    _
  $region9: #{net_forward.3} parent=0 // pred_fallthru
    _
  // Predicated region
  $region10: #{net_forward.3} parent=0 // pred_check
    _
  $region11: #{net_forward.3} parent=0 // pred_check_branch
    %15 = sbr.rel (0) target = $region13
  $region12: #{net_forward.3} parent=0 // pred_region
    _
  $region13: #{net_forward.3} parent=0 // pred_fallthru
    _
  // Predicated region
  $region14: #{net_forward.3} parent=0 // pred_check
    _
  $region15: #{net_forward.3} parent=0 // pred_check_branch
    %17 = sbr.rel (0) target = $region17
  $region16: #{net_forward.3} parent=0 // pred_region
    _
  $region17: #{net_forward.3} parent=0 // pred_fallthru
    _
  // Predicated region
  $region18: #{net_forward.3} parent=0 // pred_check
    _
  $region19: #{net_forward.3} parent=0 // pred_check_branch
    %19 = sbr.rel (0) target = $region21
  $region20: #{net_forward.3} parent=0 // pred_region
    _
  $region21: #{net_forward.3} parent=0 // pred_fallthru
    _
  %v20 = vld [vmem:[%s0] sm:$0xff]
  %v21 = vld [vmem:[%s0 + $0x8] sm:$0xff]
  %v22 = vld [vmem:[%s0 + $0x10] sm:$0xff]
  %v23 = vld [vmem:[%s0 + $0x18] sm:$0xff]
  %v24 = vld [vmem:[%s0 + $0x20] sm:$0xff]
  %v25 = vld [vmem:[%s0 + $0x28] sm:$0xff]
  %v26 = vld [vmem:[%s0 + $0x30] sm:$0xff]
  %v27 = vld [vmem:[%s0 + $0x38] sm:$0xff]
  %v28 = vld [vmem:[%s1] sm:$0xff]
  %v29 = vld [vmem:[%s1 + $0x8] sm:$0xff]
  %v30 = vld [vmem:[%s1 + $0x10] sm:$0xff]
  %v31 = vld [vmem:[%s1 + $0x18] sm:$0xff]
  %v32 = vld [vmem:[%s1 + $0x20] sm:$0xff]
  %v33 = vld [vmem:[%s1 + $0x28] sm:$0xff]
  %v34 = vld [vmem:[%s1 + $0x30] sm:$0xff]
  %v35 = vld [vmem:[%s1 + $0x38] sm:$0xff]
  %v36 = vld [vmem:[%s1 + $0x40] sm:$0xff]
  %v37 = vld [vmem:[%s1 + $0x48] sm:$0xff]
  %v38 = vld [vmem:[%s1 + $0x50] sm:$0xff]
  %v39 = vld [vmem:[%s1 + $0x58] sm:$0xff]
  %v40 = vld [vmem:[%s1 + $0x60] sm:$0xff]
  %v41 = vld [vmem:[%s1 + $0x68] sm:$0xff]
  %v42 = vld [vmem:[%s1 + $0x70] sm:$0xff]
  %v43 = vld [vmem:[%s1 + $0x78] sm:$0xff]
  %v44 = vld [vmem:[%s1 + $0x80] sm:$0xff]
  %v45 = vld [vmem:[%s1 + $0x88] sm:$0xff]
  %v46 = vld [vmem:[%s1 + $0x90] sm:$0xff]
  %v47 = vld [vmem:[%s1 + $0x98] sm:$0xff]
  %v48 = vld [vmem:[%s1 + $0xa0] sm:$0xff]
  %v49 = vld [vmem:[%s1 + $0xa8] sm:$0xff]
  %v50 = vld [vmem:[%s1 + $0xb0] sm:$0xff]
  %v51 = vld [vmem:[%s1 + $0xb8] sm:$0xff]
  %v52 = vld [vmem:[%s1 + $0xc0] sm:$0xff]
  %v53 = vld [vmem:[%s1 + $0xc8] sm:$0xff]
  %v54 = vld [vmem:[%s1 + $0xd0] sm:$0xff]
  %v55 = vld [vmem:[%s1 + $0xd8] sm:$0xff]
  %v56 = vld [vmem:[%s1 + $0xe0] sm:$0xff]
  %v57 = vld [vmem:[%s1 + $0xe8] sm:$0xff]
  %v58 = vld [vmem:[%s1 + $0xf0] sm:$0xff]
  %v59 = vld [vmem:[%s1 + $0xf8] sm:$0xff]
  %v60 = vld [vmem:[%s1 + $0x100] sm:$0xff]
  %v61 = vld [vmem:[%s1 + $0x108] sm:$0xff]
  %v62 = vld [vmem:[%s1 + $0x110] sm:$0xff]
  %v63 = vld [vmem:[%s1 + $0x118] sm:$0xff]
  %v64 = vld [vmem:[%s1 + $0x120] sm:$0xff]
  %v65 = vld [vmem:[%s1 + $0x128] sm:$0xff]
  %v66 = vld [vmem:[%s1 + $0x130] sm:$0xff]
  %v67 = vld [vmem:[%s1 + $0x138] sm:$0xff]
  %v68 = vld [vmem:[%s1 + $0x140] sm:$0xff]
  %v69 = vld [vmem:[%s1 + $0x148] sm:$0xff]
  %v70 = vld [vmem:[%s1 + $0x150] sm:$0xff]
  %v71 = vld [vmem:[%s1 + $0x158] sm:$0xff]
  %v72 = vld [vmem:[%s1 + $0x160] sm:$0xff]
  %v73 = vld [vmem:[%s1 + $0x168] sm:$0xff]
  %v74 = vld [vmem:[%s1 + $0x170] sm:$0xff]
  %v75 = vld [vmem:[%s1 + $0x178] sm:$0xff]
  %v76 = vld [vmem:[%s1 + $0x180] sm:$0xff]
  %v77 = vld [vmem:[%s1 + $0x188] sm:$0xff]
  %v78 = vld [vmem:[%s1 + $0x190] sm:$0xff]
  %v79 = vld [vmem:[%s1 + $0x198] sm:$0xff]
  %v80 = vld [vmem:[%s1 + $0x1a0] sm:$0xff]
  %v81 = vld [vmem:[%s1 + $0x1a8] sm:$0xff]
  %v82 = vld [vmem:[%s1 + $0x1b0] sm:$0xff]
  %v83 = vld [vmem:[%s1 + $0x1b8] sm:$0xff]
  %v84 = vld [vmem:[%s1 + $0x1c0] sm:$0xff]
  %v85 = vld [vmem:[%s1 + $0x1c8] sm:$0xff]
  %v86 = vld [vmem:[%s1 + $0x1d0] sm:$0xff]
  %v87 = vld [vmem:[%s1 + $0x1d8] sm:$0xff]
  %v88 = vld [vmem:[%s1 + $0x1e0] sm:$0xff]
  %v89 = vld [vmem:[%s1 + $0x1e8] sm:$0xff]
  %v90 = vld [vmem:[%s1 + $0x1f0] sm:$0xff]
  %v91 = vld [vmem:[%s1 + $0x1f8] sm:$0xff]
  %v92 = vld [vmem:[%s1 + $0x200] sm:$0xff]
  %v93 = vld [vmem:[%s1 + $0x208] sm:$0xff]
  %v94 = vld [vmem:[%s1 + $0x210] sm:$0xff]
  %v95 = vld [vmem:[%s1 + $0x218] sm:$0xff]
  %v96 = vld [vmem:[%s1 + $0x220] sm:$0xff]
  %v97 = vld [vmem:[%s1 + $0x228] sm:$0xff]
  %v98 = vld [vmem:[%s1 + $0x230] sm:$0xff]
  %v99 = vld [vmem:[%s1 + $0x238] sm:$0xff]
  %v100 = vld [vmem:[%s1 + $0x240] sm:$0xff]
  %v101 = vld [vmem:[%s1 + $0x248] sm:$0xff]
  %v102 = vld [vmem:[%s1 + $0x250] sm:$0xff]
  %v103 = vld [vmem:[%s1 + $0x258] sm:$0xff]
  %v104 = vld [vmem:[%s1 + $0x260] sm:$0xff]
  %v105 = vld [vmem:[%s1 + $0x268] sm:$0xff]
  %v106 = vld [vmem:[%s1 + $0x270] sm:$0xff]
  %v107 = vld [vmem:[%s1 + $0x278] sm:$0xff]
  %v108 = vld [vmem:[%s1 + $0x280] sm:$0xff]
  %v109 = vld [vmem:[%s1 + $0x288] sm:$0xff]
  %v110 = vld [vmem:[%s1 + $0x290] sm:$0xff]
  %v111 = vld [vmem:[%s1 + $0x298] sm:$0xff]
  %v112 = vld [vmem:[%s1 + $0x2a0] sm:$0xff]
  %v113 = vld [vmem:[%s1 + $0x2a8] sm:$0xff]
  %v114 = vld [vmem:[%s1 + $0x2b0] sm:$0xff]
  %v115 = vld [vmem:[%s1 + $0x2b8] sm:$0xff]
  %v116 = vld [vmem:[%s1 + $0x2c0] sm:$0xff]
  %v117 = vld [vmem:[%s1 + $0x2c8] sm:$0xff]
  %v118 = vld [vmem:[%s1 + $0x2d0] sm:$0xff]
  %v119 = vld [vmem:[%s1 + $0x2d8] sm:$0xff]
  %v120 = vld [vmem:[%s1 + $0x2e0] sm:$0xff]
  %v121 = vld [vmem:[%s1 + $0x2e8] sm:$0xff]
  %v122 = vld [vmem:[%s1 + $0x2f0] sm:$0xff]
  %v123 = vld [vmem:[%s1 + $0x2f8] sm:$0xff]
  %v124 = vld [vmem:[%s1 + $0x300] sm:$0xff]
  %v125 = vld [vmem:[%s1 + $0x308] sm:$0xff]
  %v126 = vld [vmem:[%s1 + $0x310] sm:$0xff]
  %v127 = vld [vmem:[%s1 + $0x318] sm:$0xff]
  %v128 = vld [vmem:[%s1 + $0x320] sm:$0xff]
  %v129 = vld [vmem:[%s1 + $0x328] sm:$0xff]
  %v130 = vld [vmem:[%s1 + $0x330] sm:$0xff]
  %v131 = vld [vmem:[%s1 + $0x338] sm:$0xff]
  %v132 = vld [vmem:[%s1 + $0x340] sm:$0xff]
  %v133 = vld [vmem:[%s1 + $0x348] sm:$0xff]
  %v134 = vld [vmem:[%s1 + $0x350] sm:$0xff]
  %v135 = vld [vmem:[%s1 + $0x358] sm:$0xff]
  %v136 = vld [vmem:[%s1 + $0x360] sm:$0xff]
  %v137 = vld [vmem:[%s1 + $0x368] sm:$0xff]
  %v138 = vld [vmem:[%s1 + $0x370] sm:$0xff]
  %v139 = vld [vmem:[%s1 + $0x378] sm:$0xff]
  %v140 = vld [vmem:[%s1 + $0x380] sm:$0xff]
  %v141 = vld [vmem:[%s1 + $0x388] sm:$0xff]
  %v142 = vld [vmem:[%s1 + $0x390] sm:$0xff]
  %v143 = vld [vmem:[%s1 + $0x398] sm:$0xff]
  %v144 = vld [vmem:[%s1 + $0x3a0] sm:$0xff]
  %v145 = vld [vmem:[%s1 + $0x3a8] sm:$0xff]
  %v146 = vld [vmem:[%s1 + $0x3b0] sm:$0xff]
  %v147 = vld [vmem:[%s1 + $0x3b8] sm:$0xff]
  %v148 = vld [vmem:[%s1 + $0x3c0] sm:$0xff]
  %v149 = vld [vmem:[%s1 + $0x3c8] sm:$0xff]
  %v150 = vld [vmem:[%s1 + $0x3d0] sm:$0xff]
  %v151 = vld [vmem:[%s1 + $0x3d8] sm:$0xff]
  %v152 = vld [vmem:[%s1 + $0x3e0] sm:$0xff]
  %v153 = vld [vmem:[%s1 + $0x3e8] sm:$0xff]
  %v154 = vld [vmem:[%s1 + $0x3f0] sm:$0xff]
  %v155 = vld [vmem:[%s1 + $0x3f8] sm:$0xff]
  %v156 = vld [vmem:[%s1 + $0x400] sm:$0xff]
  %v157 = vld [vmem:[%s1 + $0x408] sm:$0xff]
  %v158 = vld [vmem:[%s1 + $0x410] sm:$0xff]
  %v159 = vld [vmem:[%s1 + $0x418] sm:$0xff]
  %v160 = vld [vmem:[%s1 + $0x420] sm:$0xff]
  %v161 = vld [vmem:[%s1 + $0x428] sm:$0xff]
  %v162 = vld [vmem:[%s1 + $0x430] sm:$0xff]
  %v163 = vld [vmem:[%s1 + $0x438] sm:$0xff]
  %v164 = vld [vmem:[%s1 + $0x440] sm:$0xff]
  %v165 = vld [vmem:[%s1 + $0x448] sm:$0xff]
  %v166 = vld [vmem:[%s1 + $0x450] sm:$0xff]
  %v167 = vld [vmem:[%s1 + $0x458] sm:$0xff]
  %v168 = vld [vmem:[%s1 + $0x460] sm:$0xff]
  %v169 = vld [vmem:[%s1 + $0x468] sm:$0xff]
  %v170 = vld [vmem:[%s1 + $0x470] sm:$0xff]
  %v171 = vld [vmem:[%s1 + $0x478] sm:$0xff]
  %v172 = vld [vmem:[%s1 + $0x480] sm:$0xff]
  %v173 = vld [vmem:[%s1 + $0x488] sm:$0xff]
  %v174 = vld [vmem:[%s1 + $0x490] sm:$0xff]
  %v175 = vld [vmem:[%s1 + $0x498] sm:$0xff]
  %v176 = vld [vmem:[%s1 + $0x4a0] sm:$0xff]
  %v177 = vld [vmem:[%s1 + $0x4a8] sm:$0xff]
  %v178 = vld [vmem:[%s1 + $0x4b0] sm:$0xff]
  %v179 = vld [vmem:[%s1 + $0x4b8] sm:$0xff]
  %v180 = vld [vmem:[%s1 + $0x4c0] sm:$0xff]
  %v181 = vld [vmem:[%s1 + $0x4c8] sm:$0xff]
  %v182 = vld [vmem:[%s1 + $0x4d0] sm:$0xff]
  %v183 = vld [vmem:[%s1 + $0x4d8] sm:$0xff]
  %v184 = vld [vmem:[%s1 + $0x4e0] sm:$0xff]
  %v185 = vld [vmem:[%s1 + $0x4e8] sm:$0xff]
  %v186 = vld [vmem:[%s1 + $0x4f0] sm:$0xff]
  %v187 = vld [vmem:[%s1 + $0x4f8] sm:$0xff]
  %v188 = vld [vmem:[%s1 + $0x500] sm:$0xff]
  %v189 = vld [vmem:[%s1 + $0x508] sm:$0xff]
  %v190 = vld [vmem:[%s1 + $0x510] sm:$0xff]
  %v191 = vld [vmem:[%s1 + $0x518] sm:$0xff]
  %v192 = vld [vmem:[%s1 + $0x520] sm:$0xff]
  %v193 = vld [vmem:[%s1 + $0x528] sm:$0xff]
  %v194 = vld [vmem:[%s1 + $0x530] sm:$0xff]
  %v195 = vld [vmem:[%s1 + $0x538] sm:$0xff]
  %v196 = vld [vmem:[%s1 + $0x540] sm:$0xff]
  %v197 = vld [vmem:[%s1 + $0x548] sm:$0xff]
  %v198 = vld [vmem:[%s1 + $0x550] sm:$0xff]
  %v199 = vld [vmem:[%s1 + $0x558] sm:$0xff]
  %v200 = vld [vmem:[%s1 + $0x560] sm:$0xff]
  %v201 = vld [vmem:[%s1 + $0x568] sm:$0xff]
  %v202 = vld [vmem:[%s1 + $0x570] sm:$0xff]
  %v203 = vld [vmem:[%s1 + $0x578] sm:$0xff]
  %v204 = vld [vmem:[%s1 + $0x580] sm:$0xff]
  %v205 = vld [vmem:[%s1 + $0x588] sm:$0xff]
  %v206 = vld [vmem:[%s1 + $0x590] sm:$0xff]
  %v207 = vld [vmem:[%s1 + $0x598] sm:$0xff]
  %v208 = vld [vmem:[%s1 + $0x5a0] sm:$0xff]
  %v209 = vld [vmem:[%s1 + $0x5a8] sm:$0xff]
  %v210 = vld [vmem:[%s1 + $0x5b0] sm:$0xff]
  %v211 = vld [vmem:[%s1 + $0x5b8] sm:$0xff]
  %v212 = vld [vmem:[%s1 + $0x5c0] sm:$0xff]
  %v213 = vld [vmem:[%s1 + $0x5c8] sm:$0xff]
  %v214 = vld [vmem:[%s1 + $0x5d0] sm:$0xff]
  %v215 = vld [vmem:[%s1 + $0x5d8] sm:$0xff]
  %v216 = vld [vmem:[%s1 + $0x5e0] sm:$0xff]
  %v217 = vld [vmem:[%s1 + $0x5e8] sm:$0xff]
  %v218 = vld [vmem:[%s1 + $0x5f0] sm:$0xff]
  %v219 = vld [vmem:[%s1 + $0x5f8] sm:$0xff]
  %v220 = vld [vmem:[%s1 + $0x600] sm:$0xff]
  %v221 = vld [vmem:[%s1 + $0x608] sm:$0xff]
  %v222 = vld [vmem:[%s1 + $0x610] sm:$0xff]
  %v223 = vld [vmem:[%s1 + $0x618] sm:$0xff]
  %v224 = vld [vmem:[%s1 + $0x620] sm:$0xff]
  %v225 = vld [vmem:[%s1 + $0x628] sm:$0xff]
  %v226 = vld [vmem:[%s1 + $0x630] sm:$0xff]
  %v227 = vld [vmem:[%s1 + $0x638] sm:$0xff]
  %v228 = vld [vmem:[%s1 + $0x640] sm:$0xff]
  %v229 = vld [vmem:[%s1 + $0x648] sm:$0xff]
  %v230 = vld [vmem:[%s1 + $0x650] sm:$0xff]
  %v231 = vld [vmem:[%s1 + $0x658] sm:$0xff]
  %v232 = vld [vmem:[%s1 + $0x660] sm:$0xff]
  %v233 = vld [vmem:[%s1 + $0x668] sm:$0xff]
  %v234 = vld [vmem:[%s1 + $0x670] sm:$0xff]
  %v235 = vld [vmem:[%s1 + $0x678] sm:$0xff]
  %v236 = vld [vmem:[%s1 + $0x680] sm:$0xff]
  %v237 = vld [vmem:[%s1 + $0x688] sm:$0xff]
  %v238 = vld [vmem:[%s1 + $0x690] sm:$0xff]
  %v239 = vld [vmem:[%s1 + $0x698] sm:$0xff]
  %v240 = vld [vmem:[%s1 + $0x6a0] sm:$0xff]
  %v241 = vld [vmem:[%s1 + $0x6a8] sm:$0xff]
  %v242 = vld [vmem:[%s1 + $0x6b0] sm:$0xff]
  %v243 = vld [vmem:[%s1 + $0x6b8] sm:$0xff]
  %v244 = vld [vmem:[%s1 + $0x6c0] sm:$0xff]
  %v245 = vld [vmem:[%s1 + $0x6c8] sm:$0xff]
  %v246 = vld [vmem:[%s1 + $0x6d0] sm:$0xff]
  %v247 = vld [vmem:[%s1 + $0x6d8] sm:$0xff]
  %v248 = vld [vmem:[%s1 + $0x6e0] sm:$0xff]
  %v249 = vld [vmem:[%s1 + $0x6e8] sm:$0xff]
  %v250 = vld [vmem:[%s1 + $0x6f0] sm:$0xff]
  %v251 = vld [vmem:[%s1 + $0x6f8] sm:$0xff]
  %v252 = vld [vmem:[%s1 + $0x700] sm:$0xff]
  %v253 = vld [vmem:[%s1 + $0x708] sm:$0xff]
  %v254 = vld [vmem:[%s1 + $0x710] sm:$0xff]
  %v255 = vld [vmem:[%s1 + $0x718] sm:$0xff]
  %v256 = vld [vmem:[%s1 + $0x720] sm:$0xff]
  %v257 = vld [vmem:[%s1 + $0x728] sm:$0xff]
  %v258 = vld [vmem:[%s1 + $0x730] sm:$0xff]
  %v259 = vld [vmem:[%s1 + $0x738] sm:$0xff]
  %v260 = vld [vmem:[%s1 + $0x740] sm:$0xff]
  %v261 = vld [vmem:[%s1 + $0x748] sm:$0xff]
  %v262 = vld [vmem:[%s1 + $0x750] sm:$0xff]
  %v263 = vld [vmem:[%s1 + $0x758] sm:$0xff]
  %v264 = vld [vmem:[%s1 + $0x760] sm:$0xff]
  %v265 = vld [vmem:[%s1 + $0x768] sm:$0xff]
  %v266 = vld [vmem:[%s1 + $0x770] sm:$0xff]
  %v267 = vld [vmem:[%s1 + $0x778] sm:$0xff]
  %v268 = vld [vmem:[%s1 + $0x780] sm:$0xff]
  %v269 = vld [vmem:[%s1 + $0x788] sm:$0xff]
  %v270 = vld [vmem:[%s1 + $0x790] sm:$0xff]
  %v271 = vld [vmem:[%s1 + $0x798] sm:$0xff]
  %v272 = vld [vmem:[%s1 + $0x7a0] sm:$0xff]
  %v273 = vld [vmem:[%s1 + $0x7a8] sm:$0xff]
  %v274 = vld [vmem:[%s1 + $0x7b0] sm:$0xff]
  %v275 = vld [vmem:[%s1 + $0x7b8] sm:$0xff]
  %v276 = vld [vmem:[%s1 + $0x7c0] sm:$0xff]
  %v277 = vld [vmem:[%s1 + $0x7c8] sm:$0xff]
  %v278 = vld [vmem:[%s1 + $0x7d0] sm:$0xff]
  %v279 = vld [vmem:[%s1 + $0x7d8] sm:$0xff]
  %v280 = vld [vmem:[%s1 + $0x7e0] sm:$0xff]
  %v281 = vld [vmem:[%s1 + $0x7e8] sm:$0xff]
  %v282 = vld [vmem:[%s1 + $0x7f0] sm:$0xff]
  %v283 = vld [vmem:[%s1 + $0x7f8] sm:$0xff]
  %v284 = vld [vmem:[%s1 + $0x800] sm:$0xff]
  %v285 = vld [vmem:[%s1 + $0x808] sm:$0xff]
  %v286 = vld [vmem:[%s1 + $0x810] sm:$0xff]
  %v287 = vld [vmem:[%s1 + $0x818] sm:$0xff]
  %v288 = vld [vmem:[%s1 + $0x820] sm:$0xff]
  %v289 = vld [vmem:[%s1 + $0x828] sm:$0xff]
  %v290 = vld [vmem:[%s1 + $0x830] sm:$0xff]
  %v291 = vld [vmem:[%s1 + $0x838] sm:$0xff]
  %v292 = vld [vmem:[%s1 + $0x840] sm:$0xff]
  %v293 = vld [vmem:[%s1 + $0x848] sm:$0xff]
  %v294 = vld [vmem:[%s1 + $0x850] sm:$0xff]
  %v295 = vld [vmem:[%s1 + $0x858] sm:$0xff]
  %v296 = vld [vmem:[%s1 + $0x860] sm:$0xff]
  %v297 = vld [vmem:[%s1 + $0x868] sm:$0xff]
  %v298 = vld [vmem:[%s1 + $0x870] sm:$0xff]
  %v299 = vld [vmem:[%s1 + $0x878] sm:$0xff]
  %v300 = vld [vmem:[%s1 + $0x880] sm:$0xff]
  %v301 = vld [vmem:[%s1 + $0x888] sm:$0xff]
  %v302 = vld [vmem:[%s1 + $0x890] sm:$0xff]
  %v303 = vld [vmem:[%s1 + $0x898] sm:$0xff]
  %v304 = vld [vmem:[%s1 + $0x8a0] sm:$0xff]
  %v305 = vld [vmem:[%s1 + $0x8a8] sm:$0xff]
  %v306 = vld [vmem:[%s1 + $0x8b0] sm:$0xff]
  %v307 = vld [vmem:[%s1 + $0x8b8] sm:$0xff]
  %v308 = vld [vmem:[%s1 + $0x8c0] sm:$0xff]
  %v309 = vld [vmem:[%s1 + $0x8c8] sm:$0xff]
  %v310 = vld [vmem:[%s1 + $0x8d0] sm:$0xff]
  %v311 = vld [vmem:[%s1 + $0x8d8] sm:$0xff]
  %v312 = vld [vmem:[%s1 + $0x8e0] sm:$0xff]
  %v313 = vld [vmem:[%s1 + $0x8e8] sm:$0xff]
  %v314 = vld [vmem:[%s1 + $0x8f0] sm:$0xff]
  %v315 = vld [vmem:[%s1 + $0x8f8] sm:$0xff]
  %v316 = vld [vmem:[%s1 + $0x900] sm:$0xff]
  %v317 = vld [vmem:[%s1 + $0x908] sm:$0xff]
  %v318 = vld [vmem:[%s1 + $0x910] sm:$0xff]
  %v319 = vld [vmem:[%s1 + $0x918] sm:$0xff]
  %v320 = vld [vmem:[%s1 + $0x920] sm:$0xff]
  %v321 = vld [vmem:[%s1 + $0x928] sm:$0xff]
  %v322 = vld [vmem:[%s1 + $0x930] sm:$0xff]
  %v323 = vld [vmem:[%s1 + $0x938] sm:$0xff]
  %v324 = vld [vmem:[%s1 + $0x940] sm:$0xff]
  %v325 = vld [vmem:[%s1 + $0x948] sm:$0xff]
  %v326 = vld [vmem:[%s1 + $0x950] sm:$0xff]
  %v327 = vld [vmem:[%s1 + $0x958] sm:$0xff]
  %v328 = vld [vmem:[%s1 + $0x960] sm:$0xff]
  %v329 = vld [vmem:[%s1 + $0x968] sm:$0xff]
  %v330 = vld [vmem:[%s1 + $0x970] sm:$0xff]
  %v331 = vld [vmem:[%s1 + $0x978] sm:$0xff]
  %v332 = vld [vmem:[%s1 + $0x980] sm:$0xff]
  %v333 = vld [vmem:[%s1 + $0x988] sm:$0xff]
  %v334 = vld [vmem:[%s1 + $0x990] sm:$0xff]
  %v335 = vld [vmem:[%s1 + $0x998] sm:$0xff]
  %v336 = vld [vmem:[%s1 + $0x9a0] sm:$0xff]
  %v337 = vld [vmem:[%s1 + $0x9a8] sm:$0xff]
  %v338 = vld [vmem:[%s1 + $0x9b0] sm:$0xff]
  %v339 = vld [vmem:[%s1 + $0x9b8] sm:$0xff]
  %v340 = vld [vmem:[%s1 + $0x9c0] sm:$0xff]
  %v341 = vld [vmem:[%s1 + $0x9c8] sm:$0xff]
  %v342 = vld [vmem:[%s1 + $0x9d0] sm:$0xff]
  %v343 = vld [vmem:[%s1 + $0x9d8] sm:$0xff]
  %v344 = vld [vmem:[%s1 + $0x9e0] sm:$0xff]
  %v345 = vld [vmem:[%s1 + $0x9e8] sm:$0xff]
  %v346 = vld [vmem:[%s1 + $0x9f0] sm:$0xff]
  %v347 = vld [vmem:[%s1 + $0x9f8] sm:$0xff]
  %v348 = vld [vmem:[%s1 + $0xa00] sm:$0xff]
  %v349 = vld [vmem:[%s1 + $0xa08] sm:$0xff]
  %v350 = vld [vmem:[%s1 + $0xa10] sm:$0xff]
  %v351 = vld [vmem:[%s1 + $0xa18] sm:$0xff]
  %v352 = vld [vmem:[%s1 + $0xa20] sm:$0xff]
  %v353 = vld [vmem:[%s1 + $0xa28] sm:$0xff]
  %v354 = vld [vmem:[%s1 + $0xa30] sm:$0xff]
  %v355 = vld [vmem:[%s1 + $0xa38] sm:$0xff]
  %v356 = vld [vmem:[%s1 + $0xa40] sm:$0xff]
  %v357 = vld [vmem:[%s1 + $0xa48] sm:$0xff]
  %v358 = vld [vmem:[%s1 + $0xa50] sm:$0xff]
  %v359 = vld [vmem:[%s1 + $0xa58] sm:$0xff]
  %v360 = vld [vmem:[%s1 + $0xa60] sm:$0xff]
  %v361 = vld [vmem:[%s1 + $0xa68] sm:$0xff]
  %v362 = vld [vmem:[%s1 + $0xa70] sm:$0xff]
  %v363 = vld [vmem:[%s1 + $0xa78] sm:$0xff]
  %v364 = vld [vmem:[%s1 + $0xa80] sm:$0xff]
  %v365 = vld [vmem:[%s1 + $0xa88] sm:$0xff]
  %v366 = vld [vmem:[%s1 + $0xa90] sm:$0xff]
  %v367 = vld [vmem:[%s1 + $0xa98] sm:$0xff]
  %v368 = vld [vmem:[%s1 + $0xaa0] sm:$0xff]
  %v369 = vld [vmem:[%s1 + $0xaa8] sm:$0xff]
  %v370 = vld [vmem:[%s1 + $0xab0] sm:$0xff]
  %v371 = vld [vmem:[%s1 + $0xab8] sm:$0xff]
  %v372 = vld [vmem:[%s1 + $0xac0] sm:$0xff]
  %v373 = vld [vmem:[%s1 + $0xac8] sm:$0xff]
  %v374 = vld [vmem:[%s1 + $0xad0] sm:$0xff]
  %v375 = vld [vmem:[%s1 + $0xad8] sm:$0xff]
  %v376 = vld [vmem:[%s1 + $0xae0] sm:$0xff]
  %v377 = vld [vmem:[%s1 + $0xae8] sm:$0xff]
  %v378 = vld [vmem:[%s1 + $0xaf0] sm:$0xff]
  %v379 = vld [vmem:[%s1 + $0xaf8] sm:$0xff]
  %v380 = vld [vmem:[%s1 + $0xb00] sm:$0xff]
  %v381 = vld [vmem:[%s1 + $0xb08] sm:$0xff]
  %v382 = vld [vmem:[%s1 + $0xb10] sm:$0xff]
  %v383 = vld [vmem:[%s1 + $0xb18] sm:$0xff]
  %v384 = vld [vmem:[%s1 + $0xb20] sm:$0xff]
  %v385 = vld [vmem:[%s1 + $0xb28] sm:$0xff]
  %v386 = vld [vmem:[%s1 + $0xb30] sm:$0xff]
  %v387 = vld [vmem:[%s1 + $0xb38] sm:$0xff]
  %v388 = vld [vmem:[%s1 + $0xb40] sm:$0xff]
  %v389 = vld [vmem:[%s1 + $0xb48] sm:$0xff]
  %v390 = vld [vmem:[%s1 + $0xb50] sm:$0xff]
  %v391 = vld [vmem:[%s1 + $0xb58] sm:$0xff]
  %v392 = vld [vmem:[%s1 + $0xb60] sm:$0xff]
  %v393 = vld [vmem:[%s1 + $0xb68] sm:$0xff]
  %v394 = vld [vmem:[%s1 + $0xb70] sm:$0xff]
  %v395 = vld [vmem:[%s1 + $0xb78] sm:$0xff]
  %v396 = vld [vmem:[%s1 + $0xb80] sm:$0xff]
  %v397 = vld [vmem:[%s1 + $0xb88] sm:$0xff]
  %v398 = vld [vmem:[%s1 + $0xb90] sm:$0xff]
  %v399 = vld [vmem:[%s1 + $0xb98] sm:$0xff]
  %v400 = vld [vmem:[%s1 + $0xba0] sm:$0xff]
  %v401 = vld [vmem:[%s1 + $0xba8] sm:$0xff]
  %v402 = vld [vmem:[%s1 + $0xbb0] sm:$0xff]
  %v403 = vld [vmem:[%s1 + $0xbb8] sm:$0xff]
  %v404 = vld [vmem:[%s1 + $0xbc0] sm:$0xff]
  %v405 = vld [vmem:[%s1 + $0xbc8] sm:$0xff]
  %v406 = vld [vmem:[%s1 + $0xbd0] sm:$0xff]
  %v407 = vld [vmem:[%s1 + $0xbd8] sm:$0xff]
  %v408 = vld [vmem:[%s1 + $0xbe0] sm:$0xff]
  %v409 = vld [vmem:[%s1 + $0xbe8] sm:$0xff]
  %v410 = vld [vmem:[%s1 + $0xbf0] sm:$0xff]
  %v411 = vld [vmem:[%s1 + $0xbf8] sm:$0xff]
  %v412 = vld [vmem:[%s1 + $0xc00] sm:$0xff]
  %v413 = vld [vmem:[%s1 + $0xc08] sm:$0xff]
  %v414 = vld [vmem:[%s1 + $0xc10] sm:$0xff]
  %v415 = vld [vmem:[%s1 + $0xc18] sm:$0xff]
  %v416 = vld [vmem:[%s1 + $0xc20] sm:$0xff]
  %v417 = vld [vmem:[%s1 + $0xc28] sm:$0xff]
  %v418 = vld [vmem:[%s1 + $0xc30] sm:$0xff]
  %v419 = vld [vmem:[%s1 + $0xc38] sm:$0xff]
  %v420 = vld [vmem:[%s1 + $0xc40] sm:$0xff]
  %v421 = vld [vmem:[%s1 + $0xc48] sm:$0xff]
  %v422 = vld [vmem:[%s1 + $0xc50] sm:$0xff]
  %v423 = vld [vmem:[%s1 + $0xc58] sm:$0xff]
  %v424 = vld [vmem:[%s1 + $0xc60] sm:$0xff]
  %v425 = vld [vmem:[%s1 + $0xc68] sm:$0xff]
  %v426 = vld [vmem:[%s1 + $0xc70] sm:$0xff]
  %v427 = vld [vmem:[%s1 + $0xc78] sm:$0xff]
  %v428 = vld [vmem:[%s1 + $0xc80] sm:$0xff]
  %v429 = vld [vmem:[%s1 + $0xc88] sm:$0xff]
  %v430 = vld [vmem:[%s1 + $0xc90] sm:$0xff]
  %v431 = vld [vmem:[%s1 + $0xc98] sm:$0xff]
  %v432 = vld [vmem:[%s1 + $0xca0] sm:$0xff]
  %v433 = vld [vmem:[%s1 + $0xca8] sm:$0xff]
  %v434 = vld [vmem:[%s1 + $0xcb0] sm:$0xff]
  %v435 = vld [vmem:[%s1 + $0xcb8] sm:$0xff]
  %v436 = vld [vmem:[%s1 + $0xcc0] sm:$0xff]
  %v437 = vld [vmem:[%s1 + $0xcc8] sm:$0xff]
  %v438 = vld [vmem:[%s1 + $0xcd0] sm:$0xff]
  %v439 = vld [vmem:[%s1 + $0xcd8] sm:$0xff]
  %v440 = vld [vmem:[%s1 + $0xce0] sm:$0xff]
  %v441 = vld [vmem:[%s1 + $0xce8] sm:$0xff]
  %v442 = vld [vmem:[%s1 + $0xcf0] sm:$0xff]
  %v443 = vld [vmem:[%s1 + $0xcf8] sm:$0xff]
  %v444 = vld [vmem:[%s1 + $0xd00] sm:$0xff]
  %v445 = vld [vmem:[%s1 + $0xd08] sm:$0xff]
  %v446 = vld [vmem:[%s1 + $0xd10] sm:$0xff]
  %v447 = vld [vmem:[%s1 + $0xd18] sm:$0xff]
  %v448 = vld [vmem:[%s1 + $0xd20] sm:$0xff]
  %v449 = vld [vmem:[%s1 + $0xd28] sm:$0xff]
  %v450 = vld [vmem:[%s1 + $0xd30] sm:$0xff]
  %v451 = vld [vmem:[%s1 + $0xd38] sm:$0xff]
  %v452 = vld [vmem:[%s1 + $0xd40] sm:$0xff]
  %v453 = vld [vmem:[%s1 + $0xd48] sm:$0xff]
  %v454 = vld [vmem:[%s1 + $0xd50] sm:$0xff]
  %v455 = vld [vmem:[%s1 + $0xd58] sm:$0xff]
  %v456 = vld [vmem:[%s1 + $0xd60] sm:$0xff]
  %v457 = vld [vmem:[%s1 + $0xd68] sm:$0xff]
  %v458 = vld [vmem:[%s1 + $0xd70] sm:$0xff]
  %v459 = vld [vmem:[%s1 + $0xd78] sm:$0xff]
  %v460 = vld [vmem:[%s1 + $0xd80] sm:$0xff]
  %v461 = vld [vmem:[%s1 + $0xd88] sm:$0xff]
  %v462 = vld [vmem:[%s1 + $0xd90] sm:$0xff]
  %v463 = vld [vmem:[%s1 + $0xd98] sm:$0xff]
  %v464 = vld [vmem:[%s1 + $0xda0] sm:$0xff]
  %v465 = vld [vmem:[%s1 + $0xda8] sm:$0xff]
  %v466 = vld [vmem:[%s1 + $0xdb0] sm:$0xff]
  %v467 = vld [vmem:[%s1 + $0xdb8] sm:$0xff]
  %v468 = vld [vmem:[%s1 + $0xdc0] sm:$0xff]
  %v469 = vld [vmem:[%s1 + $0xdc8] sm:$0xff]
  %v470 = vld [vmem:[%s1 + $0xdd0] sm:$0xff]
  %v471 = vld [vmem:[%s1 + $0xdd8] sm:$0xff]
  %v472 = vld [vmem:[%s1 + $0xde0] sm:$0xff]
  %v473 = vld [vmem:[%s1 + $0xde8] sm:$0xff]
  %v474 = vld [vmem:[%s1 + $0xdf0] sm:$0xff]
  %v475 = vld [vmem:[%s1 + $0xdf8] sm:$0xff]
  %v476 = vld [vmem:[%s1 + $0xe00] sm:$0xff]
  %v477 = vld [vmem:[%s1 + $0xe08] sm:$0xff]
  %v478 = vld [vmem:[%s1 + $0xe10] sm:$0xff]
  %v479 = vld [vmem:[%s1 + $0xe18] sm:$0xff]
  %v480 = vld [vmem:[%s1 + $0xe20] sm:$0xff]
  %v481 = vld [vmem:[%s1 + $0xe28] sm:$0xff]
  %v482 = vld [vmem:[%s1 + $0xe30] sm:$0xff]
  %v483 = vld [vmem:[%s1 + $0xe38] sm:$0xff]
  %v484 = vld [vmem:[%s1 + $0xe40] sm:$0xff]
  %v485 = vld [vmem:[%s1 + $0xe48] sm:$0xff]
  %v486 = vld [vmem:[%s1 + $0xe50] sm:$0xff]
  %v487 = vld [vmem:[%s1 + $0xe58] sm:$0xff]
  %v488 = vld [vmem:[%s1 + $0xe60] sm:$0xff]
  %v489 = vld [vmem:[%s1 + $0xe68] sm:$0xff]
  %v490 = vld [vmem:[%s1 + $0xe70] sm:$0xff]
  %v491 = vld [vmem:[%s1 + $0xe78] sm:$0xff]
  %v492 = vld [vmem:[%s1 + $0xe80] sm:$0xff]
  %v493 = vld [vmem:[%s1 + $0xe88] sm:$0xff]
  %v494 = vld [vmem:[%s1 + $0xe90] sm:$0xff]
  %v495 = vld [vmem:[%s1 + $0xe98] sm:$0xff]
  %v496 = vld [vmem:[%s1 + $0xea0] sm:$0xff]
  %v497 = vld [vmem:[%s1 + $0xea8] sm:$0xff]
  %v498 = vld [vmem:[%s1 + $0xeb0] sm:$0xff]
  %v499 = vld [vmem:[%s1 + $0xeb8] sm:$0xff]
  %v500 = vld [vmem:[%s1 + $0xec0] sm:$0xff]
  %v501 = vld [vmem:[%s1 + $0xec8] sm:$0xff]
  %v502 = vld [vmem:[%s1 + $0xed0] sm:$0xff]
  %v503 = vld [vmem:[%s1 + $0xed8] sm:$0xff]
  %v504 = vld [vmem:[%s1 + $0xee0] sm:$0xff]
  %v505 = vld [vmem:[%s1 + $0xee8] sm:$0xff]
  %v506 = vld [vmem:[%s1 + $0xef0] sm:$0xff]
  %v507 = vld [vmem:[%s1 + $0xef8] sm:$0xff]
  %v508 = vld [vmem:[%s1 + $0xf00] sm:$0xff]
  %v509 = vld [vmem:[%s1 + $0xf08] sm:$0xff]
  %v510 = vld [vmem:[%s1 + $0xf10] sm:$0xff]
  %v511 = vld [vmem:[%s1 + $0xf18] sm:$0xff]
  %v512 = vld [vmem:[%s1 + $0xf20] sm:$0xff]
  %v513 = vld [vmem:[%s1 + $0xf28] sm:$0xff]
  %v514 = vld [vmem:[%s1 + $0xf30] sm:$0xff]
  %v515 = vld [vmem:[%s1 + $0xf38] sm:$0xff]
  %v516 = vld [vmem:[%s1 + $0xf40] sm:$0xff]
  %v517 = vld [vmem:[%s1 + $0xf48] sm:$0xff]
  %v518 = vld [vmem:[%s1 + $0xf50] sm:$0xff]
  %v519 = vld [vmem:[%s1 + $0xf58] sm:$0xff]
  %v520 = vld [vmem:[%s1 + $0xf60] sm:$0xff]
  %v521 = vld [vmem:[%s1 + $0xf68] sm:$0xff]
  %v522 = vld [vmem:[%s1 + $0xf70] sm:$0xff]
  %v523 = vld [vmem:[%s1 + $0xf78] sm:$0xff]
  %v524 = vld [vmem:[%s1 + $0xf80] sm:$0xff]
  %v525 = vld [vmem:[%s1 + $0xf88] sm:$0xff]
  %v526 = vld [vmem:[%s1 + $0xf90] sm:$0xff]
  %v527 = vld [vmem:[%s1 + $0xf98] sm:$0xff]
  %v528 = vld [vmem:[%s1 + $0xfa0] sm:$0xff]
  %v529 = vld [vmem:[%s1 + $0xfa8] sm:$0xff]
  %v530 = vld [vmem:[%s1 + $0xfb0] sm:$0xff]
  %v531 = vld [vmem:[%s1 + $0xfb8] sm:$0xff]
  %v532 = vld [vmem:[%s1 + $0xfc0] sm:$0xff]
  %v533 = vld [vmem:[%s1 + $0xfc8] sm:$0xff]
  %v534 = vld [vmem:[%s1 + $0xfd0] sm:$0xff]
  %v535 = vld [vmem:[%s1 + $0xfd8] sm:$0xff]
  %v536 = vld [vmem:[%s1 + $0xfe0] sm:$0xff]
  %v537 = vld [vmem:[%s1 + $0xfe8] sm:$0xff]
  %v538 = vld [vmem:[%s1 + $0xff0] sm:$0xff]
  %v539 = vld [vmem:[%s1 + $0xff8] sm:$0xff]
  %v540 = vld [vmem:[%s1 + $0x1000] sm:$0xff]
  %v541 = vld [vmem:[%s1 + $0x1008] sm:$0xff]
  %v542 = vld [vmem:[%s1 + $0x1010] sm:$0xff]
  %v543 = vld [vmem:[%s1 + $0x1018] sm:$0xff]
  %v544 = vld [vmem:[%s1 + $0x1020] sm:$0xff]
  %v545 = vld [vmem:[%s1 + $0x1028] sm:$0xff]
  %v546 = vld [vmem:[%s1 + $0x1030] sm:$0xff]
  %v547 = vld [vmem:[%s1 + $0x1038] sm:$0xff]
  %v548 = vld [vmem:[%s1 + $0x1040] sm:$0xff]
  %v549 = vld [vmem:[%s1 + $0x1048] sm:$0xff]
  %v550 = vld [vmem:[%s1 + $0x1050] sm:$0xff]
  %v551 = vld [vmem:[%s1 + $0x1058] sm:$0xff]
  %v552 = vld [vmem:[%s1 + $0x1060] sm:$0xff]
  %v553 = vld [vmem:[%s1 + $0x1068] sm:$0xff]
  %v554 = vld [vmem:[%s1 + $0x1070] sm:$0xff]
  %v555 = vld [vmem:[%s1 + $0x1078] sm:$0xff]
  %v556 = vld [vmem:[%s1 + $0x1080] sm:$0xff]
  %v557 = vld [vmem:[%s1 + $0x1088] sm:$0xff]
  %v558 = vld [vmem:[%s1 + $0x1090] sm:$0xff]
  %v559 = vld [vmem:[%s1 + $0x1098] sm:$0xff]
  %v560 = vld [vmem:[%s1 + $0x10a0] sm:$0xff]
  %v561 = vld [vmem:[%s1 + $0x10a8] sm:$0xff]
  %v562 = vld [vmem:[%s1 + $0x10b0] sm:$0xff]
  %v563 = vld [vmem:[%s1 + $0x10b8] sm:$0xff]
  %v564 = vld [vmem:[%s1 + $0x10c0] sm:$0xff]
  %v565 = vld [vmem:[%s1 + $0x10c8] sm:$0xff]
  %v566 = vld [vmem:[%s1 + $0x10d0] sm:$0xff]
  %v567 = vld [vmem:[%s1 + $0x10d8] sm:$0xff]
  %v568 = vld [vmem:[%s1 + $0x10e0] sm:$0xff]
  %v569 = vld [vmem:[%s1 + $0x10e8] sm:$0xff]
  %v570 = vld [vmem:[%s1 + $0x10f0] sm:$0xff]
  %v571 = vld [vmem:[%s1 + $0x10f8] sm:$0xff]
  %v572 = vld [vmem:[%s1 + $0x1100] sm:$0xff]
  %v573 = vld [vmem:[%s1 + $0x1108] sm:$0xff]
  %v574 = vld [vmem:[%s1 + $0x1110] sm:$0xff]
  %v575 = vld [vmem:[%s1 + $0x1118] sm:$0xff]
  %v576 = vld [vmem:[%s1 + $0x1120] sm:$0xff]
  %v577 = vld [vmem:[%s1 + $0x1128] sm:$0xff]
  %v578 = vld [vmem:[%s1 + $0x1130] sm:$0xff]
  %v579 = vld [vmem:[%s1 + $0x1138] sm:$0xff]
  %v580 = vld [vmem:[%s1 + $0x1140] sm:$0xff]
  %v581 = vld [vmem:[%s1 + $0x1148] sm:$0xff]
  %v582 = vld [vmem:[%s1 + $0x1150] sm:$0xff]
  %v583 = vld [vmem:[%s1 + $0x1158] sm:$0xff]
  %v584 = vld [vmem:[%s1 + $0x1160] sm:$0xff]
  %v585 = vld [vmem:[%s1 + $0x1168] sm:$0xff]
  %v586 = vld [vmem:[%s1 + $0x1170] sm:$0xff]
  %v587 = vld [vmem:[%s1 + $0x1178] sm:$0xff]
  %v588 = vld [vmem:[%s1 + $0x1180] sm:$0xff]
  %v589 = vld [vmem:[%s1 + $0x1188] sm:$0xff]
  %v590 = vld [vmem:[%s1 + $0x1190] sm:$0xff]
  %v591 = vld [vmem:[%s1 + $0x1198] sm:$0xff]
  %v592 = vld [vmem:[%s1 + $0x11a0] sm:$0xff]
  %v593 = vld [vmem:[%s1 + $0x11a8] sm:$0xff]
  %v594 = vld [vmem:[%s1 + $0x11b0] sm:$0xff]
  %v595 = vld [vmem:[%s1 + $0x11b8] sm:$0xff]
  %v596 = vld [vmem:[%s1 + $0x11c0] sm:$0xff]
  %v597 = vld [vmem:[%s1 + $0x11c8] sm:$0xff]
  %v598 = vld [vmem:[%s1 + $0x11d0] sm:$0xff]
  %v599 = vld [vmem:[%s1 + $0x11d8] sm:$0xff]
  %v600 = vld [vmem:[%s1 + $0x11e0] sm:$0xff]
  %v601 = vld [vmem:[%s1 + $0x11e8] sm:$0xff]
  %v602 = vld [vmem:[%s1 + $0x11f0] sm:$0xff]
  %v603 = vld [vmem:[%s1 + $0x11f8] sm:$0xff]
  %v604 = vld [vmem:[%s1 + $0x1200] sm:$0xff]
  %v605 = vld [vmem:[%s1 + $0x1208] sm:$0xff]
  %v606 = vld [vmem:[%s1 + $0x1210] sm:$0xff]
  %v607 = vld [vmem:[%s1 + $0x1218] sm:$0xff]
  %v608 = vld [vmem:[%s1 + $0x1220] sm:$0xff]
  %v609 = vld [vmem:[%s1 + $0x1228] sm:$0xff]
  %v610 = vld [vmem:[%s1 + $0x1230] sm:$0xff]
  %v611 = vld [vmem:[%s1 + $0x1238] sm:$0xff]
  %v612 = vld [vmem:[%s1 + $0x1240] sm:$0xff]
  %v613 = vld [vmem:[%s1 + $0x1248] sm:$0xff]
  %v614 = vld [vmem:[%s1 + $0x1250] sm:$0xff]
  %v615 = vld [vmem:[%s1 + $0x1258] sm:$0xff]
  %v616 = vld [vmem:[%s1 + $0x1260] sm:$0xff]
  %v617 = vld [vmem:[%s1 + $0x1268] sm:$0xff]
  %v618 = vld [vmem:[%s1 + $0x1270] sm:$0xff]
  %v619 = vld [vmem:[%s1 + $0x1278] sm:$0xff]
  %v620 = vld [vmem:[%s1 + $0x1280] sm:$0xff]
  %v621 = vld [vmem:[%s1 + $0x1288] sm:$0xff]
  %v622 = vld [vmem:[%s1 + $0x1290] sm:$0xff]
  %v623 = vld [vmem:[%s1 + $0x1298] sm:$0xff]
  %v624 = vld [vmem:[%s1 + $0x12a0] sm:$0xff]
  %v625 = vld [vmem:[%s1 + $0x12a8] sm:$0xff]
  %v626 = vld [vmem:[%s1 + $0x12b0] sm:$0xff]
  %v627 = vld [vmem:[%s1 + $0x12b8] sm:$0xff]
  %v628 = vld [vmem:[%s1 + $0x12c0] sm:$0xff]
  %v629 = vld [vmem:[%s1 + $0x12c8] sm:$0xff]
  %v630 = vld [vmem:[%s1 + $0x12d0] sm:$0xff]
  %v631 = vld [vmem:[%s1 + $0x12d8] sm:$0xff]
  %v632 = vld [vmem:[%s1 + $0x12e0] sm:$0xff]
  %v633 = vld [vmem:[%s1 + $0x12e8] sm:$0xff]
  %v634 = vld [vmem:[%s1 + $0x12f0] sm:$0xff]
  %v635 = vld [vmem:[%s1 + $0x12f8] sm:$0xff]
  %v636 = vld [vmem:[%s1 + $0x1300] sm:$0xff]
  %v637 = vld [vmem:[%s1 + $0x1308] sm:$0xff]
  %v638 = vld [vmem:[%s1 + $0x1310] sm:$0xff]
  %v639 = vld [vmem:[%s1 + $0x1318] sm:$0xff]
  %v640 = vld [vmem:[%s1 + $0x1320] sm:$0xff]
  %v641 = vld [vmem:[%s1 + $0x1328] sm:$0xff]
  %v642 = vld [vmem:[%s1 + $0x1330] sm:$0xff]
  %v643 = vld [vmem:[%s1 + $0x1338] sm:$0xff]
  %v644 = vld [vmem:[%s1 + $0x1340] sm:$0xff]
  %v645 = vld [vmem:[%s1 + $0x1348] sm:$0xff]
  %v646 = vld [vmem:[%s1 + $0x1350] sm:$0xff]
  %v647 = vld [vmem:[%s1 + $0x1358] sm:$0xff]
  %v648 = vld [vmem:[%s1 + $0x1360] sm:$0xff]
  %v649 = vld [vmem:[%s1 + $0x1368] sm:$0xff]
  %v650 = vld [vmem:[%s1 + $0x1370] sm:$0xff]
  %v651 = vld [vmem:[%s1 + $0x1378] sm:$0xff]
  %v652 = vld [vmem:[%s1 + $0x1380] sm:$0xff]
  %v653 = vld [vmem:[%s1 + $0x1388] sm:$0xff]
  %v654 = vld [vmem:[%s1 + $0x1390] sm:$0xff]
  %v655 = vld [vmem:[%s1 + $0x1398] sm:$0xff]
  %v656 = vld [vmem:[%s1 + $0x13a0] sm:$0xff]
  %v657 = vld [vmem:[%s1 + $0x13a8] sm:$0xff]
  %v658 = vld [vmem:[%s1 + $0x13b0] sm:$0xff]
  %v659 = vld [vmem:[%s1 + $0x13b8] sm:$0xff]
  %v660 = vld [vmem:[%s1 + $0x13c0] sm:$0xff]
  %v661 = vld [vmem:[%s1 + $0x13c8] sm:$0xff]
  %v662 = vld [vmem:[%s1 + $0x13d0] sm:$0xff]
  %v663 = vld [vmem:[%s1 + $0x13d8] sm:$0xff]
  %v664 = vld [vmem:[%s1 + $0x13e0] sm:$0xff]
  %v665 = vld [vmem:[%s1 + $0x13e8] sm:$0xff]
  %v666 = vld [vmem:[%s1 + $0x13f0] sm:$0xff]
  %v667 = vld [vmem:[%s1 + $0x13f8] sm:$0xff]
  %v668 = vld [vmem:[%s1 + $0x1400] sm:$0xff]
  %v669 = vld [vmem:[%s1 + $0x1408] sm:$0xff]
  %v670 = vld [vmem:[%s1 + $0x1410] sm:$0xff]
  %v671 = vld [vmem:[%s1 + $0x1418] sm:$0xff]
  %v672 = vld [vmem:[%s1 + $0x1420] sm:$0xff]
  %v673 = vld [vmem:[%s1 + $0x1428] sm:$0xff]
  %v674 = vld [vmem:[%s1 + $0x1430] sm:$0xff]
  %v675 = vld [vmem:[%s1 + $0x1438] sm:$0xff]
  %v676 = vld [vmem:[%s1 + $0x1440] sm:$0xff]
  %v677 = vld [vmem:[%s1 + $0x1448] sm:$0xff]
  %v678 = vld [vmem:[%s1 + $0x1450] sm:$0xff]
  %v679 = vld [vmem:[%s1 + $0x1458] sm:$0xff]
  %v680 = vld [vmem:[%s1 + $0x1460] sm:$0xff]
  %v681 = vld [vmem:[%s1 + $0x1468] sm:$0xff]
  %v682 = vld [vmem:[%s1 + $0x1470] sm:$0xff]
  %v683 = vld [vmem:[%s1 + $0x1478] sm:$0xff]
  %v684 = vld [vmem:[%s1 + $0x1480] sm:$0xff]
  %v685 = vld [vmem:[%s1 + $0x1488] sm:$0xff]
  %v686 = vld [vmem:[%s1 + $0x1490] sm:$0xff]
  %v687 = vld [vmem:[%s1 + $0x1498] sm:$0xff]
  %v688 = vld [vmem:[%s1 + $0x14a0] sm:$0xff]
  %v689 = vld [vmem:[%s1 + $0x14a8] sm:$0xff]
  %v690 = vld [vmem:[%s1 + $0x14b0] sm:$0xff]
  %v691 = vld [vmem:[%s1 + $0x14b8] sm:$0xff]
  %v692 = vld [vmem:[%s1 + $0x14c0] sm:$0xff]
  %v693 = vld [vmem:[%s1 + $0x14c8] sm:$0xff]
  %v694 = vld [vmem:[%s1 + $0x14d0] sm:$0xff]
  %v695 = vld [vmem:[%s1 + $0x14d8] sm:$0xff]
  %v696 = vld [vmem:[%s1 + $0x14e0] sm:$0xff]
  %v697 = vld [vmem:[%s1 + $0x14e8] sm:$0xff]
  %v698 = vld [vmem:[%s1 + $0x14f0] sm:$0xff]
  %v699 = vld [vmem:[%s1 + $0x14f8] sm:$0xff]
  %v700 = vld [vmem:[%s1 + $0x1500] sm:$0xff]
  %v701 = vld [vmem:[%s1 + $0x1508] sm:$0xff]
  %v702 = vld [vmem:[%s1 + $0x1510] sm:$0xff]
  %v703 = vld [vmem:[%s1 + $0x1518] sm:$0xff]
  %v704 = vld [vmem:[%s1 + $0x1520] sm:$0xff]
  %v705 = vld [vmem:[%s1 + $0x1528] sm:$0xff]
  %v706 = vld [vmem:[%s1 + $0x1530] sm:$0xff]
  %v707 = vld [vmem:[%s1 + $0x1538] sm:$0xff]
  %v708 = vld [vmem:[%s1 + $0x1540] sm:$0xff]
  %v709 = vld [vmem:[%s1 + $0x1548] sm:$0xff]
  %v710 = vld [vmem:[%s1 + $0x1550] sm:$0xff]
  %v711 = vld [vmem:[%s1 + $0x1558] sm:$0xff]
  %v712 = vld [vmem:[%s1 + $0x1560] sm:$0xff]
  %v713 = vld [vmem:[%s1 + $0x1568] sm:$0xff]
  %v714 = vld [vmem:[%s1 + $0x1570] sm:$0xff]
  %v715 = vld [vmem:[%s1 + $0x1578] sm:$0xff]
  %v716 = vld [vmem:[%s1 + $0x1580] sm:$0xff]
  %v717 = vld [vmem:[%s1 + $0x1588] sm:$0xff]
  %v718 = vld [vmem:[%s1 + $0x1590] sm:$0xff]
  %v719 = vld [vmem:[%s1 + $0x1598] sm:$0xff]
  %v720 = vld [vmem:[%s1 + $0x15a0] sm:$0xff]
  %v721 = vld [vmem:[%s1 + $0x15a8] sm:$0xff]
  %v722 = vld [vmem:[%s1 + $0x15b0] sm:$0xff]
  %v723 = vld [vmem:[%s1 + $0x15b8] sm:$0xff]
  %v724 = vld [vmem:[%s1 + $0x15c0] sm:$0xff]
  %v725 = vld [vmem:[%s1 + $0x15c8] sm:$0xff]
  %v726 = vld [vmem:[%s1 + $0x15d0] sm:$0xff]
  %v727 = vld [vmem:[%s1 + $0x15d8] sm:$0xff]
  %v728 = vld [vmem:[%s1 + $0x15e0] sm:$0xff]
  %v729 = vld [vmem:[%s1 + $0x15e8] sm:$0xff]
  %v730 = vld [vmem:[%s1 + $0x15f0] sm:$0xff]
  %v731 = vld [vmem:[%s1 + $0x15f8] sm:$0xff]
  %v732 = vld [vmem:[%s1 + $0x1600] sm:$0xff]
  %v733 = vld [vmem:[%s1 + $0x1608] sm:$0xff]
  %v734 = vld [vmem:[%s1 + $0x1610] sm:$0xff]
  %v735 = vld [vmem:[%s1 + $0x1618] sm:$0xff]
  %v736 = vld [vmem:[%s1 + $0x1620] sm:$0xff]
  %v737 = vld [vmem:[%s1 + $0x1628] sm:$0xff]
  %v738 = vld [vmem:[%s1 + $0x1630] sm:$0xff]
  %v739 = vld [vmem:[%s1 + $0x1638] sm:$0xff]
  %v740 = vld [vmem:[%s1 + $0x1640] sm:$0xff]
  %v741 = vld [vmem:[%s1 + $0x1648] sm:$0xff]
  %v742 = vld [vmem:[%s1 + $0x1650] sm:$0xff]
  %v743 = vld [vmem:[%s1 + $0x1658] sm:$0xff]
  %v744 = vld [vmem:[%s1 + $0x1660] sm:$0xff]
  %v745 = vld [vmem:[%s1 + $0x1668] sm:$0xff]
  %v746 = vld [vmem:[%s1 + $0x1670] sm:$0xff]
  %v747 = vld [vmem:[%s1 + $0x1678] sm:$0xff]
  %v748 = vld [vmem:[%s1 + $0x1680] sm:$0xff]
  %v749 = vld [vmem:[%s1 + $0x1688] sm:$0xff]
  %v750 = vld [vmem:[%s1 + $0x1690] sm:$0xff]
  %v751 = vld [vmem:[%s1 + $0x1698] sm:$0xff]
  %v752 = vld [vmem:[%s1 + $0x16a0] sm:$0xff]
  %v753 = vld [vmem:[%s1 + $0x16a8] sm:$0xff]
  %v754 = vld [vmem:[%s1 + $0x16b0] sm:$0xff]
  %v755 = vld [vmem:[%s1 + $0x16b8] sm:$0xff]
  %v756 = vld [vmem:[%s1 + $0x16c0] sm:$0xff]
  %v757 = vld [vmem:[%s1 + $0x16c8] sm:$0xff]
  %v758 = vld [vmem:[%s1 + $0x16d0] sm:$0xff]
  %v759 = vld [vmem:[%s1 + $0x16d8] sm:$0xff]
  %v760 = vld [vmem:[%s1 + $0x16e0] sm:$0xff]
  %v761 = vld [vmem:[%s1 + $0x16e8] sm:$0xff]
  %v762 = vld [vmem:[%s1 + $0x16f0] sm:$0xff]
  %v763 = vld [vmem:[%s1 + $0x16f8] sm:$0xff]
  %v764 = vld [vmem:[%s1 + $0x1700] sm:$0xff]
  %v765 = vld [vmem:[%s1 + $0x1708] sm:$0xff]
  %v766 = vld [vmem:[%s1 + $0x1710] sm:$0xff]
  %v767 = vld [vmem:[%s1 + $0x1718] sm:$0xff]
  %v768 = vld [vmem:[%s1 + $0x1720] sm:$0xff]
  %v769 = vld [vmem:[%s1 + $0x1728] sm:$0xff]
  %v770 = vld [vmem:[%s1 + $0x1730] sm:$0xff]
  %v771 = vld [vmem:[%s1 + $0x1738] sm:$0xff]
  %v772 = vld [vmem:[%s1 + $0x1740] sm:$0xff]
  %v773 = vld [vmem:[%s1 + $0x1748] sm:$0xff]
  %v774 = vld [vmem:[%s1 + $0x1750] sm:$0xff]
  %v775 = vld [vmem:[%s1 + $0x1758] sm:$0xff]
  %v776 = vld [vmem:[%s1 + $0x1760] sm:$0xff]
  %v777 = vld [vmem:[%s1 + $0x1768] sm:$0xff]
  %v778 = vld [vmem:[%s1 + $0x1770] sm:$0xff]
  %v779 = vld [vmem:[%s1 + $0x1778] sm:$0xff]
  %v780 = vld [vmem:[%s1 + $0x1780] sm:$0xff]
  %v781 = vld [vmem:[%s1 + $0x1788] sm:$0xff]
  %v782 = vld [vmem:[%s1 + $0x1790] sm:$0xff]
  %v783 = vld [vmem:[%s1 + $0x1798] sm:$0xff]
  %v784 = vld [vmem:[%s1 + $0x17a0] sm:$0xff]
  %v785 = vld [vmem:[%s1 + $0x17a8] sm:$0xff]
  %v786 = vld [vmem:[%s1 + $0x17b0] sm:$0xff]
  %v787 = vld [vmem:[%s1 + $0x17b8] sm:$0xff]
  %v788 = vld [vmem:[%s1 + $0x17c0] sm:$0xff]
  %v789 = vld [vmem:[%s1 + $0x17c8] sm:$0xff]
  %v790 = vld [vmem:[%s1 + $0x17d0] sm:$0xff]
  %v791 = vld [vmem:[%s1 + $0x17d8] sm:$0xff]
  %v792 = vld [vmem:[%s1 + $0x17e0] sm:$0xff]
  %v793 = vld [vmem:[%s1 + $0x17e8] sm:$0xff]
  %v794 = vld [vmem:[%s1 + $0x17f0] sm:$0xff]
  %v795 = vld [vmem:[%s1 + $0x17f8] sm:$0xff]
  %v796 = vld [vmem:[%s1 + $0x1800] sm:$0xff]
  %v797 = vld [vmem:[%s1 + $0x1808] sm:$0xff]
  %v798 = vld [vmem:[%s1 + $0x1810] sm:$0xff]
  %v799 = vld [vmem:[%s1 + $0x1818] sm:$0xff]
  %v800 = vld [vmem:[%s1 + $0x1820] sm:$0xff]
  %v801 = vld [vmem:[%s1 + $0x1828] sm:$0xff]
  %v802 = vld [vmem:[%s1 + $0x1830] sm:$0xff]
  %v803 = vld [vmem:[%s1 + $0x1838] sm:$0xff]
  %v804 = vld [vmem:[%s1 + $0x1840] sm:$0xff]
  %v805 = vld [vmem:[%s1 + $0x1848] sm:$0xff]
  %v806 = vld [vmem:[%s1 + $0x1850] sm:$0xff]
  %v807 = vld [vmem:[%s1 + $0x1858] sm:$0xff]
  %v808 = vld [vmem:[%s1 + $0x1860] sm:$0xff]
  %v809 = vld [vmem:[%s1 + $0x1868] sm:$0xff]
  %v810 = vld [vmem:[%s1 + $0x1870] sm:$0xff]
  %v811 = vld [vmem:[%s1 + $0x1878] sm:$0xff]
  %v812 = vld [vmem:[%s1 + $0x1880] sm:$0xff]
  %v813 = vld [vmem:[%s1 + $0x1888] sm:$0xff]
  %v814 = vld [vmem:[%s1 + $0x1890] sm:$0xff]
  %v815 = vld [vmem:[%s1 + $0x1898] sm:$0xff]
  %v816 = vld [vmem:[%s1 + $0x18a0] sm:$0xff]
  %v817 = vld [vmem:[%s1 + $0x18a8] sm:$0xff]
  %v818 = vld [vmem:[%s1 + $0x18b0] sm:$0xff]
  %v819 = vld [vmem:[%s1 + $0x18b8] sm:$0xff]
  %v820 = vld [vmem:[%s1 + $0x18c0] sm:$0xff]
  %v821 = vld [vmem:[%s1 + $0x18c8] sm:$0xff]
  %v822 = vld [vmem:[%s1 + $0x18d0] sm:$0xff]
  %v823 = vld [vmem:[%s1 + $0x18d8] sm:$0xff]
  %v824 = vld [vmem:[%s1 + $0x18e0] sm:$0xff]
  %v825 = vld [vmem:[%s1 + $0x18e8] sm:$0xff]
  %v826 = vld [vmem:[%s1 + $0x18f0] sm:$0xff]
  %v827 = vld [vmem:[%s1 + $0x18f8] sm:$0xff]
  %v828 = vld [vmem:[%s1 + $0x1900] sm:$0xff]
  %v829 = vld [vmem:[%s1 + $0x1908] sm:$0xff]
  %v830 = vld [vmem:[%s1 + $0x1910] sm:$0xff]
  %v831 = vld [vmem:[%s1 + $0x1918] sm:$0xff]
  %v832 = vld [vmem:[%s1 + $0x1920] sm:$0xff]
  %v833 = vld [vmem:[%s1 + $0x1928] sm:$0xff]
  %v834 = vld [vmem:[%s1 + $0x1930] sm:$0xff]
  %v835 = vld [vmem:[%s1 + $0x1938] sm:$0xff]
  %v836 = vld [vmem:[%s1 + $0x1940] sm:$0xff]
  %v837 = vld [vmem:[%s1 + $0x1948] sm:$0xff]
  %v838 = vld [vmem:[%s1 + $0x1950] sm:$0xff]
  %v839 = vld [vmem:[%s1 + $0x1958] sm:$0xff]
  %v840 = vld [vmem:[%s1 + $0x1960] sm:$0xff]
  %v841 = vld [vmem:[%s1 + $0x1968] sm:$0xff]
  %v842 = vld [vmem:[%s1 + $0x1970] sm:$0xff]
  %v843 = vld [vmem:[%s1 + $0x1978] sm:$0xff]
  %v844 = vld [vmem:[%s1 + $0x1980] sm:$0xff]
  %v845 = vld [vmem:[%s1 + $0x1988] sm:$0xff]
  %v846 = vld [vmem:[%s1 + $0x1990] sm:$0xff]
  %v847 = vld [vmem:[%s1 + $0x1998] sm:$0xff]
  %v848 = vld [vmem:[%s1 + $0x19a0] sm:$0xff]
  %v849 = vld [vmem:[%s1 + $0x19a8] sm:$0xff]
  %v850 = vld [vmem:[%s1 + $0x19b0] sm:$0xff]
  %v851 = vld [vmem:[%s1 + $0x19b8] sm:$0xff]
  %v852 = vld [vmem:[%s1 + $0x19c0] sm:$0xff]
  %v853 = vld [vmem:[%s1 + $0x19c8] sm:$0xff]
  %v854 = vld [vmem:[%s1 + $0x19d0] sm:$0xff]
  %v855 = vld [vmem:[%s1 + $0x19d8] sm:$0xff]
  %v856 = vld [vmem:[%s1 + $0x19e0] sm:$0xff]
  %v857 = vld [vmem:[%s1 + $0x19e8] sm:$0xff]
  %v858 = vld [vmem:[%s1 + $0x19f0] sm:$0xff]
  %v859 = vld [vmem:[%s1 + $0x19f8] sm:$0xff]
  %v860 = vld [vmem:[%s1 + $0x1a00] sm:$0xff]
  %v861 = vld [vmem:[%s1 + $0x1a08] sm:$0xff]
  %v862 = vld [vmem:[%s1 + $0x1a10] sm:$0xff]
  %v863 = vld [vmem:[%s1 + $0x1a18] sm:$0xff]
  %v864 = vld [vmem:[%s1 + $0x1a20] sm:$0xff]
  %v865 = vld [vmem:[%s1 + $0x1a28] sm:$0xff]
  %v866 = vld [vmem:[%s1 + $0x1a30] sm:$0xff]
  %v867 = vld [vmem:[%s1 + $0x1a38] sm:$0xff]
  %v868 = vld [vmem:[%s1 + $0x1a40] sm:$0xff]
  %v869 = vld [vmem:[%s1 + $0x1a48] sm:$0xff]
  %v870 = vld [vmem:[%s1 + $0x1a50] sm:$0xff]
  %v871 = vld [vmem:[%s1 + $0x1a58] sm:$0xff]
  %v872 = vld [vmem:[%s1 + $0x1a60] sm:$0xff]
  %v873 = vld [vmem:[%s1 + $0x1a68] sm:$0xff]
  %v874 = vld [vmem:[%s1 + $0x1a70] sm:$0xff]
  %v875 = vld [vmem:[%s1 + $0x1a78] sm:$0xff]
  %v876 = vld [vmem:[%s1 + $0x1a80] sm:$0xff]
  %v877 = vld [vmem:[%s1 + $0x1a88] sm:$0xff]
  %v878 = vld [vmem:[%s1 + $0x1a90] sm:$0xff]
  %v879 = vld [vmem:[%s1 + $0x1a98] sm:$0xff]
  %v880 = vld [vmem:[%s1 + $0x1aa0] sm:$0xff]
  %v881 = vld [vmem:[%s1 + $0x1aa8] sm:$0xff]
  %v882 = vld [vmem:[%s1 + $0x1ab0] sm:$0xff]
  %v883 = vld [vmem:[%s1 + $0x1ab8] sm:$0xff]
  %v884 = vld [vmem:[%s1 + $0x1ac0] sm:$0xff]
  %v885 = vld [vmem:[%s1 + $0x1ac8] sm:$0xff]
  %v886 = vld [vmem:[%s1 + $0x1ad0] sm:$0xff]
  %v887 = vld [vmem:[%s1 + $0x1ad8] sm:$0xff]
  %v888 = vld [vmem:[%s1 + $0x1ae0] sm:$0xff]
  %v889 = vld [vmem:[%s1 + $0x1ae8] sm:$0xff]
  %v890 = vld [vmem:[%s1 + $0x1af0] sm:$0xff]
  %v891 = vld [vmem:[%s1 + $0x1af8] sm:$0xff]
  %v892 = vld [vmem:[%s1 + $0x1b00] sm:$0xff]
  %v893 = vld [vmem:[%s1 + $0x1b08] sm:$0xff]
  %v894 = vld [vmem:[%s1 + $0x1b10] sm:$0xff]
  %v895 = vld [vmem:[%s1 + $0x1b18] sm:$0xff]
  %v896 = vld [vmem:[%s1 + $0x1b20] sm:$0xff]
  %v897 = vld [vmem:[%s1 + $0x1b28] sm:$0xff]
  %v898 = vld [vmem:[%s1 + $0x1b30] sm:$0xff]
  %v899 = vld [vmem:[%s1 + $0x1b38] sm:$0xff]
  %v900 = vld [vmem:[%s1 + $0x1b40] sm:$0xff]
  %v901 = vld [vmem:[%s1 + $0x1b48] sm:$0xff]
  %v902 = vld [vmem:[%s1 + $0x1b50] sm:$0xff]
  %v903 = vld [vmem:[%s1 + $0x1b58] sm:$0xff]
  %v904 = vld [vmem:[%s1 + $0x1b60] sm:$0xff]
  %v905 = vld [vmem:[%s1 + $0x1b68] sm:$0xff]
  %v906 = vld [vmem:[%s1 + $0x1b70] sm:$0xff]
  %v907 = vld [vmem:[%s1 + $0x1b78] sm:$0xff]
  %v908 = vld [vmem:[%s1 + $0x1b80] sm:$0xff]
  %v909 = vld [vmem:[%s1 + $0x1b88] sm:$0xff]
  %v910 = vld [vmem:[%s1 + $0x1b90] sm:$0xff]
  %v911 = vld [vmem:[%s1 + $0x1b98] sm:$0xff]
  %v912 = vld [vmem:[%s1 + $0x1ba0] sm:$0xff]
  %v913 = vld [vmem:[%s1 + $0x1ba8] sm:$0xff]
  %v914 = vld [vmem:[%s1 + $0x1bb0] sm:$0xff]
  %v915 = vld [vmem:[%s1 + $0x1bb8] sm:$0xff]
  %v916 = vld [vmem:[%s1 + $0x1bc0] sm:$0xff]
  %v917 = vld [vmem:[%s1 + $0x1bc8] sm:$0xff]
  %v918 = vld [vmem:[%s1 + $0x1bd0] sm:$0xff]
  %v919 = vld [vmem:[%s1 + $0x1bd8] sm:$0xff]
  %v920 = vld [vmem:[%s1 + $0x1be0] sm:$0xff]
  %v921 = vld [vmem:[%s1 + $0x1be8] sm:$0xff]
  %v922 = vld [vmem:[%s1 + $0x1bf0] sm:$0xff]
  %v923 = vld [vmem:[%s1 + $0x1bf8] sm:$0xff]
  %v924 = vld [vmem:[%s1 + $0x1c00] sm:$0xff]
  %v925 = vld [vmem:[%s1 + $0x1c08] sm:$0xff]
  %v926 = vld [vmem:[%s1 + $0x1c10] sm:$0xff]
  %v927 = vld [vmem:[%s1 + $0x1c18] sm:$0xff]
  %v928 = vld [vmem:[%s1 + $0x1c20] sm:$0xff]
  %v929 = vld [vmem:[%s1 + $0x1c28] sm:$0xff]
  %v930 = vld [vmem:[%s1 + $0x1c30] sm:$0xff]
  %v931 = vld [vmem:[%s1 + $0x1c38] sm:$0xff]
  %v932 = vld [vmem:[%s1 + $0x1c40] sm:$0xff]
  %v933 = vld [vmem:[%s1 + $0x1c48] sm:$0xff]
  %v934 = vld [vmem:[%s1 + $0x1c50] sm:$0xff]
  %v935 = vld [vmem:[%s1 + $0x1c58] sm:$0xff]
  %v936 = vld [vmem:[%s1 + $0x1c60] sm:$0xff]
  %v937 = vld [vmem:[%s1 + $0x1c68] sm:$0xff]
  %v938 = vld [vmem:[%s1 + $0x1c70] sm:$0xff]
  %v939 = vld [vmem:[%s1 + $0x1c78] sm:$0xff]
  %v940 = vld [vmem:[%s1 + $0x1c80] sm:$0xff]
  %v941 = vld [vmem:[%s1 + $0x1c88] sm:$0xff]
  %v942 = vld [vmem:[%s1 + $0x1c90] sm:$0xff]
  %v943 = vld [vmem:[%s1 + $0x1c98] sm:$0xff]
  %v944 = vld [vmem:[%s1 + $0x1ca0] sm:$0xff]
  %v945 = vld [vmem:[%s1 + $0x1ca8] sm:$0xff]
  %v946 = vld [vmem:[%s1 + $0x1cb0] sm:$0xff]
  %v947 = vld [vmem:[%s1 + $0x1cb8] sm:$0xff]
  %v948 = vld [vmem:[%s1 + $0x1cc0] sm:$0xff]
  %v949 = vld [vmem:[%s1 + $0x1cc8] sm:$0xff]
  %v950 = vld [vmem:[%s1 + $0x1cd0] sm:$0xff]
  %v951 = vld [vmem:[%s1 + $0x1cd8] sm:$0xff]
  %v952 = vld [vmem:[%s1 + $0x1ce0] sm:$0xff]
  %v953 = vld [vmem:[%s1 + $0x1ce8] sm:$0xff]
  %v954 = vld [vmem:[%s1 + $0x1cf0] sm:$0xff]
  %v955 = vld [vmem:[%s1 + $0x1cf8] sm:$0xff]
  %v956 = vld [vmem:[%s1 + $0x1d00] sm:$0xff]
  %v957 = vld [vmem:[%s1 + $0x1d08] sm:$0xff]
  %v958 = vld [vmem:[%s1 + $0x1d10] sm:$0xff]
  %v959 = vld [vmem:[%s1 + $0x1d18] sm:$0xff]
  %v960 = vld [vmem:[%s1 + $0x1d20] sm:$0xff]
  %v961 = vld [vmem:[%s1 + $0x1d28] sm:$0xff]
  %v962 = vld [vmem:[%s1 + $0x1d30] sm:$0xff]
  %v963 = vld [vmem:[%s1 + $0x1d38] sm:$0xff]
  %v964 = vld [vmem:[%s1 + $0x1d40] sm:$0xff]
  %v965 = vld [vmem:[%s1 + $0x1d48] sm:$0xff]
  %v966 = vld [vmem:[%s1 + $0x1d50] sm:$0xff]
  %v967 = vld [vmem:[%s1 + $0x1d58] sm:$0xff]
  %v968 = vld [vmem:[%s1 + $0x1d60] sm:$0xff]
  %v969 = vld [vmem:[%s1 + $0x1d68] sm:$0xff]
  %v970 = vld [vmem:[%s1 + $0x1d70] sm:$0xff]
  %v971 = vld [vmem:[%s1 + $0x1d78] sm:$0xff]
  %v972 = vld [vmem:[%s1 + $0x1d80] sm:$0xff]
  %v973 = vld [vmem:[%s1 + $0x1d88] sm:$0xff]
  %v974 = vld [vmem:[%s1 + $0x1d90] sm:$0xff]
  %v975 = vld [vmem:[%s1 + $0x1d98] sm:$0xff]
  %v976 = vld [vmem:[%s1 + $0x1da0] sm:$0xff]
  %v977 = vld [vmem:[%s1 + $0x1da8] sm:$0xff]
  %v978 = vld [vmem:[%s1 + $0x1db0] sm:$0xff]
  %v979 = vld [vmem:[%s1 + $0x1db8] sm:$0xff]
  %v980 = vld [vmem:[%s1 + $0x1dc0] sm:$0xff]
  %v981 = vld [vmem:[%s1 + $0x1dc8] sm:$0xff]
  %v982 = vld [vmem:[%s1 + $0x1dd0] sm:$0xff]
  %v983 = vld [vmem:[%s1 + $0x1dd8] sm:$0xff]
  %v984 = vld [vmem:[%s1 + $0x1de0] sm:$0xff]
  %v985 = vld [vmem:[%s1 + $0x1de8] sm:$0xff]
  %v986 = vld [vmem:[%s1 + $0x1df0] sm:$0xff]
  %v987 = vld [vmem:[%s1 + $0x1df8] sm:$0xff]
  %v988 = vld [vmem:[%s1 + $0x1e00] sm:$0xff]
  %v989 = vld [vmem:[%s1 + $0x1e08] sm:$0xff]
  %v990 = vld [vmem:[%s1 + $0x1e10] sm:$0xff]
  %v991 = vld [vmem:[%s1 + $0x1e18] sm:$0xff]
  %v992 = vld [vmem:[%s1 + $0x1e20] sm:$0xff]
  %v993 = vld [vmem:[%s1 + $0x1e28] sm:$0xff]
  %v994 = vld [vmem:[%s1 + $0x1e30] sm:$0xff]
  %v995 = vld [vmem:[%s1 + $0x1e38] sm:$0xff]
  %v996 = vld [vmem:[%s1 + $0x1e40] sm:$0xff]
  %v997 = vld [vmem:[%s1 + $0x1e48] sm:$0xff]
  %v998 = vld [vmem:[%s1 + $0x1e50] sm:$0xff]
  %v999 = vld [vmem:[%s1 + $0x1e58] sm:$0xff]
  %v1000 = vld [vmem:[%s1 + $0x1e60] sm:$0xff]
  %v1001 = vld [vmem:[%s1 + $0x1e68] sm:$0xff]
  %v1002 = vld [vmem:[%s1 + $0x1e70] sm:$0xff]
  %v1003 = vld [vmem:[%s1 + $0x1e78] sm:$0xff]
  %v1004 = vld [vmem:[%s1 + $0x1e80] sm:$0xff]
  %v1005 = vld [vmem:[%s1 + $0x1e88] sm:$0xff]
  %v1006 = vld [vmem:[%s1 + $0x1e90] sm:$0xff]
  %v1007 = vld [vmem:[%s1 + $0x1e98] sm:$0xff]
  %v1008 = vld [vmem:[%s1 + $0x1ea0] sm:$0xff]
  %v1009 = vld [vmem:[%s1 + $0x1ea8] sm:$0xff]
  %v1010 = vld [vmem:[%s1 + $0x1eb0] sm:$0xff]
  %v1011 = vld [vmem:[%s1 + $0x1eb8] sm:$0xff]
  %v1012 = vld [vmem:[%s1 + $0x1ec0] sm:$0xff]
  %v1013 = vld [vmem:[%s1 + $0x1ec8] sm:$0xff]
  %v1014 = vld [vmem:[%s1 + $0x1ed0] sm:$0xff]
  %v1015 = vld [vmem:[%s1 + $0x1ed8] sm:$0xff]
  %v1016 = vld [vmem:[%s1 + $0x1ee0] sm:$0xff]
  %v1017 = vld [vmem:[%s1 + $0x1ee8] sm:$0xff]
  %v1018 = vld [vmem:[%s1 + $0x1ef0] sm:$0xff]
  %v1019 = vld [vmem:[%s1 + $0x1ef8] sm:$0xff]
  %v1020 = vld [vmem:[%s1 + $0x1f00] sm:$0xff]
  %v1021 = vld [vmem:[%s1 + $0x1f08] sm:$0xff]
  %v1022 = vld [vmem:[%s1 + $0x1f10] sm:$0xff]
  %v1023 = vld [vmem:[%s1 + $0x1f18] sm:$0xff]
  %v1024 = vld [vmem:[%s1 + $0x1f20] sm:$0xff]
  %v1025 = vld [vmem:[%s1 + $0x1f28] sm:$0xff]
  %v1026 = vld [vmem:[%s1 + $0x1f30] sm:$0xff]
  %v1027 = vld [vmem:[%s1 + $0x1f38] sm:$0xff]
  %v1028 = vld [vmem:[%s1 + $0x1f40] sm:$0xff]
  %v1029 = vld [vmem:[%s1 + $0x1f48] sm:$0xff]
  %v1030 = vld [vmem:[%s1 + $0x1f50] sm:$0xff]
  %v1031 = vld [vmem:[%s1 + $0x1f58] sm:$0xff]
  %v1032 = vld [vmem:[%s1 + $0x1f60] sm:$0xff]
  %v1033 = vld [vmem:[%s1 + $0x1f68] sm:$0xff]
  %v1034 = vld [vmem:[%s1 + $0x1f70] sm:$0xff]
  %v1035 = vld [vmem:[%s1 + $0x1f78] sm:$0xff]
  %v1036 = vld [vmem:[%s1 + $0x1f80] sm:$0xff]
  %v1037 = vld [vmem:[%s1 + $0x1f88] sm:$0xff]
  %v1038 = vld [vmem:[%s1 + $0x1f90] sm:$0xff]
  %v1039 = vld [vmem:[%s1 + $0x1f98] sm:$0xff]
  %v1040 = vld [vmem:[%s1 + $0x1fa0] sm:$0xff]
  %v1041 = vld [vmem:[%s1 + $0x1fa8] sm:$0xff]
  %v1042 = vld [vmem:[%s1 + $0x1fb0] sm:$0xff]
  %v1043 = vld [vmem:[%s1 + $0x1fb8] sm:$0xff]
  %v1044 = vld [vmem:[%s1 + $0x1fc0] sm:$0xff]
  %v1045 = vld [vmem:[%s1 + $0x1fc8] sm:$0xff]
  %v1046 = vld [vmem:[%s1 + $0x1fd0] sm:$0xff]
  %v1047 = vld [vmem:[%s1 + $0x1fd8] sm:$0xff]
  %v1048 = vld [vmem:[%s1 + $0x1fe0] sm:$0xff]
  %v1049 = vld [vmem:[%s1 + $0x1fe8] sm:$0xff]
  %v1050 = vld [vmem:[%s1 + $0x1ff0] sm:$0xff]
  %v1051 = vld [vmem:[%s1 + $0x1ff8] sm:$0xff]
  %v1052 = vld [vmem:[%s2] sm:$0xff]
  %v1054 = vlaneseq
  %v1055 = vshrl.u32 %v1054, 7
  %v1056 = vsub.s32 0, %v1055
  %v1057 = vrot.slane %v1052, %v1056
  %v1058 = vlaneseq
  %v1059 = vshrl.u32 %v1058, 7
  %v1060 = vsub.s32 1, %v1059
  %v1061 = vrot.slane %v1052, %v1060
  %v1062 = vlaneseq
  %v1063 = vshrl.u32 %v1062, 7
  %v1064 = vsub.s32 2, %v1063
  %v1065 = vrot.slane %v1052, %v1064
  %v1066 = vlaneseq
  %v1067 = vshrl.u32 %v1066, 7
  %v1068 = vsub.s32 3, %v1067
  %v1069 = vrot.slane %v1052, %v1068
  %v1070 = vlaneseq
  %v1071 = vshrl.u32 %v1070, 7
  %v1072 = vsub.s32 4, %v1071
  %v1073 = vrot.slane %v1052, %v1072
  %v1074 = vlaneseq
  %v1075 = vshrl.u32 %v1074, 7
  %v1076 = vsub.s32 5, %v1075
  %v1077 = vrot.slane %v1052, %v1076
  %v1078 = vlaneseq
  %v1079 = vshrl.u32 %v1078, 7
  %v1080 = vsub.s32 6, %v1079
  %v1081 = vrot.slane %v1052, %v1080
  %v1082 = vlaneseq
  %v1083 = vshrl.u32 %v1082, 7
  %v1084 = vsub.s32 7, %v1083
  %v1085 = vrot.slane %v1052, %v1084
  %1094 = vmatprep.subr.mxu0 %v149
  %1095 = vmatpush1.msra.mxu0 %v148
  %1096 = vmatprep.subr.mxu0 %v141
  %1097 = vmatpush1.msra.mxu0 %v140
  %1098 = vmatprep.subr.mxu0 %v133
  %1099 = vmatpush1.msra.mxu0 %v132
  %1100 = vmatprep.subr.mxu0 %v125
  %1101 = vmatpush1.msra.mxu0 %v124
  %1102 = vmatprep.subr.mxu0 %v117
  %1103 = vmatpush1.msra.mxu0 %v116
  %1104 = vmatprep.subr.mxu0 %v109
  %1105 = vmatpush1.msra.mxu0 %v108
  %1106 = vmatprep.subr.mxu0 %v101
  %1107 = vmatpush1.msra.mxu0 %v100
  %1108 = vmatprep.subr.mxu0 %v93
  %1109 = vmatpush1.msra.mxu0 %v92
  %1110 = vmatprep.subr.mxu0 %v85
  %1111 = vmatpush1.msra.mxu0 %v84
  %1112 = vmatprep.subr.mxu0 %v77
  %1113 = vmatpush1.msra.mxu0 %v76
  %1114 = vmatprep.subr.mxu0 %v69
  %1115 = vmatpush1.msra.mxu0 %v68
  %1116 = vmatprep.subr.mxu0 %v61
  %1117 = vmatpush1.msra.mxu0 %v60
  %1118 = vmatprep.subr.mxu0 %v53
  %1119 = vmatpush1.msra.mxu0 %v52
  %1120 = vmatprep.subr.mxu0 %v45
  %1121 = vmatpush1.msra.mxu0 %v44
  %1122 = vmatprep.subr.mxu0 %v37
  %1123 = vmatpush1.msra.mxu0 %v36
  %1124 = vmatprep.subr.mxu0 %v29
  %1125 = vmatpush1.msra.mxu0 %v28
  %1126 = vmatprep.subr.mxu0 %v277
  %1127 = vmatpush2.msra.mxu0 %v276
  %1128 = vmatprep.subr.mxu0 %v269
  %1129 = vmatpush2.msra.mxu0 %v268
  %1130 = vmatprep.subr.mxu0 %v261
  %1131 = vmatpush2.msra.mxu0 %v260
  %1132 = vmatprep.subr.mxu0 %v253
  %1133 = vmatpush2.msra.mxu0 %v252
  %1134 = vmatprep.subr.mxu0 %v245
  %1135 = vmatpush2.msra.mxu0 %v244
  %1136 = vmatprep.subr.mxu0 %v237
  %1137 = vmatpush2.msra.mxu0 %v236
  %1138 = vmatprep.subr.mxu0 %v229
  %1139 = vmatpush2.msra.mxu0 %v228
  %1140 = vmatprep.subr.mxu0 %v221
  %1141 = vmatpush2.msra.mxu0 %v220
  %1142 = vmatprep.subr.mxu0 %v213
  %1143 = vmatpush2.msra.mxu0 %v212
  %1144 = vmatprep.subr.mxu0 %v205
  %1145 = vmatpush2.msra.mxu0 %v204
  %1146 = vmatprep.subr.mxu0 %v197
  %1147 = vmatpush2.msra.mxu0 %v196
  %1148 = vmatprep.subr.mxu0 %v189
  %1149 = vmatpush2.msra.mxu0 %v188
  %1150 = vmatprep.subr.mxu0 %v181
  %1151 = vmatpush2.msra.mxu0 %v180
  %1152 = vmatprep.subr.mxu0 %v173
  %1153 = vmatpush2.msra.mxu0 %v172
  %1154 = vmatprep.subr.mxu0 %v165
  %1155 = vmatpush2.msra.mxu0 %v164
  %1156 = vmatprep.subr.mxu0 %v157
  %1157 = vmatpush2.msra.mxu0 %v156
  %1158 = vmatprep.mubr.f32.mxu0 %v21
  %1159 = vmatmul.mubr.f32.gmra.mxu0 %v20
  %v1160 = vpop.f32.mrf.mxu0
  %v1161 = vadd.f32 %v1057, %v1160
  %v1162 = vpop.f32.mrf.mxu0
  %v1163 = vadd.f32 %v1061, %v1162
  %1164 = vdwg.mxu0
  %1165 = vmatprep.subr.mxu0 %v405
  %1166 = vmatpush1.msra.mxu0 %v404
  %1167 = vmatprep.subr.mxu0 %v397
  %1168 = vmatpush1.msra.mxu0 %v396
  %1169 = vmatprep.subr.mxu0 %v389
  %1170 = vmatpush1.msra.mxu0 %v388
  %1171 = vmatprep.subr.mxu0 %v381
  %1172 = vmatpush1.msra.mxu0 %v380
  %1173 = vmatprep.subr.mxu0 %v373
  %1174 = vmatpush1.msra.mxu0 %v372
  %1175 = vmatprep.subr.mxu0 %v365
  %1176 = vmatpush1.msra.mxu0 %v364
  %1177 = vmatprep.subr.mxu0 %v357
  %1178 = vmatpush1.msra.mxu0 %v356
  %1179 = vmatprep.subr.mxu0 %v349
  %1180 = vmatpush1.msra.mxu0 %v348
  %1181 = vmatprep.subr.mxu0 %v341
  %1182 = vmatpush1.msra.mxu0 %v340
  %1183 = vmatprep.subr.mxu0 %v333
  %1184 = vmatpush1.msra.mxu0 %v332
  %1185 = vmatprep.subr.mxu0 %v325
  %1186 = vmatpush1.msra.mxu0 %v324
  %1187 = vmatprep.subr.mxu0 %v317
  %1188 = vmatpush1.msra.mxu0 %v316
  %1189 = vmatprep.subr.mxu0 %v309
  %1190 = vmatpush1.msra.mxu0 %v308
  %1191 = vmatprep.subr.mxu0 %v301
  %1192 = vmatpush1.msra.mxu0 %v300
  %1193 = vmatprep.subr.mxu0 %v293
  %1194 = vmatpush1.msra.mxu0 %v292
  %1195 = vmatprep.subr.mxu0 %v285
  %1196 = vmatpush1.msra.mxu0 %v284
  %1197 = vmatprep.subr.mxu0 %v533
  %1198 = vmatpush2.msra.mxu0 %v532
  %1199 = vmatprep.subr.mxu0 %v525
  %1200 = vmatpush2.msra.mxu0 %v524
  %1201 = vmatprep.subr.mxu0 %v517
  %1202 = vmatpush2.msra.mxu0 %v516
  %1203 = vmatprep.subr.mxu0 %v509
  %1204 = vmatpush2.msra.mxu0 %v508
  %1205 = vmatprep.subr.mxu0 %v501
  %1206 = vmatpush2.msra.mxu0 %v500
  %1207 = vmatprep.subr.mxu0 %v493
  %1208 = vmatpush2.msra.mxu0 %v492
  %1209 = vmatprep.subr.mxu0 %v485
  %1210 = vmatpush2.msra.mxu0 %v484
  %1211 = vmatprep.subr.mxu0 %v477
  %1212 = vmatpush2.msra.mxu0 %v476
  %1213 = vmatprep.subr.mxu0 %v469
  %1214 = vmatpush2.msra.mxu0 %v468
  %1215 = vmatprep.subr.mxu0 %v461
  %1216 = vmatpush2.msra.mxu0 %v460
  %1217 = vmatprep.subr.mxu0 %v453
  %1218 = vmatpush2.msra.mxu0 %v452
  %1219 = vmatprep.subr.mxu0 %v445
  %1220 = vmatpush2.msra.mxu0 %v444
  %1221 = vmatprep.subr.mxu0 %v437
  %1222 = vmatpush2.msra.mxu0 %v436
  %1223 = vmatprep.subr.mxu0 %v429
  %1224 = vmatpush2.msra.mxu0 %v428
  %1225 = vmatprep.subr.mxu0 %v421
  %1226 = vmatpush2.msra.mxu0 %v420
  %1227 = vmatprep.subr.mxu0 %v413
  %1228 = vmatpush2.msra.mxu0 %v412
  %1229 = vmatprep.mubr.f32.mxu0 %v23
  %1230 = vmatmul.mubr.f32.gmra.mxu0 %v22
  %v1231 = vpop.f32.mrf.mxu0
  %v1232 = vadd.f32 %v1161, %v1231
  %v1233 = vpop.f32.mrf.mxu0
  %v1234 = vadd.f32 %v1163, %v1233
  %1235 = vdwg.mxu0
  %1236 = vmatprep.subr.mxu0 %v661
  %1237 = vmatpush1.msra.mxu0 %v660
  %1238 = vmatprep.subr.mxu0 %v653
  %1239 = vmatpush1.msra.mxu0 %v652
  %1240 = vmatprep.subr.mxu0 %v645
  %1241 = vmatpush1.msra.mxu0 %v644
  %1242 = vmatprep.subr.mxu0 %v637
  %1243 = vmatpush1.msra.mxu0 %v636
  %1244 = vmatprep.subr.mxu0 %v629
  %1245 = vmatpush1.msra.mxu0 %v628
  %1246 = vmatprep.subr.mxu0 %v621
  %1247 = vmatpush1.msra.mxu0 %v620
  %1248 = vmatprep.subr.mxu0 %v613
  %1249 = vmatpush1.msra.mxu0 %v612
  %1250 = vmatprep.subr.mxu0 %v605
  %1251 = vmatpush1.msra.mxu0 %v604
  %1252 = vmatprep.subr.mxu0 %v597
  %1253 = vmatpush1.msra.mxu0 %v596
  %1254 = vmatprep.subr.mxu0 %v589
  %1255 = vmatpush1.msra.mxu0 %v588
  %1256 = vmatprep.subr.mxu0 %v581
  %1257 = vmatpush1.msra.mxu0 %v580
  %1258 = vmatprep.subr.mxu0 %v573
  %1259 = vmatpush1.msra.mxu0 %v572
  %1260 = vmatprep.subr.mxu0 %v565
  %1261 = vmatpush1.msra.mxu0 %v564
  %1262 = vmatprep.subr.mxu0 %v557
  %1263 = vmatpush1.msra.mxu0 %v556
  %1264 = vmatprep.subr.mxu0 %v549
  %1265 = vmatpush1.msra.mxu0 %v548
  %1266 = vmatprep.subr.mxu0 %v541
  %1267 = vmatpush1.msra.mxu0 %v540
  %1268 = vmatprep.subr.mxu0 %v789
  %1269 = vmatpush2.msra.mxu0 %v788
  %1270 = vmatprep.subr.mxu0 %v781
  %1271 = vmatpush2.msra.mxu0 %v780
  %1272 = vmatprep.subr.mxu0 %v773
  %1273 = vmatpush2.msra.mxu0 %v772
  %1274 = vmatprep.subr.mxu0 %v765
  %1275 = vmatpush2.msra.mxu0 %v764
  %1276 = vmatprep.subr.mxu0 %v757
  %1277 = vmatpush2.msra.mxu0 %v756
  %1278 = vmatprep.subr.mxu0 %v749
  %1279 = vmatpush2.msra.mxu0 %v748
  %1280 = vmatprep.subr.mxu0 %v741
  %1281 = vmatpush2.msra.mxu0 %v740
  %1282 = vmatprep.subr.mxu0 %v733
  %1283 = vmatpush2.msra.mxu0 %v732
  %1284 = vmatprep.subr.mxu0 %v725
  %1285 = vmatpush2.msra.mxu0 %v724
  %1286 = vmatprep.subr.mxu0 %v717
  %1287 = vmatpush2.msra.mxu0 %v716
  %1288 = vmatprep.subr.mxu0 %v709
  %1289 = vmatpush2.msra.mxu0 %v708
  %1290 = vmatprep.subr.mxu0 %v701
  %1291 = vmatpush2.msra.mxu0 %v700
  %1292 = vmatprep.subr.mxu0 %v693
  %1293 = vmatpush2.msra.mxu0 %v692
  %1294 = vmatprep.subr.mxu0 %v685
  %1295 = vmatpush2.msra.mxu0 %v684
  %1296 = vmatprep.subr.mxu0 %v677
  %1297 = vmatpush2.msra.mxu0 %v676
  %1298 = vmatprep.subr.mxu0 %v669
  %1299 = vmatpush2.msra.mxu0 %v668
  %1300 = vmatprep.mubr.f32.mxu0 %v25
  %1301 = vmatmul.mubr.f32.gmra.mxu0 %v24
  %v1302 = vpop.f32.mrf.mxu0
  %v1303 = vadd.f32 %v1232, %v1302
  %v1304 = vpop.f32.mrf.mxu0
  %v1305 = vadd.f32 %v1234, %v1304
  %1306 = vdwg.mxu0
  %1307 = vmatprep.subr.mxu0 %v917
  %1308 = vmatpush1.msra.mxu0 %v916
  %1309 = vmatprep.subr.mxu0 %v909
  %1310 = vmatpush1.msra.mxu0 %v908
  %1311 = vmatprep.subr.mxu0 %v901
  %1312 = vmatpush1.msra.mxu0 %v900
  %1313 = vmatprep.subr.mxu0 %v893
  %1314 = vmatpush1.msra.mxu0 %v892
  %1315 = vmatprep.subr.mxu0 %v885
  %1316 = vmatpush1.msra.mxu0 %v884
  %1317 = vmatprep.subr.mxu0 %v877
  %1318 = vmatpush1.msra.mxu0 %v876
  %1319 = vmatprep.subr.mxu0 %v869
  %1320 = vmatpush1.msra.mxu0 %v868
  %1321 = vmatprep.subr.mxu0 %v861
  %1322 = vmatpush1.msra.mxu0 %v860
  %1323 = vmatprep.subr.mxu0 %v853
  %1324 = vmatpush1.msra.mxu0 %v852
  %1325 = vmatprep.subr.mxu0 %v845
  %1326 = vmatpush1.msra.mxu0 %v844
  %1327 = vmatprep.subr.mxu0 %v837
  %1328 = vmatpush1.msra.mxu0 %v836
  %1329 = vmatprep.subr.mxu0 %v829
  %1330 = vmatpush1.msra.mxu0 %v828
  %1331 = vmatprep.subr.mxu0 %v821
  %1332 = vmatpush1.msra.mxu0 %v820
  %1333 = vmatprep.subr.mxu0 %v813
  %1334 = vmatpush1.msra.mxu0 %v812
  %1335 = vmatprep.subr.mxu0 %v805
  %1336 = vmatpush1.msra.mxu0 %v804
  %1337 = vmatprep.subr.mxu0 %v797
  %1338 = vmatpush1.msra.mxu0 %v796
  %1339 = vmatprep.subr.mxu0 %v1045
  %1340 = vmatpush2.msra.mxu0 %v1044
  %1341 = vmatprep.subr.mxu0 %v1037
  %1342 = vmatpush2.msra.mxu0 %v1036
  %1343 = vmatprep.subr.mxu0 %v1029
  %1344 = vmatpush2.msra.mxu0 %v1028
  %1345 = vmatprep.subr.mxu0 %v1021
  %1346 = vmatpush2.msra.mxu0 %v1020
  %1347 = vmatprep.subr.mxu0 %v1013
  %1348 = vmatpush2.msra.mxu0 %v1012
  %1349 = vmatprep.subr.mxu0 %v1005
  %1350 = vmatpush2.msra.mxu0 %v1004
  %1351 = vmatprep.subr.mxu0 %v997
  %1352 = vmatpush2.msra.mxu0 %v996
  %1353 = vmatprep.subr.mxu0 %v989
  %1354 = vmatpush2.msra.mxu0 %v988
  %1355 = vmatprep.subr.mxu0 %v981
  %1356 = vmatpush2.msra.mxu0 %v980
  %1357 = vmatprep.subr.mxu0 %v973
  %1358 = vmatpush2.msra.mxu0 %v972
  %1359 = vmatprep.subr.mxu0 %v965
  %1360 = vmatpush2.msra.mxu0 %v964
  %1361 = vmatprep.subr.mxu0 %v957
  %1362 = vmatpush2.msra.mxu0 %v956
  %1363 = vmatprep.subr.mxu0 %v949
  %1364 = vmatpush2.msra.mxu0 %v948
  %1365 = vmatprep.subr.mxu0 %v941
  %1366 = vmatpush2.msra.mxu0 %v940
  %1367 = vmatprep.subr.mxu0 %v933
  %1368 = vmatpush2.msra.mxu0 %v932
  %1369 = vmatprep.subr.mxu0 %v925
  %1370 = vmatpush2.msra.mxu0 %v924
  %1371 = vmatprep.mubr.f32.mxu0 %v27
  %1372 = vmatmul.mubr.f32.gmra.mxu0 %v26
  %v1373 = vpop.f32.mrf.mxu0
  %v1374 = vadd.f32 %v1303, %v1373
  %v1375 = vpop.f32.mrf.mxu0
  %v1376 = vadd.f32 %v1305, %v1375
  %1377 = vdwg.mxu0
  %1378 = vmatprep.subr.mxu0 %v151
  %1379 = vmatpush1.msra.mxu0 %v150
  %1380 = vmatprep.subr.mxu0 %v143
  %1381 = vmatpush1.msra.mxu0 %v142
  %1382 = vmatprep.subr.mxu0 %v135
  %1383 = vmatpush1.msra.mxu0 %v134
  %1384 = vmatprep.subr.mxu0 %v127
  %1385 = vmatpush1.msra.mxu0 %v126
  %1386 = vmatprep.subr.mxu0 %v119
  %1387 = vmatpush1.msra.mxu0 %v118
  %1388 = vmatprep.subr.mxu0 %v111
  %1389 = vmatpush1.msra.mxu0 %v110
  %1390 = vmatprep.subr.mxu0 %v103
  %1391 = vmatpush1.msra.mxu0 %v102
  %1392 = vmatprep.subr.mxu0 %v95
  %1393 = vmatpush1.msra.mxu0 %v94
  %1394 = vmatprep.subr.mxu0 %v87
  %1395 = vmatpush1.msra.mxu0 %v86
  %1396 = vmatprep.subr.mxu0 %v79
  %1397 = vmatpush1.msra.mxu0 %v78
  %1398 = vmatprep.subr.mxu0 %v71
  %1399 = vmatpush1.msra.mxu0 %v70
  %1400 = vmatprep.subr.mxu0 %v63
  %1401 = vmatpush1.msra.mxu0 %v62
  %1402 = vmatprep.subr.mxu0 %v55
  %1403 = vmatpush1.msra.mxu0 %v54
  %1404 = vmatprep.subr.mxu0 %v47
  %1405 = vmatpush1.msra.mxu0 %v46
  %1406 = vmatprep.subr.mxu0 %v39
  %1407 = vmatpush1.msra.mxu0 %v38
  %1408 = vmatprep.subr.mxu0 %v31
  %1409 = vmatpush1.msra.mxu0 %v30
  %1410 = vmatprep.subr.mxu0 %v279
  %1411 = vmatpush2.msra.mxu0 %v278
  %1412 = vmatprep.subr.mxu0 %v271
  %1413 = vmatpush2.msra.mxu0 %v270
  %1414 = vmatprep.subr.mxu0 %v263
  %1415 = vmatpush2.msra.mxu0 %v262
  %1416 = vmatprep.subr.mxu0 %v255
  %1417 = vmatpush2.msra.mxu0 %v254
  %1418 = vmatprep.subr.mxu0 %v247
  %1419 = vmatpush2.msra.mxu0 %v246
  %1420 = vmatprep.subr.mxu0 %v239
  %1421 = vmatpush2.msra.mxu0 %v238
  %1422 = vmatprep.subr.mxu0 %v231
  %1423 = vmatpush2.msra.mxu0 %v230
  %1424 = vmatprep.subr.mxu0 %v223
  %1425 = vmatpush2.msra.mxu0 %v222
  %1426 = vmatprep.subr.mxu0 %v215
  %1427 = vmatpush2.msra.mxu0 %v214
  %1428 = vmatprep.subr.mxu0 %v207
  %1429 = vmatpush2.msra.mxu0 %v206
  %1430 = vmatprep.subr.mxu0 %v199
  %1431 = vmatpush2.msra.mxu0 %v198
  %1432 = vmatprep.subr.mxu0 %v191
  %1433 = vmatpush2.msra.mxu0 %v190
  %1434 = vmatprep.subr.mxu0 %v183
  %1435 = vmatpush2.msra.mxu0 %v182
  %1436 = vmatprep.subr.mxu0 %v175
  %1437 = vmatpush2.msra.mxu0 %v174
  %1438 = vmatprep.subr.mxu0 %v167
  %1439 = vmatpush2.msra.mxu0 %v166
  %1440 = vmatprep.subr.mxu0 %v159
  %1441 = vmatpush2.msra.mxu0 %v158
  %1442 = vmatprep.mubr.f32.mxu0 %v21
  %1443 = vmatmul.mubr.f32.gmra.mxu0 %v20
  %v1444 = vpop.f32.mrf.mxu0
  %v1445 = vadd.f32 %v1065, %v1444
  %v1446 = vpop.f32.mrf.mxu0
  %v1447 = vadd.f32 %v1069, %v1446
  %1448 = vdwg.mxu0
  %1449 = vmatprep.subr.mxu0 %v407
  %1450 = vmatpush1.msra.mxu0 %v406
  %1451 = vmatprep.subr.mxu0 %v399
  %1452 = vmatpush1.msra.mxu0 %v398
  %1453 = vmatprep.subr.mxu0 %v391
  %1454 = vmatpush1.msra.mxu0 %v390
  %1455 = vmatprep.subr.mxu0 %v383
  %1456 = vmatpush1.msra.mxu0 %v382
  %1457 = vmatprep.subr.mxu0 %v375
  %1458 = vmatpush1.msra.mxu0 %v374
  %1459 = vmatprep.subr.mxu0 %v367
  %1460 = vmatpush1.msra.mxu0 %v366
  %1461 = vmatprep.subr.mxu0 %v359
  %1462 = vmatpush1.msra.mxu0 %v358
  %1463 = vmatprep.subr.mxu0 %v351
  %1464 = vmatpush1.msra.mxu0 %v350
  %1465 = vmatprep.subr.mxu0 %v343
  %1466 = vmatpush1.msra.mxu0 %v342
  %1467 = vmatprep.subr.mxu0 %v335
  %1468 = vmatpush1.msra.mxu0 %v334
  %1469 = vmatprep.subr.mxu0 %v327
  %1470 = vmatpush1.msra.mxu0 %v326
  %1471 = vmatprep.subr.mxu0 %v319
  %1472 = vmatpush1.msra.mxu0 %v318
  %1473 = vmatprep.subr.mxu0 %v311
  %1474 = vmatpush1.msra.mxu0 %v310
  %1475 = vmatprep.subr.mxu0 %v303
  %1476 = vmatpush1.msra.mxu0 %v302
  %1477 = vmatprep.subr.mxu0 %v295
  %1478 = vmatpush1.msra.mxu0 %v294
  %1479 = vmatprep.subr.mxu0 %v287
  %1480 = vmatpush1.msra.mxu0 %v286
  %1481 = vmatprep.subr.mxu0 %v535
  %1482 = vmatpush2.msra.mxu0 %v534
  %1483 = vmatprep.subr.mxu0 %v527
  %1484 = vmatpush2.msra.mxu0 %v526
  %1485 = vmatprep.subr.mxu0 %v519
  %1486 = vmatpush2.msra.mxu0 %v518
  %1487 = vmatprep.subr.mxu0 %v511
  %1488 = vmatpush2.msra.mxu0 %v510
  %1489 = vmatprep.subr.mxu0 %v503
  %1490 = vmatpush2.msra.mxu0 %v502
  %1491 = vmatprep.subr.mxu0 %v495
  %1492 = vmatpush2.msra.mxu0 %v494
  %1493 = vmatprep.subr.mxu0 %v487
  %1494 = vmatpush2.msra.mxu0 %v486
  %1495 = vmatprep.subr.mxu0 %v479
  %1496 = vmatpush2.msra.mxu0 %v478
  %1497 = vmatprep.subr.mxu0 %v471
  %1498 = vmatpush2.msra.mxu0 %v470
  %1499 = vmatprep.subr.mxu0 %v463
  %1500 = vmatpush2.msra.mxu0 %v462
  %1501 = vmatprep.subr.mxu0 %v455
  %1502 = vmatpush2.msra.mxu0 %v454
  %1503 = vmatprep.subr.mxu0 %v447
  %1504 = vmatpush2.msra.mxu0 %v446
  %1505 = vmatprep.subr.mxu0 %v439
  %1506 = vmatpush2.msra.mxu0 %v438
  %1507 = vmatprep.subr.mxu0 %v431
  %1508 = vmatpush2.msra.mxu0 %v430
  %1509 = vmatprep.subr.mxu0 %v423
  %1510 = vmatpush2.msra.mxu0 %v422
  %1511 = vmatprep.subr.mxu0 %v415
  %1512 = vmatpush2.msra.mxu0 %v414
  %1513 = vmatprep.mubr.f32.mxu0 %v23
  %1514 = vmatmul.mubr.f32.gmra.mxu0 %v22
  %v1515 = vpop.f32.mrf.mxu0
  %v1516 = vadd.f32 %v1445, %v1515
  %v1517 = vpop.f32.mrf.mxu0
  %v1518 = vadd.f32 %v1447, %v1517
  %1519 = vdwg.mxu0
  %1520 = vmatprep.subr.mxu0 %v663
  %1521 = vmatpush1.msra.mxu0 %v662
  %1522 = vmatprep.subr.mxu0 %v655
  %1523 = vmatpush1.msra.mxu0 %v654
  %1524 = vmatprep.subr.mxu0 %v647
  %1525 = vmatpush1.msra.mxu0 %v646
  %1526 = vmatprep.subr.mxu0 %v639
  %1527 = vmatpush1.msra.mxu0 %v638
  %1528 = vmatprep.subr.mxu0 %v631
  %1529 = vmatpush1.msra.mxu0 %v630
  %1530 = vmatprep.subr.mxu0 %v623
  %1531 = vmatpush1.msra.mxu0 %v622
  %1532 = vmatprep.subr.mxu0 %v615
  %1533 = vmatpush1.msra.mxu0 %v614
  %1534 = vmatprep.subr.mxu0 %v607
  %1535 = vmatpush1.msra.mxu0 %v606
  %1536 = vmatprep.subr.mxu0 %v599
  %1537 = vmatpush1.msra.mxu0 %v598
  %1538 = vmatprep.subr.mxu0 %v591
  %1539 = vmatpush1.msra.mxu0 %v590
  %1540 = vmatprep.subr.mxu0 %v583
  %1541 = vmatpush1.msra.mxu0 %v582
  %1542 = vmatprep.subr.mxu0 %v575
  %1543 = vmatpush1.msra.mxu0 %v574
  %1544 = vmatprep.subr.mxu0 %v567
  %1545 = vmatpush1.msra.mxu0 %v566
  %1546 = vmatprep.subr.mxu0 %v559
  %1547 = vmatpush1.msra.mxu0 %v558
  %1548 = vmatprep.subr.mxu0 %v551
  %1549 = vmatpush1.msra.mxu0 %v550
  %1550 = vmatprep.subr.mxu0 %v543
  %1551 = vmatpush1.msra.mxu0 %v542
  %1552 = vmatprep.subr.mxu0 %v791
  %1553 = vmatpush2.msra.mxu0 %v790
  %1554 = vmatprep.subr.mxu0 %v783
  %1555 = vmatpush2.msra.mxu0 %v782
  %1556 = vmatprep.subr.mxu0 %v775
  %1557 = vmatpush2.msra.mxu0 %v774
  %1558 = vmatprep.subr.mxu0 %v767
  %1559 = vmatpush2.msra.mxu0 %v766
  %1560 = vmatprep.subr.mxu0 %v759
  %1561 = vmatpush2.msra.mxu0 %v758
  %1562 = vmatprep.subr.mxu0 %v751
  %1563 = vmatpush2.msra.mxu0 %v750
  %1564 = vmatprep.subr.mxu0 %v743
  %1565 = vmatpush2.msra.mxu0 %v742
  %1566 = vmatprep.subr.mxu0 %v735
  %1567 = vmatpush2.msra.mxu0 %v734
  %1568 = vmatprep.subr.mxu0 %v727
  %1569 = vmatpush2.msra.mxu0 %v726
  %1570 = vmatprep.subr.mxu0 %v719
  %1571 = vmatpush2.msra.mxu0 %v718
  %1572 = vmatprep.subr.mxu0 %v711
  %1573 = vmatpush2.msra.mxu0 %v710
  %1574 = vmatprep.subr.mxu0 %v703
  %1575 = vmatpush2.msra.mxu0 %v702
  %1576 = vmatprep.subr.mxu0 %v695
  %1577 = vmatpush2.msra.mxu0 %v694
  %1578 = vmatprep.subr.mxu0 %v687
  %1579 = vmatpush2.msra.mxu0 %v686
  %1580 = vmatprep.subr.mxu0 %v679
  %1581 = vmatpush2.msra.mxu0 %v678
  %1582 = vmatprep.subr.mxu0 %v671
  %1583 = vmatpush2.msra.mxu0 %v670
  %1584 = vmatprep.mubr.f32.mxu0 %v25
  %1585 = vmatmul.mubr.f32.gmra.mxu0 %v24
  %v1586 = vpop.f32.mrf.mxu0
  %v1587 = vadd.f32 %v1516, %v1586
  %v1588 = vpop.f32.mrf.mxu0
  %v1589 = vadd.f32 %v1518, %v1588
  %1590 = vdwg.mxu0
  %1591 = vmatprep.subr.mxu0 %v919
  %1592 = vmatpush1.msra.mxu0 %v918
  %1593 = vmatprep.subr.mxu0 %v911
  %1594 = vmatpush1.msra.mxu0 %v910
  %1595 = vmatprep.subr.mxu0 %v903
  %1596 = vmatpush1.msra.mxu0 %v902
  %1597 = vmatprep.subr.mxu0 %v895
  %1598 = vmatpush1.msra.mxu0 %v894
  %1599 = vmatprep.subr.mxu0 %v887
  %1600 = vmatpush1.msra.mxu0 %v886
  %1601 = vmatprep.subr.mxu0 %v879
  %1602 = vmatpush1.msra.mxu0 %v878
  %1603 = vmatprep.subr.mxu0 %v871
  %1604 = vmatpush1.msra.mxu0 %v870
  %1605 = vmatprep.subr.mxu0 %v863
  %1606 = vmatpush1.msra.mxu0 %v862
  %1607 = vmatprep.subr.mxu0 %v855
  %1608 = vmatpush1.msra.mxu0 %v854
  %1609 = vmatprep.subr.mxu0 %v847
  %1610 = vmatpush1.msra.mxu0 %v846
  %1611 = vmatprep.subr.mxu0 %v839
  %1612 = vmatpush1.msra.mxu0 %v838
  %1613 = vmatprep.subr.mxu0 %v831
  %1614 = vmatpush1.msra.mxu0 %v830
  %1615 = vmatprep.subr.mxu0 %v823
  %1616 = vmatpush1.msra.mxu0 %v822
  %1617 = vmatprep.subr.mxu0 %v815
  %1618 = vmatpush1.msra.mxu0 %v814
  %1619 = vmatprep.subr.mxu0 %v807
  %1620 = vmatpush1.msra.mxu0 %v806
  %1621 = vmatprep.subr.mxu0 %v799
  %1622 = vmatpush1.msra.mxu0 %v798
  %1623 = vmatprep.subr.mxu0 %v1047
  %1624 = vmatpush2.msra.mxu0 %v1046
  %1625 = vmatprep.subr.mxu0 %v1039
  %1626 = vmatpush2.msra.mxu0 %v1038
  %1627 = vmatprep.subr.mxu0 %v1031
  %1628 = vmatpush2.msra.mxu0 %v1030
  %1629 = vmatprep.subr.mxu0 %v1023
  %1630 = vmatpush2.msra.mxu0 %v1022
  %1631 = vmatprep.subr.mxu0 %v1015
  %1632 = vmatpush2.msra.mxu0 %v1014
  %1633 = vmatprep.subr.mxu0 %v1007
  %1634 = vmatpush2.msra.mxu0 %v1006
  %1635 = vmatprep.subr.mxu0 %v999
  %1636 = vmatpush2.msra.mxu0 %v998
  %1637 = vmatprep.subr.mxu0 %v991
  %1638 = vmatpush2.msra.mxu0 %v990
  %1639 = vmatprep.subr.mxu0 %v983
  %1640 = vmatpush2.msra.mxu0 %v982
  %1641 = vmatprep.subr.mxu0 %v975
  %1642 = vmatpush2.msra.mxu0 %v974
  %1643 = vmatprep.subr.mxu0 %v967
  %1644 = vmatpush2.msra.mxu0 %v966
  %1645 = vmatprep.subr.mxu0 %v959
  %1646 = vmatpush2.msra.mxu0 %v958
  %1647 = vmatprep.subr.mxu0 %v951
  %1648 = vmatpush2.msra.mxu0 %v950
  %1649 = vmatprep.subr.mxu0 %v943
  %1650 = vmatpush2.msra.mxu0 %v942
  %1651 = vmatprep.subr.mxu0 %v935
  %1652 = vmatpush2.msra.mxu0 %v934
  %1653 = vmatprep.subr.mxu0 %v927
  %1654 = vmatpush2.msra.mxu0 %v926
  %1655 = vmatprep.mubr.f32.mxu0 %v27
  %1656 = vmatmul.mubr.f32.gmra.mxu0 %v26
  %v1657 = vpop.f32.mrf.mxu0
  %v1658 = vadd.f32 %v1587, %v1657
  %v1659 = vpop.f32.mrf.mxu0
  %v1660 = vadd.f32 %v1589, %v1659
  %1661 = vdwg.mxu0
  %1662 = vmatprep.subr.mxu0 %v153
  %1663 = vmatpush1.msra.mxu0 %v152
  %1664 = vmatprep.subr.mxu0 %v145
  %1665 = vmatpush1.msra.mxu0 %v144
  %1666 = vmatprep.subr.mxu0 %v137
  %1667 = vmatpush1.msra.mxu0 %v136
  %1668 = vmatprep.subr.mxu0 %v129
  %1669 = vmatpush1.msra.mxu0 %v128
  %1670 = vmatprep.subr.mxu0 %v121
  %1671 = vmatpush1.msra.mxu0 %v120
  %1672 = vmatprep.subr.mxu0 %v113
  %1673 = vmatpush1.msra.mxu0 %v112
  %1674 = vmatprep.subr.mxu0 %v105
  %1675 = vmatpush1.msra.mxu0 %v104
  %1676 = vmatprep.subr.mxu0 %v97
  %1677 = vmatpush1.msra.mxu0 %v96
  %1678 = vmatprep.subr.mxu0 %v89
  %1679 = vmatpush1.msra.mxu0 %v88
  %1680 = vmatprep.subr.mxu0 %v81
  %1681 = vmatpush1.msra.mxu0 %v80
  %1682 = vmatprep.subr.mxu0 %v73
  %1683 = vmatpush1.msra.mxu0 %v72
  %1684 = vmatprep.subr.mxu0 %v65
  %1685 = vmatpush1.msra.mxu0 %v64
  %1686 = vmatprep.subr.mxu0 %v57
  %1687 = vmatpush1.msra.mxu0 %v56
  %1688 = vmatprep.subr.mxu0 %v49
  %1689 = vmatpush1.msra.mxu0 %v48
  %1690 = vmatprep.subr.mxu0 %v41
  %1691 = vmatpush1.msra.mxu0 %v40
  %1692 = vmatprep.subr.mxu0 %v33
  %1693 = vmatpush1.msra.mxu0 %v32
  %1694 = vmatprep.subr.mxu0 %v281
  %1695 = vmatpush2.msra.mxu0 %v280
  %1696 = vmatprep.subr.mxu0 %v273
  %1697 = vmatpush2.msra.mxu0 %v272
  %1698 = vmatprep.subr.mxu0 %v265
  %1699 = vmatpush2.msra.mxu0 %v264
  %1700 = vmatprep.subr.mxu0 %v257
  %1701 = vmatpush2.msra.mxu0 %v256
  %1702 = vmatprep.subr.mxu0 %v249
  %1703 = vmatpush2.msra.mxu0 %v248
  %1704 = vmatprep.subr.mxu0 %v241
  %1705 = vmatpush2.msra.mxu0 %v240
  %1706 = vmatprep.subr.mxu0 %v233
  %1707 = vmatpush2.msra.mxu0 %v232
  %1708 = vmatprep.subr.mxu0 %v225
  %1709 = vmatpush2.msra.mxu0 %v224
  %1710 = vmatprep.subr.mxu0 %v217
  %1711 = vmatpush2.msra.mxu0 %v216
  %1712 = vmatprep.subr.mxu0 %v209
  %1713 = vmatpush2.msra.mxu0 %v208
  %1714 = vmatprep.subr.mxu0 %v201
  %1715 = vmatpush2.msra.mxu0 %v200
  %1716 = vmatprep.subr.mxu0 %v193
  %1717 = vmatpush2.msra.mxu0 %v192
  %1718 = vmatprep.subr.mxu0 %v185
  %1719 = vmatpush2.msra.mxu0 %v184
  %1720 = vmatprep.subr.mxu0 %v177
  %1721 = vmatpush2.msra.mxu0 %v176
  %1722 = vmatprep.subr.mxu0 %v169
  %1723 = vmatpush2.msra.mxu0 %v168
  %1724 = vmatprep.subr.mxu0 %v161
  %1725 = vmatpush2.msra.mxu0 %v160
  %1726 = vmatprep.mubr.f32.mxu0 %v21
  %1727 = vmatmul.mubr.f32.gmra.mxu0 %v20
  %v1728 = vpop.f32.mrf.mxu0
  %v1729 = vadd.f32 %v1073, %v1728
  %v1730 = vpop.f32.mrf.mxu0
  %v1731 = vadd.f32 %v1077, %v1730
  %1732 = vdwg.mxu0
  %1733 = vmatprep.subr.mxu0 %v409
  %1734 = vmatpush1.msra.mxu0 %v408
  %1735 = vmatprep.subr.mxu0 %v401
  %1736 = vmatpush1.msra.mxu0 %v400
  %1737 = vmatprep.subr.mxu0 %v393
  %1738 = vmatpush1.msra.mxu0 %v392
  %1739 = vmatprep.subr.mxu0 %v385
  %1740 = vmatpush1.msra.mxu0 %v384
  %1741 = vmatprep.subr.mxu0 %v377
  %1742 = vmatpush1.msra.mxu0 %v376
  %1743 = vmatprep.subr.mxu0 %v369
  %1744 = vmatpush1.msra.mxu0 %v368
  %1745 = vmatprep.subr.mxu0 %v361
  %1746 = vmatpush1.msra.mxu0 %v360
  %1747 = vmatprep.subr.mxu0 %v353
  %1748 = vmatpush1.msra.mxu0 %v352
  %1749 = vmatprep.subr.mxu0 %v345
  %1750 = vmatpush1.msra.mxu0 %v344
  %1751 = vmatprep.subr.mxu0 %v337
  %1752 = vmatpush1.msra.mxu0 %v336
  %1753 = vmatprep.subr.mxu0 %v329
  %1754 = vmatpush1.msra.mxu0 %v328
  %1755 = vmatprep.subr.mxu0 %v321
  %1756 = vmatpush1.msra.mxu0 %v320
  %1757 = vmatprep.subr.mxu0 %v313
  %1758 = vmatpush1.msra.mxu0 %v312
  %1759 = vmatprep.subr.mxu0 %v305
  %1760 = vmatpush1.msra.mxu0 %v304
  %1761 = vmatprep.subr.mxu0 %v297
  %1762 = vmatpush1.msra.mxu0 %v296
  %1763 = vmatprep.subr.mxu0 %v289
  %1764 = vmatpush1.msra.mxu0 %v288
  %1765 = vmatprep.subr.mxu0 %v537
  %1766 = vmatpush2.msra.mxu0 %v536
  %1767 = vmatprep.subr.mxu0 %v529
  %1768 = vmatpush2.msra.mxu0 %v528
  %1769 = vmatprep.subr.mxu0 %v521
  %1770 = vmatpush2.msra.mxu0 %v520
  %1771 = vmatprep.subr.mxu0 %v513
  %1772 = vmatpush2.msra.mxu0 %v512
  %1773 = vmatprep.subr.mxu0 %v505
  %1774 = vmatpush2.msra.mxu0 %v504
  %1775 = vmatprep.subr.mxu0 %v497
  %1776 = vmatpush2.msra.mxu0 %v496
  %1777 = vmatprep.subr.mxu0 %v489
  %1778 = vmatpush2.msra.mxu0 %v488
  %1779 = vmatprep.subr.mxu0 %v481
  %1780 = vmatpush2.msra.mxu0 %v480
  %1781 = vmatprep.subr.mxu0 %v473
  %1782 = vmatpush2.msra.mxu0 %v472
  %1783 = vmatprep.subr.mxu0 %v465
  %1784 = vmatpush2.msra.mxu0 %v464
  %1785 = vmatprep.subr.mxu0 %v457
  %1786 = vmatpush2.msra.mxu0 %v456
  %1787 = vmatprep.subr.mxu0 %v449
  %1788 = vmatpush2.msra.mxu0 %v448
  %1789 = vmatprep.subr.mxu0 %v441
  %1790 = vmatpush2.msra.mxu0 %v440
  %1791 = vmatprep.subr.mxu0 %v433
  %1792 = vmatpush2.msra.mxu0 %v432
  %1793 = vmatprep.subr.mxu0 %v425
  %1794 = vmatpush2.msra.mxu0 %v424
  %1795 = vmatprep.subr.mxu0 %v417
  %1796 = vmatpush2.msra.mxu0 %v416
  %1797 = vmatprep.mubr.f32.mxu0 %v23
  %1798 = vmatmul.mubr.f32.gmra.mxu0 %v22
  %v1799 = vpop.f32.mrf.mxu0
  %v1800 = vadd.f32 %v1729, %v1799
  %v1801 = vpop.f32.mrf.mxu0
  %v1802 = vadd.f32 %v1731, %v1801
  %1803 = vdwg.mxu0
  %1804 = vmatprep.subr.mxu0 %v665
  %1805 = vmatpush1.msra.mxu0 %v664
  %1806 = vmatprep.subr.mxu0 %v657
  %1807 = vmatpush1.msra.mxu0 %v656
  %1808 = vmatprep.subr.mxu0 %v649
  %1809 = vmatpush1.msra.mxu0 %v648
  %1810 = vmatprep.subr.mxu0 %v641
  %1811 = vmatpush1.msra.mxu0 %v640
  %1812 = vmatprep.subr.mxu0 %v633
  %1813 = vmatpush1.msra.mxu0 %v632
  %1814 = vmatprep.subr.mxu0 %v625
  %1815 = vmatpush1.msra.mxu0 %v624
  %1816 = vmatprep.subr.mxu0 %v617
  %1817 = vmatpush1.msra.mxu0 %v616
  %1818 = vmatprep.subr.mxu0 %v609
  %1819 = vmatpush1.msra.mxu0 %v608
  %1820 = vmatprep.subr.mxu0 %v601
  %1821 = vmatpush1.msra.mxu0 %v600
  %1822 = vmatprep.subr.mxu0 %v593
  %1823 = vmatpush1.msra.mxu0 %v592
  %1824 = vmatprep.subr.mxu0 %v585
  %1825 = vmatpush1.msra.mxu0 %v584
  %1826 = vmatprep.subr.mxu0 %v577
  %1827 = vmatpush1.msra.mxu0 %v576
  %1828 = vmatprep.subr.mxu0 %v569
  %1829 = vmatpush1.msra.mxu0 %v568
  %1830 = vmatprep.subr.mxu0 %v561
  %1831 = vmatpush1.msra.mxu0 %v560
  %1832 = vmatprep.subr.mxu0 %v553
  %1833 = vmatpush1.msra.mxu0 %v552
  %1834 = vmatprep.subr.mxu0 %v545
  %1835 = vmatpush1.msra.mxu0 %v544
  %1836 = vmatprep.subr.mxu0 %v793
  %1837 = vmatpush2.msra.mxu0 %v792
  %1838 = vmatprep.subr.mxu0 %v785
  %1839 = vmatpush2.msra.mxu0 %v784
  %1840 = vmatprep.subr.mxu0 %v777
  %1841 = vmatpush2.msra.mxu0 %v776
  %1842 = vmatprep.subr.mxu0 %v769
  %1843 = vmatpush2.msra.mxu0 %v768
  %1844 = vmatprep.subr.mxu0 %v761
  %1845 = vmatpush2.msra.mxu0 %v760
  %1846 = vmatprep.subr.mxu0 %v753
  %1847 = vmatpush2.msra.mxu0 %v752
  %1848 = vmatprep.subr.mxu0 %v745
  %1849 = vmatpush2.msra.mxu0 %v744
  %1850 = vmatprep.subr.mxu0 %v737
  %1851 = vmatpush2.msra.mxu0 %v736
  %1852 = vmatprep.subr.mxu0 %v729
  %1853 = vmatpush2.msra.mxu0 %v728
  %1854 = vmatprep.subr.mxu0 %v721
  %1855 = vmatpush2.msra.mxu0 %v720
  %1856 = vmatprep.subr.mxu0 %v713
  %1857 = vmatpush2.msra.mxu0 %v712
  %1858 = vmatprep.subr.mxu0 %v705
  %1859 = vmatpush2.msra.mxu0 %v704
  %1860 = vmatprep.subr.mxu0 %v697
  %1861 = vmatpush2.msra.mxu0 %v696
  %1862 = vmatprep.subr.mxu0 %v689
  %1863 = vmatpush2.msra.mxu0 %v688
  %1864 = vmatprep.subr.mxu0 %v681
  %1865 = vmatpush2.msra.mxu0 %v680
  %1866 = vmatprep.subr.mxu0 %v673
  %1867 = vmatpush2.msra.mxu0 %v672
  %1868 = vmatprep.mubr.f32.mxu0 %v25
  %1869 = vmatmul.mubr.f32.gmra.mxu0 %v24
  %v1870 = vpop.f32.mrf.mxu0
  %v1871 = vadd.f32 %v1800, %v1870
  %v1872 = vpop.f32.mrf.mxu0
  %v1873 = vadd.f32 %v1802, %v1872
  %1874 = vdwg.mxu0
  %1875 = vmatprep.subr.mxu0 %v921
  %1876 = vmatpush1.msra.mxu0 %v920
  %1877 = vmatprep.subr.mxu0 %v913
  %1878 = vmatpush1.msra.mxu0 %v912
  %1879 = vmatprep.subr.mxu0 %v905
  %1880 = vmatpush1.msra.mxu0 %v904
  %1881 = vmatprep.subr.mxu0 %v897
  %1882 = vmatpush1.msra.mxu0 %v896
  %1883 = vmatprep.subr.mxu0 %v889
  %1884 = vmatpush1.msra.mxu0 %v888
  %1885 = vmatprep.subr.mxu0 %v881
  %1886 = vmatpush1.msra.mxu0 %v880
  %1887 = vmatprep.subr.mxu0 %v873
  %1888 = vmatpush1.msra.mxu0 %v872
  %1889 = vmatprep.subr.mxu0 %v865
  %1890 = vmatpush1.msra.mxu0 %v864
  %1891 = vmatprep.subr.mxu0 %v857
  %1892 = vmatpush1.msra.mxu0 %v856
  %1893 = vmatprep.subr.mxu0 %v849
  %1894 = vmatpush1.msra.mxu0 %v848
  %1895 = vmatprep.subr.mxu0 %v841
  %1896 = vmatpush1.msra.mxu0 %v840
  %1897 = vmatprep.subr.mxu0 %v833
  %1898 = vmatpush1.msra.mxu0 %v832
  %1899 = vmatprep.subr.mxu0 %v825
  %1900 = vmatpush1.msra.mxu0 %v824
  %1901 = vmatprep.subr.mxu0 %v817
  %1902 = vmatpush1.msra.mxu0 %v816
  %1903 = vmatprep.subr.mxu0 %v809
  %1904 = vmatpush1.msra.mxu0 %v808
  %1905 = vmatprep.subr.mxu0 %v801
  %1906 = vmatpush1.msra.mxu0 %v800
  %1907 = vmatprep.subr.mxu0 %v1049
  %1908 = vmatpush2.msra.mxu0 %v1048
  %1909 = vmatprep.subr.mxu0 %v1041
  %1910 = vmatpush2.msra.mxu0 %v1040
  %1911 = vmatprep.subr.mxu0 %v1033
  %1912 = vmatpush2.msra.mxu0 %v1032
  %1913 = vmatprep.subr.mxu0 %v1025
  %1914 = vmatpush2.msra.mxu0 %v1024
  %1915 = vmatprep.subr.mxu0 %v1017
  %1916 = vmatpush2.msra.mxu0 %v1016
  %1917 = vmatprep.subr.mxu0 %v1009
  %1918 = vmatpush2.msra.mxu0 %v1008
  %1919 = vmatprep.subr.mxu0 %v1001
  %1920 = vmatpush2.msra.mxu0 %v1000
  %1921 = vmatprep.subr.mxu0 %v993
  %1922 = vmatpush2.msra.mxu0 %v992
  %1923 = vmatprep.subr.mxu0 %v985
  %1924 = vmatpush2.msra.mxu0 %v984
  %1925 = vmatprep.subr.mxu0 %v977
  %1926 = vmatpush2.msra.mxu0 %v976
  %1927 = vmatprep.subr.mxu0 %v969
  %1928 = vmatpush2.msra.mxu0 %v968
  %1929 = vmatprep.subr.mxu0 %v961
  %1930 = vmatpush2.msra.mxu0 %v960
  %1931 = vmatprep.subr.mxu0 %v953
  %1932 = vmatpush2.msra.mxu0 %v952
  %1933 = vmatprep.subr.mxu0 %v945
  %1934 = vmatpush2.msra.mxu0 %v944
  %1935 = vmatprep.subr.mxu0 %v937
  %1936 = vmatpush2.msra.mxu0 %v936
  %1937 = vmatprep.subr.mxu0 %v929
  %1938 = vmatpush2.msra.mxu0 %v928
  %1939 = vmatprep.mubr.f32.mxu0 %v27
  %1940 = vmatmul.mubr.f32.gmra.mxu0 %v26
  %v1941 = vpop.f32.mrf.mxu0
  %v1942 = vadd.f32 %v1871, %v1941
  %v1943 = vpop.f32.mrf.mxu0
  %v1944 = vadd.f32 %v1873, %v1943
  %1945 = vdwg.mxu0
  %1946 = vmatprep.subr.mxu0 %v155
  %1947 = vmatpush1.msra.mxu0 %v154
  %1948 = vmatprep.subr.mxu0 %v147
  %1949 = vmatpush1.msra.mxu0 %v146
  %1950 = vmatprep.subr.mxu0 %v139
  %1951 = vmatpush1.msra.mxu0 %v138
  %1952 = vmatprep.subr.mxu0 %v131
  %1953 = vmatpush1.msra.mxu0 %v130
  %1954 = vmatprep.subr.mxu0 %v123
  %1955 = vmatpush1.msra.mxu0 %v122
  %1956 = vmatprep.subr.mxu0 %v115
  %1957 = vmatpush1.msra.mxu0 %v114
  %1958 = vmatprep.subr.mxu0 %v107
  %1959 = vmatpush1.msra.mxu0 %v106
  %1960 = vmatprep.subr.mxu0 %v99
  %1961 = vmatpush1.msra.mxu0 %v98
  %1962 = vmatprep.subr.mxu0 %v91
  %1963 = vmatpush1.msra.mxu0 %v90
  %1964 = vmatprep.subr.mxu0 %v83
  %1965 = vmatpush1.msra.mxu0 %v82
  %1966 = vmatprep.subr.mxu0 %v75
  %1967 = vmatpush1.msra.mxu0 %v74
  %1968 = vmatprep.subr.mxu0 %v67
  %1969 = vmatpush1.msra.mxu0 %v66
  %1970 = vmatprep.subr.mxu0 %v59
  %1971 = vmatpush1.msra.mxu0 %v58
  %1972 = vmatprep.subr.mxu0 %v51
  %1973 = vmatpush1.msra.mxu0 %v50
  %1974 = vmatprep.subr.mxu0 %v43
  %1975 = vmatpush1.msra.mxu0 %v42
  %1976 = vmatprep.subr.mxu0 %v35
  %1977 = vmatpush1.msra.mxu0 %v34
  %1978 = vmatprep.subr.mxu0 %v283
  %1979 = vmatpush2.msra.mxu0 %v282
  %1980 = vmatprep.subr.mxu0 %v275
  %1981 = vmatpush2.msra.mxu0 %v274
  %1982 = vmatprep.subr.mxu0 %v267
  %1983 = vmatpush2.msra.mxu0 %v266
  %1984 = vmatprep.subr.mxu0 %v259
  %1985 = vmatpush2.msra.mxu0 %v258
  %1986 = vmatprep.subr.mxu0 %v251
  %1987 = vmatpush2.msra.mxu0 %v250
  %1988 = vmatprep.subr.mxu0 %v243
  %1989 = vmatpush2.msra.mxu0 %v242
  %1990 = vmatprep.subr.mxu0 %v235
  %1991 = vmatpush2.msra.mxu0 %v234
  %1992 = vmatprep.subr.mxu0 %v227
  %1993 = vmatpush2.msra.mxu0 %v226
  %1994 = vmatprep.subr.mxu0 %v219
  %1995 = vmatpush2.msra.mxu0 %v218
  %1996 = vmatprep.subr.mxu0 %v211
  %1997 = vmatpush2.msra.mxu0 %v210
  %1998 = vmatprep.subr.mxu0 %v203
  %1999 = vmatpush2.msra.mxu0 %v202
  %2000 = vmatprep.subr.mxu0 %v195
  %2001 = vmatpush2.msra.mxu0 %v194
  %2002 = vmatprep.subr.mxu0 %v187
  %2003 = vmatpush2.msra.mxu0 %v186
  %2004 = vmatprep.subr.mxu0 %v179
  %2005 = vmatpush2.msra.mxu0 %v178
  %2006 = vmatprep.subr.mxu0 %v171
  %2007 = vmatpush2.msra.mxu0 %v170
  %2008 = vmatprep.subr.mxu0 %v163
  %2009 = vmatpush2.msra.mxu0 %v162
  %2010 = vmatprep.mubr.f32.mxu0 %v21
  %2011 = vmatmul.mubr.f32.gmra.mxu0 %v20
  %v2012 = vpop.f32.mrf.mxu0
  %v2013 = vadd.f32 %v1081, %v2012
  %v2014 = vpop.f32.mrf.mxu0
  %v2015 = vadd.f32 %v1085, %v2014
  %2016 = vdwg.mxu0
  %2017 = vmatprep.subr.mxu0 %v411
  %2018 = vmatpush1.msra.mxu0 %v410
  %2019 = vmatprep.subr.mxu0 %v403
  %2020 = vmatpush1.msra.mxu0 %v402
  %2021 = vmatprep.subr.mxu0 %v395
  %2022 = vmatpush1.msra.mxu0 %v394
  %2023 = vmatprep.subr.mxu0 %v387
  %2024 = vmatpush1.msra.mxu0 %v386
  %2025 = vmatprep.subr.mxu0 %v379
  %2026 = vmatpush1.msra.mxu0 %v378
  %2027 = vmatprep.subr.mxu0 %v371
  %2028 = vmatpush1.msra.mxu0 %v370
  %2029 = vmatprep.subr.mxu0 %v363
  %2030 = vmatpush1.msra.mxu0 %v362
  %2031 = vmatprep.subr.mxu0 %v355
  %2032 = vmatpush1.msra.mxu0 %v354
  %2033 = vmatprep.subr.mxu0 %v347
  %2034 = vmatpush1.msra.mxu0 %v346
  %2035 = vmatprep.subr.mxu0 %v339
  %2036 = vmatpush1.msra.mxu0 %v338
  %2037 = vmatprep.subr.mxu0 %v331
  %2038 = vmatpush1.msra.mxu0 %v330
  %2039 = vmatprep.subr.mxu0 %v323
  %2040 = vmatpush1.msra.mxu0 %v322
  %2041 = vmatprep.subr.mxu0 %v315
  %2042 = vmatpush1.msra.mxu0 %v314
  %2043 = vmatprep.subr.mxu0 %v307
  %2044 = vmatpush1.msra.mxu0 %v306
  %2045 = vmatprep.subr.mxu0 %v299
  %2046 = vmatpush1.msra.mxu0 %v298
  %2047 = vmatprep.subr.mxu0 %v291
  %2048 = vmatpush1.msra.mxu0 %v290
  %2049 = vmatprep.subr.mxu0 %v539
  %2050 = vmatpush2.msra.mxu0 %v538
  %2051 = vmatprep.subr.mxu0 %v531
  %2052 = vmatpush2.msra.mxu0 %v530
  %2053 = vmatprep.subr.mxu0 %v523
  %2054 = vmatpush2.msra.mxu0 %v522
  %2055 = vmatprep.subr.mxu0 %v515
  %2056 = vmatpush2.msra.mxu0 %v514
  %2057 = vmatprep.subr.mxu0 %v507
  %2058 = vmatpush2.msra.mxu0 %v506
  %2059 = vmatprep.subr.mxu0 %v499
  %2060 = vmatpush2.msra.mxu0 %v498
  %2061 = vmatprep.subr.mxu0 %v491
  %2062 = vmatpush2.msra.mxu0 %v490
  %2063 = vmatprep.subr.mxu0 %v483
  %2064 = vmatpush2.msra.mxu0 %v482
  %2065 = vmatprep.subr.mxu0 %v475
  %2066 = vmatpush2.msra.mxu0 %v474
  %2067 = vmatprep.subr.mxu0 %v467
  %2068 = vmatpush2.msra.mxu0 %v466
  %2069 = vmatprep.subr.mxu0 %v459
  %2070 = vmatpush2.msra.mxu0 %v458
  %2071 = vmatprep.subr.mxu0 %v451
  %2072 = vmatpush2.msra.mxu0 %v450
  %2073 = vmatprep.subr.mxu0 %v443
  %2074 = vmatpush2.msra.mxu0 %v442
  %2075 = vmatprep.subr.mxu0 %v435
  %2076 = vmatpush2.msra.mxu0 %v434
  %2077 = vmatprep.subr.mxu0 %v427
  %2078 = vmatpush2.msra.mxu0 %v426
  %2079 = vmatprep.subr.mxu0 %v419
  %2080 = vmatpush2.msra.mxu0 %v418
  %2081 = vmatprep.mubr.f32.mxu0 %v23
  %2082 = vmatmul.mubr.f32.gmra.mxu0 %v22
  %v2083 = vpop.f32.mrf.mxu0
  %v2084 = vadd.f32 %v2013, %v2083
  %v2085 = vpop.f32.mrf.mxu0
  %v2086 = vadd.f32 %v2015, %v2085
  %2087 = vdwg.mxu0
  %2088 = vmatprep.subr.mxu0 %v667
  %2089 = vmatpush1.msra.mxu0 %v666
  %2090 = vmatprep.subr.mxu0 %v659
  %2091 = vmatpush1.msra.mxu0 %v658
  %2092 = vmatprep.subr.mxu0 %v651
  %2093 = vmatpush1.msra.mxu0 %v650
  %2094 = vmatprep.subr.mxu0 %v643
  %2095 = vmatpush1.msra.mxu0 %v642
  %2096 = vmatprep.subr.mxu0 %v635
  %2097 = vmatpush1.msra.mxu0 %v634
  %2098 = vmatprep.subr.mxu0 %v627
  %2099 = vmatpush1.msra.mxu0 %v626
  %2100 = vmatprep.subr.mxu0 %v619
  %2101 = vmatpush1.msra.mxu0 %v618
  %2102 = vmatprep.subr.mxu0 %v611
  %2103 = vmatpush1.msra.mxu0 %v610
  %2104 = vmatprep.subr.mxu0 %v603
  %2105 = vmatpush1.msra.mxu0 %v602
  %2106 = vmatprep.subr.mxu0 %v595
  %2107 = vmatpush1.msra.mxu0 %v594
  %2108 = vmatprep.subr.mxu0 %v587
  %2109 = vmatpush1.msra.mxu0 %v586
  %2110 = vmatprep.subr.mxu0 %v579
  %2111 = vmatpush1.msra.mxu0 %v578
  %2112 = vmatprep.subr.mxu0 %v571
  %2113 = vmatpush1.msra.mxu0 %v570
  %2114 = vmatprep.subr.mxu0 %v563
  %2115 = vmatpush1.msra.mxu0 %v562
  %2116 = vmatprep.subr.mxu0 %v555
  %2117 = vmatpush1.msra.mxu0 %v554
  %2118 = vmatprep.subr.mxu0 %v547
  %2119 = vmatpush1.msra.mxu0 %v546
  %2120 = vmatprep.subr.mxu0 %v795
  %2121 = vmatpush2.msra.mxu0 %v794
  %2122 = vmatprep.subr.mxu0 %v787
  %2123 = vmatpush2.msra.mxu0 %v786
  %2124 = vmatprep.subr.mxu0 %v779
  %2125 = vmatpush2.msra.mxu0 %v778
  %2126 = vmatprep.subr.mxu0 %v771
  %2127 = vmatpush2.msra.mxu0 %v770
  %2128 = vmatprep.subr.mxu0 %v763
  %2129 = vmatpush2.msra.mxu0 %v762
  %2130 = vmatprep.subr.mxu0 %v755
  %2131 = vmatpush2.msra.mxu0 %v754
  %2132 = vmatprep.subr.mxu0 %v747
  %2133 = vmatpush2.msra.mxu0 %v746
  %2134 = vmatprep.subr.mxu0 %v739
  %2135 = vmatpush2.msra.mxu0 %v738
  %2136 = vmatprep.subr.mxu0 %v731
  %2137 = vmatpush2.msra.mxu0 %v730
  %2138 = vmatprep.subr.mxu0 %v723
  %2139 = vmatpush2.msra.mxu0 %v722
  %2140 = vmatprep.subr.mxu0 %v715
  %2141 = vmatpush2.msra.mxu0 %v714
  %2142 = vmatprep.subr.mxu0 %v707
  %2143 = vmatpush2.msra.mxu0 %v706
  %2144 = vmatprep.subr.mxu0 %v699
  %2145 = vmatpush2.msra.mxu0 %v698
  %2146 = vmatprep.subr.mxu0 %v691
  %2147 = vmatpush2.msra.mxu0 %v690
  %2148 = vmatprep.subr.mxu0 %v683
  %2149 = vmatpush2.msra.mxu0 %v682
  %2150 = vmatprep.subr.mxu0 %v675
  %2151 = vmatpush2.msra.mxu0 %v674
  %2152 = vmatprep.mubr.f32.mxu0 %v25
  %2153 = vmatmul.mubr.f32.gmra.mxu0 %v24
  %v2154 = vpop.f32.mrf.mxu0
  %v2155 = vadd.f32 %v2084, %v2154
  %v2156 = vpop.f32.mrf.mxu0
  %v2157 = vadd.f32 %v2086, %v2156
  %2158 = vdwg.mxu0
  %2159 = vmatprep.subr.mxu0 %v923
  %2160 = vmatpush1.msra.mxu0 %v922
  %2161 = vmatprep.subr.mxu0 %v915
  %2162 = vmatpush1.msra.mxu0 %v914
  %2163 = vmatprep.subr.mxu0 %v907
  %2164 = vmatpush1.msra.mxu0 %v906
  %2165 = vmatprep.subr.mxu0 %v899
  %2166 = vmatpush1.msra.mxu0 %v898
  %2167 = vmatprep.subr.mxu0 %v891
  %2168 = vmatpush1.msra.mxu0 %v890
  %2169 = vmatprep.subr.mxu0 %v883
  %2170 = vmatpush1.msra.mxu0 %v882
  %2171 = vmatprep.subr.mxu0 %v875
  %2172 = vmatpush1.msra.mxu0 %v874
  %2173 = vmatprep.subr.mxu0 %v867
  %2174 = vmatpush1.msra.mxu0 %v866
  %2175 = vmatprep.subr.mxu0 %v859
  %2176 = vmatpush1.msra.mxu0 %v858
  %2177 = vmatprep.subr.mxu0 %v851
  %2178 = vmatpush1.msra.mxu0 %v850
  %2179 = vmatprep.subr.mxu0 %v843
  %2180 = vmatpush1.msra.mxu0 %v842
  %2181 = vmatprep.subr.mxu0 %v835
  %2182 = vmatpush1.msra.mxu0 %v834
  %2183 = vmatprep.subr.mxu0 %v827
  %2184 = vmatpush1.msra.mxu0 %v826
  %2185 = vmatprep.subr.mxu0 %v819
  %2186 = vmatpush1.msra.mxu0 %v818
  %2187 = vmatprep.subr.mxu0 %v811
  %2188 = vmatpush1.msra.mxu0 %v810
  %2189 = vmatprep.subr.mxu0 %v803
  %2190 = vmatpush1.msra.mxu0 %v802
  %2191 = vmatprep.subr.mxu0 %v1051
  %2192 = vmatpush2.msra.mxu0 %v1050
  %2193 = vmatprep.subr.mxu0 %v1043
  %2194 = vmatpush2.msra.mxu0 %v1042
  %2195 = vmatprep.subr.mxu0 %v1035
  %2196 = vmatpush2.msra.mxu0 %v1034
  %2197 = vmatprep.subr.mxu0 %v1027
  %2198 = vmatpush2.msra.mxu0 %v1026
  %2199 = vmatprep.subr.mxu0 %v1019
  %2200 = vmatpush2.msra.mxu0 %v1018
  %2201 = vmatprep.subr.mxu0 %v1011
  %2202 = vmatpush2.msra.mxu0 %v1010
  %2203 = vmatprep.subr.mxu0 %v1003
  %2204 = vmatpush2.msra.mxu0 %v1002
  %2205 = vmatprep.subr.mxu0 %v995
  %2206 = vmatpush2.msra.mxu0 %v994
  %2207 = vmatprep.subr.mxu0 %v987
  %2208 = vmatpush2.msra.mxu0 %v986
  %2209 = vmatprep.subr.mxu0 %v979
  %2210 = vmatpush2.msra.mxu0 %v978
  %2211 = vmatprep.subr.mxu0 %v971
  %2212 = vmatpush2.msra.mxu0 %v970
  %2213 = vmatprep.subr.mxu0 %v963
  %2214 = vmatpush2.msra.mxu0 %v962
  %2215 = vmatprep.subr.mxu0 %v955
  %2216 = vmatpush2.msra.mxu0 %v954
  %2217 = vmatprep.subr.mxu0 %v947
  %2218 = vmatpush2.msra.mxu0 %v946
  %2219 = vmatprep.subr.mxu0 %v939
  %2220 = vmatpush2.msra.mxu0 %v938
  %2221 = vmatprep.subr.mxu0 %v931
  %2222 = vmatpush2.msra.mxu0 %v930
  %2223 = vmatprep.mubr.f32.mxu0 %v27
  %2224 = vmatmul.mubr.f32.gmra.mxu0 %v26
  %v2225 = vpop.f32.mrf.mxu0
  %v2226 = vadd.f32 %v2155, %v2225
  %v2227 = vpop.f32.mrf.mxu0
  %v2228 = vadd.f32 %v2157, %v2227
  %2229 = vdwg.mxu0
  %v2230 = vmax.f32 %v1374, 0.0
  %v2231 = vmax.f32 %v1376, 0.0
  %v2232 = vmax.f32 %v1658, 0.0
  %v2233 = vmax.f32 %v1660, 0.0
  %v2234 = vmax.f32 %v1942, 0.0
  %v2235 = vmax.f32 %v1944, 0.0
  %v2236 = vmax.f32 %v2226, 0.0
  %v2237 = vmax.f32 %v2228, 0.0
  %v2238 = vld [vmem:[%s3] sm:$0xff]
  %v2239 = vld [vmem:[%s3 + $0x8] sm:$0xff]
  %v2240 = vld [vmem:[%s3 + $0x10] sm:$0xff]
  %v2241 = vld [vmem:[%s3 + $0x18] sm:$0xff]
  %v2242 = vld [vmem:[%s3 + $0x20] sm:$0xff]
  %v2243 = vld [vmem:[%s3 + $0x28] sm:$0xff]
  %v2244 = vld [vmem:[%s3 + $0x30] sm:$0xff]
  %v2245 = vld [vmem:[%s3 + $0x38] sm:$0xff]
  %v2246 = vld [vmem:[%s3 + $0x40] sm:$0xff]
  %v2247 = vld [vmem:[%s3 + $0x48] sm:$0xff]
  %v2248 = vld [vmem:[%s3 + $0x50] sm:$0xff]
  %v2249 = vld [vmem:[%s3 + $0x58] sm:$0xff]
  %v2250 = vld [vmem:[%s3 + $0x60] sm:$0xff]
  %v2251 = vld [vmem:[%s3 + $0x68] sm:$0xff]
  %v2252 = vld [vmem:[%s3 + $0x70] sm:$0xff]
  %v2253 = vld [vmem:[%s3 + $0x78] sm:$0xff]
  %v2254 = vld [vmem:[%s3 + $0x80] sm:$0xff]
  %v2255 = vld [vmem:[%s3 + $0x88] sm:$0xff]
  %v2256 = vld [vmem:[%s3 + $0x90] sm:$0xff]
  %v2257 = vld [vmem:[%s3 + $0x98] sm:$0xff]
  %v2258 = vld [vmem:[%s3 + $0xa0] sm:$0xff]
  %v2259 = vld [vmem:[%s3 + $0xa8] sm:$0xff]
  %v2260 = vld [vmem:[%s3 + $0xb0] sm:$0xff]
  %v2261 = vld [vmem:[%s3 + $0xb8] sm:$0xff]
  %v2262 = vld [vmem:[%s3 + $0xc0] sm:$0xff]
  %v2263 = vld [vmem:[%s3 + $0xc8] sm:$0xff]
  %v2264 = vld [vmem:[%s3 + $0xd0] sm:$0xff]
  %v2265 = vld [vmem:[%s3 + $0xd8] sm:$0xff]
  %v2266 = vld [vmem:[%s3 + $0xe0] sm:$0xff]
  %v2267 = vld [vmem:[%s3 + $0xe8] sm:$0xff]
  %v2268 = vld [vmem:[%s3 + $0xf0] sm:$0xff]
  %v2269 = vld [vmem:[%s3 + $0xf8] sm:$0xff]
  %v2270 = vld [vmem:[%s3 + $0x100] sm:$0xff]
  %v2271 = vld [vmem:[%s3 + $0x108] sm:$0xff]
  %v2272 = vld [vmem:[%s3 + $0x110] sm:$0xff]
  %v2273 = vld [vmem:[%s3 + $0x118] sm:$0xff]
  %v2274 = vld [vmem:[%s3 + $0x120] sm:$0xff]
  %v2275 = vld [vmem:[%s3 + $0x128] sm:$0xff]
  %v2276 = vld [vmem:[%s3 + $0x130] sm:$0xff]
  %v2277 = vld [vmem:[%s3 + $0x138] sm:$0xff]
  %v2278 = vld [vmem:[%s3 + $0x140] sm:$0xff]
  %v2279 = vld [vmem:[%s3 + $0x148] sm:$0xff]
  %v2280 = vld [vmem:[%s3 + $0x150] sm:$0xff]
  %v2281 = vld [vmem:[%s3 + $0x158] sm:$0xff]
  %v2282 = vld [vmem:[%s3 + $0x160] sm:$0xff]
  %v2283 = vld [vmem:[%s3 + $0x168] sm:$0xff]
  %v2284 = vld [vmem:[%s3 + $0x170] sm:$0xff]
  %v2285 = vld [vmem:[%s3 + $0x178] sm:$0xff]
  %v2286 = vld [vmem:[%s3 + $0x180] sm:$0xff]
  %v2287 = vld [vmem:[%s3 + $0x188] sm:$0xff]
  %v2288 = vld [vmem:[%s3 + $0x190] sm:$0xff]
  %v2289 = vld [vmem:[%s3 + $0x198] sm:$0xff]
  %v2290 = vld [vmem:[%s3 + $0x1a0] sm:$0xff]
  %v2291 = vld [vmem:[%s3 + $0x1a8] sm:$0xff]
  %v2292 = vld [vmem:[%s3 + $0x1b0] sm:$0xff]
  %v2293 = vld [vmem:[%s3 + $0x1b8] sm:$0xff]
  %v2294 = vld [vmem:[%s3 + $0x1c0] sm:$0xff]
  %v2295 = vld [vmem:[%s3 + $0x1c8] sm:$0xff]
  %v2296 = vld [vmem:[%s3 + $0x1d0] sm:$0xff]
  %v2297 = vld [vmem:[%s3 + $0x1d8] sm:$0xff]
  %v2298 = vld [vmem:[%s3 + $0x1e0] sm:$0xff]
  %v2299 = vld [vmem:[%s3 + $0x1e8] sm:$0xff]
  %v2300 = vld [vmem:[%s3 + $0x1f0] sm:$0xff]
  %v2301 = vld [vmem:[%s3 + $0x1f8] sm:$0xff]
  %v2302 = vld [vmem:[%s3 + $0x200] sm:$0xff]
  %v2303 = vld [vmem:[%s3 + $0x208] sm:$0xff]
  %v2304 = vld [vmem:[%s3 + $0x210] sm:$0xff]
  %v2305 = vld [vmem:[%s3 + $0x218] sm:$0xff]
  %v2306 = vld [vmem:[%s3 + $0x220] sm:$0xff]
  %v2307 = vld [vmem:[%s3 + $0x228] sm:$0xff]
  %v2308 = vld [vmem:[%s3 + $0x230] sm:$0xff]
  %v2309 = vld [vmem:[%s3 + $0x238] sm:$0xff]
  %v2310 = vld [vmem:[%s3 + $0x240] sm:$0xff]
  %v2311 = vld [vmem:[%s3 + $0x248] sm:$0xff]
  %v2312 = vld [vmem:[%s3 + $0x250] sm:$0xff]
  %v2313 = vld [vmem:[%s3 + $0x258] sm:$0xff]
  %v2314 = vld [vmem:[%s3 + $0x260] sm:$0xff]
  %v2315 = vld [vmem:[%s3 + $0x268] sm:$0xff]
  %v2316 = vld [vmem:[%s3 + $0x270] sm:$0xff]
  %v2317 = vld [vmem:[%s3 + $0x278] sm:$0xff]
  %v2318 = vld [vmem:[%s3 + $0x280] sm:$0xff]
  %v2319 = vld [vmem:[%s3 + $0x288] sm:$0xff]
  %v2320 = vld [vmem:[%s3 + $0x290] sm:$0xff]
  %v2321 = vld [vmem:[%s3 + $0x298] sm:$0xff]
  %v2322 = vld [vmem:[%s3 + $0x2a0] sm:$0xff]
  %v2323 = vld [vmem:[%s3 + $0x2a8] sm:$0xff]
  %v2324 = vld [vmem:[%s3 + $0x2b0] sm:$0xff]
  %v2325 = vld [vmem:[%s3 + $0x2b8] sm:$0xff]
  %v2326 = vld [vmem:[%s3 + $0x2c0] sm:$0xff]
  %v2327 = vld [vmem:[%s3 + $0x2c8] sm:$0xff]
  %v2328 = vld [vmem:[%s3 + $0x2d0] sm:$0xff]
  %v2329 = vld [vmem:[%s3 + $0x2d8] sm:$0xff]
  %v2330 = vld [vmem:[%s3 + $0x2e0] sm:$0xff]
  %v2331 = vld [vmem:[%s3 + $0x2e8] sm:$0xff]
  %v2332 = vld [vmem:[%s3 + $0x2f0] sm:$0xff]
  %v2333 = vld [vmem:[%s3 + $0x2f8] sm:$0xff]
  %v2334 = vld [vmem:[%s3 + $0x300] sm:$0xff]
  %v2335 = vld [vmem:[%s3 + $0x308] sm:$0xff]
  %v2336 = vld [vmem:[%s3 + $0x310] sm:$0xff]
  %v2337 = vld [vmem:[%s3 + $0x318] sm:$0xff]
  %v2338 = vld [vmem:[%s3 + $0x320] sm:$0xff]
  %v2339 = vld [vmem:[%s3 + $0x328] sm:$0xff]
  %v2340 = vld [vmem:[%s3 + $0x330] sm:$0xff]
  %v2341 = vld [vmem:[%s3 + $0x338] sm:$0xff]
  %v2342 = vld [vmem:[%s3 + $0x340] sm:$0xff]
  %v2343 = vld [vmem:[%s3 + $0x348] sm:$0xff]
  %v2344 = vld [vmem:[%s3 + $0x350] sm:$0xff]
  %v2345 = vld [vmem:[%s3 + $0x358] sm:$0xff]
  %v2346 = vld [vmem:[%s3 + $0x360] sm:$0xff]
  %v2347 = vld [vmem:[%s3 + $0x368] sm:$0xff]
  %v2348 = vld [vmem:[%s3 + $0x370] sm:$0xff]
  %v2349 = vld [vmem:[%s3 + $0x378] sm:$0xff]
  %v2350 = vld [vmem:[%s3 + $0x380] sm:$0xff]
  %v2351 = vld [vmem:[%s3 + $0x388] sm:$0xff]
  %v2352 = vld [vmem:[%s3 + $0x390] sm:$0xff]
  %v2353 = vld [vmem:[%s3 + $0x398] sm:$0xff]
  %v2354 = vld [vmem:[%s3 + $0x3a0] sm:$0xff]
  %v2355 = vld [vmem:[%s3 + $0x3a8] sm:$0xff]
  %v2356 = vld [vmem:[%s3 + $0x3b0] sm:$0xff]
  %v2357 = vld [vmem:[%s3 + $0x3b8] sm:$0xff]
  %v2358 = vld [vmem:[%s3 + $0x3c0] sm:$0xff]
  %v2359 = vld [vmem:[%s3 + $0x3c8] sm:$0xff]
  %v2360 = vld [vmem:[%s3 + $0x3d0] sm:$0xff]
  %v2361 = vld [vmem:[%s3 + $0x3d8] sm:$0xff]
  %v2362 = vld [vmem:[%s3 + $0x3e0] sm:$0xff]
  %v2363 = vld [vmem:[%s3 + $0x3e8] sm:$0xff]
  %v2364 = vld [vmem:[%s3 + $0x3f0] sm:$0xff]
  %v2365 = vld [vmem:[%s3 + $0x3f8] sm:$0xff]
  %v2366 = vld [vmem:[%s4] sm:$0x1]
  %v2368 = vlaneseq
  %v2369 = vshrl.u32 %v2368, 7
  %v2370 = vsub.s32 0, %v2369
  %v2371 = vrot.slane %v2366, %v2370
  %2373 = vmatprep.subr.mxu0 0.0
  %2374 = vmatpush1.msra.mxu0 %v2253
  %2375 = vmatprep.subr.mxu0 0.0
  %2376 = vmatpush1.msra.mxu0 %v2252
  %2377 = vmatprep.subr.mxu0 0.0
  %2378 = vmatpush1.msra.mxu0 %v2251
  %2379 = vmatprep.subr.mxu0 0.0
  %2380 = vmatpush1.msra.mxu0 %v2250
  %2381 = vmatprep.subr.mxu0 0.0
  %2382 = vmatpush1.msra.mxu0 %v2249
  %2383 = vmatprep.subr.mxu0 0.0
  %2384 = vmatpush1.msra.mxu0 %v2248
  %2385 = vmatprep.subr.mxu0 0.0
  %2386 = vmatpush1.msra.mxu0 %v2247
  %2387 = vmatprep.subr.mxu0 0.0
  %2388 = vmatpush1.msra.mxu0 %v2246
  %2389 = vmatprep.subr.mxu0 0.0
  %2390 = vmatpush1.msra.mxu0 %v2245
  %2391 = vmatprep.subr.mxu0 0.0
  %2392 = vmatpush1.msra.mxu0 %v2244
  %2393 = vmatprep.subr.mxu0 0.0
  %2394 = vmatpush1.msra.mxu0 %v2243
  %2395 = vmatprep.subr.mxu0 0.0
  %2396 = vmatpush1.msra.mxu0 %v2242
  %2397 = vmatprep.subr.mxu0 0.0
  %2398 = vmatpush1.msra.mxu0 %v2241
  %2399 = vmatprep.subr.mxu0 0.0
  %2400 = vmatpush1.msra.mxu0 %v2240
  %2401 = vmatprep.subr.mxu0 0.0
  %2402 = vmatpush1.msra.mxu0 %v2239
  %2403 = vmatprep.subr.mxu0 0.0
  %2404 = vmatpush1.msra.mxu0 %v2238
  %2405 = vmatprep.subr.mxu0 0.0
  %2406 = vmatpush2.msra.mxu0 %v2269
  %2407 = vmatprep.subr.mxu0 0.0
  %2408 = vmatpush2.msra.mxu0 %v2268
  %2409 = vmatprep.subr.mxu0 0.0
  %2410 = vmatpush2.msra.mxu0 %v2267
  %2411 = vmatprep.subr.mxu0 0.0
  %2412 = vmatpush2.msra.mxu0 %v2266
  %2413 = vmatprep.subr.mxu0 0.0
  %2414 = vmatpush2.msra.mxu0 %v2265
  %2415 = vmatprep.subr.mxu0 0.0
  %2416 = vmatpush2.msra.mxu0 %v2264
  %2417 = vmatprep.subr.mxu0 0.0
  %2418 = vmatpush2.msra.mxu0 %v2263
  %2419 = vmatprep.subr.mxu0 0.0
  %2420 = vmatpush2.msra.mxu0 %v2262
  %2421 = vmatprep.subr.mxu0 0.0
  %2422 = vmatpush2.msra.mxu0 %v2261
  %2423 = vmatprep.subr.mxu0 0.0
  %2424 = vmatpush2.msra.mxu0 %v2260
  %2425 = vmatprep.subr.mxu0 0.0
  %2426 = vmatpush2.msra.mxu0 %v2259
  %2427 = vmatprep.subr.mxu0 0.0
  %2428 = vmatpush2.msra.mxu0 %v2258
  %2429 = vmatprep.subr.mxu0 0.0
  %2430 = vmatpush2.msra.mxu0 %v2257
  %2431 = vmatprep.subr.mxu0 0.0
  %2432 = vmatpush2.msra.mxu0 %v2256
  %2433 = vmatprep.subr.mxu0 0.0
  %2434 = vmatpush2.msra.mxu0 %v2255
  %2435 = vmatprep.subr.mxu0 0.0
  %2436 = vmatpush2.msra.mxu0 %v2254
  %2437 = vmatprep.mubr.f32.mxu0 %v2231
  %2438 = vmatmul.mubr.f32.gmra.mxu0 %v2230
  %v2439 = vpop.f32.mrf.mxu0
  %v2440 = vadd.f32 %v2371, %v2439
  %v2441 = vpop.f32.mrf.mxu0
  %2442 = vdwg.mxu0
  %2443 = vmatprep.subr.mxu0 0.0
  %2444 = vmatpush1.msra.mxu0 %v2285
  %2445 = vmatprep.subr.mxu0 0.0
  %2446 = vmatpush1.msra.mxu0 %v2284
  %2447 = vmatprep.subr.mxu0 0.0
  %2448 = vmatpush1.msra.mxu0 %v2283
  %2449 = vmatprep.subr.mxu0 0.0
  %2450 = vmatpush1.msra.mxu0 %v2282
  %2451 = vmatprep.subr.mxu0 0.0
  %2452 = vmatpush1.msra.mxu0 %v2281
  %2453 = vmatprep.subr.mxu0 0.0
  %2454 = vmatpush1.msra.mxu0 %v2280
  %2455 = vmatprep.subr.mxu0 0.0
  %2456 = vmatpush1.msra.mxu0 %v2279
  %2457 = vmatprep.subr.mxu0 0.0
  %2458 = vmatpush1.msra.mxu0 %v2278
  %2459 = vmatprep.subr.mxu0 0.0
  %2460 = vmatpush1.msra.mxu0 %v2277
  %2461 = vmatprep.subr.mxu0 0.0
  %2462 = vmatpush1.msra.mxu0 %v2276
  %2463 = vmatprep.subr.mxu0 0.0
  %2464 = vmatpush1.msra.mxu0 %v2275
  %2465 = vmatprep.subr.mxu0 0.0
  %2466 = vmatpush1.msra.mxu0 %v2274
  %2467 = vmatprep.subr.mxu0 0.0
  %2468 = vmatpush1.msra.mxu0 %v2273
  %2469 = vmatprep.subr.mxu0 0.0
  %2470 = vmatpush1.msra.mxu0 %v2272
  %2471 = vmatprep.subr.mxu0 0.0
  %2472 = vmatpush1.msra.mxu0 %v2271
  %2473 = vmatprep.subr.mxu0 0.0
  %2474 = vmatpush1.msra.mxu0 %v2270
  %2475 = vmatprep.subr.mxu0 0.0
  %2476 = vmatpush2.msra.mxu0 %v2301
  %2477 = vmatprep.subr.mxu0 0.0
  %2478 = vmatpush2.msra.mxu0 %v2300
  %2479 = vmatprep.subr.mxu0 0.0
  %2480 = vmatpush2.msra.mxu0 %v2299
  %2481 = vmatprep.subr.mxu0 0.0
  %2482 = vmatpush2.msra.mxu0 %v2298
  %2483 = vmatprep.subr.mxu0 0.0
  %2484 = vmatpush2.msra.mxu0 %v2297
  %2485 = vmatprep.subr.mxu0 0.0
  %2486 = vmatpush2.msra.mxu0 %v2296
  %2487 = vmatprep.subr.mxu0 0.0
  %2488 = vmatpush2.msra.mxu0 %v2295
  %2489 = vmatprep.subr.mxu0 0.0
  %2490 = vmatpush2.msra.mxu0 %v2294
  %2491 = vmatprep.subr.mxu0 0.0
  %2492 = vmatpush2.msra.mxu0 %v2293
  %2493 = vmatprep.subr.mxu0 0.0
  %2494 = vmatpush2.msra.mxu0 %v2292
  %2495 = vmatprep.subr.mxu0 0.0
  %2496 = vmatpush2.msra.mxu0 %v2291
  %2497 = vmatprep.subr.mxu0 0.0
  %2498 = vmatpush2.msra.mxu0 %v2290
  %2499 = vmatprep.subr.mxu0 0.0
  %2500 = vmatpush2.msra.mxu0 %v2289
  %2501 = vmatprep.subr.mxu0 0.0
  %2502 = vmatpush2.msra.mxu0 %v2288
  %2503 = vmatprep.subr.mxu0 0.0
  %2504 = vmatpush2.msra.mxu0 %v2287
  %2505 = vmatprep.subr.mxu0 0.0
  %2506 = vmatpush2.msra.mxu0 %v2286
  %2507 = vmatprep.mubr.f32.mxu0 %v2233
  %2508 = vmatmul.mubr.f32.gmra.mxu0 %v2232
  %v2509 = vpop.f32.mrf.mxu0
  %v2510 = vadd.f32 %v2440, %v2509
  %v2511 = vpop.f32.mrf.mxu0
  %2512 = vdwg.mxu0
  %2513 = vmatprep.subr.mxu0 0.0
  %2514 = vmatpush1.msra.mxu0 %v2317
  %2515 = vmatprep.subr.mxu0 0.0
  %2516 = vmatpush1.msra.mxu0 %v2316
  %2517 = vmatprep.subr.mxu0 0.0
  %2518 = vmatpush1.msra.mxu0 %v2315
  %2519 = vmatprep.subr.mxu0 0.0
  %2520 = vmatpush1.msra.mxu0 %v2314
  %2521 = vmatprep.subr.mxu0 0.0
  %2522 = vmatpush1.msra.mxu0 %v2313
  %2523 = vmatprep.subr.mxu0 0.0
  %2524 = vmatpush1.msra.mxu0 %v2312
  %2525 = vmatprep.subr.mxu0 0.0
  %2526 = vmatpush1.msra.mxu0 %v2311
  %2527 = vmatprep.subr.mxu0 0.0
  %2528 = vmatpush1.msra.mxu0 %v2310
  %2529 = vmatprep.subr.mxu0 0.0
  %2530 = vmatpush1.msra.mxu0 %v2309
  %2531 = vmatprep.subr.mxu0 0.0
  %2532 = vmatpush1.msra.mxu0 %v2308
  %2533 = vmatprep.subr.mxu0 0.0
  %2534 = vmatpush1.msra.mxu0 %v2307
  %2535 = vmatprep.subr.mxu0 0.0
  %2536 = vmatpush1.msra.mxu0 %v2306
  %2537 = vmatprep.subr.mxu0 0.0
  %2538 = vmatpush1.msra.mxu0 %v2305
  %2539 = vmatprep.subr.mxu0 0.0
  %2540 = vmatpush1.msra.mxu0 %v2304
  %2541 = vmatprep.subr.mxu0 0.0
  %2542 = vmatpush1.msra.mxu0 %v2303
  %2543 = vmatprep.subr.mxu0 0.0
  %2544 = vmatpush1.msra.mxu0 %v2302
  %2545 = vmatprep.subr.mxu0 0.0
  %2546 = vmatpush2.msra.mxu0 %v2333
  %2547 = vmatprep.subr.mxu0 0.0
  %2548 = vmatpush2.msra.mxu0 %v2332
  %2549 = vmatprep.subr.mxu0 0.0
  %2550 = vmatpush2.msra.mxu0 %v2331
  %2551 = vmatprep.subr.mxu0 0.0
  %2552 = vmatpush2.msra.mxu0 %v2330
  %2553 = vmatprep.subr.mxu0 0.0
  %2554 = vmatpush2.msra.mxu0 %v2329
  %2555 = vmatprep.subr.mxu0 0.0
  %2556 = vmatpush2.msra.mxu0 %v2328
  %2557 = vmatprep.subr.mxu0 0.0
  %2558 = vmatpush2.msra.mxu0 %v2327
  %2559 = vmatprep.subr.mxu0 0.0
  %2560 = vmatpush2.msra.mxu0 %v2326
  %2561 = vmatprep.subr.mxu0 0.0
  %2562 = vmatpush2.msra.mxu0 %v2325
  %2563 = vmatprep.subr.mxu0 0.0
  %2564 = vmatpush2.msra.mxu0 %v2324
  %2565 = vmatprep.subr.mxu0 0.0
  %2566 = vmatpush2.msra.mxu0 %v2323
  %2567 = vmatprep.subr.mxu0 0.0
  %2568 = vmatpush2.msra.mxu0 %v2322
  %2569 = vmatprep.subr.mxu0 0.0
  %2570 = vmatpush2.msra.mxu0 %v2321
  %2571 = vmatprep.subr.mxu0 0.0
  %2572 = vmatpush2.msra.mxu0 %v2320
  %2573 = vmatprep.subr.mxu0 0.0
  %2574 = vmatpush2.msra.mxu0 %v2319
  %2575 = vmatprep.subr.mxu0 0.0
  %2576 = vmatpush2.msra.mxu0 %v2318
  %2577 = vmatprep.mubr.f32.mxu0 %v2235
  %2578 = vmatmul.mubr.f32.gmra.mxu0 %v2234
  %v2579 = vpop.f32.mrf.mxu0
  %v2580 = vadd.f32 %v2510, %v2579
  %v2581 = vpop.f32.mrf.mxu0
  %2582 = vdwg.mxu0
  %2583 = vmatprep.subr.mxu0 0.0
  %2584 = vmatpush1.msra.mxu0 %v2349
  %2585 = vmatprep.subr.mxu0 0.0
  %2586 = vmatpush1.msra.mxu0 %v2348
  %2587 = vmatprep.subr.mxu0 0.0
  %2588 = vmatpush1.msra.mxu0 %v2347
  %2589 = vmatprep.subr.mxu0 0.0
  %2590 = vmatpush1.msra.mxu0 %v2346
  %2591 = vmatprep.subr.mxu0 0.0
  %2592 = vmatpush1.msra.mxu0 %v2345
  %2593 = vmatprep.subr.mxu0 0.0
  %2594 = vmatpush1.msra.mxu0 %v2344
  %2595 = vmatprep.subr.mxu0 0.0
  %2596 = vmatpush1.msra.mxu0 %v2343
  %2597 = vmatprep.subr.mxu0 0.0
  %2598 = vmatpush1.msra.mxu0 %v2342
  %2599 = vmatprep.subr.mxu0 0.0
  %2600 = vmatpush1.msra.mxu0 %v2341
  %2601 = vmatprep.subr.mxu0 0.0
  %2602 = vmatpush1.msra.mxu0 %v2340
  %2603 = vmatprep.subr.mxu0 0.0
  %2604 = vmatpush1.msra.mxu0 %v2339
  %2605 = vmatprep.subr.mxu0 0.0
  %2606 = vmatpush1.msra.mxu0 %v2338
  %2607 = vmatprep.subr.mxu0 0.0
  %2608 = vmatpush1.msra.mxu0 %v2337
  %2609 = vmatprep.subr.mxu0 0.0
  %2610 = vmatpush1.msra.mxu0 %v2336
  %2611 = vmatprep.subr.mxu0 0.0
  %2612 = vmatpush1.msra.mxu0 %v2335
  %2613 = vmatprep.subr.mxu0 0.0
  %2614 = vmatpush1.msra.mxu0 %v2334
  %2615 = vmatprep.subr.mxu0 0.0
  %2616 = vmatpush2.msra.mxu0 %v2365
  %2617 = vmatprep.subr.mxu0 0.0
  %2618 = vmatpush2.msra.mxu0 %v2364
  %2619 = vmatprep.subr.mxu0 0.0
  %2620 = vmatpush2.msra.mxu0 %v2363
  %2621 = vmatprep.subr.mxu0 0.0
  %2622 = vmatpush2.msra.mxu0 %v2362
  %2623 = vmatprep.subr.mxu0 0.0
  %2624 = vmatpush2.msra.mxu0 %v2361
  %2625 = vmatprep.subr.mxu0 0.0
  %2626 = vmatpush2.msra.mxu0 %v2360
  %2627 = vmatprep.subr.mxu0 0.0
  %2628 = vmatpush2.msra.mxu0 %v2359
  %2629 = vmatprep.subr.mxu0 0.0
  %2630 = vmatpush2.msra.mxu0 %v2358
  %2631 = vmatprep.subr.mxu0 0.0
  %2632 = vmatpush2.msra.mxu0 %v2357
  %2633 = vmatprep.subr.mxu0 0.0
  %2634 = vmatpush2.msra.mxu0 %v2356
  %2635 = vmatprep.subr.mxu0 0.0
  %2636 = vmatpush2.msra.mxu0 %v2355
  %2637 = vmatprep.subr.mxu0 0.0
  %2638 = vmatpush2.msra.mxu0 %v2354
  %2639 = vmatprep.subr.mxu0 0.0
  %2640 = vmatpush2.msra.mxu0 %v2353
  %2641 = vmatprep.subr.mxu0 0.0
  %2642 = vmatpush2.msra.mxu0 %v2352
  %2643 = vmatprep.subr.mxu0 0.0
  %2644 = vmatpush2.msra.mxu0 %v2351
  %2645 = vmatprep.subr.mxu0 0.0
  %2646 = vmatpush2.msra.mxu0 %v2350
  %2647 = vmatprep.mubr.f32.mxu0 %v2237
  %2648 = vmatmul.mubr.f32.gmra.mxu0 %v2236
  %v2649 = vpop.f32.mrf.mxu0
  %v2650 = vadd.f32 %v2580, %v2649
  %v2651 = vpop.f32.mrf.mxu0
  %2652 = vdwg.mxu0
  %2653 = vst [vmem:[%s5] sm:$0xff] %v2650
  // Predicated region
  $region22: #{net_forward.3} parent=0 // pred_check
    _
  $region23: #{net_forward.3} parent=0 // pred_check_branch
    %2655 = sbr.rel (0) target = $region25
  $region24: #{net_forward.3} parent=0 // pred_region
    _
  $region25: #{net_forward.3} parent=0 // pred_fallthru
    _
  // Predicated region
  $region26: #{net_forward.3} parent=0 // pred_check
    _
  $region27: #{net_forward.3} parent=0 // pred_check_branch
    %2657 = sbr.rel (0) target = $region29
  $region28: #{net_forward.3} parent=0 // pred_region
    _
  $region29: #{net_forward.3} parent=0 // pred_fallthru
    _

// kernel: net_forward.2
$region0: #{net_forward.2}
  #allocation0 [shape = 'u32[]', space=smem, size = 0x4, offset = 0x4, fixed_abs, tag = 'smem constant byte address 0x4 - core index']
  #allocation1 [shape = 'u32[144,128]{1,0:T(1,128)}', space=vmem, size = 0x12000, scoped, tag = 'internal scratch']
  %s0 = inlined_call_operand.vmem [shape: f32[8,7296], index: 0, kind: input, shape index: {}]
  %s1 = inlined_call_operand.hbm [shape: f32[7296,1024], index: 1, kind: input, shape index: {}]
  %s2 = inlined_call_operand.hbm [shape: f32[1,1024], index: 2, kind: input, shape index: {}]
  %s3 = inlined_call_operand.vmem [shape: f32[8,1024], index: 3, kind: output, shape index: {}]
  %s4 = sld [smem:[#allocation0]]
  $region61: #{net_forward.2} parent=0
    _
  %s6 = ssub.s32 1, %s4
  %s7 = scalar_select 0, %s6, %s4
  $region1: #{net_forward.2} parent=0
    #allocation2 [shape = 'u8[9961472]{0}', space=vmem, size = 0x980000, scoped, tag = 'input window, operand 1']
    #allocation3 [shape = 's32[2]{0}', space=sflag, size = 0x8, scoped, tag = 'scoped memory for net_forward.2']
    #allocation4 [shape = 'u8[4096]{0}', space=vmem, size = 0x1000, scoped, tag = 'input window, operand 2']
    #allocation5 [shape = 's32[2]{0}', space=sflag, size = 0x8, scoped, tag = 'scoped memory for net_forward.2']
    %8 = vsyncpa [#allocation3], 0
    %s9 = scalar_lea.sflag [#allocation3], 1
    %10 = vsyncpa %s9, 0
    %11 = vsyncpa [#allocation5], 0
    %s12 = scalar_lea.sflag [#allocation5], 1
    %13 = vsyncpa %s12, 0
    loop: start=0, step=1, limit=8
    $region2: #{net_forward.2} parent=1 // loop_pre_header
      _
    $region3: #{net_forward.2} parent=1 // loop_header
      %s15 = sphi 0, %s19
      %p16 = scmp.ge.s32.totalorder %s15, 8
      %s22 = sphi 0, %s34
      %s23 = sphi 0, %s30
      %s24 = sphi 0, %s22
      %s25 = sphi 0, %s23
      %s26 = sphi 0, %s24
      %s27 = sphi 0, %s25
      %s37 = sphi 0, %s39
      %s40 = sphi 0, %s37
      %s41 = sphi 0, %s40
      %s57 = sphi 0, %s41
      %s65 = sphi 0, %s67
      %s68 = sphi 0, %s65
      %s69 = sphi 0, %s68
      %s85 = sphi 0, %s69
      %s91 = sphi 0, %s93
      %s94 = sphi 0, %s91
      %s95 = sphi 0, %s94
      %s111 = sphi 0, %s95
      %s117 = sphi 0, %s119
      %s120 = sphi 0, %s117
      %s121 = sphi 0, %s120
      %s137 = sphi 0, %s121
    $region4: #{net_forward.2} parent=1 // loop_header_branch
      %18 = sbr.rel (%p16) target = $region8
    $region5: #{net_forward.2} parent=1 // loop_body
      %s20 = ssub.s32 %s15, 1
      %s21 = ssub.s32 %s15, 2
      %s28 = sadd.s32 1, %s23
      %p29 = scmp.ge.s32.totalorder %s28, 3
      %s30 = scalar_select %p29, 0, %s28
      %s31 = sadd.s32 1, %s22
      %s32 = scalar_select %p29, %s31, %s22
      %p33 = scmp.ge.s32.totalorder %s32, 2
      %s34 = scalar_select %p33, 0, %s32
      %s35 = ssub.s32 %s23, %s30
      %p36 = scmp.eq.s32.totalorder %s35, 0
      %s38 = sadd.s32 %s37, 1
      %s39 = scalar_select %p36, %s37, %s38
      %p42 = pneg %p36
      %p43 = scmp.eq.s32.totalorder %s15, 5
      %p44 = por %p42, %p43
      %p45 = scmp.ne.s32.totalorder %s37, %s40
      %p46 = scmp.eq.s32.totalorder %s15, 0
      %p47 = por %p45, %p46
      %p48 = scmp.ne.s32.totalorder %s37, %s40
      %p49 = scmp.eq.s32.totalorder %s20, 5
      %p50 = por %p48, %p49
      %p51 = scmp.ne.s32.totalorder %s40, %s41
      %p52 = scmp.eq.s32.totalorder %s20, 0
      %p53 = por %p51, %p52
      %p54 = scmp.ne.s32.totalorder %s40, %s41
      %p55 = scmp.eq.s32.totalorder %s21, 5
      %p56 = por %p54, %p55
      %p58 = scmp.ne.s32.totalorder %s41, %s57
      %p59 = scmp.eq.s32.totalorder %s21, 0
      %p60 = por %p58, %p59
      %s61 = ssub.s32 %s23, %s30
      %s62 = ssub.s32 %s22, %s34
      %s63 = sor.u32 %s61, %s62
      %p64 = scmp.eq.s32.totalorder %s63, 0
      %s66 = sadd.s32 %s65, 1
      %s67 = scalar_select %p64, %s65, %s66
      %p70 = pneg %p64
      %p71 = scmp.eq.s32.totalorder %s15, 5
      %p72 = por %p70, %p71
      %p73 = scmp.ne.s32.totalorder %s65, %s68
      %p74 = scmp.eq.s32.totalorder %s15, 0
      %p75 = por %p73, %p74
      %p76 = scmp.ne.s32.totalorder %s65, %s68
      %p77 = scmp.eq.s32.totalorder %s20, 5
      %p78 = por %p76, %p77
      %p79 = scmp.ne.s32.totalorder %s68, %s69
      %p80 = scmp.eq.s32.totalorder %s20, 0
      %p81 = por %p79, %p80
      %p82 = scmp.ne.s32.totalorder %s68, %s69
      %p83 = scmp.eq.s32.totalorder %s21, 5
      %p84 = por %p82, %p83
      %p86 = scmp.ne.s32.totalorder %s69, %s85
      %p87 = scmp.eq.s32.totalorder %s21, 0
      %p88 = por %p86, %p87
      %s89 = ssub.s32 %s22, %s34
      %p90 = scmp.eq.s32.totalorder %s89, 0
      %s92 = sadd.s32 %s91, 1
      %s93 = scalar_select %p90, %s91, %s92
      %p96 = pneg %p90
      %p97 = scmp.eq.s32.totalorder %s15, 5
      %p98 = por %p96, %p97
      %p99 = scmp.ne.s32.totalorder %s91, %s94
      %p100 = scmp.eq.s32.totalorder %s15, 0
      %p101 = por %p99, %p100
      %p102 = scmp.ne.s32.totalorder %s91, %s94
      %p103 = scmp.eq.s32.totalorder %s20, 5
      %p104 = por %p102, %p103
      %p105 = scmp.ne.s32.totalorder %s94, %s95
      %p106 = scmp.eq.s32.totalorder %s20, 0
      %p107 = por %p105, %p106
      %p108 = scmp.ne.s32.totalorder %s94, %s95
      %p109 = scmp.eq.s32.totalorder %s21, 5
      %p110 = por %p108, %p109
      %p112 = scmp.ne.s32.totalorder %s95, %s111
      %p113 = scmp.eq.s32.totalorder %s21, 0
      %p114 = por %p112, %p113
      %s115 = ssub.s32 %s22, %s34
      %p116 = scmp.eq.s32.totalorder %s115, 0
      %s118 = sadd.s32 %s117, 1
      %s119 = scalar_select %p116, %s117, %s118
      %p122 = pneg %p116
      %p123 = scmp.eq.s32.totalorder %s15, 5
      %p124 = por %p122, %p123
      %p125 = scmp.ne.s32.totalorder %s117, %s120
      %p126 = scmp.eq.s32.totalorder %s15, 0
      %p127 = por %p125, %p126
      %p128 = scmp.ne.s32.totalorder %s117, %s120
      %p129 = scmp.eq.s32.totalorder %s20, 5
      %p130 = por %p128, %p129
      %p131 = scmp.ne.s32.totalorder %s120, %s121
      %p132 = scmp.eq.s32.totalorder %s20, 0
      %p133 = por %p131, %p132
      %p134 = scmp.ne.s32.totalorder %s120, %s121
      %p135 = scmp.eq.s32.totalorder %s21, 5
      %p136 = por %p134, %p135
      %p138 = scmp.ne.s32.totalorder %s121, %s137
      %p139 = scmp.eq.s32.totalorder %s21, 0
      %p140 = por %p138, %p139
      %p141 = scmp.le.s32.totalorder 1, %s15
      %p142 = scmp.lt.s32.totalorder %s15, 7
      %p143 = pnand %p141, %p142
      %p144 = pneg %p143
      // Predicated region
      $region9: #{net_forward.2} parent=5 // pred_check
        _
      $region10: #{net_forward.2} parent=5 // pred_check_branch
        %146 = sbr.rel (%p143) target = $region12
      $region11: #{net_forward.2} parent=5 // pred_region
        %s147 = ssub.s32 %s15, 1
      $region12: #{net_forward.2} parent=5 // pred_fallthru
        _
      %p148 = scmp.lt.s32.totalorder %s15, 6
      // Predicated region
      $region13: #{net_forward.2} parent=5 // pred_check
        %p149 = pneg %p148
      $region14: #{net_forward.2} parent=5 // pred_check_branch
        %151 = sbr.rel (%p149) target = $region16
      $region15: #{net_forward.2} parent=5 // pred_region
        // Predicated region
        $region17: #{net_forward.2} parent=15 // pred_check
          %p152 = pneg %p47
        $region18: #{net_forward.2} parent=15 // pred_check_branch
          %154 = sbr.rel (%p152) target = $region20
        $region19: #{net_forward.2} parent=15 // pred_region
          %s155 = smul.u32 19, %s23
          %p156 = scmp.lt.s32.totalorder %s155, 56
          %s157 = scalar_select %p156, %s155, 56
          %s158 = smul.addr %s157, 8
          %s159 = scalar_lea.vmem %s0, %s158
          %s160 = smul.u32 19, %s23
        $region20: #{net_forward.2} parent=15 // pred_fallthru
          _
        // Predicated region
        $region21: #{net_forward.2} parent=15 // pred_check
          %p161 = pneg %p75
        $region22: #{net_forward.2} parent=15 // pred_check_branch
          %163 = sbr.rel (%p161) target = $region24
        $region23: #{net_forward.2} parent=15 // pred_region
          %s164 = sand.u32 %s65, 1
          %s165 = scalar_lea.sflag [#allocation3], %s164
          %s166 = sand.u32 %s65, 1
          %s167 = smul.addr %s166, 9728
          %s168 = scalar_lea.vmem [#allocation2], %s167
          %s169 = smul.u32 304, %s23
          %s170 = smul.u32 4, %s22
          %s172 = ssub.s32 155648, 155648
          %173 = vsyncadd %s165, %s172
          %s174 = smul.addr %s169, 8
          %s175 = sadd.s32 %s170, %s174
          %s176 = smul.addr %s175, 128
          %s177 = scalar_lea.hbm %s1, %s176
          %s178 = sshll.u32 %s168, 4
          %s179 = int_to_ptr.vmem [resolvable:$true] %s178
          %184 = dma.hbm_to_vmem [thread:$0]  %s177, 155648, %s179, %s165, 1024, 512, 32
        $region24: #{net_forward.2} parent=15 // pred_fallthru
          _
        // Predicated region
        $region25: #{net_forward.2} parent=15 // pred_check
          %p185 = pneg %p101
        $region26: #{net_forward.2} parent=15 // pred_check_branch
          %187 = sbr.rel (%p185) target = $region28
        $region27: #{net_forward.2} parent=15 // pred_region
          %s188 = sand.u32 %s91, 1
          %s189 = scalar_lea.sflag [#allocation5], %s188
          %s190 = sand.u32 %s91, 1
          %s191 = smul.addr %s190, 4
          %s192 = scalar_lea.vmem [#allocation4], %s191
          %s193 = smul.u32 4, %s22
          %s195 = ssub.s32 64, 64
          %196 = vsyncadd %s189, %s195
          %s197 = smul.addr %s193, 16
          %s198 = scalar_lea.hbm %s2, %s197
          %s200 = sshll.u32 %s192, 4
          %s201 = int_to_ptr.vmem [resolvable:$true] %s200
          %203 = dma.hbm_to_vmem [thread:$0]  %s198, 64, %s201, %s189
        $region28: #{net_forward.2} parent=15 // pred_fallthru
          _
      $region16: #{net_forward.2} parent=5 // pred_fallthru
        _
      %p204 = scmp.le.s32.totalorder 1, %s15
      %p205 = scmp.lt.s32.totalorder %s15, 7
      %p206 = pnand %p204, %p205
      %p207 = pneg %p206
      // Predicated region
      $region29: #{net_forward.2} parent=5 // pred_check
        _
      $region30: #{net_forward.2} parent=5 // pred_check_branch
        %209 = sbr.rel (%p206) target = $region32
      $region31: #{net_forward.2} parent=5 // pred_region
        %s210 = ssub.s32 %s15, 1
        %s211 = sand.u32 %s68, 1
        %s212 = scalar_lea.sflag [#allocation3], %s211
        %s213 = sand.u32 %s68, 1
        %s214 = smul.addr %s213, 9728
        %s215 = scalar_lea.vmem [#allocation2], %s214
        // Predicated region
        $region33: #{net_forward.2} parent=31 // pred_check
          %p216 = pneg %p81
        $region34: #{net_forward.2} parent=31 // pred_check_branch
          %218 = sbr.rel (%p216) target = $region36
        $region35: #{net_forward.2} parent=31 // pred_region
          %219 = dma.done %s212, 155648
        $region36: #{net_forward.2} parent=31 // pred_fallthru
          _
        %s220 = sand.u32 %s94, 1
        %s221 = scalar_lea.sflag [#allocation5], %s220
        %s222 = sand.u32 %s94, 1
        %s223 = smul.addr %s222, 4
        %s224 = scalar_lea.vmem [#allocation4], %s223
        // Predicated region
        $region37: #{net_forward.2} parent=31 // pred_check
          %p225 = pneg %p107
        $region38: #{net_forward.2} parent=31 // pred_check_branch
          %227 = sbr.rel (%p225) target = $region40
        $region39: #{net_forward.2} parent=31 // pred_region
          %228 = dma.done %s221, 64
        $region40: #{net_forward.2} parent=31 // pred_fallthru
          _
        %s229 = smul.u32 19, %s25
        %p230 = scmp.lt.s32.totalorder %s229, 56
        %s231 = scalar_select %p230, %s229, 56
        %s232 = smul.addr %s231, 8
        %s233 = scalar_lea.vmem %s0, %s232
        %p234 = pneg %p53
        %p235 = pneg %p50
        %s236 = sand.u32 %s68, 1
        %s237 = scalar_lea.sflag [#allocation3], %s236
        %s238 = sand.u32 %s68, 1
        %s239 = smul.addr %s238, 9728
        %s240 = scalar_lea.vmem [#allocation2], %s239
        %p241 = pneg %p81
        %p242 = pneg %p78
        %s243 = sand.u32 %s94, 1
        %s244 = scalar_lea.sflag [#allocation5], %s243
        %s245 = sand.u32 %s94, 1
        %s246 = smul.addr %s245, 4
        %s247 = scalar_lea.vmem [#allocation4], %s246
        %p248 = pneg %p107
        %p249 = pneg %p104
        %p250 = pneg %p133
        %p251 = pneg %p130
        %s252 = smul.u32 4, %s24
        %p253 = scmp.lt.s32.totalorder %s252, 7
        %s254 = scalar_select %p253, %s252, 7
        %s255 = smul.addr %s254, 8
        %s256 = scalar_lea.vmem %s3, %s255
        %s257 = smul.u32 19, %s25
        %p258 = scmp.lt.s32.totalorder %s257, 56
        %s259 = scalar_select %p258, %s257, 56
        %s260 = smul.addr %s259, 8
        %s261 = scalar_lea.vmem %s0, %s260
        %s262 = smul.u32 19, %s25
        %s263 = smul.u32 304, %s25
        %s264 = smul.u32 4, %s24
        %s265 = smul.u32 4, %s24
        %s266 = smul.u32 4, %s24
        %p267 = scmp.lt.s32.totalorder %s266, 7
        %s268 = scalar_select %p267, %s266, 7
        %s269 = smul.addr %s268, 8
        %s270 = scalar_lea.vmem %s3, %s269
        %s271 = smul.u32 4, %s24
        %p272 = scmp.eq.s32.totalorder %s25, 0
        // Predicated region
        $region41: #{net_forward.2} parent=31 // pred_check
          %p273 = pneg %p272
        $region42: #{net_forward.2} parent=31 // pred_check_branch
          %275 = sbr.rel (%p273) target = $region44
        $region43: #{net_forward.2} parent=31 // pred_region
          %276 = vst [vmem:[%s270] sm:$0xff] 0.0
          %277 = vst [vmem:[%s270 + $0x8] sm:$0xff] 0.0
          %278 = vst [vmem:[%s270 + $0x10] sm:$0xff] 0.0
          %279 = vst [vmem:[%s270 + $0x18] sm:$0xff] 0.0
        $region44: #{net_forward.2} parent=31 // pred_fallthru
          _
        %v280 = vld [vmem:[%s270] sm:$0xff]
        %v281 = vld [vmem:[%s270 + $0x8] sm:$0xff]
        %v282 = vld [vmem:[%s270 + $0x10] sm:$0xff]
        %v283 = vld [vmem:[%s270 + $0x18] sm:$0xff]
        %v284 = vld [vmem:[%s261] sm:$0xff]
        %v285 = vld [vmem:[%s261 + $0x8] sm:$0xff]
        %v286 = vld [vmem:[%s261 + $0x10] sm:$0xff]
        %v287 = vld [vmem:[%s261 + $0x18] sm:$0xff]
        %v288 = vld [vmem:[%s261 + $0x20] sm:$0xff]
        %v289 = vld [vmem:[%s261 + $0x28] sm:$0xff]
        %v290 = vld [vmem:[%s261 + $0x30] sm:$0xff]
        %v291 = vld [vmem:[%s261 + $0x38] sm:$0xff]
        %v292 = vld [vmem:[%s261 + $0x40] sm:$0xff]
        %v293 = vld [vmem:[%s261 + $0x48] sm:$0xff]
        %v294 = vld [vmem:[%s261 + $0x50] sm:$0xff]
        %v295 = vld [vmem:[%s261 + $0x58] sm:$0xff]
        %v296 = vld [vmem:[%s261 + $0x60] sm:$0xff]
        %v297 = vld [vmem:[%s261 + $0x68] sm:$0xff]
        %v298 = vld [vmem:[%s261 + $0x70] sm:$0xff]
        %v299 = vld [vmem:[%s261 + $0x78] sm:$0xff]
        %v300 = vld [vmem:[%s261 + $0x80] sm:$0xff]
        %v301 = vld [vmem:[%s261 + $0x88] sm:$0xff]
        %v302 = vld [vmem:[%s261 + $0x90] sm:$0xff]
        %v303 = vld [vmem:[%s215] sm:$0xff]
        %v304 = vld [vmem:[%s215 + $0x8] sm:$0xff]
        %v305 = vld [vmem:[%s215 + $0x10] sm:$0xff]
        %v306 = vld [vmem:[%s215 + $0x18] sm:$0xff]
        %v307 = vld [vmem:[%s215 + $0x20] sm:$0xff]
        %v308 = vld [vmem:[%s215 + $0x28] sm:$0xff]
        %v309 = vld [vmem:[%s215 + $0x30] sm:$0xff]
        %v310 = vld [vmem:[%s215 + $0x38] sm:$0xff]
        %v311 = vld [vmem:[%s215 + $0x40] sm:$0xff]
        %v312 = vld [vmem:[%s215 + $0x48] sm:$0xff]
        %v313 = vld [vmem:[%s215 + $0x50] sm:$0xff]
        %v314 = vld [vmem:[%s215 + $0x58] sm:$0xff]
        %v315 = vld [vmem:[%s215 + $0x60] sm:$0xff]
        %v316 = vld [vmem:[%s215 + $0x68] sm:$0xff]
        %v317 = vld [vmem:[%s215 + $0x70] sm:$0xff]
        %v318 = vld [vmem:[%s215 + $0x78] sm:$0xff]
        %v319 = vld [vmem:[%s215 + $0x80] sm:$0xff]
        %v320 = vld [vmem:[%s215 + $0x88] sm:$0xff]
        %v321 = vld [vmem:[%s215 + $0x90] sm:$0xff]
        %v322 = vld [vmem:[%s215 + $0x98] sm:$0xff]
        %v323 = vld [vmem:[%s215 + $0xa0] sm:$0xff]
        %v324 = vld [vmem:[%s215 + $0xa8] sm:$0xff]
        %v325 = vld [vmem:[%s215 + $0xb0] sm:$0xff]
        %v326 = vld [vmem:[%s215 + $0xb8] sm:$0xff]
        %v327 = vld [vmem:[%s215 + $0xc0] sm:$0xff]
        %v328 = vld [vmem:[%s215 + $0xc8] sm:$0xff]
        %v329 = vld [vmem:[%s215 + $0xd0] sm:$0xff]
        %v330 = vld [vmem:[%s215 + $0xd8] sm:$0xff]
        %v331 = vld [vmem:[%s215 + $0xe0] sm:$0xff]
        %v332 = vld [vmem:[%s215 + $0xe8] sm:$0xff]
        %v333 = vld [vmem:[%s215 + $0xf0] sm:$0xff]
        %v334 = vld [vmem:[%s215 + $0xf8] sm:$0xff]
        %v335 = vld [vmem:[%s215 + $0x100] sm:$0xff]
        %v336 = vld [vmem:[%s215 + $0x108] sm:$0xff]
        %v337 = vld [vmem:[%s215 + $0x110] sm:$0xff]
        %v338 = vld [vmem:[%s215 + $0x118] sm:$0xff]
        %v339 = vld [vmem:[%s215 + $0x120] sm:$0xff]
        %v340 = vld [vmem:[%s215 + $0x128] sm:$0xff]
        %v341 = vld [vmem:[%s215 + $0x130] sm:$0xff]
        %v342 = vld [vmem:[%s215 + $0x138] sm:$0xff]
        %v343 = vld [vmem:[%s215 + $0x140] sm:$0xff]
        %v344 = vld [vmem:[%s215 + $0x148] sm:$0xff]
        %v345 = vld [vmem:[%s215 + $0x150] sm:$0xff]
        %v346 = vld [vmem:[%s215 + $0x158] sm:$0xff]
        %v347 = vld [vmem:[%s215 + $0x160] sm:$0xff]
        %v348 = vld [vmem:[%s215 + $0x168] sm:$0xff]
        %v349 = vld [vmem:[%s215 + $0x170] sm:$0xff]
        %v350 = vld [vmem:[%s215 + $0x178] sm:$0xff]
        %v351 = vld [vmem:[%s215 + $0x180] sm:$0xff]
        %v352 = vld [vmem:[%s215 + $0x188] sm:$0xff]
        %v353 = vld [vmem:[%s215 + $0x190] sm:$0xff]
        %v354 = vld [vmem:[%s215 + $0x198] sm:$0xff]
        %v355 = vld [vmem:[%s215 + $0x1a0] sm:$0xff]
        %v356 = vld [vmem:[%s215 + $0x1a8] sm:$0xff]
        %v357 = vld [vmem:[%s215 + $0x1b0] sm:$0xff]
        %v358 = vld [vmem:[%s215 + $0x1b8] sm:$0xff]
        %v359 = vld [vmem:[%s215 + $0x1c0] sm:$0xff]
        %v360 = vld [vmem:[%s215 + $0x1c8] sm:$0xff]
        %v361 = vld [vmem:[%s215 + $0x1d0] sm:$0xff]
        %v362 = vld [vmem:[%s215 + $0x1d8] sm:$0xff]
        %v363 = vld [vmem:[%s215 + $0x1e0] sm:$0xff]
        %v364 = vld [vmem:[%s215 + $0x1e8] sm:$0xff]
        %v365 = vld [vmem:[%s215 + $0x1f0] sm:$0xff]
        %v366 = vld [vmem:[%s215 + $0x1f8] sm:$0xff]
        %v367 = vld [vmem:[%s215 + $0x200] sm:$0xff]
        %v368 = vld [vmem:[%s215 + $0x208] sm:$0xff]
        %v369 = vld [vmem:[%s215 + $0x210] sm:$0xff]
        %v370 = vld [vmem:[%s215 + $0x218] sm:$0xff]
        %v371 = vld [vmem:[%s215 + $0x220] sm:$0xff]
        %v372 = vld [vmem:[%s215 + $0x228] sm:$0xff]
        %v373 = vld [vmem:[%s215 + $0x230] sm:$0xff]
        %v374 = vld [vmem:[%s215 + $0x238] sm:$0xff]
        %v375 = vld [vmem:[%s215 + $0x240] sm:$0xff]
        %v376 = vld [vmem:[%s215 + $0x248] sm:$0xff]
        %v377 = vld [vmem:[%s215 + $0x250] sm:$0xff]
        %v378 = vld [vmem:[%s215 + $0x258] sm:$0xff]
        %v379 = vld [vmem:[%s215 + $0x260] sm:$0xff]
        %v380 = vld [vmem:[%s215 + $0x268] sm:$0xff]
        %v381 = vld [vmem:[%s215 + $0x270] sm:$0xff]
        %v382 = vld [vmem:[%s215 + $0x278] sm:$0xff]
        %v383 = vld [vmem:[%s215 + $0x280] sm:$0xff]
        %v384 = vld [vmem:[%s215 + $0x288] sm:$0xff]
        %v385 = vld [vmem:[%s215 + $0x290] sm:$0xff]
        %v386 = vld [vmem:[%s215 + $0x298] sm:$0xff]
        %v387 = vld [vmem:[%s215 + $0x2a0] sm:$0xff]
        %v388 = vld [vmem:[%s215 + $0x2a8] sm:$0xff]
        %v389 = vld [vmem:[%s215 + $0x2b0] sm:$0xff]
        %v390 = vld [vmem:[%s215 + $0x2b8] sm:$0xff]
        %v391 = vld [vmem:[%s215 + $0x2c0] sm:$0xff]
        %v392 = vld [vmem:[%s215 + $0x2c8] sm:$0xff]
        %v393 = vld [vmem:[%s215 + $0x2d0] sm:$0xff]
        %v394 = vld [vmem:[%s215 + $0x2d8] sm:$0xff]
        %v395 = vld [vmem:[%s215 + $0x2e0] sm:$0xff]
        %v396 = vld [vmem:[%s215 + $0x2e8] sm:$0xff]
        %v397 = vld [vmem:[%s215 + $0x2f0] sm:$0xff]
        %v398 = vld [vmem:[%s215 + $0x2f8] sm:$0xff]
        %v399 = vld [vmem:[%s215 + $0x300] sm:$0xff]
        %v400 = vld [vmem:[%s215 + $0x308] sm:$0xff]
        %v401 = vld [vmem:[%s215 + $0x310] sm:$0xff]
        %v402 = vld [vmem:[%s215 + $0x318] sm:$0xff]
        %v403 = vld [vmem:[%s215 + $0x320] sm:$0xff]
        %v404 = vld [vmem:[%s215 + $0x328] sm:$0xff]
        %v405 = vld [vmem:[%s215 + $0x330] sm:$0xff]
        %v406 = vld [vmem:[%s215 + $0x338] sm:$0xff]
        %v407 = vld [vmem:[%s215 + $0x340] sm:$0xff]
        %v408 = vld [vmem:[%s215 + $0x348] sm:$0xff]
        %v409 = vld [vmem:[%s215 + $0x350] sm:$0xff]
        %v410 = vld [vmem:[%s215 + $0x358] sm:$0xff]
        %v411 = vld [vmem:[%s215 + $0x360] sm:$0xff]
        %v412 = vld [vmem:[%s215 + $0x368] sm:$0xff]
        %v413 = vld [vmem:[%s215 + $0x370] sm:$0xff]
        %v414 = vld [vmem:[%s215 + $0x378] sm:$0xff]
        %v415 = vld [vmem:[%s215 + $0x380] sm:$0xff]
        %v416 = vld [vmem:[%s215 + $0x388] sm:$0xff]
        %v417 = vld [vmem:[%s215 + $0x390] sm:$0xff]
        %v418 = vld [vmem:[%s215 + $0x398] sm:$0xff]
        %v419 = vld [vmem:[%s215 + $0x3a0] sm:$0xff]
        %v420 = vld [vmem:[%s215 + $0x3a8] sm:$0xff]
        %v421 = vld [vmem:[%s215 + $0x3b0] sm:$0xff]
        %v422 = vld [vmem:[%s215 + $0x3b8] sm:$0xff]
        %v423 = vld [vmem:[%s215 + $0x3c0] sm:$0xff]
        %v424 = vld [vmem:[%s215 + $0x3c8] sm:$0xff]
        %v425 = vld [vmem:[%s215 + $0x3d0] sm:$0xff]
        %v426 = vld [vmem:[%s215 + $0x3d8] sm:$0xff]
        %v427 = vld [vmem:[%s215 + $0x3e0] sm:$0xff]
        %v428 = vld [vmem:[%s215 + $0x3e8] sm:$0xff]
        %v429 = vld [vmem:[%s215 + $0x3f0] sm:$0xff]
        %v430 = vld [vmem:[%s215 + $0x3f8] sm:$0xff]
        %v431 = vld [vmem:[%s215 + $0x400] sm:$0xff]
        %v432 = vld [vmem:[%s215 + $0x408] sm:$0xff]
        %v433 = vld [vmem:[%s215 + $0x410] sm:$0xff]
        %v434 = vld [vmem:[%s215 + $0x418] sm:$0xff]
        %v435 = vld [vmem:[%s215 + $0x420] sm:$0xff]
        %v436 = vld [vmem:[%s215 + $0x428] sm:$0xff]
        %v437 = vld [vmem:[%s215 + $0x430] sm:$0xff]
        %v438 = vld [vmem:[%s215 + $0x438] sm:$0xff]
        %v439 = vld [vmem:[%s215 + $0x440] sm:$0xff]
        %v440 = vld [vmem:[%s215 + $0x448] sm:$0xff]
        %v441 = vld [vmem:[%s215 + $0x450] sm:$0xff]
        %v442 = vld [vmem:[%s215 + $0x458] sm:$0xff]
        %v443 = vld [vmem:[%s215 + $0x460] sm:$0xff]
        %v444 = vld [vmem:[%s215 + $0x468] sm:$0xff]
        %v445 = vld [vmem:[%s215 + $0x470] sm:$0xff]
        %v446 = vld [vmem:[%s215 + $0x478] sm:$0xff]
        %v447 = vld [vmem:[%s215 + $0x480] sm:$0xff]
        %v448 = vld [vmem:[%s215 + $0x488] sm:$0xff]
        %v449 = vld [vmem:[%s215 + $0x490] sm:$0xff]
        %v450 = vld [vmem:[%s215 + $0x498] sm:$0xff]
        %v451 = vld [vmem:[%s215 + $0x4a0] sm:$0xff]
        %v452 = vld [vmem:[%s215 + $0x4a8] sm:$0xff]
        %v453 = vld [vmem:[%s215 + $0x4b0] sm:$0xff]
        %v454 = vld [vmem:[%s215 + $0x4b8] sm:$0xff]
        %v455 = vld [vmem:[%s215 + $0x4c0] sm:$0xff]
        %v456 = vld [vmem:[%s215 + $0x4c8] sm:$0xff]
        %v457 = vld [vmem:[%s215 + $0x4d0] sm:$0xff]
        %v458 = vld [vmem:[%s215 + $0x4d8] sm:$0xff]
        %v459 = vld [vmem:[%s215 + $0x4e0] sm:$0xff]
        %v460 = vld [vmem:[%s215 + $0x4e8] sm:$0xff]
        %v461 = vld [vmem:[%s215 + $0x4f0] sm:$0xff]
        %v462 = vld [vmem:[%s215 + $0x4f8] sm:$0xff]
        %v463 = vld [vmem:[%s215 + $0x500] sm:$0xff]
        %v464 = vld [vmem:[%s215 + $0x508] sm:$0xff]
        %v465 = vld [vmem:[%s215 + $0x510] sm:$0xff]
        %v466 = vld [vmem:[%s215 + $0x518] sm:$0xff]
        %v467 = vld [vmem:[%s215 + $0x520] sm:$0xff]
        %v468 = vld [vmem:[%s215 + $0x528] sm:$0xff]
        %v469 = vld [vmem:[%s215 + $0x530] sm:$0xff]
        %v470 = vld [vmem:[%s215 + $0x538] sm:$0xff]
        %v471 = vld [vmem:[%s215 + $0x540] sm:$0xff]
        %v472 = vld [vmem:[%s215 + $0x548] sm:$0xff]
        %v473 = vld [vmem:[%s215 + $0x550] sm:$0xff]
        %v474 = vld [vmem:[%s215 + $0x558] sm:$0xff]
        %v475 = vld [vmem:[%s215 + $0x560] sm:$0xff]
        %v476 = vld [vmem:[%s215 + $0x568] sm:$0xff]
        %v477 = vld [vmem:[%s215 + $0x570] sm:$0xff]
        %v478 = vld [vmem:[%s215 + $0x578] sm:$0xff]
        %v479 = vld [vmem:[%s215 + $0x580] sm:$0xff]
        %v480 = vld [vmem:[%s215 + $0x588] sm:$0xff]
        %v481 = vld [vmem:[%s215 + $0x590] sm:$0xff]
        %v482 = vld [vmem:[%s215 + $0x598] sm:$0xff]
        %v483 = vld [vmem:[%s215 + $0x5a0] sm:$0xff]
        %v484 = vld [vmem:[%s215 + $0x5a8] sm:$0xff]
        %v485 = vld [vmem:[%s215 + $0x5b0] sm:$0xff]
        %v486 = vld [vmem:[%s215 + $0x5b8] sm:$0xff]
        %v487 = vld [vmem:[%s215 + $0x5c0] sm:$0xff]
        %v488 = vld [vmem:[%s215 + $0x5c8] sm:$0xff]
        %v489 = vld [vmem:[%s215 + $0x5d0] sm:$0xff]
        %v490 = vld [vmem:[%s215 + $0x5d8] sm:$0xff]
        %v491 = vld [vmem:[%s215 + $0x5e0] sm:$0xff]
        %v492 = vld [vmem:[%s215 + $0x5e8] sm:$0xff]
        %v493 = vld [vmem:[%s215 + $0x5f0] sm:$0xff]
        %v494 = vld [vmem:[%s215 + $0x5f8] sm:$0xff]
        %v495 = vld [vmem:[%s215 + $0x600] sm:$0xff]
        %v496 = vld [vmem:[%s215 + $0x608] sm:$0xff]
        %v497 = vld [vmem:[%s215 + $0x610] sm:$0xff]
        %v498 = vld [vmem:[%s215 + $0x618] sm:$0xff]
        %v499 = vld [vmem:[%s215 + $0x620] sm:$0xff]
        %v500 = vld [vmem:[%s215 + $0x628] sm:$0xff]
        %v501 = vld [vmem:[%s215 + $0x630] sm:$0xff]
        %v502 = vld [vmem:[%s215 + $0x638] sm:$0xff]
        %v503 = vld [vmem:[%s215 + $0x640] sm:$0xff]
        %v504 = vld [vmem:[%s215 + $0x648] sm:$0xff]
        %v505 = vld [vmem:[%s215 + $0x650] sm:$0xff]
        %v506 = vld [vmem:[%s215 + $0x658] sm:$0xff]
        %v507 = vld [vmem:[%s215 + $0x660] sm:$0xff]
        %v508 = vld [vmem:[%s215 + $0x668] sm:$0xff]
        %v509 = vld [vmem:[%s215 + $0x670] sm:$0xff]
        %v510 = vld [vmem:[%s215 + $0x678] sm:$0xff]
        %v511 = vld [vmem:[%s215 + $0x680] sm:$0xff]
        %v512 = vld [vmem:[%s215 + $0x688] sm:$0xff]
        %v513 = vld [vmem:[%s215 + $0x690] sm:$0xff]
        %v514 = vld [vmem:[%s215 + $0x698] sm:$0xff]
        %v515 = vld [vmem:[%s215 + $0x6a0] sm:$0xff]
        %v516 = vld [vmem:[%s215 + $0x6a8] sm:$0xff]
        %v517 = vld [vmem:[%s215 + $0x6b0] sm:$0xff]
        %v518 = vld [vmem:[%s215 + $0x6b8] sm:$0xff]
        %v519 = vld [vmem:[%s215 + $0x6c0] sm:$0xff]
        %v520 = vld [vmem:[%s215 + $0x6c8] sm:$0xff]
        %v521 = vld [vmem:[%s215 + $0x6d0] sm:$0xff]
        %v522 = vld [vmem:[%s215 + $0x6d8] sm:$0xff]
        %v523 = vld [vmem:[%s215 + $0x6e0] sm:$0xff]
        %v524 = vld [vmem:[%s215 + $0x6e8] sm:$0xff]
        %v525 = vld [vmem:[%s215 + $0x6f0] sm:$0xff]
        %v526 = vld [vmem:[%s215 + $0x6f8] sm:$0xff]
        %v527 = vld [vmem:[%s215 + $0x700] sm:$0xff]
        %v528 = vld [vmem:[%s215 + $0x708] sm:$0xff]
        %v529 = vld [vmem:[%s215 + $0x710] sm:$0xff]
        %v530 = vld [vmem:[%s215 + $0x718] sm:$0xff]
        %v531 = vld [vmem:[%s215 + $0x720] sm:$0xff]
        %v532 = vld [vmem:[%s215 + $0x728] sm:$0xff]
        %v533 = vld [vmem:[%s215 + $0x730] sm:$0xff]
        %v534 = vld [vmem:[%s215 + $0x738] sm:$0xff]
        %v535 = vld [vmem:[%s215 + $0x740] sm:$0xff]
        %v536 = vld [vmem:[%s215 + $0x748] sm:$0xff]
        %v537 = vld [vmem:[%s215 + $0x750] sm:$0xff]
        %v538 = vld [vmem:[%s215 + $0x758] sm:$0xff]
        %v539 = vld [vmem:[%s215 + $0x760] sm:$0xff]
        %v540 = vld [vmem:[%s215 + $0x768] sm:$0xff]
        %v541 = vld [vmem:[%s215 + $0x770] sm:$0xff]
        %v542 = vld [vmem:[%s215 + $0x778] sm:$0xff]
        %v543 = vld [vmem:[%s215 + $0x780] sm:$0xff]
        %v544 = vld [vmem:[%s215 + $0x788] sm:$0xff]
        %v545 = vld [vmem:[%s215 + $0x790] sm:$0xff]
        %v546 = vld [vmem:[%s215 + $0x798] sm:$0xff]
        %v547 = vld [vmem:[%s215 + $0x7a0] sm:$0xff]
        %v548 = vld [vmem:[%s215 + $0x7a8] sm:$0xff]
        %v549 = vld [vmem:[%s215 + $0x7b0] sm:$0xff]
        %v550 = vld [vmem:[%s215 + $0x7b8] sm:$0xff]
        %v551 = vld [vmem:[%s215 + $0x7c0] sm:$0xff]
        %v552 = vld [vmem:[%s215 + $0x7c8] sm:$0xff]
        %v553 = vld [vmem:[%s215 + $0x7d0] sm:$0xff]
        %v554 = vld [vmem:[%s215 + $0x7d8] sm:$0xff]
        %v555 = vld [vmem:[%s215 + $0x7e0] sm:$0xff]
        %v556 = vld [vmem:[%s215 + $0x7e8] sm:$0xff]
        %v557 = vld [vmem:[%s215 + $0x7f0] sm:$0xff]
        %v558 = vld [vmem:[%s215 + $0x7f8] sm:$0xff]
        %v559 = vld [vmem:[%s215 + $0x800] sm:$0xff]
        %v560 = vld [vmem:[%s215 + $0x808] sm:$0xff]
        %v561 = vld [vmem:[%s215 + $0x810] sm:$0xff]
        %v562 = vld [vmem:[%s215 + $0x818] sm:$0xff]
        %v563 = vld [vmem:[%s215 + $0x820] sm:$0xff]
        %v564 = vld [vmem:[%s215 + $0x828] sm:$0xff]
        %v565 = vld [vmem:[%s215 + $0x830] sm:$0xff]
        %v566 = vld [vmem:[%s215 + $0x838] sm:$0xff]
        %v567 = vld [vmem:[%s215 + $0x840] sm:$0xff]
        %v568 = vld [vmem:[%s215 + $0x848] sm:$0xff]
        %v569 = vld [vmem:[%s215 + $0x850] sm:$0xff]
        %v570 = vld [vmem:[%s215 + $0x858] sm:$0xff]
        %v571 = vld [vmem:[%s215 + $0x860] sm:$0xff]
        %v572 = vld [vmem:[%s215 + $0x868] sm:$0xff]
        %v573 = vld [vmem:[%s215 + $0x870] sm:$0xff]
        %v574 = vld [vmem:[%s215 + $0x878] sm:$0xff]
        %v575 = vld [vmem:[%s215 + $0x880] sm:$0xff]
        %v576 = vld [vmem:[%s215 + $0x888] sm:$0xff]
        %v577 = vld [vmem:[%s215 + $0x890] sm:$0xff]
        %v578 = vld [vmem:[%s215 + $0x898] sm:$0xff]
        %v579 = vld [vmem:[%s215 + $0x8a0] sm:$0xff]
        %v580 = vld [vmem:[%s215 + $0x8a8] sm:$0xff]
        %v581 = vld [vmem:[%s215 + $0x8b0] sm:$0xff]
        %v582 = vld [vmem:[%s215 + $0x8b8] sm:$0xff]
        %v583 = vld [vmem:[%s215 + $0x8c0] sm:$0xff]
        %v584 = vld [vmem:[%s215 + $0x8c8] sm:$0xff]
        %v585 = vld [vmem:[%s215 + $0x8d0] sm:$0xff]
        %v586 = vld [vmem:[%s215 + $0x8d8] sm:$0xff]
        %v587 = vld [vmem:[%s215 + $0x8e0] sm:$0xff]
        %v588 = vld [vmem:[%s215 + $0x8e8] sm:$0xff]
        %v589 = vld [vmem:[%s215 + $0x8f0] sm:$0xff]
        %v590 = vld [vmem:[%s215 + $0x8f8] sm:$0xff]
        %v591 = vld [vmem:[%s215 + $0x900] sm:$0xff]
        %v592 = vld [vmem:[%s215 + $0x908] sm:$0xff]
        %v593 = vld [vmem:[%s215 + $0x910] sm:$0xff]
        %v594 = vld [vmem:[%s215 + $0x918] sm:$0xff]
        %v595 = vld [vmem:[%s215 + $0x920] sm:$0xff]
        %v596 = vld [vmem:[%s215 + $0x928] sm:$0xff]
        %v597 = vld [vmem:[%s215 + $0x930] sm:$0xff]
        %v598 = vld [vmem:[%s215 + $0x938] sm:$0xff]
        %v599 = vld [vmem:[%s215 + $0x940] sm:$0xff]
        %v600 = vld [vmem:[%s215 + $0x948] sm:$0xff]
        %v601 = vld [vmem:[%s215 + $0x950] sm:$0xff]
        %v602 = vld [vmem:[%s215 + $0x958] sm:$0xff]
        %v603 = vld [vmem:[%s215 + $0x960] sm:$0xff]
        %v604 = vld [vmem:[%s215 + $0x968] sm:$0xff]
        %v605 = vld [vmem:[%s215 + $0x970] sm:$0xff]
        %v606 = vld [vmem:[%s215 + $0x978] sm:$0xff]
        %v607 = vld [vmem:[%s215 + $0x980] sm:$0xff]
        %v608 = vld [vmem:[%s215 + $0x988] sm:$0xff]
        %v609 = vld [vmem:[%s215 + $0x990] sm:$0xff]
        %v610 = vld [vmem:[%s215 + $0x998] sm:$0xff]
        %v611 = vld [vmem:[%s215 + $0x9a0] sm:$0xff]
        %v612 = vld [vmem:[%s215 + $0x9a8] sm:$0xff]
        %v613 = vld [vmem:[%s215 + $0x9b0] sm:$0xff]
        %v614 = vld [vmem:[%s215 + $0x9b8] sm:$0xff]
        %v615 = vld [vmem:[%s215 + $0x9c0] sm:$0xff]
        %v616 = vld [vmem:[%s215 + $0x9c8] sm:$0xff]
        %v617 = vld [vmem:[%s215 + $0x9d0] sm:$0xff]
        %v618 = vld [vmem:[%s215 + $0x9d8] sm:$0xff]
        %v619 = vld [vmem:[%s215 + $0x9e0] sm:$0xff]
        %v620 = vld [vmem:[%s215 + $0x9e8] sm:$0xff]
        %v621 = vld [vmem:[%s215 + $0x9f0] sm:$0xff]
        %v622 = vld [vmem:[%s215 + $0x9f8] sm:$0xff]
        %v623 = vld [vmem:[%s215 + $0xa00] sm:$0xff]
        %v624 = vld [vmem:[%s215 + $0xa08] sm:$0xff]
        %v625 = vld [vmem:[%s215 + $0xa10] sm:$0xff]
        %v626 = vld [vmem:[%s215 + $0xa18] sm:$0xff]
        %v627 = vld [vmem:[%s215 + $0xa20] sm:$0xff]
        %v628 = vld [vmem:[%s215 + $0xa28] sm:$0xff]
        %v629 = vld [vmem:[%s215 + $0xa30] sm:$0xff]
        %v630 = vld [vmem:[%s215 + $0xa38] sm:$0xff]
        %v631 = vld [vmem:[%s215 + $0xa40] sm:$0xff]
        %v632 = vld [vmem:[%s215 + $0xa48] sm:$0xff]
        %v633 = vld [vmem:[%s215 + $0xa50] sm:$0xff]
        %v634 = vld [vmem:[%s215 + $0xa58] sm:$0xff]
        %v635 = vld [vmem:[%s215 + $0xa60] sm:$0xff]
        %v636 = vld [vmem:[%s215 + $0xa68] sm:$0xff]
        %v637 = vld [vmem:[%s215 + $0xa70] sm:$0xff]
        %v638 = vld [vmem:[%s215 + $0xa78] sm:$0xff]
        %v639 = vld [vmem:[%s215 + $0xa80] sm:$0xff]
        %v640 = vld [vmem:[%s215 + $0xa88] sm:$0xff]
        %v641 = vld [vmem:[%s215 + $0xa90] sm:$0xff]
        %v642 = vld [vmem:[%s215 + $0xa98] sm:$0xff]
        %v643 = vld [vmem:[%s215 + $0xaa0] sm:$0xff]
        %v644 = vld [vmem:[%s215 + $0xaa8] sm:$0xff]
        %v645 = vld [vmem:[%s215 + $0xab0] sm:$0xff]
        %v646 = vld [vmem:[%s215 + $0xab8] sm:$0xff]
        %v647 = vld [vmem:[%s215 + $0xac0] sm:$0xff]
        %v648 = vld [vmem:[%s215 + $0xac8] sm:$0xff]
        %v649 = vld [vmem:[%s215 + $0xad0] sm:$0xff]
        %v650 = vld [vmem:[%s215 + $0xad8] sm:$0xff]
        %v651 = vld [vmem:[%s215 + $0xae0] sm:$0xff]
        %v652 = vld [vmem:[%s215 + $0xae8] sm:$0xff]
        %v653 = vld [vmem:[%s215 + $0xaf0] sm:$0xff]
        %v654 = vld [vmem:[%s215 + $0xaf8] sm:$0xff]
        %v655 = vld [vmem:[%s215 + $0xb00] sm:$0xff]
        %v656 = vld [vmem:[%s215 + $0xb08] sm:$0xff]
        %v657 = vld [vmem:[%s215 + $0xb10] sm:$0xff]
        %v658 = vld [vmem:[%s215 + $0xb18] sm:$0xff]
        %v659 = vld [vmem:[%s215 + $0xb20] sm:$0xff]
        %v660 = vld [vmem:[%s215 + $0xb28] sm:$0xff]
        %v661 = vld [vmem:[%s215 + $0xb30] sm:$0xff]
        %v662 = vld [vmem:[%s215 + $0xb38] sm:$0xff]
        %v663 = vld [vmem:[%s215 + $0xb40] sm:$0xff]
        %v664 = vld [vmem:[%s215 + $0xb48] sm:$0xff]
        %v665 = vld [vmem:[%s215 + $0xb50] sm:$0xff]
        %v666 = vld [vmem:[%s215 + $0xb58] sm:$0xff]
        %v667 = vld [vmem:[%s215 + $0xb60] sm:$0xff]
        %v668 = vld [vmem:[%s215 + $0xb68] sm:$0xff]
        %v669 = vld [vmem:[%s215 + $0xb70] sm:$0xff]
        %v670 = vld [vmem:[%s215 + $0xb78] sm:$0xff]
        %v671 = vld [vmem:[%s215 + $0xb80] sm:$0xff]
        %v672 = vld [vmem:[%s215 + $0xb88] sm:$0xff]
        %v673 = vld [vmem:[%s215 + $0xb90] sm:$0xff]
        %v674 = vld [vmem:[%s215 + $0xb98] sm:$0xff]
        %v675 = vld [vmem:[%s215 + $0xba0] sm:$0xff]
        %v676 = vld [vmem:[%s215 + $0xba8] sm:$0xff]
        %v677 = vld [vmem:[%s215 + $0xbb0] sm:$0xff]
        %v678 = vld [vmem:[%s215 + $0xbb8] sm:$0xff]
        %v679 = vld [vmem:[%s215 + $0xbc0] sm:$0xff]
        %v680 = vld [vmem:[%s215 + $0xbc8] sm:$0xff]
        %v681 = vld [vmem:[%s215 + $0xbd0] sm:$0xff]
        %v682 = vld [vmem:[%s215 + $0xbd8] sm:$0xff]
        %v683 = vld [vmem:[%s215 + $0xbe0] sm:$0xff]
        %v684 = vld [vmem:[%s215 + $0xbe8] sm:$0xff]
        %v685 = vld [vmem:[%s215 + $0xbf0] sm:$0xff]
        %v686 = vld [vmem:[%s215 + $0xbf8] sm:$0xff]
        %v687 = vld [vmem:[%s215 + $0xc00] sm:$0xff]
        %v688 = vld [vmem:[%s215 + $0xc08] sm:$0xff]
        %v689 = vld [vmem:[%s215 + $0xc10] sm:$0xff]
        %v690 = vld [vmem:[%s215 + $0xc18] sm:$0xff]
        %v691 = vld [vmem:[%s215 + $0xc20] sm:$0xff]
        %v692 = vld [vmem:[%s215 + $0xc28] sm:$0xff]
        %v693 = vld [vmem:[%s215 + $0xc30] sm:$0xff]
        %v694 = vld [vmem:[%s215 + $0xc38] sm:$0xff]
        %v695 = vld [vmem:[%s215 + $0xc40] sm:$0xff]
        %v696 = vld [vmem:[%s215 + $0xc48] sm:$0xff]
        %v697 = vld [vmem:[%s215 + $0xc50] sm:$0xff]
        %v698 = vld [vmem:[%s215 + $0xc58] sm:$0xff]
        %v699 = vld [vmem:[%s215 + $0xc60] sm:$0xff]
        %v700 = vld [vmem:[%s215 + $0xc68] sm:$0xff]
        %v701 = vld [vmem:[%s215 + $0xc70] sm:$0xff]
        %v702 = vld [vmem:[%s215 + $0xc78] sm:$0xff]
        %v703 = vld [vmem:[%s215 + $0xc80] sm:$0xff]
        %v704 = vld [vmem:[%s215 + $0xc88] sm:$0xff]
        %v705 = vld [vmem:[%s215 + $0xc90] sm:$0xff]
        %v706 = vld [vmem:[%s215 + $0xc98] sm:$0xff]
        %v707 = vld [vmem:[%s215 + $0xca0] sm:$0xff]
        %v708 = vld [vmem:[%s215 + $0xca8] sm:$0xff]
        %v709 = vld [vmem:[%s215 + $0xcb0] sm:$0xff]
        %v710 = vld [vmem:[%s215 + $0xcb8] sm:$0xff]
        %v711 = vld [vmem:[%s215 + $0xcc0] sm:$0xff]
        %v712 = vld [vmem:[%s215 + $0xcc8] sm:$0xff]
        %v713 = vld [vmem:[%s215 + $0xcd0] sm:$0xff]
        %v714 = vld [vmem:[%s215 + $0xcd8] sm:$0xff]
        %v715 = vld [vmem:[%s215 + $0xce0] sm:$0xff]
        %v716 = vld [vmem:[%s215 + $0xce8] sm:$0xff]
        %v717 = vld [vmem:[%s215 + $0xcf0] sm:$0xff]
        %v718 = vld [vmem:[%s215 + $0xcf8] sm:$0xff]
        %v719 = vld [vmem:[%s215 + $0xd00] sm:$0xff]
        %v720 = vld [vmem:[%s215 + $0xd08] sm:$0xff]
        %v721 = vld [vmem:[%s215 + $0xd10] sm:$0xff]
        %v722 = vld [vmem:[%s215 + $0xd18] sm:$0xff]
        %v723 = vld [vmem:[%s215 + $0xd20] sm:$0xff]
        %v724 = vld [vmem:[%s215 + $0xd28] sm:$0xff]
        %v725 = vld [vmem:[%s215 + $0xd30] sm:$0xff]
        %v726 = vld [vmem:[%s215 + $0xd38] sm:$0xff]
        %v727 = vld [vmem:[%s215 + $0xd40] sm:$0xff]
        %v728 = vld [vmem:[%s215 + $0xd48] sm:$0xff]
        %v729 = vld [vmem:[%s215 + $0xd50] sm:$0xff]
        %v730 = vld [vmem:[%s215 + $0xd58] sm:$0xff]
        %v731 = vld [vmem:[%s215 + $0xd60] sm:$0xff]
        %v732 = vld [vmem:[%s215 + $0xd68] sm:$0xff]
        %v733 = vld [vmem:[%s215 + $0xd70] sm:$0xff]
        %v734 = vld [vmem:[%s215 + $0xd78] sm:$0xff]
        %v735 = vld [vmem:[%s215 + $0xd80] sm:$0xff]
        %v736 = vld [vmem:[%s215 + $0xd88] sm:$0xff]
        %v737 = vld [vmem:[%s215 + $0xd90] sm:$0xff]
        %v738 = vld [vmem:[%s215 + $0xd98] sm:$0xff]
        %v739 = vld [vmem:[%s215 + $0xda0] sm:$0xff]
        %v740 = vld [vmem:[%s215 + $0xda8] sm:$0xff]
        %v741 = vld [vmem:[%s215 + $0xdb0] sm:$0xff]
        %v742 = vld [vmem:[%s215 + $0xdb8] sm:$0xff]
        %v743 = vld [vmem:[%s215 + $0xdc0] sm:$0xff]
        %v744 = vld [vmem:[%s215 + $0xdc8] sm:$0xff]
        %v745 = vld [vmem:[%s215 + $0xdd0] sm:$0xff]
        %v746 = vld [vmem:[%s215 + $0xdd8] sm:$0xff]
        %v747 = vld [vmem:[%s215 + $0xde0] sm:$0xff]
        %v748 = vld [vmem:[%s215 + $0xde8] sm:$0xff]
        %v749 = vld [vmem:[%s215 + $0xdf0] sm:$0xff]
        %v750 = vld [vmem:[%s215 + $0xdf8] sm:$0xff]
        %v751 = vld [vmem:[%s215 + $0xe00] sm:$0xff]
        %v752 = vld [vmem:[%s215 + $0xe08] sm:$0xff]
        %v753 = vld [vmem:[%s215 + $0xe10] sm:$0xff]
        %v754 = vld [vmem:[%s215 + $0xe18] sm:$0xff]
        %v755 = vld [vmem:[%s215 + $0xe20] sm:$0xff]
        %v756 = vld [vmem:[%s215 + $0xe28] sm:$0xff]
        %v757 = vld [vmem:[%s215 + $0xe30] sm:$0xff]
        %v758 = vld [vmem:[%s215 + $0xe38] sm:$0xff]
        %v759 = vld [vmem:[%s215 + $0xe40] sm:$0xff]
        %v760 = vld [vmem:[%s215 + $0xe48] sm:$0xff]
        %v761 = vld [vmem:[%s215 + $0xe50] sm:$0xff]
        %v762 = vld [vmem:[%s215 + $0xe58] sm:$0xff]
        %v763 = vld [vmem:[%s215 + $0xe60] sm:$0xff]
        %v764 = vld [vmem:[%s215 + $0xe68] sm:$0xff]
        %v765 = vld [vmem:[%s215 + $0xe70] sm:$0xff]
        %v766 = vld [vmem:[%s215 + $0xe78] sm:$0xff]
        %v767 = vld [vmem:[%s215 + $0xe80] sm:$0xff]
        %v768 = vld [vmem:[%s215 + $0xe88] sm:$0xff]
        %v769 = vld [vmem:[%s215 + $0xe90] sm:$0xff]
        %v770 = vld [vmem:[%s215 + $0xe98] sm:$0xff]
        %v771 = vld [vmem:[%s215 + $0xea0] sm:$0xff]
        %v772 = vld [vmem:[%s215 + $0xea8] sm:$0xff]
        %v773 = vld [vmem:[%s215 + $0xeb0] sm:$0xff]
        %v774 = vld [vmem:[%s215 + $0xeb8] sm:$0xff]
        %v775 = vld [vmem:[%s215 + $0xec0] sm:$0xff]
        %v776 = vld [vmem:[%s215 + $0xec8] sm:$0xff]
        %v777 = vld [vmem:[%s215 + $0xed0] sm:$0xff]
        %v778 = vld [vmem:[%s215 + $0xed8] sm:$0xff]
        %v779 = vld [vmem:[%s215 + $0xee0] sm:$0xff]
        %v780 = vld [vmem:[%s215 + $0xee8] sm:$0xff]
        %v781 = vld [vmem:[%s215 + $0xef0] sm:$0xff]
        %v782 = vld [vmem:[%s215 + $0xef8] sm:$0xff]
        %v783 = vld [vmem:[%s215 + $0xf00] sm:$0xff]
        %v784 = vld [vmem:[%s215 + $0xf08] sm:$0xff]
        %v785 = vld [vmem:[%s215 + $0xf10] sm:$0xff]
        %v786 = vld [vmem:[%s215 + $0xf18] sm:$0xff]
        %v787 = vld [vmem:[%s215 + $0xf20] sm:$0xff]
        %v788 = vld [vmem:[%s215 + $0xf28] sm:$0xff]
        %v789 = vld [vmem:[%s215 + $0xf30] sm:$0xff]
        %v790 = vld [vmem:[%s215 + $0xf38] sm:$0xff]
        %v791 = vld [vmem:[%s215 + $0xf40] sm:$0xff]
        %v792 = vld [vmem:[%s215 + $0xf48] sm:$0xff]
        %v793 = vld [vmem:[%s215 + $0xf50] sm:$0xff]
        %v794 = vld [vmem:[%s215 + $0xf58] sm:$0xff]
        %v795 = vld [vmem:[%s215 + $0xf60] sm:$0xff]
        %v796 = vld [vmem:[%s215 + $0xf68] sm:$0xff]
        %v797 = vld [vmem:[%s215 + $0xf70] sm:$0xff]
        %v798 = vld [vmem:[%s215 + $0xf78] sm:$0xff]
        %v799 = vld [vmem:[%s215 + $0xf80] sm:$0xff]
        %v800 = vld [vmem:[%s215 + $0xf88] sm:$0xff]
        %v801 = vld [vmem:[%s215 + $0xf90] sm:$0xff]
        %v802 = vld [vmem:[%s215 + $0xf98] sm:$0xff]
        %v803 = vld [vmem:[%s215 + $0xfa0] sm:$0xff]
        %v804 = vld [vmem:[%s215 + $0xfa8] sm:$0xff]
        %v805 = vld [vmem:[%s215 + $0xfb0] sm:$0xff]
        %v806 = vld [vmem:[%s215 + $0xfb8] sm:$0xff]
        %v807 = vld [vmem:[%s215 + $0xfc0] sm:$0xff]
        %v808 = vld [vmem:[%s215 + $0xfc8] sm:$0xff]
        %v809 = vld [vmem:[%s215 + $0xfd0] sm:$0xff]
        %v810 = vld [vmem:[%s215 + $0xfd8] sm:$0xff]
        %v811 = vld [vmem:[%s215 + $0xfe0] sm:$0xff]
        %v812 = vld [vmem:[%s215 + $0xfe8] sm:$0xff]
        %v813 = vld [vmem:[%s215 + $0xff0] sm:$0xff]
        %v814 = vld [vmem:[%s215 + $0xff8] sm:$0xff]
        %v815 = vld [vmem:[%s215 + $0x1000] sm:$0xff]
        %v816 = vld [vmem:[%s215 + $0x1008] sm:$0xff]
        %v817 = vld [vmem:[%s215 + $0x1010] sm:$0xff]
        %v818 = vld [vmem:[%s215 + $0x1018] sm:$0xff]
        %v819 = vld [vmem:[%s215 + $0x1020] sm:$0xff]
        %v820 = vld [vmem:[%s215 + $0x1028] sm:$0xff]
        %v821 = vld [vmem:[%s215 + $0x1030] sm:$0xff]
        %v822 = vld [vmem:[%s215 + $0x1038] sm:$0xff]
        %v823 = vld [vmem:[%s215 + $0x1040] sm:$0xff]
        %v824 = vld [vmem:[%s215 + $0x1048] sm:$0xff]
        %v825 = vld [vmem:[%s215 + $0x1050] sm:$0xff]
        %v826 = vld [vmem:[%s215 + $0x1058] sm:$0xff]
        %v827 = vld [vmem:[%s215 + $0x1060] sm:$0xff]
        %v828 = vld [vmem:[%s215 + $0x1068] sm:$0xff]
        %v829 = vld [vmem:[%s215 + $0x1070] sm:$0xff]
        %v830 = vld [vmem:[%s215 + $0x1078] sm:$0xff]
        %v831 = vld [vmem:[%s215 + $0x1080] sm:$0xff]
        %v832 = vld [vmem:[%s215 + $0x1088] sm:$0xff]
        %v833 = vld [vmem:[%s215 + $0x1090] sm:$0xff]
        %v834 = vld [vmem:[%s215 + $0x1098] sm:$0xff]
        %v835 = vld [vmem:[%s215 + $0x10a0] sm:$0xff]
        %v836 = vld [vmem:[%s215 + $0x10a8] sm:$0xff]
        %v837 = vld [vmem:[%s215 + $0x10b0] sm:$0xff]
        %v838 = vld [vmem:[%s215 + $0x10b8] sm:$0xff]
        %v839 = vld [vmem:[%s215 + $0x10c0] sm:$0xff]
        %v840 = vld [vmem:[%s215 + $0x10c8] sm:$0xff]
        %v841 = vld [vmem:[%s215 + $0x10d0] sm:$0xff]
        %v842 = vld [vmem:[%s215 + $0x10d8] sm:$0xff]
        %v843 = vld [vmem:[%s215 + $0x10e0] sm:$0xff]
        %v844 = vld [vmem:[%s215 + $0x10e8] sm:$0xff]
        %v845 = vld [vmem:[%s215 + $0x10f0] sm:$0xff]
        %v846 = vld [vmem:[%s215 + $0x10f8] sm:$0xff]
        %v847 = vld [vmem:[%s215 + $0x1100] sm:$0xff]
        %v848 = vld [vmem:[%s215 + $0x1108] sm:$0xff]
        %v849 = vld [vmem:[%s215 + $0x1110] sm:$0xff]
        %v850 = vld [vmem:[%s215 + $0x1118] sm:$0xff]
        %v851 = vld [vmem:[%s215 + $0x1120] sm:$0xff]
        %v852 = vld [vmem:[%s215 + $0x1128] sm:$0xff]
        %v853 = vld [vmem:[%s215 + $0x1130] sm:$0xff]
        %v854 = vld [vmem:[%s215 + $0x1138] sm:$0xff]
        %v855 = vld [vmem:[%s215 + $0x1140] sm:$0xff]
        %v856 = vld [vmem:[%s215 + $0x1148] sm:$0xff]
        %v857 = vld [vmem:[%s215 + $0x1150] sm:$0xff]
        %v858 = vld [vmem:[%s215 + $0x1158] sm:$0xff]
        %v859 = vld [vmem:[%s215 + $0x1160] sm:$0xff]
        %v860 = vld [vmem:[%s215 + $0x1168] sm:$0xff]
        %v861 = vld [vmem:[%s215 + $0x1170] sm:$0xff]
        %v862 = vld [vmem:[%s215 + $0x1178] sm:$0xff]
        %v863 = vld [vmem:[%s215 + $0x1180] sm:$0xff]
        %v864 = vld [vmem:[%s215 + $0x1188] sm:$0xff]
        %v865 = vld [vmem:[%s215 + $0x1190] sm:$0xff]
        %v866 = vld [vmem:[%s215 + $0x1198] sm:$0xff]
        %v867 = vld [vmem:[%s215 + $0x11a0] sm:$0xff]
        %v868 = vld [vmem:[%s215 + $0x11a8] sm:$0xff]
        %v869 = vld [vmem:[%s215 + $0x11b0] sm:$0xff]
        %v870 = vld [vmem:[%s215 + $0x11b8] sm:$0xff]
        %v871 = vld [vmem:[%s215 + $0x11c0] sm:$0xff]
        %v872 = vld [vmem:[%s215 + $0x11c8] sm:$0xff]
        %v873 = vld [vmem:[%s215 + $0x11d0] sm:$0xff]
        %v874 = vld [vmem:[%s215 + $0x11d8] sm:$0xff]
        %v875 = vld [vmem:[%s215 + $0x11e0] sm:$0xff]
        %v876 = vld [vmem:[%s215 + $0x11e8] sm:$0xff]
        %v877 = vld [vmem:[%s215 + $0x11f0] sm:$0xff]
        %v878 = vld [vmem:[%s215 + $0x11f8] sm:$0xff]
        %v879 = vld [vmem:[%s215 + $0x1200] sm:$0xff]
        %v880 = vld [vmem:[%s215 + $0x1208] sm:$0xff]
        %v881 = vld [vmem:[%s215 + $0x1210] sm:$0xff]
        %v882 = vld [vmem:[%s215 + $0x1218] sm:$0xff]
        %v883 = vld [vmem:[%s215 + $0x1220] sm:$0xff]
        %v884 = vld [vmem:[%s215 + $0x1228] sm:$0xff]
        %v885 = vld [vmem:[%s215 + $0x1230] sm:$0xff]
        %v886 = vld [vmem:[%s215 + $0x1238] sm:$0xff]
        %v887 = vld [vmem:[%s215 + $0x1240] sm:$0xff]
        %v888 = vld [vmem:[%s215 + $0x1248] sm:$0xff]
        %v889 = vld [vmem:[%s215 + $0x1250] sm:$0xff]
        %v890 = vld [vmem:[%s215 + $0x1258] sm:$0xff]
        %v891 = vld [vmem:[%s215 + $0x1260] sm:$0xff]
        %v892 = vld [vmem:[%s215 + $0x1268] sm:$0xff]
        %v893 = vld [vmem:[%s215 + $0x1270] sm:$0xff]
        %v894 = vld [vmem:[%s215 + $0x1278] sm:$0xff]
        %v895 = vld [vmem:[%s215 + $0x1280] sm:$0xff]
        %v896 = vld [vmem:[%s215 + $0x1288] sm:$0xff]
        %v897 = vld [vmem:[%s215 + $0x1290] sm:$0xff]
        %v898 = vld [vmem:[%s215 + $0x1298] sm:$0xff]
        %v899 = vld [vmem:[%s215 + $0x12a0] sm:$0xff]
        %v900 = vld [vmem:[%s215 + $0x12a8] sm:$0xff]
        %v901 = vld [vmem:[%s215 + $0x12b0] sm:$0xff]
        %v902 = vld [vmem:[%s215 + $0x12b8] sm:$0xff]
        %v903 = vld [vmem:[%s215 + $0x12c0] sm:$0xff]
        %v904 = vld [vmem:[%s215 + $0x12c8] sm:$0xff]
        %v905 = vld [vmem:[%s215 + $0x12d0] sm:$0xff]
        %v906 = vld [vmem:[%s215 + $0x12d8] sm:$0xff]
        %v907 = vld [vmem:[%s215 + $0x12e0] sm:$0xff]
        %v908 = vld [vmem:[%s215 + $0x12e8] sm:$0xff]
        %v909 = vld [vmem:[%s215 + $0x12f0] sm:$0xff]
        %v910 = vld [vmem:[%s215 + $0x12f8] sm:$0xff]
        %v911 = vld [vmem:[%s215 + $0x1300] sm:$0xff]
        %v912 = vld [vmem:[%s215 + $0x1308] sm:$0xff]
        %v913 = vld [vmem:[%s215 + $0x1310] sm:$0xff]
        %v914 = vld [vmem:[%s215 + $0x1318] sm:$0xff]
        %v915 = vld [vmem:[%s215 + $0x1320] sm:$0xff]
        %v916 = vld [vmem:[%s215 + $0x1328] sm:$0xff]
        %v917 = vld [vmem:[%s215 + $0x1330] sm:$0xff]
        %v918 = vld [vmem:[%s215 + $0x1338] sm:$0xff]
        %v919 = vld [vmem:[%s215 + $0x1340] sm:$0xff]
        %v920 = vld [vmem:[%s215 + $0x1348] sm:$0xff]
        %v921 = vld [vmem:[%s215 + $0x1350] sm:$0xff]
        %v922 = vld [vmem:[%s215 + $0x1358] sm:$0xff]
        %v923 = vld [vmem:[%s215 + $0x1360] sm:$0xff]
        %v924 = vld [vmem:[%s215 + $0x1368] sm:$0xff]
        %v925 = vld [vmem:[%s215 + $0x1370] sm:$0xff]
        %v926 = vld [vmem:[%s215 + $0x1378] sm:$0xff]
        %v927 = vld [vmem:[%s215 + $0x1380] sm:$0xff]
        %v928 = vld [vmem:[%s215 + $0x1388] sm:$0xff]
        %v929 = vld [vmem:[%s215 + $0x1390] sm:$0xff]
        %v930 = vld [vmem:[%s215 + $0x1398] sm:$0xff]
        %v931 = vld [vmem:[%s215 + $0x13a0] sm:$0xff]
        %v932 = vld [vmem:[%s215 + $0x13a8] sm:$0xff]
        %v933 = vld [vmem:[%s215 + $0x13b0] sm:$0xff]
        %v934 = vld [vmem:[%s215 + $0x13b8] sm:$0xff]
        %v935 = vld [vmem:[%s215 + $0x13c0] sm:$0xff]
        %v936 = vld [vmem:[%s215 + $0x13c8] sm:$0xff]
        %v937 = vld [vmem:[%s215 + $0x13d0] sm:$0xff]
        %v938 = vld [vmem:[%s215 + $0x13d8] sm:$0xff]
        %v939 = vld [vmem:[%s215 + $0x13e0] sm:$0xff]
        %v940 = vld [vmem:[%s215 + $0x13e8] sm:$0xff]
        %v941 = vld [vmem:[%s215 + $0x13f0] sm:$0xff]
        %v942 = vld [vmem:[%s215 + $0x13f8] sm:$0xff]
        %v943 = vld [vmem:[%s215 + $0x1400] sm:$0xff]
        %v944 = vld [vmem:[%s215 + $0x1408] sm:$0xff]
        %v945 = vld [vmem:[%s215 + $0x1410] sm:$0xff]
        %v946 = vld [vmem:[%s215 + $0x1418] sm:$0xff]
        %v947 = vld [vmem:[%s215 + $0x1420] sm:$0xff]
        %v948 = vld [vmem:[%s215 + $0x1428] sm:$0xff]
        %v949 = vld [vmem:[%s215 + $0x1430] sm:$0xff]
        %v950 = vld [vmem:[%s215 + $0x1438] sm:$0xff]
        %v951 = vld [vmem:[%s215 + $0x1440] sm:$0xff]
        %v952 = vld [vmem:[%s215 + $0x1448] sm:$0xff]
        %v953 = vld [vmem:[%s215 + $0x1450] sm:$0xff]
        %v954 = vld [vmem:[%s215 + $0x1458] sm:$0xff]
        %v955 = vld [vmem:[%s215 + $0x1460] sm:$0xff]
        %v956 = vld [vmem:[%s215 + $0x1468] sm:$0xff]
        %v957 = vld [vmem:[%s215 + $0x1470] sm:$0xff]
        %v958 = vld [vmem:[%s215 + $0x1478] sm:$0xff]
        %v959 = vld [vmem:[%s215 + $0x1480] sm:$0xff]
        %v960 = vld [vmem:[%s215 + $0x1488] sm:$0xff]
        %v961 = vld [vmem:[%s215 + $0x1490] sm:$0xff]
        %v962 = vld [vmem:[%s215 + $0x1498] sm:$0xff]
        %v963 = vld [vmem:[%s215 + $0x14a0] sm:$0xff]
        %v964 = vld [vmem:[%s215 + $0x14a8] sm:$0xff]
        %v965 = vld [vmem:[%s215 + $0x14b0] sm:$0xff]
        %v966 = vld [vmem:[%s215 + $0x14b8] sm:$0xff]
        %v967 = vld [vmem:[%s215 + $0x14c0] sm:$0xff]
        %v968 = vld [vmem:[%s215 + $0x14c8] sm:$0xff]
        %v969 = vld [vmem:[%s215 + $0x14d0] sm:$0xff]
        %v970 = vld [vmem:[%s215 + $0x14d8] sm:$0xff]
        %v971 = vld [vmem:[%s215 + $0x14e0] sm:$0xff]
        %v972 = vld [vmem:[%s215 + $0x14e8] sm:$0xff]
        %v973 = vld [vmem:[%s215 + $0x14f0] sm:$0xff]
        %v974 = vld [vmem:[%s215 + $0x14f8] sm:$0xff]
        %v975 = vld [vmem:[%s215 + $0x1500] sm:$0xff]
        %v976 = vld [vmem:[%s215 + $0x1508] sm:$0xff]
        %v977 = vld [vmem:[%s215 + $0x1510] sm:$0xff]
        %v978 = vld [vmem:[%s215 + $0x1518] sm:$0xff]
        %v979 = vld [vmem:[%s215 + $0x1520] sm:$0xff]
        %v980 = vld [vmem:[%s215 + $0x1528] sm:$0xff]
        %v981 = vld [vmem:[%s215 + $0x1530] sm:$0xff]
        %v982 = vld [vmem:[%s215 + $0x1538] sm:$0xff]
        %v983 = vld [vmem:[%s215 + $0x1540] sm:$0xff]
        %v984 = vld [vmem:[%s215 + $0x1548] sm:$0xff]
        %v985 = vld [vmem:[%s215 + $0x1550] sm:$0xff]
        %v986 = vld [vmem:[%s215 + $0x1558] sm:$0xff]
        %v987 = vld [vmem:[%s215 + $0x1560] sm:$0xff]
        %v988 = vld [vmem:[%s215 + $0x1568] sm:$0xff]
        %v989 = vld [vmem:[%s215 + $0x1570] sm:$0xff]
        %v990 = vld [vmem:[%s215 + $0x1578] sm:$0xff]
        %v991 = vld [vmem:[%s215 + $0x1580] sm:$0xff]
        %v992 = vld [vmem:[%s215 + $0x1588] sm:$0xff]
        %v993 = vld [vmem:[%s215 + $0x1590] sm:$0xff]
        %v994 = vld [vmem:[%s215 + $0x1598] sm:$0xff]
        %v995 = vld [vmem:[%s215 + $0x15a0] sm:$0xff]
        %v996 = vld [vmem:[%s215 + $0x15a8] sm:$0xff]
        %v997 = vld [vmem:[%s215 + $0x15b0] sm:$0xff]
        %v998 = vld [vmem:[%s215 + $0x15b8] sm:$0xff]
        %v999 = vld [vmem:[%s215 + $0x15c0] sm:$0xff]
        %v1000 = vld [vmem:[%s215 + $0x15c8] sm:$0xff]
        %v1001 = vld [vmem:[%s215 + $0x15d0] sm:$0xff]
        %v1002 = vld [vmem:[%s215 + $0x15d8] sm:$0xff]
        %v1003 = vld [vmem:[%s215 + $0x15e0] sm:$0xff]
        %v1004 = vld [vmem:[%s215 + $0x15e8] sm:$0xff]
        %v1005 = vld [vmem:[%s215 + $0x15f0] sm:$0xff]
        %v1006 = vld [vmem:[%s215 + $0x15f8] sm:$0xff]
        %v1007 = vld [vmem:[%s215 + $0x1600] sm:$0xff]
        %v1008 = vld [vmem:[%s215 + $0x1608] sm:$0xff]
        %v1009 = vld [vmem:[%s215 + $0x1610] sm:$0xff]
        %v1010 = vld [vmem:[%s215 + $0x1618] sm:$0xff]
        %v1011 = vld [vmem:[%s215 + $0x1620] sm:$0xff]
        %v1012 = vld [vmem:[%s215 + $0x1628] sm:$0xff]
        %v1013 = vld [vmem:[%s215 + $0x1630] sm:$0xff]
        %v1014 = vld [vmem:[%s215 + $0x1638] sm:$0xff]
        %v1015 = vld [vmem:[%s215 + $0x1640] sm:$0xff]
        %v1016 = vld [vmem:[%s215 + $0x1648] sm:$0xff]
        %v1017 = vld [vmem:[%s215 + $0x1650] sm:$0xff]
        %v1018 = vld [vmem:[%s215 + $0x1658] sm:$0xff]
        %v1019 = vld [vmem:[%s215 + $0x1660] sm:$0xff]
        %v1020 = vld [vmem:[%s215 + $0x1668] sm:$0xff]
        %v1021 = vld [vmem:[%s215 + $0x1670] sm:$0xff]
        %v1022 = vld [vmem:[%s215 + $0x1678] sm:$0xff]
        %v1023 = vld [vmem:[%s215 + $0x1680] sm:$0xff]
        %v1024 = vld [vmem:[%s215 + $0x1688] sm:$0xff]
        %v1025 = vld [vmem:[%s215 + $0x1690] sm:$0xff]
        %v1026 = vld [vmem:[%s215 + $0x1698] sm:$0xff]
        %v1027 = vld [vmem:[%s215 + $0x16a0] sm:$0xff]
        %v1028 = vld [vmem:[%s215 + $0x16a8] sm:$0xff]
        %v1029 = vld [vmem:[%s215 + $0x16b0] sm:$0xff]
        %v1030 = vld [vmem:[%s215 + $0x16b8] sm:$0xff]
        %v1031 = vld [vmem:[%s215 + $0x16c0] sm:$0xff]
        %v1032 = vld [vmem:[%s215 + $0x16c8] sm:$0xff]
        %v1033 = vld [vmem:[%s215 + $0x16d0] sm:$0xff]
        %v1034 = vld [vmem:[%s215 + $0x16d8] sm:$0xff]
        %v1035 = vld [vmem:[%s215 + $0x16e0] sm:$0xff]
        %v1036 = vld [vmem:[%s215 + $0x16e8] sm:$0xff]
        %v1037 = vld [vmem:[%s215 + $0x16f0] sm:$0xff]
        %v1038 = vld [vmem:[%s215 + $0x16f8] sm:$0xff]
        %v1039 = vld [vmem:[%s215 + $0x1700] sm:$0xff]
        %v1040 = vld [vmem:[%s215 + $0x1708] sm:$0xff]
        %v1041 = vld [vmem:[%s215 + $0x1710] sm:$0xff]
        %v1042 = vld [vmem:[%s215 + $0x1718] sm:$0xff]
        %v1043 = vld [vmem:[%s215 + $0x1720] sm:$0xff]
        %v1044 = vld [vmem:[%s215 + $0x1728] sm:$0xff]
        %v1045 = vld [vmem:[%s215 + $0x1730] sm:$0xff]
        %v1046 = vld [vmem:[%s215 + $0x1738] sm:$0xff]
        %v1047 = vld [vmem:[%s215 + $0x1740] sm:$0xff]
        %v1048 = vld [vmem:[%s215 + $0x1748] sm:$0xff]
        %v1049 = vld [vmem:[%s215 + $0x1750] sm:$0xff]
        %v1050 = vld [vmem:[%s215 + $0x1758] sm:$0xff]
        %v1051 = vld [vmem:[%s215 + $0x1760] sm:$0xff]
        %v1052 = vld [vmem:[%s215 + $0x1768] sm:$0xff]
        %v1053 = vld [vmem:[%s215 + $0x1770] sm:$0xff]
        %v1054 = vld [vmem:[%s215 + $0x1778] sm:$0xff]
        %v1055 = vld [vmem:[%s215 + $0x1780] sm:$0xff]
        %v1056 = vld [vmem:[%s215 + $0x1788] sm:$0xff]
        %v1057 = vld [vmem:[%s215 + $0x1790] sm:$0xff]
        %v1058 = vld [vmem:[%s215 + $0x1798] sm:$0xff]
        %v1059 = vld [vmem:[%s215 + $0x17a0] sm:$0xff]
        %v1060 = vld [vmem:[%s215 + $0x17a8] sm:$0xff]
        %v1061 = vld [vmem:[%s215 + $0x17b0] sm:$0xff]
        %v1062 = vld [vmem:[%s215 + $0x17b8] sm:$0xff]
        %v1063 = vld [vmem:[%s215 + $0x17c0] sm:$0xff]
        %v1064 = vld [vmem:[%s215 + $0x17c8] sm:$0xff]
        %v1065 = vld [vmem:[%s215 + $0x17d0] sm:$0xff]
        %v1066 = vld [vmem:[%s215 + $0x17d8] sm:$0xff]
        %v1067 = vld [vmem:[%s215 + $0x17e0] sm:$0xff]
        %v1068 = vld [vmem:[%s215 + $0x17e8] sm:$0xff]
        %v1069 = vld [vmem:[%s215 + $0x17f0] sm:$0xff]
        %v1070 = vld [vmem:[%s215 + $0x17f8] sm:$0xff]
        %v1071 = vld [vmem:[%s215 + $0x1800] sm:$0xff]
        %v1072 = vld [vmem:[%s215 + $0x1808] sm:$0xff]
        %v1073 = vld [vmem:[%s215 + $0x1810] sm:$0xff]
        %v1074 = vld [vmem:[%s215 + $0x1818] sm:$0xff]
        %v1075 = vld [vmem:[%s215 + $0x1820] sm:$0xff]
        %v1076 = vld [vmem:[%s215 + $0x1828] sm:$0xff]
        %v1077 = vld [vmem:[%s215 + $0x1830] sm:$0xff]
        %v1078 = vld [vmem:[%s215 + $0x1838] sm:$0xff]
        %v1079 = vld [vmem:[%s215 + $0x1840] sm:$0xff]
        %v1080 = vld [vmem:[%s215 + $0x1848] sm:$0xff]
        %v1081 = vld [vmem:[%s215 + $0x1850] sm:$0xff]
        %v1082 = vld [vmem:[%s215 + $0x1858] sm:$0xff]
        %v1083 = vld [vmem:[%s215 + $0x1860] sm:$0xff]
        %v1084 = vld [vmem:[%s215 + $0x1868] sm:$0xff]
        %v1085 = vld [vmem:[%s215 + $0x1870] sm:$0xff]
        %v1086 = vld [vmem:[%s215 + $0x1878] sm:$0xff]
        %v1087 = vld [vmem:[%s215 + $0x1880] sm:$0xff]
        %v1088 = vld [vmem:[%s215 + $0x1888] sm:$0xff]
        %v1089 = vld [vmem:[%s215 + $0x1890] sm:$0xff]
        %v1090 = vld [vmem:[%s215 + $0x1898] sm:$0xff]
        %v1091 = vld [vmem:[%s215 + $0x18a0] sm:$0xff]
        %v1092 = vld [vmem:[%s215 + $0x18a8] sm:$0xff]
        %v1093 = vld [vmem:[%s215 + $0x18b0] sm:$0xff]
        %v1094 = vld [vmem:[%s215 + $0x18b8] sm:$0xff]
        %v1095 = vld [vmem:[%s215 + $0x18c0] sm:$0xff]
        %v1096 = vld [vmem:[%s215 + $0x18c8] sm:$0xff]
        %v1097 = vld [vmem:[%s215 + $0x18d0] sm:$0xff]
        %v1098 = vld [vmem:[%s215 + $0x18d8] sm:$0xff]
        %v1099 = vld [vmem:[%s215 + $0x18e0] sm:$0xff]
        %v1100 = vld [vmem:[%s215 + $0x18e8] sm:$0xff]
        %v1101 = vld [vmem:[%s215 + $0x18f0] sm:$0xff]
        %v1102 = vld [vmem:[%s215 + $0x18f8] sm:$0xff]
        %v1103 = vld [vmem:[%s215 + $0x1900] sm:$0xff]
        %v1104 = vld [vmem:[%s215 + $0x1908] sm:$0xff]
        %v1105 = vld [vmem:[%s215 + $0x1910] sm:$0xff]
        %v1106 = vld [vmem:[%s215 + $0x1918] sm:$0xff]
        %v1107 = vld [vmem:[%s215 + $0x1920] sm:$0xff]
        %v1108 = vld [vmem:[%s215 + $0x1928] sm:$0xff]
        %v1109 = vld [vmem:[%s215 + $0x1930] sm:$0xff]
        %v1110 = vld [vmem:[%s215 + $0x1938] sm:$0xff]
        %v1111 = vld [vmem:[%s215 + $0x1940] sm:$0xff]
        %v1112 = vld [vmem:[%s215 + $0x1948] sm:$0xff]
        %v1113 = vld [vmem:[%s215 + $0x1950] sm:$0xff]
        %v1114 = vld [vmem:[%s215 + $0x1958] sm:$0xff]
        %v1115 = vld [vmem:[%s215 + $0x1960] sm:$0xff]
        %v1116 = vld [vmem:[%s215 + $0x1968] sm:$0xff]
        %v1117 = vld [vmem:[%s215 + $0x1970] sm:$0xff]
        %v1118 = vld [vmem:[%s215 + $0x1978] sm:$0xff]
        %v1119 = vld [vmem:[%s215 + $0x1980] sm:$0xff]
        %v1120 = vld [vmem:[%s215 + $0x1988] sm:$0xff]
        %v1121 = vld [vmem:[%s215 + $0x1990] sm:$0xff]
        %v1122 = vld [vmem:[%s215 + $0x1998] sm:$0xff]
        %v1123 = vld [vmem:[%s215 + $0x19a0] sm:$0xff]
        %v1124 = vld [vmem:[%s215 + $0x19a8] sm:$0xff]
        %v1125 = vld [vmem:[%s215 + $0x19b0] sm:$0xff]
        %v1126 = vld [vmem:[%s215 + $0x19b8] sm:$0xff]
        %v1127 = vld [vmem:[%s215 + $0x19c0] sm:$0xff]
        %v1128 = vld [vmem:[%s215 + $0x19c8] sm:$0xff]
        %v1129 = vld [vmem:[%s215 + $0x19d0] sm:$0xff]
        %v1130 = vld [vmem:[%s215 + $0x19d8] sm:$0xff]
        %v1131 = vld [vmem:[%s215 + $0x19e0] sm:$0xff]
        %v1132 = vld [vmem:[%s215 + $0x19e8] sm:$0xff]
        %v1133 = vld [vmem:[%s215 + $0x19f0] sm:$0xff]
        %v1134 = vld [vmem:[%s215 + $0x19f8] sm:$0xff]
        %v1135 = vld [vmem:[%s215 + $0x1a00] sm:$0xff]
        %v1136 = vld [vmem:[%s215 + $0x1a08] sm:$0xff]
        %v1137 = vld [vmem:[%s215 + $0x1a10] sm:$0xff]
        %v1138 = vld [vmem:[%s215 + $0x1a18] sm:$0xff]
        %v1139 = vld [vmem:[%s215 + $0x1a20] sm:$0xff]
        %v1140 = vld [vmem:[%s215 + $0x1a28] sm:$0xff]
        %v1141 = vld [vmem:[%s215 + $0x1a30] sm:$0xff]
        %v1142 = vld [vmem:[%s215 + $0x1a38] sm:$0xff]
        %v1143 = vld [vmem:[%s215 + $0x1a40] sm:$0xff]
        %v1144 = vld [vmem:[%s215 + $0x1a48] sm:$0xff]
        %v1145 = vld [vmem:[%s215 + $0x1a50] sm:$0xff]
        %v1146 = vld [vmem:[%s215 + $0x1a58] sm:$0xff]
        %v1147 = vld [vmem:[%s215 + $0x1a60] sm:$0xff]
        %v1148 = vld [vmem:[%s215 + $0x1a68] sm:$0xff]
        %v1149 = vld [vmem:[%s215 + $0x1a70] sm:$0xff]
        %v1150 = vld [vmem:[%s215 + $0x1a78] sm:$0xff]
        %v1151 = vld [vmem:[%s215 + $0x1a80] sm:$0xff]
        %v1152 = vld [vmem:[%s215 + $0x1a88] sm:$0xff]
        %v1153 = vld [vmem:[%s215 + $0x1a90] sm:$0xff]
        %v1154 = vld [vmem:[%s215 + $0x1a98] sm:$0xff]
        %v1155 = vld [vmem:[%s215 + $0x1aa0] sm:$0xff]
        %v1156 = vld [vmem:[%s215 + $0x1aa8] sm:$0xff]
        %v1157 = vld [vmem:[%s215 + $0x1ab0] sm:$0xff]
        %v1158 = vld [vmem:[%s215 + $0x1ab8] sm:$0xff]
        %v1159 = vld [vmem:[%s215 + $0x1ac0] sm:$0xff]
        %v1160 = vld [vmem:[%s215 + $0x1ac8] sm:$0xff]
        %v1161 = vld [vmem:[%s215 + $0x1ad0] sm:$0xff]
        %v1162 = vld [vmem:[%s215 + $0x1ad8] sm:$0xff]
        %v1163 = vld [vmem:[%s215 + $0x1ae0] sm:$0xff]
        %v1164 = vld [vmem:[%s215 + $0x1ae8] sm:$0xff]
        %v1165 = vld [vmem:[%s215 + $0x1af0] sm:$0xff]
        %v1166 = vld [vmem:[%s215 + $0x1af8] sm:$0xff]
        %v1167 = vld [vmem:[%s215 + $0x1b00] sm:$0xff]
        %v1168 = vld [vmem:[%s215 + $0x1b08] sm:$0xff]
        %v1169 = vld [vmem:[%s215 + $0x1b10] sm:$0xff]
        %v1170 = vld [vmem:[%s215 + $0x1b18] sm:$0xff]
        %v1171 = vld [vmem:[%s215 + $0x1b20] sm:$0xff]
        %v1172 = vld [vmem:[%s215 + $0x1b28] sm:$0xff]
        %v1173 = vld [vmem:[%s215 + $0x1b30] sm:$0xff]
        %v1174 = vld [vmem:[%s215 + $0x1b38] sm:$0xff]
        %v1175 = vld [vmem:[%s215 + $0x1b40] sm:$0xff]
        %v1176 = vld [vmem:[%s215 + $0x1b48] sm:$0xff]
        %v1177 = vld [vmem:[%s215 + $0x1b50] sm:$0xff]
        %v1178 = vld [vmem:[%s215 + $0x1b58] sm:$0xff]
        %v1179 = vld [vmem:[%s215 + $0x1b60] sm:$0xff]
        %v1180 = vld [vmem:[%s215 + $0x1b68] sm:$0xff]
        %v1181 = vld [vmem:[%s215 + $0x1b70] sm:$0xff]
        %v1182 = vld [vmem:[%s215 + $0x1b78] sm:$0xff]
        %v1183 = vld [vmem:[%s215 + $0x1b80] sm:$0xff]
        %v1184 = vld [vmem:[%s215 + $0x1b88] sm:$0xff]
        %v1185 = vld [vmem:[%s215 + $0x1b90] sm:$0xff]
        %v1186 = vld [vmem:[%s215 + $0x1b98] sm:$0xff]
        %v1187 = vld [vmem:[%s215 + $0x1ba0] sm:$0xff]
        %v1188 = vld [vmem:[%s215 + $0x1ba8] sm:$0xff]
        %v1189 = vld [vmem:[%s215 + $0x1bb0] sm:$0xff]
        %v1190 = vld [vmem:[%s215 + $0x1bb8] sm:$0xff]
        %v1191 = vld [vmem:[%s215 + $0x1bc0] sm:$0xff]
        %v1192 = vld [vmem:[%s215 + $0x1bc8] sm:$0xff]
        %v1193 = vld [vmem:[%s215 + $0x1bd0] sm:$0xff]
        %v1194 = vld [vmem:[%s215 + $0x1bd8] sm:$0xff]
        %v1195 = vld [vmem:[%s215 + $0x1be0] sm:$0xff]
        %v1196 = vld [vmem:[%s215 + $0x1be8] sm:$0xff]
        %v1197 = vld [vmem:[%s215 + $0x1bf0] sm:$0xff]
        %v1198 = vld [vmem:[%s215 + $0x1bf8] sm:$0xff]
        %v1199 = vld [vmem:[%s215 + $0x1c00] sm:$0xff]
        %v1200 = vld [vmem:[%s215 + $0x1c08] sm:$0xff]
        %v1201 = vld [vmem:[%s215 + $0x1c10] sm:$0xff]
        %v1202 = vld [vmem:[%s215 + $0x1c18] sm:$0xff]
        %v1203 = vld [vmem:[%s215 + $0x1c20] sm:$0xff]
        %v1204 = vld [vmem:[%s215 + $0x1c28] sm:$0xff]
        %v1205 = vld [vmem:[%s215 + $0x1c30] sm:$0xff]
        %v1206 = vld [vmem:[%s215 + $0x1c38] sm:$0xff]
        %v1207 = vld [vmem:[%s215 + $0x1c40] sm:$0xff]
        %v1208 = vld [vmem:[%s215 + $0x1c48] sm:$0xff]
        %v1209 = vld [vmem:[%s215 + $0x1c50] sm:$0xff]
        %v1210 = vld [vmem:[%s215 + $0x1c58] sm:$0xff]
        %v1211 = vld [vmem:[%s215 + $0x1c60] sm:$0xff]
        %v1212 = vld [vmem:[%s215 + $0x1c68] sm:$0xff]
        %v1213 = vld [vmem:[%s215 + $0x1c70] sm:$0xff]
        %v1214 = vld [vmem:[%s215 + $0x1c78] sm:$0xff]
        %v1215 = vld [vmem:[%s215 + $0x1c80] sm:$0xff]
        %v1216 = vld [vmem:[%s215 + $0x1c88] sm:$0xff]
        %v1217 = vld [vmem:[%s215 + $0x1c90] sm:$0xff]
        %v1218 = vld [vmem:[%s215 + $0x1c98] sm:$0xff]
        %v1219 = vld [vmem:[%s215 + $0x1ca0] sm:$0xff]
        %v1220 = vld [vmem:[%s215 + $0x1ca8] sm:$0xff]
        %v1221 = vld [vmem:[%s215 + $0x1cb0] sm:$0xff]
        %v1222 = vld [vmem:[%s215 + $0x1cb8] sm:$0xff]
        %v1223 = vld [vmem:[%s215 + $0x1cc0] sm:$0xff]
        %v1224 = vld [vmem:[%s215 + $0x1cc8] sm:$0xff]
        %v1225 = vld [vmem:[%s215 + $0x1cd0] sm:$0xff]
        %v1226 = vld [vmem:[%s215 + $0x1cd8] sm:$0xff]
        %v1227 = vld [vmem:[%s215 + $0x1ce0] sm:$0xff]
        %v1228 = vld [vmem:[%s215 + $0x1ce8] sm:$0xff]
        %v1229 = vld [vmem:[%s215 + $0x1cf0] sm:$0xff]
        %v1230 = vld [vmem:[%s215 + $0x1cf8] sm:$0xff]
        %v1231 = vld [vmem:[%s215 + $0x1d00] sm:$0xff]
        %v1232 = vld [vmem:[%s215 + $0x1d08] sm:$0xff]
        %v1233 = vld [vmem:[%s215 + $0x1d10] sm:$0xff]
        %v1234 = vld [vmem:[%s215 + $0x1d18] sm:$0xff]
        %v1235 = vld [vmem:[%s215 + $0x1d20] sm:$0xff]
        %v1236 = vld [vmem:[%s215 + $0x1d28] sm:$0xff]
        %v1237 = vld [vmem:[%s215 + $0x1d30] sm:$0xff]
        %v1238 = vld [vmem:[%s215 + $0x1d38] sm:$0xff]
        %v1239 = vld [vmem:[%s215 + $0x1d40] sm:$0xff]
        %v1240 = vld [vmem:[%s215 + $0x1d48] sm:$0xff]
        %v1241 = vld [vmem:[%s215 + $0x1d50] sm:$0xff]
        %v1242 = vld [vmem:[%s215 + $0x1d58] sm:$0xff]
        %v1243 = vld [vmem:[%s215 + $0x1d60] sm:$0xff]
        %v1244 = vld [vmem:[%s215 + $0x1d68] sm:$0xff]
        %v1245 = vld [vmem:[%s215 + $0x1d70] sm:$0xff]
        %v1246 = vld [vmem:[%s215 + $0x1d78] sm:$0xff]
        %v1247 = vld [vmem:[%s215 + $0x1d80] sm:$0xff]
        %v1248 = vld [vmem:[%s215 + $0x1d88] sm:$0xff]
        %v1249 = vld [vmem:[%s215 + $0x1d90] sm:$0xff]
        %v1250 = vld [vmem:[%s215 + $0x1d98] sm:$0xff]
        %v1251 = vld [vmem:[%s215 + $0x1da0] sm:$0xff]
        %v1252 = vld [vmem:[%s215 + $0x1da8] sm:$0xff]
        %v1253 = vld [vmem:[%s215 + $0x1db0] sm:$0xff]
        %v1254 = vld [vmem:[%s215 + $0x1db8] sm:$0xff]
        %v1255 = vld [vmem:[%s215 + $0x1dc0] sm:$0xff]
        %v1256 = vld [vmem:[%s215 + $0x1dc8] sm:$0xff]
        %v1257 = vld [vmem:[%s215 + $0x1dd0] sm:$0xff]
        %v1258 = vld [vmem:[%s215 + $0x1dd8] sm:$0xff]
        %v1259 = vld [vmem:[%s215 + $0x1de0] sm:$0xff]
        %v1260 = vld [vmem:[%s215 + $0x1de8] sm:$0xff]
        %v1261 = vld [vmem:[%s215 + $0x1df0] sm:$0xff]
        %v1262 = vld [vmem:[%s215 + $0x1df8] sm:$0xff]
        %v1263 = vld [vmem:[%s215 + $0x1e00] sm:$0xff]
        %v1264 = vld [vmem:[%s215 + $0x1e08] sm:$0xff]
        %v1265 = vld [vmem:[%s215 + $0x1e10] sm:$0xff]
        %v1266 = vld [vmem:[%s215 + $0x1e18] sm:$0xff]
        %v1267 = vld [vmem:[%s215 + $0x1e20] sm:$0xff]
        %v1268 = vld [vmem:[%s215 + $0x1e28] sm:$0xff]
        %v1269 = vld [vmem:[%s215 + $0x1e30] sm:$0xff]
        %v1270 = vld [vmem:[%s215 + $0x1e38] sm:$0xff]
        %v1271 = vld [vmem:[%s215 + $0x1e40] sm:$0xff]
        %v1272 = vld [vmem:[%s215 + $0x1e48] sm:$0xff]
        %v1273 = vld [vmem:[%s215 + $0x1e50] sm:$0xff]
        %v1274 = vld [vmem:[%s215 + $0x1e58] sm:$0xff]
        %v1275 = vld [vmem:[%s215 + $0x1e60] sm:$0xff]
        %v1276 = vld [vmem:[%s215 + $0x1e68] sm:$0xff]
        %v1277 = vld [vmem:[%s215 + $0x1e70] sm:$0xff]
        %v1278 = vld [vmem:[%s215 + $0x1e78] sm:$0xff]
        %v1279 = vld [vmem:[%s215 + $0x1e80] sm:$0xff]
        %v1280 = vld [vmem:[%s215 + $0x1e88] sm:$0xff]
        %v1281 = vld [vmem:[%s215 + $0x1e90] sm:$0xff]
        %v1282 = vld [vmem:[%s215 + $0x1e98] sm:$0xff]
        %v1283 = vld [vmem:[%s215 + $0x1ea0] sm:$0xff]
        %v1284 = vld [vmem:[%s215 + $0x1ea8] sm:$0xff]
        %v1285 = vld [vmem:[%s215 + $0x1eb0] sm:$0xff]
        %v1286 = vld [vmem:[%s215 + $0x1eb8] sm:$0xff]
        %v1287 = vld [vmem:[%s215 + $0x1ec0] sm:$0xff]
        %v1288 = vld [vmem:[%s215 + $0x1ec8] sm:$0xff]
        %v1289 = vld [vmem:[%s215 + $0x1ed0] sm:$0xff]
        %v1290 = vld [vmem:[%s215 + $0x1ed8] sm:$0xff]
        %v1291 = vld [vmem:[%s215 + $0x1ee0] sm:$0xff]
        %v1292 = vld [vmem:[%s215 + $0x1ee8] sm:$0xff]
        %v1293 = vld [vmem:[%s215 + $0x1ef0] sm:$0xff]
        %v1294 = vld [vmem:[%s215 + $0x1ef8] sm:$0xff]
        %v1295 = vld [vmem:[%s215 + $0x1f00] sm:$0xff]
        %v1296 = vld [vmem:[%s215 + $0x1f08] sm:$0xff]
        %v1297 = vld [vmem:[%s215 + $0x1f10] sm:$0xff]
        %v1298 = vld [vmem:[%s215 + $0x1f18] sm:$0xff]
        %v1299 = vld [vmem:[%s215 + $0x1f20] sm:$0xff]
        %v1300 = vld [vmem:[%s215 + $0x1f28] sm:$0xff]
        %v1301 = vld [vmem:[%s215 + $0x1f30] sm:$0xff]
        %v1302 = vld [vmem:[%s215 + $0x1f38] sm:$0xff]
        %v1303 = vld [vmem:[%s215 + $0x1f40] sm:$0xff]
        %v1304 = vld [vmem:[%s215 + $0x1f48] sm:$0xff]
        %v1305 = vld [vmem:[%s215 + $0x1f50] sm:$0xff]
        %v1306 = vld [vmem:[%s215 + $0x1f58] sm:$0xff]
        %v1307 = vld [vmem:[%s215 + $0x1f60] sm:$0xff]
        %v1308 = vld [vmem:[%s215 + $0x1f68] sm:$0xff]
        %v1309 = vld [vmem:[%s215 + $0x1f70] sm:$0xff]
        %v1310 = vld [vmem:[%s215 + $0x1f78] sm:$0xff]
        %v1311 = vld [vmem:[%s215 + $0x1f80] sm:$0xff]
        %v1312 = vld [vmem:[%s215 + $0x1f88] sm:$0xff]
        %v1313 = vld [vmem:[%s215 + $0x1f90] sm:$0xff]
        %v1314 = vld [vmem:[%s215 + $0x1f98] sm:$0xff]
        %v1315 = vld [vmem:[%s215 + $0x1fa0] sm:$0xff]
        %v1316 = vld [vmem:[%s215 + $0x1fa8] sm:$0xff]
        %v1317 = vld [vmem:[%s215 + $0x1fb0] sm:$0xff]
        %v1318 = vld [vmem:[%s215 + $0x1fb8] sm:$0xff]
        %v1319 = vld [vmem:[%s215 + $0x1fc0] sm:$0xff]
        %v1320 = vld [vmem:[%s215 + $0x1fc8] sm:$0xff]
        %v1321 = vld [vmem:[%s215 + $0x1fd0] sm:$0xff]
        %v1322 = vld [vmem:[%s215 + $0x1fd8] sm:$0xff]
        %v1323 = vld [vmem:[%s215 + $0x1fe0] sm:$0xff]
        %v1324 = vld [vmem:[%s215 + $0x1fe8] sm:$0xff]
        %v1325 = vld [vmem:[%s215 + $0x1ff0] sm:$0xff]
        %v1326 = vld [vmem:[%s215 + $0x1ff8] sm:$0xff]
        %v1327 = vld [vmem:[%s215 + $0x2000] sm:$0xff]
        %v1328 = vld [vmem:[%s215 + $0x2008] sm:$0xff]
        %v1329 = vld [vmem:[%s215 + $0x2010] sm:$0xff]
        %v1330 = vld [vmem:[%s215 + $0x2018] sm:$0xff]
        %v1331 = vld [vmem:[%s215 + $0x2020] sm:$0xff]
        %v1332 = vld [vmem:[%s215 + $0x2028] sm:$0xff]
        %v1333 = vld [vmem:[%s215 + $0x2030] sm:$0xff]
        %v1334 = vld [vmem:[%s215 + $0x2038] sm:$0xff]
        %v1335 = vld [vmem:[%s215 + $0x2040] sm:$0xff]
        %v1336 = vld [vmem:[%s215 + $0x2048] sm:$0xff]
        %v1337 = vld [vmem:[%s215 + $0x2050] sm:$0xff]
        %v1338 = vld [vmem:[%s215 + $0x2058] sm:$0xff]
        %v1339 = vld [vmem:[%s215 + $0x2060] sm:$0xff]
        %v1340 = vld [vmem:[%s215 + $0x2068] sm:$0xff]
        %v1341 = vld [vmem:[%s215 + $0x2070] sm:$0xff]
        %v1342 = vld [vmem:[%s215 + $0x2078] sm:$0xff]
        %v1343 = vld [vmem:[%s215 + $0x2080] sm:$0xff]
        %v1344 = vld [vmem:[%s215 + $0x2088] sm:$0xff]
        %v1345 = vld [vmem:[%s215 + $0x2090] sm:$0xff]
        %v1346 = vld [vmem:[%s215 + $0x2098] sm:$0xff]
        %v1347 = vld [vmem:[%s215 + $0x20a0] sm:$0xff]
        %v1348 = vld [vmem:[%s215 + $0x20a8] sm:$0xff]
        %v1349 = vld [vmem:[%s215 + $0x20b0] sm:$0xff]
        %v1350 = vld [vmem:[%s215 + $0x20b8] sm:$0xff]
        %v1351 = vld [vmem:[%s215 + $0x20c0] sm:$0xff]
        %v1352 = vld [vmem:[%s215 + $0x20c8] sm:$0xff]
        %v1353 = vld [vmem:[%s215 + $0x20d0] sm:$0xff]
        %v1354 = vld [vmem:[%s215 + $0x20d8] sm:$0xff]
        %v1355 = vld [vmem:[%s215 + $0x20e0] sm:$0xff]
        %v1356 = vld [vmem:[%s215 + $0x20e8] sm:$0xff]
        %v1357 = vld [vmem:[%s215 + $0x20f0] sm:$0xff]
        %v1358 = vld [vmem:[%s215 + $0x20f8] sm:$0xff]
        %v1359 = vld [vmem:[%s215 + $0x2100] sm:$0xff]
        %v1360 = vld [vmem:[%s215 + $0x2108] sm:$0xff]
        %v1361 = vld [vmem:[%s215 + $0x2110] sm:$0xff]
        %v1362 = vld [vmem:[%s215 + $0x2118] sm:$0xff]
        %v1363 = vld [vmem:[%s215 + $0x2120] sm:$0xff]
        %v1364 = vld [vmem:[%s215 + $0x2128] sm:$0xff]
        %v1365 = vld [vmem:[%s215 + $0x2130] sm:$0xff]
        %v1366 = vld [vmem:[%s215 + $0x2138] sm:$0xff]
        %v1367 = vld [vmem:[%s215 + $0x2140] sm:$0xff]
        %v1368 = vld [vmem:[%s215 + $0x2148] sm:$0xff]
        %v1369 = vld [vmem:[%s215 + $0x2150] sm:$0xff]
        %v1370 = vld [vmem:[%s215 + $0x2158] sm:$0xff]
        %v1371 = vld [vmem:[%s215 + $0x2160] sm:$0xff]
        %v1372 = vld [vmem:[%s215 + $0x2168] sm:$0xff]
        %v1373 = vld [vmem:[%s215 + $0x2170] sm:$0xff]
        %v1374 = vld [vmem:[%s215 + $0x2178] sm:$0xff]
        %v1375 = vld [vmem:[%s215 + $0x2180] sm:$0xff]
        %v1376 = vld [vmem:[%s215 + $0x2188] sm:$0xff]
        %v1377 = vld [vmem:[%s215 + $0x2190] sm:$0xff]
        %v1378 = vld [vmem:[%s215 + $0x2198] sm:$0xff]
        %v1379 = vld [vmem:[%s215 + $0x21a0] sm:$0xff]
        %v1380 = vld [vmem:[%s215 + $0x21a8] sm:$0xff]
        %v1381 = vld [vmem:[%s215 + $0x21b0] sm:$0xff]
        %v1382 = vld [vmem:[%s215 + $0x21b8] sm:$0xff]
        %v1383 = vld [vmem:[%s215 + $0x21c0] sm:$0xff]
        %v1384 = vld [vmem:[%s215 + $0x21c8] sm:$0xff]
        %v1385 = vld [vmem:[%s215 + $0x21d0] sm:$0xff]
        %v1386 = vld [vmem:[%s215 + $0x21d8] sm:$0xff]
        %v1387 = vld [vmem:[%s215 + $0x21e0] sm:$0xff]
        %v1388 = vld [vmem:[%s215 + $0x21e8] sm:$0xff]
        %v1389 = vld [vmem:[%s215 + $0x21f0] sm:$0xff]
        %v1390 = vld [vmem:[%s215 + $0x21f8] sm:$0xff]
        %v1391 = vld [vmem:[%s215 + $0x2200] sm:$0xff]
        %v1392 = vld [vmem:[%s215 + $0x2208] sm:$0xff]
        %v1393 = vld [vmem:[%s215 + $0x2210] sm:$0xff]
        %v1394 = vld [vmem:[%s215 + $0x2218] sm:$0xff]
        %v1395 = vld [vmem:[%s215 + $0x2220] sm:$0xff]
        %v1396 = vld [vmem:[%s215 + $0x2228] sm:$0xff]
        %v1397 = vld [vmem:[%s215 + $0x2230] sm:$0xff]
        %v1398 = vld [vmem:[%s215 + $0x2238] sm:$0xff]
        %v1399 = vld [vmem:[%s215 + $0x2240] sm:$0xff]
        %v1400 = vld [vmem:[%s215 + $0x2248] sm:$0xff]
        %v1401 = vld [vmem:[%s215 + $0x2250] sm:$0xff]
        %v1402 = vld [vmem:[%s215 + $0x2258] sm:$0xff]
        %v1403 = vld [vmem:[%s215 + $0x2260] sm:$0xff]
        %v1404 = vld [vmem:[%s215 + $0x2268] sm:$0xff]
        %v1405 = vld [vmem:[%s215 + $0x2270] sm:$0xff]
        %v1406 = vld [vmem:[%s215 + $0x2278] sm:$0xff]
        %v1407 = vld [vmem:[%s215 + $0x2280] sm:$0xff]
        %v1408 = vld [vmem:[%s215 + $0x2288] sm:$0xff]
        %v1409 = vld [vmem:[%s215 + $0x2290] sm:$0xff]
        %v1410 = vld [vmem:[%s215 + $0x2298] sm:$0xff]
        %v1411 = vld [vmem:[%s215 + $0x22a0] sm:$0xff]
        %v1412 = vld [vmem:[%s215 + $0x22a8] sm:$0xff]
        %v1413 = vld [vmem:[%s215 + $0x22b0] sm:$0xff]
        %v1414 = vld [vmem:[%s215 + $0x22b8] sm:$0xff]
        %v1415 = vld [vmem:[%s215 + $0x22c0] sm:$0xff]
        %v1416 = vld [vmem:[%s215 + $0x22c8] sm:$0xff]
        %v1417 = vld [vmem:[%s215 + $0x22d0] sm:$0xff]
        %v1418 = vld [vmem:[%s215 + $0x22d8] sm:$0xff]
        %v1419 = vld [vmem:[%s215 + $0x22e0] sm:$0xff]
        %v1420 = vld [vmem:[%s215 + $0x22e8] sm:$0xff]
        %v1421 = vld [vmem:[%s215 + $0x22f0] sm:$0xff]
        %v1422 = vld [vmem:[%s215 + $0x22f8] sm:$0xff]
        %v1423 = vld [vmem:[%s215 + $0x2300] sm:$0xff]
        %v1424 = vld [vmem:[%s215 + $0x2308] sm:$0xff]
        %v1425 = vld [vmem:[%s215 + $0x2310] sm:$0xff]
        %v1426 = vld [vmem:[%s215 + $0x2318] sm:$0xff]
        %v1427 = vld [vmem:[%s215 + $0x2320] sm:$0xff]
        %v1428 = vld [vmem:[%s215 + $0x2328] sm:$0xff]
        %v1429 = vld [vmem:[%s215 + $0x2330] sm:$0xff]
        %v1430 = vld [vmem:[%s215 + $0x2338] sm:$0xff]
        %v1431 = vld [vmem:[%s215 + $0x2340] sm:$0xff]
        %v1432 = vld [vmem:[%s215 + $0x2348] sm:$0xff]
        %v1433 = vld [vmem:[%s215 + $0x2350] sm:$0xff]
        %v1434 = vld [vmem:[%s215 + $0x2358] sm:$0xff]
        %v1435 = vld [vmem:[%s215 + $0x2360] sm:$0xff]
        %v1436 = vld [vmem:[%s215 + $0x2368] sm:$0xff]
        %v1437 = vld [vmem:[%s215 + $0x2370] sm:$0xff]
        %v1438 = vld [vmem:[%s215 + $0x2378] sm:$0xff]
        %v1439 = vld [vmem:[%s215 + $0x2380] sm:$0xff]
        %v1440 = vld [vmem:[%s215 + $0x2388] sm:$0xff]
        %v1441 = vld [vmem:[%s215 + $0x2390] sm:$0xff]
        %v1442 = vld [vmem:[%s215 + $0x2398] sm:$0xff]
        %v1443 = vld [vmem:[%s215 + $0x23a0] sm:$0xff]
        %v1444 = vld [vmem:[%s215 + $0x23a8] sm:$0xff]
        %v1445 = vld [vmem:[%s215 + $0x23b0] sm:$0xff]
        %v1446 = vld [vmem:[%s215 + $0x23b8] sm:$0xff]
        %v1447 = vld [vmem:[%s215 + $0x23c0] sm:$0xff]
        %v1448 = vld [vmem:[%s215 + $0x23c8] sm:$0xff]
        %v1449 = vld [vmem:[%s215 + $0x23d0] sm:$0xff]
        %v1450 = vld [vmem:[%s215 + $0x23d8] sm:$0xff]
        %v1451 = vld [vmem:[%s215 + $0x23e0] sm:$0xff]
        %v1452 = vld [vmem:[%s215 + $0x23e8] sm:$0xff]
        %v1453 = vld [vmem:[%s215 + $0x23f0] sm:$0xff]
        %v1454 = vld [vmem:[%s215 + $0x23f8] sm:$0xff]
        %v1455 = vld [vmem:[%s215 + $0x2400] sm:$0xff]
        %v1456 = vld [vmem:[%s215 + $0x2408] sm:$0xff]
        %v1457 = vld [vmem:[%s215 + $0x2410] sm:$0xff]
        %v1458 = vld [vmem:[%s215 + $0x2418] sm:$0xff]
        %v1459 = vld [vmem:[%s215 + $0x2420] sm:$0xff]
        %v1460 = vld [vmem:[%s215 + $0x2428] sm:$0xff]
        %v1461 = vld [vmem:[%s215 + $0x2430] sm:$0xff]
        %v1462 = vld [vmem:[%s215 + $0x2438] sm:$0xff]
        %v1463 = vld [vmem:[%s215 + $0x2440] sm:$0xff]
        %v1464 = vld [vmem:[%s215 + $0x2448] sm:$0xff]
        %v1465 = vld [vmem:[%s215 + $0x2450] sm:$0xff]
        %v1466 = vld [vmem:[%s215 + $0x2458] sm:$0xff]
        %v1467 = vld [vmem:[%s215 + $0x2460] sm:$0xff]
        %v1468 = vld [vmem:[%s215 + $0x2468] sm:$0xff]
        %v1469 = vld [vmem:[%s215 + $0x2470] sm:$0xff]
        %v1470 = vld [vmem:[%s215 + $0x2478] sm:$0xff]
        %v1471 = vld [vmem:[%s215 + $0x2480] sm:$0xff]
        %v1472 = vld [vmem:[%s215 + $0x2488] sm:$0xff]
        %v1473 = vld [vmem:[%s215 + $0x2490] sm:$0xff]
        %v1474 = vld [vmem:[%s215 + $0x2498] sm:$0xff]
        %v1475 = vld [vmem:[%s215 + $0x24a0] sm:$0xff]
        %v1476 = vld [vmem:[%s215 + $0x24a8] sm:$0xff]
        %v1477 = vld [vmem:[%s215 + $0x24b0] sm:$0xff]
        %v1478 = vld [vmem:[%s215 + $0x24b8] sm:$0xff]
        %v1479 = vld [vmem:[%s215 + $0x24c0] sm:$0xff]
        %v1480 = vld [vmem:[%s215 + $0x24c8] sm:$0xff]
        %v1481 = vld [vmem:[%s215 + $0x24d0] sm:$0xff]
        %v1482 = vld [vmem:[%s215 + $0x24d8] sm:$0xff]
        %v1483 = vld [vmem:[%s215 + $0x24e0] sm:$0xff]
        %v1484 = vld [vmem:[%s215 + $0x24e8] sm:$0xff]
        %v1485 = vld [vmem:[%s215 + $0x24f0] sm:$0xff]
        %v1486 = vld [vmem:[%s215 + $0x24f8] sm:$0xff]
        %v1487 = vld [vmem:[%s215 + $0x2500] sm:$0xff]
        %v1488 = vld [vmem:[%s215 + $0x2508] sm:$0xff]
        %v1489 = vld [vmem:[%s215 + $0x2510] sm:$0xff]
        %v1490 = vld [vmem:[%s215 + $0x2518] sm:$0xff]
        %v1491 = vld [vmem:[%s215 + $0x2520] sm:$0xff]
        %v1492 = vld [vmem:[%s215 + $0x2528] sm:$0xff]
        %v1493 = vld [vmem:[%s215 + $0x2530] sm:$0xff]
        %v1494 = vld [vmem:[%s215 + $0x2538] sm:$0xff]
        %v1495 = vld [vmem:[%s215 + $0x2540] sm:$0xff]
        %v1496 = vld [vmem:[%s215 + $0x2548] sm:$0xff]
        %v1497 = vld [vmem:[%s215 + $0x2550] sm:$0xff]
        %v1498 = vld [vmem:[%s215 + $0x2558] sm:$0xff]
        %v1499 = vld [vmem:[%s215 + $0x2560] sm:$0xff]
        %v1500 = vld [vmem:[%s215 + $0x2568] sm:$0xff]
        %v1501 = vld [vmem:[%s215 + $0x2570] sm:$0xff]
        %v1502 = vld [vmem:[%s215 + $0x2578] sm:$0xff]
        %v1503 = vld [vmem:[%s215 + $0x2580] sm:$0xff]
        %v1504 = vld [vmem:[%s215 + $0x2588] sm:$0xff]
        %v1505 = vld [vmem:[%s215 + $0x2590] sm:$0xff]
        %v1506 = vld [vmem:[%s215 + $0x2598] sm:$0xff]
        %v1507 = vld [vmem:[%s215 + $0x25a0] sm:$0xff]
        %v1508 = vld [vmem:[%s215 + $0x25a8] sm:$0xff]
        %v1509 = vld [vmem:[%s215 + $0x25b0] sm:$0xff]
        %v1510 = vld [vmem:[%s215 + $0x25b8] sm:$0xff]
        %v1511 = vld [vmem:[%s215 + $0x25c0] sm:$0xff]
        %v1512 = vld [vmem:[%s215 + $0x25c8] sm:$0xff]
        %v1513 = vld [vmem:[%s215 + $0x25d0] sm:$0xff]
        %v1514 = vld [vmem:[%s215 + $0x25d8] sm:$0xff]
        %v1515 = vld [vmem:[%s215 + $0x25e0] sm:$0xff]
        %v1516 = vld [vmem:[%s215 + $0x25e8] sm:$0xff]
        %v1517 = vld [vmem:[%s215 + $0x25f0] sm:$0xff]
        %v1518 = vld [vmem:[%s215 + $0x25f8] sm:$0xff]
        %1519 = vmatprep.subr.mxu0 %v364
        %1520 = vmatpush1.msra.mxu0 %v363
        %1521 = vmatprep.subr.mxu0 %v360
        %1522 = vmatpush1.msra.mxu0 %v359
        %1523 = vmatprep.subr.mxu0 %v356
        %1524 = vmatpush1.msra.mxu0 %v355
        %1525 = vmatprep.subr.mxu0 %v352
        %1526 = vmatpush1.msra.mxu0 %v351
        %1527 = vmatprep.subr.mxu0 %v348
        %1528 = vmatpush1.msra.mxu0 %v347
        %1529 = vmatprep.subr.mxu0 %v344
        %1530 = vmatpush1.msra.mxu0 %v343
        %1531 = vmatprep.subr.mxu0 %v340
        %1532 = vmatpush1.msra.mxu0 %v339
        %1533 = vmatprep.subr.mxu0 %v336
        %1534 = vmatpush1.msra.mxu0 %v335
        %1535 = vmatprep.subr.mxu0 %v332
        %1536 = vmatpush1.msra.mxu0 %v331
        %1537 = vmatprep.subr.mxu0 %v328
        %1538 = vmatpush1.msra.mxu0 %v327
        %1539 = vmatprep.subr.mxu0 %v324
        %1540 = vmatpush1.msra.mxu0 %v323
        %1541 = vmatprep.subr.mxu0 %v320
        %1542 = vmatpush1.msra.mxu0 %v319
        %1543 = vmatprep.subr.mxu0 %v316
        %1544 = vmatpush1.msra.mxu0 %v315
        %1545 = vmatprep.subr.mxu0 %v312
        %1546 = vmatpush1.msra.mxu0 %v311
        %1547 = vmatprep.subr.mxu0 %v308
        %1548 = vmatpush1.msra.mxu0 %v307
        %1549 = vmatprep.subr.mxu0 %v304
        %1550 = vmatpush1.msra.mxu0 %v303
        %1551 = vmatprep.subr.mxu0 %v428
        %1552 = vmatpush2.msra.mxu0 %v427
        %1553 = vmatprep.subr.mxu0 %v424
        %1554 = vmatpush2.msra.mxu0 %v423
        %1555 = vmatprep.subr.mxu0 %v420
        %1556 = vmatpush2.msra.mxu0 %v419
        %1557 = vmatprep.subr.mxu0 %v416
        %1558 = vmatpush2.msra.mxu0 %v415
        %1559 = vmatprep.subr.mxu0 %v412
        %1560 = vmatpush2.msra.mxu0 %v411
        %1561 = vmatprep.subr.mxu0 %v408
        %1562 = vmatpush2.msra.mxu0 %v407
        %1563 = vmatprep.subr.mxu0 %v404
        %1564 = vmatpush2.msra.mxu0 %v403
        %1565 = vmatprep.subr.mxu0 %v400
        %1566 = vmatpush2.msra.mxu0 %v399
        %1567 = vmatprep.subr.mxu0 %v396
        %1568 = vmatpush2.msra.mxu0 %v395
        %1569 = vmatprep.subr.mxu0 %v392
        %1570 = vmatpush2.msra.mxu0 %v391
        %1571 = vmatprep.subr.mxu0 %v388
        %1572 = vmatpush2.msra.mxu0 %v387
        %1573 = vmatprep.subr.mxu0 %v384
        %1574 = vmatpush2.msra.mxu0 %v383
        %1575 = vmatprep.subr.mxu0 %v380
        %1576 = vmatpush2.msra.mxu0 %v379
        %1577 = vmatprep.subr.mxu0 %v376
        %1578 = vmatpush2.msra.mxu0 %v375
        %1579 = vmatprep.subr.mxu0 %v372
        %1580 = vmatpush2.msra.mxu0 %v371
        %1581 = vmatprep.subr.mxu0 %v368
        %1582 = vmatpush2.msra.mxu0 %v367
        %1583 = vmatprep.mubr.f32.mxu0 %v285
        %1584 = vmatmul.mubr.f32.gmra.mxu0 %v284
        %v1585 = vpop.f32.mrf.mxu0
        %v1586 = vadd.f32 0.0, %v1585
        %v1587 = vpop.f32.mrf.mxu0
        %v1588 = vadd.f32 0.0, %v1587
        %1589 = vdwg.mxu0
        %1590 = vmatprep.subr.mxu0 %v492
        %1591 = vmatpush1.msra.mxu0 %v491
        %1592 = vmatprep.subr.mxu0 %v488
        %1593 = vmatpush1.msra.mxu0 %v487
        %1594 = vmatprep.subr.mxu0 %v484
        %1595 = vmatpush1.msra.mxu0 %v483
        %1596 = vmatprep.subr.mxu0 %v480
        %1597 = vmatpush1.msra.mxu0 %v479
        %1598 = vmatprep.subr.mxu0 %v476
        %1599 = vmatpush1.msra.mxu0 %v475
        %1600 = vmatprep.subr.mxu0 %v472
        %1601 = vmatpush1.msra.mxu0 %v471
        %1602 = vmatprep.subr.mxu0 %v468
        %1603 = vmatpush1.msra.mxu0 %v467
        %1604 = vmatprep.subr.mxu0 %v464
        %1605 = vmatpush1.msra.mxu0 %v463
        %1606 = vmatprep.subr.mxu0 %v460
        %1607 = vmatpush1.msra.mxu0 %v459
        %1608 = vmatprep.subr.mxu0 %v456
        %1609 = vmatpush1.msra.mxu0 %v455
        %1610 = vmatprep.subr.mxu0 %v452
        %1611 = vmatpush1.msra.mxu0 %v451
        %1612 = vmatprep.subr.mxu0 %v448
        %1613 = vmatpush1.msra.mxu0 %v447
        %1614 = vmatprep.subr.mxu0 %v444
        %1615 = vmatpush1.msra.mxu0 %v443
        %1616 = vmatprep.subr.mxu0 %v440
        %1617 = vmatpush1.msra.mxu0 %v439
        %1618 = vmatprep.subr.mxu0 %v436
        %1619 = vmatpush1.msra.mxu0 %v435
        %1620 = vmatprep.subr.mxu0 %v432
        %1621 = vmatpush1.msra.mxu0 %v431
        %1622 = vmatprep.subr.mxu0 %v556
        %1623 = vmatpush2.msra.mxu0 %v555
        %1624 = vmatprep.subr.mxu0 %v552
        %1625 = vmatpush2.msra.mxu0 %v551
        %1626 = vmatprep.subr.mxu0 %v548
        %1627 = vmatpush2.msra.mxu0 %v547
        %1628 = vmatprep.subr.mxu0 %v544
        %1629 = vmatpush2.msra.mxu0 %v543
        %1630 = vmatprep.subr.mxu0 %v540
        %1631 = vmatpush2.msra.mxu0 %v539
        %1632 = vmatprep.subr.mxu0 %v536
        %1633 = vmatpush2.msra.mxu0 %v535
        %1634 = vmatprep.subr.mxu0 %v532
        %1635 = vmatpush2.msra.mxu0 %v531
        %1636 = vmatprep.subr.mxu0 %v528
        %1637 = vmatpush2.msra.mxu0 %v527
        %1638 = vmatprep.subr.mxu0 %v524
        %1639 = vmatpush2.msra.mxu0 %v523
        %1640 = vmatprep.subr.mxu0 %v520
        %1641 = vmatpush2.msra.mxu0 %v519
        %1642 = vmatprep.subr.mxu0 %v516
        %1643 = vmatpush2.msra.mxu0 %v515
        %1644 = vmatprep.subr.mxu0 %v512
        %1645 = vmatpush2.msra.mxu0 %v511
        %1646 = vmatprep.subr.mxu0 %v508
        %1647 = vmatpush2.msra.mxu0 %v507
        %1648 = vmatprep.subr.mxu0 %v504
        %1649 = vmatpush2.msra.mxu0 %v503
        %1650 = vmatprep.subr.mxu0 %v500
        %1651 = vmatpush2.msra.mxu0 %v499
        %1652 = vmatprep.subr.mxu0 %v496
        %1653 = vmatpush2.msra.mxu0 %v495
        %1654 = vmatprep.mubr.f32.mxu0 %v287
        %1655 = vmatmul.mubr.f32.gmra.mxu0 %v286
        %v1656 = vpop.f32.mrf.mxu0
        %v1657 = vadd.f32 %v1586, %v1656
        %v1658 = vpop.f32.mrf.mxu0
        %v1659 = vadd.f32 %v1588, %v1658
        %1660 = vdwg.mxu0
        %1661 = vmatprep.subr.mxu0 %v620
        %1662 = vmatpush1.msra.mxu0 %v619
        %1663 = vmatprep.subr.mxu0 %v616
        %1664 = vmatpush1.msra.mxu0 %v615
        %1665 = vmatprep.subr.mxu0 %v612
        %1666 = vmatpush1.msra.mxu0 %v611
        %1667 = vmatprep.subr.mxu0 %v608
        %1668 = vmatpush1.msra.mxu0 %v607
        %1669 = vmatprep.subr.mxu0 %v604
        %1670 = vmatpush1.msra.mxu0 %v603
        %1671 = vmatprep.subr.mxu0 %v600
        %1672 = vmatpush1.msra.mxu0 %v599
        %1673 = vmatprep.subr.mxu0 %v596
        %1674 = vmatpush1.msra.mxu0 %v595
        %1675 = vmatprep.subr.mxu0 %v592
        %1676 = vmatpush1.msra.mxu0 %v591
        %1677 = vmatprep.subr.mxu0 %v588
        %1678 = vmatpush1.msra.mxu0 %v587
        %1679 = vmatprep.subr.mxu0 %v584
        %1680 = vmatpush1.msra.mxu0 %v583
        %1681 = vmatprep.subr.mxu0 %v580
        %1682 = vmatpush1.msra.mxu0 %v579
        %1683 = vmatprep.subr.mxu0 %v576
        %1684 = vmatpush1.msra.mxu0 %v575
        %1685 = vmatprep.subr.mxu0 %v572
        %1686 = vmatpush1.msra.mxu0 %v571
        %1687 = vmatprep.subr.mxu0 %v568
        %1688 = vmatpush1.msra.mxu0 %v567
        %1689 = vmatprep.subr.mxu0 %v564
        %1690 = vmatpush1.msra.mxu0 %v563
        %1691 = vmatprep.subr.mxu0 %v560
        %1692 = vmatpush1.msra.mxu0 %v559
        %1693 = vmatprep.subr.mxu0 %v684
        %1694 = vmatpush2.msra.mxu0 %v683
        %1695 = vmatprep.subr.mxu0 %v680
        %1696 = vmatpush2.msra.mxu0 %v679
        %1697 = vmatprep.subr.mxu0 %v676
        %1698 = vmatpush2.msra.mxu0 %v675
        %1699 = vmatprep.subr.mxu0 %v672
        %1700 = vmatpush2.msra.mxu0 %v671
        %1701 = vmatprep.subr.mxu0 %v668
        %1702 = vmatpush2.msra.mxu0 %v667
        %1703 = vmatprep.subr.mxu0 %v664
        %1704 = vmatpush2.msra.mxu0 %v663
        %1705 = vmatprep.subr.mxu0 %v660
        %1706 = vmatpush2.msra.mxu0 %v659
        %1707 = vmatprep.subr.mxu0 %v656
        %1708 = vmatpush2.msra.mxu0 %v655
        %1709 = vmatprep.subr.mxu0 %v652
        %1710 = vmatpush2.msra.mxu0 %v651
        %1711 = vmatprep.subr.mxu0 %v648
        %1712 = vmatpush2.msra.mxu0 %v647
        %1713 = vmatprep.subr.mxu0 %v644
        %1714 = vmatpush2.msra.mxu0 %v643
        %1715 = vmatprep.subr.mxu0 %v640
        %1716 = vmatpush2.msra.mxu0 %v639
        %1717 = vmatprep.subr.mxu0 %v636
        %1718 = vmatpush2.msra.mxu0 %v635
        %1719 = vmatprep.subr.mxu0 %v632
        %1720 = vmatpush2.msra.mxu0 %v631
        %1721 = vmatprep.subr.mxu0 %v628
        %1722 = vmatpush2.msra.mxu0 %v627
        %1723 = vmatprep.subr.mxu0 %v624
        %1724 = vmatpush2.msra.mxu0 %v623
        %1725 = vmatprep.mubr.f32.mxu0 %v289
        %1726 = vmatmul.mubr.f32.gmra.mxu0 %v288
        %v1727 = vpop.f32.mrf.mxu0
        %v1728 = vadd.f32 %v1657, %v1727
        %v1729 = vpop.f32.mrf.mxu0
        %v1730 = vadd.f32 %v1659, %v1729
        %1731 = vdwg.mxu0
        %1732 = vmatprep.subr.mxu0 %v748
        %1733 = vmatpush1.msra.mxu0 %v747
        %1734 = vmatprep.subr.mxu0 %v744
        %1735 = vmatpush1.msra.mxu0 %v743
        %1736 = vmatprep.subr.mxu0 %v740
        %1737 = vmatpush1.msra.mxu0 %v739
        %1738 = vmatprep.subr.mxu0 %v736
        %1739 = vmatpush1.msra.mxu0 %v735
        %1740 = vmatprep.subr.mxu0 %v732
        %1741 = vmatpush1.msra.mxu0 %v731
        %1742 = vmatprep.subr.mxu0 %v728
        %1743 = vmatpush1.msra.mxu0 %v727
        %1744 = vmatprep.subr.mxu0 %v724
        %1745 = vmatpush1.msra.mxu0 %v723
        %1746 = vmatprep.subr.mxu0 %v720
        %1747 = vmatpush1.msra.mxu0 %v719
        %1748 = vmatprep.subr.mxu0 %v716
        %1749 = vmatpush1.msra.mxu0 %v715
        %1750 = vmatprep.subr.mxu0 %v712
        %1751 = vmatpush1.msra.mxu0 %v711
        %1752 = vmatprep.subr.mxu0 %v708
        %1753 = vmatpush1.msra.mxu0 %v707
        %1754 = vmatprep.subr.mxu0 %v704
        %1755 = vmatpush1.msra.mxu0 %v703
        %1756 = vmatprep.subr.mxu0 %v700
        %1757 = vmatpush1.msra.mxu0 %v699
        %1758 = vmatprep.subr.mxu0 %v696
        %1759 = vmatpush1.msra.mxu0 %v695
        %1760 = vmatprep.subr.mxu0 %v692
        %1761 = vmatpush1.msra.mxu0 %v691
        %1762 = vmatprep.subr.mxu0 %v688
        %1763 = vmatpush1.msra.mxu0 %v687
        %1764 = vmatprep.subr.mxu0 %v812
        %1765 = vmatpush2.msra.mxu0 %v811
        %1766 = vmatprep.subr.mxu0 %v808
        %1767 = vmatpush2.msra.mxu0 %v807
        %1768 = vmatprep.subr.mxu0 %v804
        %1769 = vmatpush2.msra.mxu0 %v803
        %1770 = vmatprep.subr.mxu0 %v800
        %1771 = vmatpush2.msra.mxu0 %v799
        %1772 = vmatprep.subr.mxu0 %v796
        %1773 = vmatpush2.msra.mxu0 %v795
        %1774 = vmatprep.subr.mxu0 %v792
        %1775 = vmatpush2.msra.mxu0 %v791
        %1776 = vmatprep.subr.mxu0 %v788
        %1777 = vmatpush2.msra.mxu0 %v787
        %1778 = vmatprep.subr.mxu0 %v784
        %1779 = vmatpush2.msra.mxu0 %v783
        %1780 = vmatprep.subr.mxu0 %v780
        %1781 = vmatpush2.msra.mxu0 %v779
        %1782 = vmatprep.subr.mxu0 %v776
        %1783 = vmatpush2.msra.mxu0 %v775
        %1784 = vmatprep.subr.mxu0 %v772
        %1785 = vmatpush2.msra.mxu0 %v771
        %1786 = vmatprep.subr.mxu0 %v768
        %1787 = vmatpush2.msra.mxu0 %v767
        %1788 = vmatprep.subr.mxu0 %v764
        %1789 = vmatpush2.msra.mxu0 %v763
        %1790 = vmatprep.subr.mxu0 %v760
        %1791 = vmatpush2.msra.mxu0 %v759
        %1792 = vmatprep.subr.mxu0 %v756
        %1793 = vmatpush2.msra.mxu0 %v755
        %1794 = vmatprep.subr.mxu0 %v752
        %1795 = vmatpush2.msra.mxu0 %v751
        %1796 = vmatprep.mubr.f32.mxu0 %v291
        %1797 = vmatmul.mubr.f32.gmra.mxu0 %v290
        %v1798 = vpop.f32.mrf.mxu0
        %v1799 = vadd.f32 %v1728, %v1798
        %v1800 = vpop.f32.mrf.mxu0
        %v1801 = vadd.f32 %v1730, %v1800
        %1802 = vdwg.mxu0
        %1803 = vmatprep.subr.mxu0 %v876
        %1804 = vmatpush1.msra.mxu0 %v875
        %1805 = vmatprep.subr.mxu0 %v872
        %1806 = vmatpush1.msra.mxu0 %v871
        %1807 = vmatprep.subr.mxu0 %v868
        %1808 = vmatpush1.msra.mxu0 %v867
        %1809 = vmatprep.subr.mxu0 %v864
        %1810 = vmatpush1.msra.mxu0 %v863
        %1811 = vmatprep.subr.mxu0 %v860
        %1812 = vmatpush1.msra.mxu0 %v859
        %1813 = vmatprep.subr.mxu0 %v856
        %1814 = vmatpush1.msra.mxu0 %v855
        %1815 = vmatprep.subr.mxu0 %v852
        %1816 = vmatpush1.msra.mxu0 %v851
        %1817 = vmatprep.subr.mxu0 %v848
        %1818 = vmatpush1.msra.mxu0 %v847
        %1819 = vmatprep.subr.mxu0 %v844
        %1820 = vmatpush1.msra.mxu0 %v843
        %1821 = vmatprep.subr.mxu0 %v840
        %1822 = vmatpush1.msra.mxu0 %v839
        %1823 = vmatprep.subr.mxu0 %v836
        %1824 = vmatpush1.msra.mxu0 %v835
        %1825 = vmatprep.subr.mxu0 %v832
        %1826 = vmatpush1.msra.mxu0 %v831
        %1827 = vmatprep.subr.mxu0 %v828
        %1828 = vmatpush1.msra.mxu0 %v827
        %1829 = vmatprep.subr.mxu0 %v824
        %1830 = vmatpush1.msra.mxu0 %v823
        %1831 = vmatprep.subr.mxu0 %v820
        %1832 = vmatpush1.msra.mxu0 %v819
        %1833 = vmatprep.subr.mxu0 %v816
        %1834 = vmatpush1.msra.mxu0 %v815
        %1835 = vmatprep.subr.mxu0 %v940
        %1836 = vmatpush2.msra.mxu0 %v939
        %1837 = vmatprep.subr.mxu0 %v936
        %1838 = vmatpush2.msra.mxu0 %v935
        %1839 = vmatprep.subr.mxu0 %v932
        %1840 = vmatpush2.msra.mxu0 %v931
        %1841 = vmatprep.subr.mxu0 %v928
        %1842 = vmatpush2.msra.mxu0 %v927
        %1843 = vmatprep.subr.mxu0 %v924
        %1844 = vmatpush2.msra.mxu0 %v923
        %1845 = vmatprep.subr.mxu0 %v920
        %1846 = vmatpush2.msra.mxu0 %v919
        %1847 = vmatprep.subr.mxu0 %v916
        %1848 = vmatpush2.msra.mxu0 %v915
        %1849 = vmatprep.subr.mxu0 %v912
        %1850 = vmatpush2.msra.mxu0 %v911
        %1851 = vmatprep.subr.mxu0 %v908
        %1852 = vmatpush2.msra.mxu0 %v907
        %1853 = vmatprep.subr.mxu0 %v904
        %1854 = vmatpush2.msra.mxu0 %v903
        %1855 = vmatprep.subr.mxu0 %v900
        %1856 = vmatpush2.msra.mxu0 %v899
        %1857 = vmatprep.subr.mxu0 %v896
        %1858 = vmatpush2.msra.mxu0 %v895
        %1859 = vmatprep.subr.mxu0 %v892
        %1860 = vmatpush2.msra.mxu0 %v891
        %1861 = vmatprep.subr.mxu0 %v888
        %1862 = vmatpush2.msra.mxu0 %v887
        %1863 = vmatprep.subr.mxu0 %v884
        %1864 = vmatpush2.msra.mxu0 %v883
        %1865 = vmatprep.subr.mxu0 %v880
        %1866 = vmatpush2.msra.mxu0 %v879
        %1867 = vmatprep.mubr.f32.mxu0 %v293
        %1868 = vmatmul.mubr.f32.gmra.mxu0 %v292
        %v1869 = vpop.f32.mrf.mxu0
        %v1870 = vadd.f32 %v1799, %v1869
        %v1871 = vpop.f32.mrf.mxu0
        %v1872 = vadd.f32 %v1801, %v1871
        %1873 = vdwg.mxu0
        %1874 = vmatprep.subr.mxu0 %v1004
        %1875 = vmatpush1.msra.mxu0 %v1003
        %1876 = vmatprep.subr.mxu0 %v1000
        %1877 = vmatpush1.msra.mxu0 %v999
        %1878 = vmatprep.subr.mxu0 %v996
        %1879 = vmatpush1.msra.mxu0 %v995
        %1880 = vmatprep.subr.mxu0 %v992
        %1881 = vmatpush1.msra.mxu0 %v991
        %1882 = vmatprep.subr.mxu0 %v988
        %1883 = vmatpush1.msra.mxu0 %v987
        %1884 = vmatprep.subr.mxu0 %v984
        %1885 = vmatpush1.msra.mxu0 %v983
        %1886 = vmatprep.subr.mxu0 %v980
        %1887 = vmatpush1.msra.mxu0 %v979
        %1888 = vmatprep.subr.mxu0 %v976
        %1889 = vmatpush1.msra.mxu0 %v975
        %1890 = vmatprep.subr.mxu0 %v972
        %1891 = vmatpush1.msra.mxu0 %v971
        %1892 = vmatprep.subr.mxu0 %v968
        %1893 = vmatpush1.msra.mxu0 %v967
        %1894 = vmatprep.subr.mxu0 %v964
        %1895 = vmatpush1.msra.mxu0 %v963
        %1896 = vmatprep.subr.mxu0 %v960
        %1897 = vmatpush1.msra.mxu0 %v959
        %1898 = vmatprep.subr.mxu0 %v956
        %1899 = vmatpush1.msra.mxu0 %v955
        %1900 = vmatprep.subr.mxu0 %v952
        %1901 = vmatpush1.msra.mxu0 %v951
        %1902 = vmatprep.subr.mxu0 %v948
        %1903 = vmatpush1.msra.mxu0 %v947
        %1904 = vmatprep.subr.mxu0 %v944
        %1905 = vmatpush1.msra.mxu0 %v943
        %1906 = vmatprep.subr.mxu0 %v1068
        %1907 = vmatpush2.msra.mxu0 %v1067
        %1908 = vmatprep.subr.mxu0 %v1064
        %1909 = vmatpush2.msra.mxu0 %v1063
        %1910 = vmatprep.subr.mxu0 %v1060
        %1911 = vmatpush2.msra.mxu0 %v1059
        %1912 = vmatprep.subr.mxu0 %v1056
        %1913 = vmatpush2.msra.mxu0 %v1055
        %1914 = vmatprep.subr.mxu0 %v1052
        %1915 = vmatpush2.msra.mxu0 %v1051
        %1916 = vmatprep.subr.mxu0 %v1048
        %1917 = vmatpush2.msra.mxu0 %v1047
        %1918 = vmatprep.subr.mxu0 %v1044
        %1919 = vmatpush2.msra.mxu0 %v1043
        %1920 = vmatprep.subr.mxu0 %v1040
        %1921 = vmatpush2.msra.mxu0 %v1039
        %1922 = vmatprep.subr.mxu0 %v1036
        %1923 = vmatpush2.msra.mxu0 %v1035
        %1924 = vmatprep.subr.mxu0 %v1032
        %1925 = vmatpush2.msra.mxu0 %v1031
        %1926 = vmatprep.subr.mxu0 %v1028
        %1927 = vmatpush2.msra.mxu0 %v1027
        %1928 = vmatprep.subr.mxu0 %v1024
        %1929 = vmatpush2.msra.mxu0 %v1023
        %1930 = vmatprep.subr.mxu0 %v1020
        %1931 = vmatpush2.msra.mxu0 %v1019
        %1932 = vmatprep.subr.mxu0 %v1016
        %1933 = vmatpush2.msra.mxu0 %v1015
        %1934 = vmatprep.subr.mxu0 %v1012
        %1935 = vmatpush2.msra.mxu0 %v1011
        %1936 = vmatprep.subr.mxu0 %v1008
        %1937 = vmatpush2.msra.mxu0 %v1007
        %1938 = vmatprep.mubr.f32.mxu0 %v295
        %1939 = vmatmul.mubr.f32.gmra.mxu0 %v294
        %v1940 = vpop.f32.mrf.mxu0
        %v1941 = vadd.f32 %v1870, %v1940
        %v1942 = vpop.f32.mrf.mxu0
        %v1943 = vadd.f32 %v1872, %v1942
        %1944 = vdwg.mxu0
        %1945 = vmatprep.subr.mxu0 %v1132
        %1946 = vmatpush1.msra.mxu0 %v1131
        %1947 = vmatprep.subr.mxu0 %v1128
        %1948 = vmatpush1.msra.mxu0 %v1127
        %1949 = vmatprep.subr.mxu0 %v1124
        %1950 = vmatpush1.msra.mxu0 %v1123
        %1951 = vmatprep.subr.mxu0 %v1120
        %1952 = vmatpush1.msra.mxu0 %v1119
        %1953 = vmatprep.subr.mxu0 %v1116
        %1954 = vmatpush1.msra.mxu0 %v1115
        %1955 = vmatprep.subr.mxu0 %v1112
        %1956 = vmatpush1.msra.mxu0 %v1111
        %1957 = vmatprep.subr.mxu0 %v1108
        %1958 = vmatpush1.msra.mxu0 %v1107
        %1959 = vmatprep.subr.mxu0 %v1104
        %1960 = vmatpush1.msra.mxu0 %v1103
        %1961 = vmatprep.subr.mxu0 %v1100
        %1962 = vmatpush1.msra.mxu0 %v1099
        %1963 = vmatprep.subr.mxu0 %v1096
        %1964 = vmatpush1.msra.mxu0 %v1095
        %1965 = vmatprep.subr.mxu0 %v1092
        %1966 = vmatpush1.msra.mxu0 %v1091
        %1967 = vmatprep.subr.mxu0 %v1088
        %1968 = vmatpush1.msra.mxu0 %v1087
        %1969 = vmatprep.subr.mxu0 %v1084
        %1970 = vmatpush1.msra.mxu0 %v1083
        %1971 = vmatprep.subr.mxu0 %v1080
        %1972 = vmatpush1.msra.mxu0 %v1079
        %1973 = vmatprep.subr.mxu0 %v1076
        %1974 = vmatpush1.msra.mxu0 %v1075
        %1975 = vmatprep.subr.mxu0 %v1072
        %1976 = vmatpush1.msra.mxu0 %v1071
        %1977 = vmatprep.subr.mxu0 %v1196
        %1978 = vmatpush2.msra.mxu0 %v1195
        %1979 = vmatprep.subr.mxu0 %v1192
        %1980 = vmatpush2.msra.mxu0 %v1191
        %1981 = vmatprep.subr.mxu0 %v1188
        %1982 = vmatpush2.msra.mxu0 %v1187
        %1983 = vmatprep.subr.mxu0 %v1184
        %1984 = vmatpush2.msra.mxu0 %v1183
        %1985 = vmatprep.subr.mxu0 %v1180
        %1986 = vmatpush2.msra.mxu0 %v1179
        %1987 = vmatprep.subr.mxu0 %v1176
        %1988 = vmatpush2.msra.mxu0 %v1175
        %1989 = vmatprep.subr.mxu0 %v1172
        %1990 = vmatpush2.msra.mxu0 %v1171
        %1991 = vmatprep.subr.mxu0 %v1168
        %1992 = vmatpush2.msra.mxu0 %v1167
        %1993 = vmatprep.subr.mxu0 %v1164
        %1994 = vmatpush2.msra.mxu0 %v1163
        %1995 = vmatprep.subr.mxu0 %v1160
        %1996 = vmatpush2.msra.mxu0 %v1159
        %1997 = vmatprep.subr.mxu0 %v1156
        %1998 = vmatpush2.msra.mxu0 %v1155
        %1999 = vmatprep.subr.mxu0 %v1152
        %2000 = vmatpush2.msra.mxu0 %v1151
        %2001 = vmatprep.subr.mxu0 %v1148
        %2002 = vmatpush2.msra.mxu0 %v1147
        %2003 = vmatprep.subr.mxu0 %v1144
        %2004 = vmatpush2.msra.mxu0 %v1143
        %2005 = vmatprep.subr.mxu0 %v1140
        %2006 = vmatpush2.msra.mxu0 %v1139
        %2007 = vmatprep.subr.mxu0 %v1136
        %2008 = vmatpush2.msra.mxu0 %v1135
        %2009 = vmatprep.mubr.f32.mxu0 %v297
        %2010 = vmatmul.mubr.f32.gmra.mxu0 %v296
        %v2011 = vpop.f32.mrf.mxu0
        %v2012 = vadd.f32 %v1941, %v2011
        %v2013 = vpop.f32.mrf.mxu0
        %v2014 = vadd.f32 %v1943, %v2013
        %2015 = vdwg.mxu0
        %2016 = vmatprep.subr.mxu0 %v1260
        %2017 = vmatpush1.msra.mxu0 %v1259
        %2018 = vmatprep.subr.mxu0 %v1256
        %2019 = vmatpush1.msra.mxu0 %v1255
        %2020 = vmatprep.subr.mxu0 %v1252
        %2021 = vmatpush1.msra.mxu0 %v1251
        %2022 = vmatprep.subr.mxu0 %v1248
        %2023 = vmatpush1.msra.mxu0 %v1247
        %2024 = vmatprep.subr.mxu0 %v1244
        %2025 = vmatpush1.msra.mxu0 %v1243
        %2026 = vmatprep.subr.mxu0 %v1240
        %2027 = vmatpush1.msra.mxu0 %v1239
        %2028 = vmatprep.subr.mxu0 %v1236
        %2029 = vmatpush1.msra.mxu0 %v1235
        %2030 = vmatprep.subr.mxu0 %v1232
        %2031 = vmatpush1.msra.mxu0 %v1231
        %2032 = vmatprep.subr.mxu0 %v1228
        %2033 = vmatpush1.msra.mxu0 %v1227
        %2034 = vmatprep.subr.mxu0 %v1224
        %2035 = vmatpush1.msra.mxu0 %v1223
        %2036 = vmatprep.subr.mxu0 %v1220
        %2037 = vmatpush1.msra.mxu0 %v1219
        %2038 = vmatprep.subr.mxu0 %v1216
        %2039 = vmatpush1.msra.mxu0 %v1215
        %2040 = vmatprep.subr.mxu0 %v1212
        %2041 = vmatpush1.msra.mxu0 %v1211
        %2042 = vmatprep.subr.mxu0 %v1208
        %2043 = vmatpush1.msra.mxu0 %v1207
        %2044 = vmatprep.subr.mxu0 %v1204
        %2045 = vmatpush1.msra.mxu0 %v1203
        %2046 = vmatprep.subr.mxu0 %v1200
        %2047 = vmatpush1.msra.mxu0 %v1199
        %2048 = vmatprep.subr.mxu0 %v1324
        %2049 = vmatpush2.msra.mxu0 %v1323
        %2050 = vmatprep.subr.mxu0 %v1320
        %2051 = vmatpush2.msra.mxu0 %v1319
        %2052 = vmatprep.subr.mxu0 %v1316
        %2053 = vmatpush2.msra.mxu0 %v1315
        %2054 = vmatprep.subr.mxu0 %v1312
        %2055 = vmatpush2.msra.mxu0 %v1311
        %2056 = vmatprep.subr.mxu0 %v1308
        %2057 = vmatpush2.msra.mxu0 %v1307
        %2058 = vmatprep.subr.mxu0 %v1304
        %2059 = vmatpush2.msra.mxu0 %v1303
        %2060 = vmatprep.subr.mxu0 %v1300
        %2061 = vmatpush2.msra.mxu0 %v1299
        %2062 = vmatprep.subr.mxu0 %v1296
        %2063 = vmatpush2.msra.mxu0 %v1295
        %2064 = vmatprep.subr.mxu0 %v1292
        %2065 = vmatpush2.msra.mxu0 %v1291
        %2066 = vmatprep.subr.mxu0 %v1288
        %2067 = vmatpush2.msra.mxu0 %v1287
        %2068 = vmatprep.subr.mxu0 %v1284
        %2069 = vmatpush2.msra.mxu0 %v1283
        %2070 = vmatprep.subr.mxu0 %v1280
        %2071 = vmatpush2.msra.mxu0 %v1279
        %2072 = vmatprep.subr.mxu0 %v1276
        %2073 = vmatpush2.msra.mxu0 %v1275
        %2074 = vmatprep.subr.mxu0 %v1272
        %2075 = vmatpush2.msra.mxu0 %v1271
        %2076 = vmatprep.subr.mxu0 %v1268
        %2077 = vmatpush2.msra.mxu0 %v1267
        %2078 = vmatprep.subr.mxu0 %v1264
        %2079 = vmatpush2.msra.mxu0 %v1263
        %2080 = vmatprep.mubr.f32.mxu0 %v299
        %2081 = vmatmul.mubr.f32.gmra.mxu0 %v298
        %v2082 = vpop.f32.mrf.mxu0
        %v2083 = vadd.f32 %v2012, %v2082
        %v2084 = vpop.f32.mrf.mxu0
        %v2085 = vadd.f32 %v2014, %v2084
        %2086 = vdwg.mxu0
        %2087 = vmatprep.subr.mxu0 %v1388
        %2088 = vmatpush1.msra.mxu0 %v1387
        %2089 = vmatprep.subr.mxu0 %v1384
        %2090 = vmatpush1.msra.mxu0 %v1383
        %2091 = vmatprep.subr.mxu0 %v1380
        %2092 = vmatpush1.msra.mxu0 %v1379
        %2093 = vmatprep.subr.mxu0 %v1376
        %2094 = vmatpush1.msra.mxu0 %v1375
        %2095 = vmatprep.subr.mxu0 %v1372
        %2096 = vmatpush1.msra.mxu0 %v1371
        %2097 = vmatprep.subr.mxu0 %v1368
        %2098 = vmatpush1.msra.mxu0 %v1367
        %2099 = vmatprep.subr.mxu0 %v1364
        %2100 = vmatpush1.msra.mxu0 %v1363
        %2101 = vmatprep.subr.mxu0 %v1360
        %2102 = vmatpush1.msra.mxu0 %v1359
        %2103 = vmatprep.subr.mxu0 %v1356
        %2104 = vmatpush1.msra.mxu0 %v1355
        %2105 = vmatprep.subr.mxu0 %v1352
        %2106 = vmatpush1.msra.mxu0 %v1351
        %2107 = vmatprep.subr.mxu0 %v1348
        %2108 = vmatpush1.msra.mxu0 %v1347
        %2109 = vmatprep.subr.mxu0 %v1344
        %2110 = vmatpush1.msra.mxu0 %v1343
        %2111 = vmatprep.subr.mxu0 %v1340
        %2112 = vmatpush1.msra.mxu0 %v1339
        %2113 = vmatprep.subr.mxu0 %v1336
        %2114 = vmatpush1.msra.mxu0 %v1335
        %2115 = vmatprep.subr.mxu0 %v1332
        %2116 = vmatpush1.msra.mxu0 %v1331
        %2117 = vmatprep.subr.mxu0 %v1328
        %2118 = vmatpush1.msra.mxu0 %v1327
        %2119 = vmatprep.subr.mxu0 %v1452
        %2120 = vmatpush2.msra.mxu0 %v1451
        %2121 = vmatprep.subr.mxu0 %v1448
        %2122 = vmatpush2.msra.mxu0 %v1447
        %2123 = vmatprep.subr.mxu0 %v1444
        %2124 = vmatpush2.msra.mxu0 %v1443
        %2125 = vmatprep.subr.mxu0 %v1440
        %2126 = vmatpush2.msra.mxu0 %v1439
        %2127 = vmatprep.subr.mxu0 %v1436
        %2128 = vmatpush2.msra.mxu0 %v1435
        %2129 = vmatprep.subr.mxu0 %v1432
        %2130 = vmatpush2.msra.mxu0 %v1431
        %2131 = vmatprep.subr.mxu0 %v1428
        %2132 = vmatpush2.msra.mxu0 %v1427
        %2133 = vmatprep.subr.mxu0 %v1424
        %2134 = vmatpush2.msra.mxu0 %v1423
        %2135 = vmatprep.subr.mxu0 %v1420
        %2136 = vmatpush2.msra.mxu0 %v1419
        %2137 = vmatprep.subr.mxu0 %v1416
        %2138 = vmatpush2.msra.mxu0 %v1415
        %2139 = vmatprep.subr.mxu0 %v1412
        %2140 = vmatpush2.msra.mxu0 %v1411
        %2141 = vmatprep.subr.mxu0 %v1408
        %2142 = vmatpush2.msra.mxu0 %v1407
        %2143 = vmatprep.subr.mxu0 %v1404
        %2144 = vmatpush2.msra.mxu0 %v1403
        %2145 = vmatprep.subr.mxu0 %v1400
        %2146 = vmatpush2.msra.mxu0 %v1399
        %2147 = vmatprep.subr.mxu0 %v1396
        %2148 = vmatpush2.msra.mxu0 %v1395
        %2149 = vmatprep.subr.mxu0 %v1392
        %2150 = vmatpush2.msra.mxu0 %v1391
        %2151 = vmatprep.mubr.f32.mxu0 %v301
        %2152 = vmatmul.mubr.f32.gmra.mxu0 %v300
        %v2153 = vpop.f32.mrf.mxu0
        %v2154 = vadd.f32 %v2083, %v2153
        %v2155 = vpop.f32.mrf.mxu0
        %v2156 = vadd.f32 %v2085, %v2155
        %2157 = vdwg.mxu0
        %2158 = vmatprep.subr.mxu0 %v1516
        %2159 = vmatpush1.msra.mxu0 %v1515
        %2160 = vmatprep.subr.mxu0 %v1512
        %2161 = vmatpush1.msra.mxu0 %v1511
        %2162 = vmatprep.subr.mxu0 %v1508
        %2163 = vmatpush1.msra.mxu0 %v1507
        %2164 = vmatprep.subr.mxu0 %v1504
        %2165 = vmatpush1.msra.mxu0 %v1503
        %2166 = vmatprep.subr.mxu0 %v1500
        %2167 = vmatpush1.msra.mxu0 %v1499
        %2168 = vmatprep.subr.mxu0 %v1496
        %2169 = vmatpush1.msra.mxu0 %v1495
        %2170 = vmatprep.subr.mxu0 %v1492
        %2171 = vmatpush1.msra.mxu0 %v1491
        %2172 = vmatprep.subr.mxu0 %v1488
        %2173 = vmatpush1.msra.mxu0 %v1487
        %2174 = vmatprep.subr.mxu0 %v1484
        %2175 = vmatpush1.msra.mxu0 %v1483
        %2176 = vmatprep.subr.mxu0 %v1480
        %2177 = vmatpush1.msra.mxu0 %v1479
        %2178 = vmatprep.subr.mxu0 %v1476
        %2179 = vmatpush1.msra.mxu0 %v1475
        %2180 = vmatprep.subr.mxu0 %v1472
        %2181 = vmatpush1.msra.mxu0 %v1471
        %2182 = vmatprep.subr.mxu0 %v1468
        %2183 = vmatpush1.msra.mxu0 %v1467
        %2184 = vmatprep.subr.mxu0 %v1464
        %2185 = vmatpush1.msra.mxu0 %v1463
        %2186 = vmatprep.subr.mxu0 %v1460
        %2187 = vmatpush1.msra.mxu0 %v1459
        %2188 = vmatprep.subr.mxu0 %v1456
        %2189 = vmatpush1.msra.mxu0 %v1455
        %2190 = vmatprep.subr.mxu0 0.0
        %2191 = vmatpush2.msra.mxu0 0.0
        %2192 = vmatprep.subr.mxu0 0.0
        %2193 = vmatpush2.msra.mxu0 0.0
        %2194 = vmatprep.subr.mxu0 0.0
        %2195 = vmatpush2.msra.mxu0 0.0
        %2196 = vmatprep.subr.mxu0 0.0
        %2197 = vmatpush2.msra.mxu0 0.0
        %2198 = vmatprep.subr.mxu0 0.0
        %2199 = vmatpush2.msra.mxu0 0.0
        %2200 = vmatprep.subr.mxu0 0.0
        %2201 = vmatpush2.msra.mxu0 0.0
        %2202 = vmatprep.subr.mxu0 0.0
        %2203 = vmatpush2.msra.mxu0 0.0
        %2204 = vmatprep.subr.mxu0 0.0
        %2205 = vmatpush2.msra.mxu0 0.0
        %2206 = vmatprep.subr.mxu0 0.0
        %2207 = vmatpush2.msra.mxu0 0.0
        %2208 = vmatprep.subr.mxu0 0.0
        %2209 = vmatpush2.msra.mxu0 0.0
        %2210 = vmatprep.subr.mxu0 0.0
        %2211 = vmatpush2.msra.mxu0 0.0
        %2212 = vmatprep.subr.mxu0 0.0
        %2213 = vmatpush2.msra.mxu0 0.0
        %2214 = vmatprep.subr.mxu0 0.0
        %2215 = vmatpush2.msra.mxu0 0.0
        %2216 = vmatprep.subr.mxu0 0.0
        %2217 = vmatpush2.msra.mxu0 0.0
        %2218 = vmatprep.subr.mxu0 0.0
        %2219 = vmatpush2.msra.mxu0 0.0
        %2220 = vmatprep.subr.mxu0 0.0
        %2221 = vmatpush2.msra.mxu0 0.0
        %2222 = vmatprep.mubr.f32.mxu0 0.0
        %2223 = vmatmul.mubr.f32.gmra.mxu0 %v302
        %v2224 = vpop.f32.mrf.mxu0
        %v2225 = vadd.f32 %v2154, %v2224
        %v2226 = vpop.f32.mrf.mxu0
        %v2227 = vadd.f32 %v2156, %v2226
        %2228 = vdwg.mxu0
        %2229 = vmatprep.subr.mxu0 %v366
        %2230 = vmatpush1.msra.mxu0 %v365
        %2231 = vmatprep.subr.mxu0 %v362
        %2232 = vmatpush1.msra.mxu0 %v361
        %2233 = vmatprep.subr.mxu0 %v358
        %2234 = vmatpush1.msra.mxu0 %v357
        %2235 = vmatprep.subr.mxu0 %v354
        %2236 = vmatpush1.msra.mxu0 %v353
        %2237 = vmatprep.subr.mxu0 %v350
        %2238 = vmatpush1.msra.mxu0 %v349
        %2239 = vmatprep.subr.mxu0 %v346
        %2240 = vmatpush1.msra.mxu0 %v345
        %2241 = vmatprep.subr.mxu0 %v342
        %2242 = vmatpush1.msra.mxu0 %v341
        %2243 = vmatprep.subr.mxu0 %v338
        %2244 = vmatpush1.msra.mxu0 %v337
        %2245 = vmatprep.subr.mxu0 %v334
        %2246 = vmatpush1.msra.mxu0 %v333
        %2247 = vmatprep.subr.mxu0 %v330
        %2248 = vmatpush1.msra.mxu0 %v329
        %2249 = vmatprep.subr.mxu0 %v326
        %2250 = vmatpush1.msra.mxu0 %v325
        %2251 = vmatprep.subr.mxu0 %v322
        %2252 = vmatpush1.msra.mxu0 %v321
        %2253 = vmatprep.subr.mxu0 %v318
        %2254 = vmatpush1.msra.mxu0 %v317
        %2255 = vmatprep.subr.mxu0 %v314
        %2256 = vmatpush1.msra.mxu0 %v313
        %2257 = vmatprep.subr.mxu0 %v310
        %2258 = vmatpush1.msra.mxu0 %v309
        %2259 = vmatprep.subr.mxu0 %v306
        %2260 = vmatpush1.msra.mxu0 %v305
        %2261 = vmatprep.subr.mxu0 %v430
        %2262 = vmatpush2.msra.mxu0 %v429
        %2263 = vmatprep.subr.mxu0 %v426
        %2264 = vmatpush2.msra.mxu0 %v425
        %2265 = vmatprep.subr.mxu0 %v422
        %2266 = vmatpush2.msra.mxu0 %v421
        %2267 = vmatprep.subr.mxu0 %v418
        %2268 = vmatpush2.msra.mxu0 %v417
        %2269 = vmatprep.subr.mxu0 %v414
        %2270 = vmatpush2.msra.mxu0 %v413
        %2271 = vmatprep.subr.mxu0 %v410
        %2272 = vmatpush2.msra.mxu0 %v409
        %2273 = vmatprep.subr.mxu0 %v406
        %2274 = vmatpush2.msra.mxu0 %v405
        %2275 = vmatprep.subr.mxu0 %v402
        %2276 = vmatpush2.msra.mxu0 %v401
        %2277 = vmatprep.subr.mxu0 %v398
        %2278 = vmatpush2.msra.mxu0 %v397
        %2279 = vmatprep.subr.mxu0 %v394
        %2280 = vmatpush2.msra.mxu0 %v393
        %2281 = vmatprep.subr.mxu0 %v390
        %2282 = vmatpush2.msra.mxu0 %v389
        %2283 = vmatprep.subr.mxu0 %v386
        %2284 = vmatpush2.msra.mxu0 %v385
        %2285 = vmatprep.subr.mxu0 %v382
        %2286 = vmatpush2.msra.mxu0 %v381
        %2287 = vmatprep.subr.mxu0 %v378
        %2288 = vmatpush2.msra.mxu0 %v377
        %2289 = vmatprep.subr.mxu0 %v374
        %2290 = vmatpush2.msra.mxu0 %v373
        %2291 = vmatprep.subr.mxu0 %v370
        %2292 = vmatpush2.msra.mxu0 %v369
        %2293 = vmatprep.mubr.f32.mxu0 %v285
        %2294 = vmatmul.mubr.f32.gmra.mxu0 %v284
        %v2295 = vpop.f32.mrf.mxu0
        %v2296 = vadd.f32 0.0, %v2295
        %v2297 = vpop.f32.mrf.mxu0
        %v2298 = vadd.f32 0.0, %v2297
        %2299 = vdwg.mxu0
        %2300 = vmatprep.subr.mxu0 %v494
        %2301 = vmatpush1.msra.mxu0 %v493
        %2302 = vmatprep.subr.mxu0 %v490
        %2303 = vmatpush1.msra.mxu0 %v489
        %2304 = vmatprep.subr.mxu0 %v486
        %2305 = vmatpush1.msra.mxu0 %v485
        %2306 = vmatprep.subr.mxu0 %v482
        %2307 = vmatpush1.msra.mxu0 %v481
        %2308 = vmatprep.subr.mxu0 %v478
        %2309 = vmatpush1.msra.mxu0 %v477
        %2310 = vmatprep.subr.mxu0 %v474
        %2311 = vmatpush1.msra.mxu0 %v473
        %2312 = vmatprep.subr.mxu0 %v470
        %2313 = vmatpush1.msra.mxu0 %v469
        %2314 = vmatprep.subr.mxu0 %v466
        %2315 = vmatpush1.msra.mxu0 %v465
        %2316 = vmatprep.subr.mxu0 %v462
        %2317 = vmatpush1.msra.mxu0 %v461
        %2318 = vmatprep.subr.mxu0 %v458
        %2319 = vmatpush1.msra.mxu0 %v457
        %2320 = vmatprep.subr.mxu0 %v454
        %2321 = vmatpush1.msra.mxu0 %v453
        %2322 = vmatprep.subr.mxu0 %v450
        %2323 = vmatpush1.msra.mxu0 %v449
        %2324 = vmatprep.subr.mxu0 %v446
        %2325 = vmatpush1.msra.mxu0 %v445
        %2326 = vmatprep.subr.mxu0 %v442
        %2327 = vmatpush1.msra.mxu0 %v441
        %2328 = vmatprep.subr.mxu0 %v438
        %2329 = vmatpush1.msra.mxu0 %v437
        %2330 = vmatprep.subr.mxu0 %v434
        %2331 = vmatpush1.msra.mxu0 %v433
        %2332 = vmatprep.subr.mxu0 %v558
        %2333 = vmatpush2.msra.mxu0 %v557
        %2334 = vmatprep.subr.mxu0 %v554
        %2335 = vmatpush2.msra.mxu0 %v553
        %2336 = vmatprep.subr.mxu0 %v550
        %2337 = vmatpush2.msra.mxu0 %v549
        %2338 = vmatprep.subr.mxu0 %v546
        %2339 = vmatpush2.msra.mxu0 %v545
        %2340 = vmatprep.subr.mxu0 %v542
        %2341 = vmatpush2.msra.mxu0 %v541
        %2342 = vmatprep.subr.mxu0 %v538
        %2343 = vmatpush2.msra.mxu0 %v537
        %2344 = vmatprep.subr.mxu0 %v534
        %2345 = vmatpush2.msra.mxu0 %v533
        %2346 = vmatprep.subr.mxu0 %v530
        %2347 = vmatpush2.msra.mxu0 %v529
        %2348 = vmatprep.subr.mxu0 %v526
        %2349 = vmatpush2.msra.mxu0 %v525
        %2350 = vmatprep.subr.mxu0 %v522
        %2351 = vmatpush2.msra.mxu0 %v521
        %2352 = vmatprep.subr.mxu0 %v518
        %2353 = vmatpush2.msra.mxu0 %v517
        %2354 = vmatprep.subr.mxu0 %v514
        %2355 = vmatpush2.msra.mxu0 %v513
        %2356 = vmatprep.subr.mxu0 %v510
        %2357 = vmatpush2.msra.mxu0 %v509
        %2358 = vmatprep.subr.mxu0 %v506
        %2359 = vmatpush2.msra.mxu0 %v505
        %2360 = vmatprep.subr.mxu0 %v502
        %2361 = vmatpush2.msra.mxu0 %v501
        %2362 = vmatprep.subr.mxu0 %v498
        %2363 = vmatpush2.msra.mxu0 %v497
        %2364 = vmatprep.mubr.f32.mxu0 %v287
        %2365 = vmatmul.mubr.f32.gmra.mxu0 %v286
        %v2366 = vpop.f32.mrf.mxu0
        %v2367 = vadd.f32 %v2296, %v2366
        %v2368 = vpop.f32.mrf.mxu0
        %v2369 = vadd.f32 %v2298, %v2368
        %2370 = vdwg.mxu0
        %2371 = vmatprep.subr.mxu0 %v622
        %2372 = vmatpush1.msra.mxu0 %v621
        %2373 = vmatprep.subr.mxu0 %v618
        %2374 = vmatpush1.msra.mxu0 %v617
        %2375 = vmatprep.subr.mxu0 %v614
        %2376 = vmatpush1.msra.mxu0 %v613
        %2377 = vmatprep.subr.mxu0 %v610
        %2378 = vmatpush1.msra.mxu0 %v609
        %2379 = vmatprep.subr.mxu0 %v606
        %2380 = vmatpush1.msra.mxu0 %v605
        %2381 = vmatprep.subr.mxu0 %v602
        %2382 = vmatpush1.msra.mxu0 %v601
        %2383 = vmatprep.subr.mxu0 %v598
        %2384 = vmatpush1.msra.mxu0 %v597
        %2385 = vmatprep.subr.mxu0 %v594
        %2386 = vmatpush1.msra.mxu0 %v593
        %2387 = vmatprep.subr.mxu0 %v590
        %2388 = vmatpush1.msra.mxu0 %v589
        %2389 = vmatprep.subr.mxu0 %v586
        %2390 = vmatpush1.msra.mxu0 %v585
        %2391 = vmatprep.subr.mxu0 %v582
        %2392 = vmatpush1.msra.mxu0 %v581
        %2393 = vmatprep.subr.mxu0 %v578
        %2394 = vmatpush1.msra.mxu0 %v577
        %2395 = vmatprep.subr.mxu0 %v574
        %2396 = vmatpush1.msra.mxu0 %v573
        %2397 = vmatprep.subr.mxu0 %v570
        %2398 = vmatpush1.msra.mxu0 %v569
        %2399 = vmatprep.subr.mxu0 %v566
        %2400 = vmatpush1.msra.mxu0 %v565
        %2401 = vmatprep.subr.mxu0 %v562
        %2402 = vmatpush1.msra.mxu0 %v561
        %2403 = vmatprep.subr.mxu0 %v686
        %2404 = vmatpush2.msra.mxu0 %v685
        %2405 = vmatprep.subr.mxu0 %v682
        %2406 = vmatpush2.msra.mxu0 %v681
        %2407 = vmatprep.subr.mxu0 %v678
        %2408 = vmatpush2.msra.mxu0 %v677
        %2409 = vmatprep.subr.mxu0 %v674
        %2410 = vmatpush2.msra.mxu0 %v673
        %2411 = vmatprep.subr.mxu0 %v670
        %2412 = vmatpush2.msra.mxu0 %v669
        %2413 = vmatprep.subr.mxu0 %v666
        %2414 = vmatpush2.msra.mxu0 %v665
        %2415 = vmatprep.subr.mxu0 %v662
        %2416 = vmatpush2.msra.mxu0 %v661
        %2417 = vmatprep.subr.mxu0 %v658
        %2418 = vmatpush2.msra.mxu0 %v657
        %2419 = vmatprep.subr.mxu0 %v654
        %2420 = vmatpush2.msra.mxu0 %v653
        %2421 = vmatprep.subr.mxu0 %v650
        %2422 = vmatpush2.msra.mxu0 %v649
        %2423 = vmatprep.subr.mxu0 %v646
        %2424 = vmatpush2.msra.mxu0 %v645
        %2425 = vmatprep.subr.mxu0 %v642
        %2426 = vmatpush2.msra.mxu0 %v641
        %2427 = vmatprep.subr.mxu0 %v638
        %2428 = vmatpush2.msra.mxu0 %v637
        %2429 = vmatprep.subr.mxu0 %v634
        %2430 = vmatpush2.msra.mxu0 %v633
        %2431 = vmatprep.subr.mxu0 %v630
        %2432 = vmatpush2.msra.mxu0 %v629
        %2433 = vmatprep.subr.mxu0 %v626
        %2434 = vmatpush2.msra.mxu0 %v625
        %2435 = vmatprep.mubr.f32.mxu0 %v289
        %2436 = vmatmul.mubr.f32.gmra.mxu0 %v288
        %v2437 = vpop.f32.mrf.mxu0
        %v2438 = vadd.f32 %v2367, %v2437
        %v2439 = vpop.f32.mrf.mxu0
        %v2440 = vadd.f32 %v2369, %v2439
        %2441 = vdwg.mxu0
        %2442 = vmatprep.subr.mxu0 %v750
        %2443 = vmatpush1.msra.mxu0 %v749
        %2444 = vmatprep.subr.mxu0 %v746
        %2445 = vmatpush1.msra.mxu0 %v745
        %2446 = vmatprep.subr.mxu0 %v742
        %2447 = vmatpush1.msra.mxu0 %v741
        %2448 = vmatprep.subr.mxu0 %v738
        %2449 = vmatpush1.msra.mxu0 %v737
        %2450 = vmatprep.subr.mxu0 %v734
        %2451 = vmatpush1.msra.mxu0 %v733
        %2452 = vmatprep.subr.mxu0 %v730
        %2453 = vmatpush1.msra.mxu0 %v729
        %2454 = vmatprep.subr.mxu0 %v726
        %2455 = vmatpush1.msra.mxu0 %v725
        %2456 = vmatprep.subr.mxu0 %v722
        %2457 = vmatpush1.msra.mxu0 %v721
        %2458 = vmatprep.subr.mxu0 %v718
        %2459 = vmatpush1.msra.mxu0 %v717
        %2460 = vmatprep.subr.mxu0 %v714
        %2461 = vmatpush1.msra.mxu0 %v713
        %2462 = vmatprep.subr.mxu0 %v710
        %2463 = vmatpush1.msra.mxu0 %v709
        %2464 = vmatprep.subr.mxu0 %v706
        %2465 = vmatpush1.msra.mxu0 %v705
        %2466 = vmatprep.subr.mxu0 %v702
        %2467 = vmatpush1.msra.mxu0 %v701
        %2468 = vmatprep.subr.mxu0 %v698
        %2469 = vmatpush1.msra.mxu0 %v697
        %2470 = vmatprep.subr.mxu0 %v694
        %2471 = vmatpush1.msra.mxu0 %v693
        %2472 = vmatprep.subr.mxu0 %v690
        %2473 = vmatpush1.msra.mxu0 %v689
        %2474 = vmatprep.subr.mxu0 %v814
        %2475 = vmatpush2.msra.mxu0 %v813
        %2476 = vmatprep.subr.mxu0 %v810
        %2477 = vmatpush2.msra.mxu0 %v809
        %2478 = vmatprep.subr.mxu0 %v806
        %2479 = vmatpush2.msra.mxu0 %v805
        %2480 = vmatprep.subr.mxu0 %v802
        %2481 = vmatpush2.msra.mxu0 %v801
        %2482 = vmatprep.subr.mxu0 %v798
        %2483 = vmatpush2.msra.mxu0 %v797
        %2484 = vmatprep.subr.mxu0 %v794
        %2485 = vmatpush2.msra.mxu0 %v793
        %2486 = vmatprep.subr.mxu0 %v790
        %2487 = vmatpush2.msra.mxu0 %v789
        %2488 = vmatprep.subr.mxu0 %v786
        %2489 = vmatpush2.msra.mxu0 %v785
        %2490 = vmatprep.subr.mxu0 %v782
        %2491 = vmatpush2.msra.mxu0 %v781
        %2492 = vmatprep.subr.mxu0 %v778
        %2493 = vmatpush2.msra.mxu0 %v777
        %2494 = vmatprep.subr.mxu0 %v774
        %2495 = vmatpush2.msra.mxu0 %v773
        %2496 = vmatprep.subr.mxu0 %v770
        %2497 = vmatpush2.msra.mxu0 %v769
        %2498 = vmatprep.subr.mxu0 %v766
        %2499 = vmatpush2.msra.mxu0 %v765
        %2500 = vmatprep.subr.mxu0 %v762
        %2501 = vmatpush2.msra.mxu0 %v761
        %2502 = vmatprep.subr.mxu0 %v758
        %2503 = vmatpush2.msra.mxu0 %v757
        %2504 = vmatprep.subr.mxu0 %v754
        %2505 = vmatpush2.msra.mxu0 %v753
        %2506 = vmatprep.mubr.f32.mxu0 %v291
        %2507 = vmatmul.mubr.f32.gmra.mxu0 %v290
        %v2508 = vpop.f32.mrf.mxu0
        %v2509 = vadd.f32 %v2438, %v2508
        %v2510 = vpop.f32.mrf.mxu0
        %v2511 = vadd.f32 %v2440, %v2510
        %2512 = vdwg.mxu0
        %2513 = vmatprep.subr.mxu0 %v878
        %2514 = vmatpush1.msra.mxu0 %v877
        %2515 = vmatprep.subr.mxu0 %v874
        %2516 = vmatpush1.msra.mxu0 %v873
        %2517 = vmatprep.subr.mxu0 %v870
        %2518 = vmatpush1.msra.mxu0 %v869
        %2519 = vmatprep.subr.mxu0 %v866
        %2520 = vmatpush1.msra.mxu0 %v865
        %2521 = vmatprep.subr.mxu0 %v862
        %2522 = vmatpush1.msra.mxu0 %v861
        %2523 = vmatprep.subr.mxu0 %v858
        %2524 = vmatpush1.msra.mxu0 %v857
        %2525 = vmatprep.subr.mxu0 %v854
        %2526 = vmatpush1.msra.mxu0 %v853
        %2527 = vmatprep.subr.mxu0 %v850
        %2528 = vmatpush1.msra.mxu0 %v849
        %2529 = vmatprep.subr.mxu0 %v846
        %2530 = vmatpush1.msra.mxu0 %v845
        %2531 = vmatprep.subr.mxu0 %v842
        %2532 = vmatpush1.msra.mxu0 %v841
        %2533 = vmatprep.subr.mxu0 %v838
        %2534 = vmatpush1.msra.mxu0 %v837
        %2535 = vmatprep.subr.mxu0 %v834
        %2536 = vmatpush1.msra.mxu0 %v833
        %2537 = vmatprep.subr.mxu0 %v830
        %2538 = vmatpush1.msra.mxu0 %v829
        %2539 = vmatprep.subr.mxu0 %v826
        %2540 = vmatpush1.msra.mxu0 %v825
        %2541 = vmatprep.subr.mxu0 %v822
        %2542 = vmatpush1.msra.mxu0 %v821
        %2543 = vmatprep.subr.mxu0 %v818
        %2544 = vmatpush1.msra.mxu0 %v817
        %2545 = vmatprep.subr.mxu0 %v942
        %2546 = vmatpush2.msra.mxu0 %v941
        %2547 = vmatprep.subr.mxu0 %v938
        %2548 = vmatpush2.msra.mxu0 %v937
        %2549 = vmatprep.subr.mxu0 %v934
        %2550 = vmatpush2.msra.mxu0 %v933
        %2551 = vmatprep.subr.mxu0 %v930
        %2552 = vmatpush2.msra.mxu0 %v929
        %2553 = vmatprep.subr.mxu0 %v926
        %2554 = vmatpush2.msra.mxu0 %v925
        %2555 = vmatprep.subr.mxu0 %v922
        %2556 = vmatpush2.msra.mxu0 %v921
        %2557 = vmatprep.subr.mxu0 %v918
        %2558 = vmatpush2.msra.mxu0 %v917
        %2559 = vmatprep.subr.mxu0 %v914
        %2560 = vmatpush2.msra.mxu0 %v913
        %2561 = vmatprep.subr.mxu0 %v910
        %2562 = vmatpush2.msra.mxu0 %v909
        %2563 = vmatprep.subr.mxu0 %v906
        %2564 = vmatpush2.msra.mxu0 %v905
        %2565 = vmatprep.subr.mxu0 %v902
        %2566 = vmatpush2.msra.mxu0 %v901
        %2567 = vmatprep.subr.mxu0 %v898
        %2568 = vmatpush2.msra.mxu0 %v897
        %2569 = vmatprep.subr.mxu0 %v894
        %2570 = vmatpush2.msra.mxu0 %v893
        %2571 = vmatprep.subr.mxu0 %v890
        %2572 = vmatpush2.msra.mxu0 %v889
        %2573 = vmatprep.subr.mxu0 %v886
        %2574 = vmatpush2.msra.mxu0 %v885
        %2575 = vmatprep.subr.mxu0 %v882
        %2576 = vmatpush2.msra.mxu0 %v881
        %2577 = vmatprep.mubr.f32.mxu0 %v293
        %2578 = vmatmul.mubr.f32.gmra.mxu0 %v292
        %v2579 = vpop.f32.mrf.mxu0
        %v2580 = vadd.f32 %v2509, %v2579
        %v2581 = vpop.f32.mrf.mxu0
        %v2582 = vadd.f32 %v2511, %v2581
        %2583 = vdwg.mxu0
        %2584 = vmatprep.subr.mxu0 %v1006
        %2585 = vmatpush1.msra.mxu0 %v1005
        %2586 = vmatprep.subr.mxu0 %v1002
        %2587 = vmatpush1.msra.mxu0 %v1001
        %2588 = vmatprep.subr.mxu0 %v998
        %2589 = vmatpush1.msra.mxu0 %v997
        %2590 = vmatprep.subr.mxu0 %v994
        %2591 = vmatpush1.msra.mxu0 %v993
        %2592 = vmatprep.subr.mxu0 %v990
        %2593 = vmatpush1.msra.mxu0 %v989
        %2594 = vmatprep.subr.mxu0 %v986
        %2595 = vmatpush1.msra.mxu0 %v985
        %2596 = vmatprep.subr.mxu0 %v982
        %2597 = vmatpush1.msra.mxu0 %v981
        %2598 = vmatprep.subr.mxu0 %v978
        %2599 = vmatpush1.msra.mxu0 %v977
        %2600 = vmatprep.subr.mxu0 %v974
        %2601 = vmatpush1.msra.mxu0 %v973
        %2602 = vmatprep.subr.mxu0 %v970
        %2603 = vmatpush1.msra.mxu0 %v969
        %2604 = vmatprep.subr.mxu0 %v966
        %2605 = vmatpush1.msra.mxu0 %v965
        %2606 = vmatprep.subr.mxu0 %v962
        %2607 = vmatpush1.msra.mxu0 %v961
        %2608 = vmatprep.subr.mxu0 %v958
        %2609 = vmatpush1.msra.mxu0 %v957
        %2610 = vmatprep.subr.mxu0 %v954
        %2611 = vmatpush1.msra.mxu0 %v953
        %2612 = vmatprep.subr.mxu0 %v950
        %2613 = vmatpush1.msra.mxu0 %v949
        %2614 = vmatprep.subr.mxu0 %v946
        %2615 = vmatpush1.msra.mxu0 %v945
        %2616 = vmatprep.subr.mxu0 %v1070
        %2617 = vmatpush2.msra.mxu0 %v1069
        %2618 = vmatprep.subr.mxu0 %v1066
        %2619 = vmatpush2.msra.mxu0 %v1065
        %2620 = vmatprep.subr.mxu0 %v1062
        %2621 = vmatpush2.msra.mxu0 %v1061
        %2622 = vmatprep.subr.mxu0 %v1058
        %2623 = vmatpush2.msra.mxu0 %v1057
        %2624 = vmatprep.subr.mxu0 %v1054
        %2625 = vmatpush2.msra.mxu0 %v1053
        %2626 = vmatprep.subr.mxu0 %v1050
        %2627 = vmatpush2.msra.mxu0 %v1049
        %2628 = vmatprep.subr.mxu0 %v1046
        %2629 = vmatpush2.msra.mxu0 %v1045
        %2630 = vmatprep.subr.mxu0 %v1042
        %2631 = vmatpush2.msra.mxu0 %v1041
        %2632 = vmatprep.subr.mxu0 %v1038
        %2633 = vmatpush2.msra.mxu0 %v1037
        %2634 = vmatprep.subr.mxu0 %v1034
        %2635 = vmatpush2.msra.mxu0 %v1033
        %2636 = vmatprep.subr.mxu0 %v1030
        %2637 = vmatpush2.msra.mxu0 %v1029
        %2638 = vmatprep.subr.mxu0 %v1026
        %2639 = vmatpush2.msra.mxu0 %v1025
        %2640 = vmatprep.subr.mxu0 %v1022
        %2641 = vmatpush2.msra.mxu0 %v1021
        %2642 = vmatprep.subr.mxu0 %v1018
        %2643 = vmatpush2.msra.mxu0 %v1017
        %2644 = vmatprep.subr.mxu0 %v1014
        %2645 = vmatpush2.msra.mxu0 %v1013
        %2646 = vmatprep.subr.mxu0 %v1010
        %2647 = vmatpush2.msra.mxu0 %v1009
        %2648 = vmatprep.mubr.f32.mxu0 %v295
        %2649 = vmatmul.mubr.f32.gmra.mxu0 %v294
        %v2650 = vpop.f32.mrf.mxu0
        %v2651 = vadd.f32 %v2580, %v2650
        %v2652 = vpop.f32.mrf.mxu0
        %v2653 = vadd.f32 %v2582, %v2652
        %2654 = vdwg.mxu0
        %2655 = vmatprep.subr.mxu0 %v1134
        %2656 = vmatpush1.msra.mxu0 %v1133
        %2657 = vmatprep.subr.mxu0 %v1130
        %2658 = vmatpush1.msra.mxu0 %v1129
        %2659 = vmatprep.subr.mxu0 %v1126
        %2660 = vmatpush1.msra.mxu0 %v1125
        %2661 = vmatprep.subr.mxu0 %v1122
        %2662 = vmatpush1.msra.mxu0 %v1121
        %2663 = vmatprep.subr.mxu0 %v1118
        %2664 = vmatpush1.msra.mxu0 %v1117
        %2665 = vmatprep.subr.mxu0 %v1114
        %2666 = vmatpush1.msra.mxu0 %v1113
        %2667 = vmatprep.subr.mxu0 %v1110
        %2668 = vmatpush1.msra.mxu0 %v1109
        %2669 = vmatprep.subr.mxu0 %v1106
        %2670 = vmatpush1.msra.mxu0 %v1105
        %2671 = vmatprep.subr.mxu0 %v1102
        %2672 = vmatpush1.msra.mxu0 %v1101
        %2673 = vmatprep.subr.mxu0 %v1098
        %2674 = vmatpush1.msra.mxu0 %v1097
        %2675 = vmatprep.subr.mxu0 %v1094
        %2676 = vmatpush1.msra.mxu0 %v1093
        %2677 = vmatprep.subr.mxu0 %v1090
        %2678 = vmatpush1.msra.mxu0 %v1089
        %2679 = vmatprep.subr.mxu0 %v1086
        %2680 = vmatpush1.msra.mxu0 %v1085
        %2681 = vmatprep.subr.mxu0 %v1082
        %2682 = vmatpush1.msra.mxu0 %v1081
        %2683 = vmatprep.subr.mxu0 %v1078
        %2684 = vmatpush1.msra.mxu0 %v1077
        %2685 = vmatprep.subr.mxu0 %v1074
        %2686 = vmatpush1.msra.mxu0 %v1073
        %2687 = vmatprep.subr.mxu0 %v1198
        %2688 = vmatpush2.msra.mxu0 %v1197
        %2689 = vmatprep.subr.mxu0 %v1194
        %2690 = vmatpush2.msra.mxu0 %v1193
        %2691 = vmatprep.subr.mxu0 %v1190
        %2692 = vmatpush2.msra.mxu0 %v1189
        %2693 = vmatprep.subr.mxu0 %v1186
        %2694 = vmatpush2.msra.mxu0 %v1185
        %2695 = vmatprep.subr.mxu0 %v1182
        %2696 = vmatpush2.msra.mxu0 %v1181
        %2697 = vmatprep.subr.mxu0 %v1178
        %2698 = vmatpush2.msra.mxu0 %v1177
        %2699 = vmatprep.subr.mxu0 %v1174
        %2700 = vmatpush2.msra.mxu0 %v1173
        %2701 = vmatprep.subr.mxu0 %v1170
        %2702 = vmatpush2.msra.mxu0 %v1169
        %2703 = vmatprep.subr.mxu0 %v1166
        %2704 = vmatpush2.msra.mxu0 %v1165
        %2705 = vmatprep.subr.mxu0 %v1162
        %2706 = vmatpush2.msra.mxu0 %v1161
        %2707 = vmatprep.subr.mxu0 %v1158
        %2708 = vmatpush2.msra.mxu0 %v1157
        %2709 = vmatprep.subr.mxu0 %v1154
        %2710 = vmatpush2.msra.mxu0 %v1153
        %2711 = vmatprep.subr.mxu0 %v1150
        %2712 = vmatpush2.msra.mxu0 %v1149
        %2713 = vmatprep.subr.mxu0 %v1146
        %2714 = vmatpush2.msra.mxu0 %v1145
        %2715 = vmatprep.subr.mxu0 %v1142
        %2716 = vmatpush2.msra.mxu0 %v1141
        %2717 = vmatprep.subr.mxu0 %v1138
        %2718 = vmatpush2.msra.mxu0 %v1137
        %2719 = vmatprep.mubr.f32.mxu0 %v297
        %2720 = vmatmul.mubr.f32.gmra.mxu0 %v296
        %v2721 = vpop.f32.mrf.mxu0
        %v2722 = vadd.f32 %v2651, %v2721
        %v2723 = vpop.f32.mrf.mxu0
        %v2724 = vadd.f32 %v2653, %v2723
        %2725 = vdwg.mxu0
        %2726 = vmatprep.subr.mxu0 %v1262
        %2727 = vmatpush1.msra.mxu0 %v1261
        %2728 = vmatprep.subr.mxu0 %v1258
        %2729 = vmatpush1.msra.mxu0 %v1257
        %2730 = vmatprep.subr.mxu0 %v1254
        %2731 = vmatpush1.msra.mxu0 %v1253
        %2732 = vmatprep.subr.mxu0 %v1250
        %2733 = vmatpush1.msra.mxu0 %v1249
        %2734 = vmatprep.subr.mxu0 %v1246
        %2735 = vmatpush1.msra.mxu0 %v1245
        %2736 = vmatprep.subr.mxu0 %v1242
        %2737 = vmatpush1.msra.mxu0 %v1241
        %2738 = vmatprep.subr.mxu0 %v1238
        %2739 = vmatpush1.msra.mxu0 %v1237
        %2740 = vmatprep.subr.mxu0 %v1234
        %2741 = vmatpush1.msra.mxu0 %v1233
        %2742 = vmatprep.subr.mxu0 %v1230
        %2743 = vmatpush1.msra.mxu0 %v1229
        %2744 = vmatprep.subr.mxu0 %v1226
        %2745 = vmatpush1.msra.mxu0 %v1225
        %2746 = vmatprep.subr.mxu0 %v1222
        %2747 = vmatpush1.msra.mxu0 %v1221
        %2748 = vmatprep.subr.mxu0 %v1218
        %2749 = vmatpush1.msra.mxu0 %v1217
        %2750 = vmatprep.subr.mxu0 %v1214
        %2751 = vmatpush1.msra.mxu0 %v1213
        %2752 = vmatprep.subr.mxu0 %v1210
        %2753 = vmatpush1.msra.mxu0 %v1209
        %2754 = vmatprep.subr.mxu0 %v1206
        %2755 = vmatpush1.msra.mxu0 %v1205
        %2756 = vmatprep.subr.mxu0 %v1202
        %2757 = vmatpush1.msra.mxu0 %v1201
        %2758 = vmatprep.subr.mxu0 %v1326
        %2759 = vmatpush2.msra.mxu0 %v1325
        %2760 = vmatprep.subr.mxu0 %v1322
        %2761 = vmatpush2.msra.mxu0 %v1321
        %2762 = vmatprep.subr.mxu0 %v1318
        %2763 = vmatpush2.msra.mxu0 %v1317
        %2764 = vmatprep.subr.mxu0 %v1314
        %2765 = vmatpush2.msra.mxu0 %v1313
        %2766 = vmatprep.subr.mxu0 %v1310
        %2767 = vmatpush2.msra.mxu0 %v1309
        %2768 = vmatprep.subr.mxu0 %v1306
        %2769 = vmatpush2.msra.mxu0 %v1305
        %2770 = vmatprep.subr.mxu0 %v1302
        %2771 = vmatpush2.msra.mxu0 %v1301
        %2772 = vmatprep.subr.mxu0 %v1298
        %2773 = vmatpush2.msra.mxu0 %v1297
        %2774 = vmatprep.subr.mxu0 %v1294
        %2775 = vmatpush2.msra.mxu0 %v1293
        %2776 = vmatprep.subr.mxu0 %v1290
        %2777 = vmatpush2.msra.mxu0 %v1289
        %2778 = vmatprep.subr.mxu0 %v1286
        %2779 = vmatpush2.msra.mxu0 %v1285
        %2780 = vmatprep.subr.mxu0 %v1282
        %2781 = vmatpush2.msra.mxu0 %v1281
        %2782 = vmatprep.subr.mxu0 %v1278
        %2783 = vmatpush2.msra.mxu0 %v1277
        %2784 = vmatprep.subr.mxu0 %v1274
        %2785 = vmatpush2.msra.mxu0 %v1273
        %2786 = vmatprep.subr.mxu0 %v1270
        %2787 = vmatpush2.msra.mxu0 %v1269
        %2788 = vmatprep.subr.mxu0 %v1266
        %2789 = vmatpush2.msra.mxu0 %v1265
        %2790 = vmatprep.mubr.f32.mxu0 %v299
        %2791 = vmatmul.mubr.f32.gmra.mxu0 %v298
        %v2792 = vpop.f32.mrf.mxu0
        %v2793 = vadd.f32 %v2722, %v2792
        %v2794 = vpop.f32.mrf.mxu0
        %v2795 = vadd.f32 %v2724, %v2794
        %2796 = vdwg.mxu0
        %2797 = vmatprep.subr.mxu0 %v1390
        %2798 = vmatpush1.msra.mxu0 %v1389
        %2799 = vmatprep.subr.mxu0 %v1386
        %2800 = vmatpush1.msra.mxu0 %v1385
        %2801 = vmatprep.subr.mxu0 %v1382
        %2802 = vmatpush1.msra.mxu0 %v1381
        %2803 = vmatprep.subr.mxu0 %v1378
        %2804 = vmatpush1.msra.mxu0 %v1377
        %2805 = vmatprep.subr.mxu0 %v1374
        %2806 = vmatpush1.msra.mxu0 %v1373
        %2807 = vmatprep.subr.mxu0 %v1370
        %2808 = vmatpush1.msra.mxu0 %v1369
        %2809 = vmatprep.subr.mxu0 %v1366
        %2810 = vmatpush1.msra.mxu0 %v1365
        %2811 = vmatprep.subr.mxu0 %v1362
        %2812 = vmatpush1.msra.mxu0 %v1361
        %2813 = vmatprep.subr.mxu0 %v1358
        %2814 = vmatpush1.msra.mxu0 %v1357
        %2815 = vmatprep.subr.mxu0 %v1354
        %2816 = vmatpush1.msra.mxu0 %v1353
        %2817 = vmatprep.subr.mxu0 %v1350
        %2818 = vmatpush1.msra.mxu0 %v1349
        %2819 = vmatprep.subr.mxu0 %v1346
        %2820 = vmatpush1.msra.mxu0 %v1345
        %2821 = vmatprep.subr.mxu0 %v1342
        %2822 = vmatpush1.msra.mxu0 %v1341
        %2823 = vmatprep.subr.mxu0 %v1338
        %2824 = vmatpush1.msra.mxu0 %v1337
        %2825 = vmatprep.subr.mxu0 %v1334
        %2826 = vmatpush1.msra.mxu0 %v1333
        %2827 = vmatprep.subr.mxu0 %v1330
        %2828 = vmatpush1.msra.mxu0 %v1329
        %2829 = vmatprep.subr.mxu0 %v1454
        %2830 = vmatpush2.msra.mxu0 %v1453
        %2831 = vmatprep.subr.mxu0 %v1450
        %2832 = vmatpush2.msra.mxu0 %v1449
        %2833 = vmatprep.subr.mxu0 %v1446
        %2834 = vmatpush2.msra.mxu0 %v1445
        %2835 = vmatprep.subr.mxu0 %v1442
        %2836 = vmatpush2.msra.mxu0 %v1441
        %2837 = vmatprep.subr.mxu0 %v1438
        %2838 = vmatpush2.msra.mxu0 %v1437
        %2839 = vmatprep.subr.mxu0 %v1434
        %2840 = vmatpush2.msra.mxu0 %v1433
        %2841 = vmatprep.subr.mxu0 %v1430
        %2842 = vmatpush2.msra.mxu0 %v1429
        %2843 = vmatprep.subr.mxu0 %v1426
        %2844 = vmatpush2.msra.mxu0 %v1425
        %2845 = vmatprep.subr.mxu0 %v1422
        %2846 = vmatpush2.msra.mxu0 %v1421
        %2847 = vmatprep.subr.mxu0 %v1418
        %2848 = vmatpush2.msra.mxu0 %v1417
        %2849 = vmatprep.subr.mxu0 %v1414
        %2850 = vmatpush2.msra.mxu0 %v1413
        %2851 = vmatprep.subr.mxu0 %v1410
        %2852 = vmatpush2.msra.mxu0 %v1409
        %2853 = vmatprep.subr.mxu0 %v1406
        %2854 = vmatpush2.msra.mxu0 %v1405
        %2855 = vmatprep.subr.mxu0 %v1402
        %2856 = vmatpush2.msra.mxu0 %v1401
        %2857 = vmatprep.subr.mxu0 %v1398
        %2858 = vmatpush2.msra.mxu0 %v1397
        %2859 = vmatprep.subr.mxu0 %v1394
        %2860 = vmatpush2.msra.mxu0 %v1393
        %2861 = vmatprep.mubr.f32.mxu0 %v301
        %2862 = vmatmul.mubr.f32.gmra.mxu0 %v300
        %v2863 = vpop.f32.mrf.mxu0
        %v2864 = vadd.f32 %v2793, %v2863
        %v2865 = vpop.f32.mrf.mxu0
        %v2866 = vadd.f32 %v2795, %v2865
        %2867 = vdwg.mxu0
        %2868 = vmatprep.subr.mxu0 %v1518
        %2869 = vmatpush1.msra.mxu0 %v1517
        %2870 = vmatprep.subr.mxu0 %v1514
        %2871 = vmatpush1.msra.mxu0 %v1513
        %2872 = vmatprep.subr.mxu0 %v1510
        %2873 = vmatpush1.msra.mxu0 %v1509
        %2874 = vmatprep.subr.mxu0 %v1506
        %2875 = vmatpush1.msra.mxu0 %v1505
        %2876 = vmatprep.subr.mxu0 %v1502
        %2877 = vmatpush1.msra.mxu0 %v1501
        %2878 = vmatprep.subr.mxu0 %v1498
        %2879 = vmatpush1.msra.mxu0 %v1497
        %2880 = vmatprep.subr.mxu0 %v1494
        %2881 = vmatpush1.msra.mxu0 %v1493
        %2882 = vmatprep.subr.mxu0 %v1490
        %2883 = vmatpush1.msra.mxu0 %v1489
        %2884 = vmatprep.subr.mxu0 %v1486
        %2885 = vmatpush1.msra.mxu0 %v1485
        %2886 = vmatprep.subr.mxu0 %v1482
        %2887 = vmatpush1.msra.mxu0 %v1481
        %2888 = vmatprep.subr.mxu0 %v1478
        %2889 = vmatpush1.msra.mxu0 %v1477
        %2890 = vmatprep.subr.mxu0 %v1474
        %2891 = vmatpush1.msra.mxu0 %v1473
        %2892 = vmatprep.subr.mxu0 %v1470
        %2893 = vmatpush1.msra.mxu0 %v1469
        %2894 = vmatprep.subr.mxu0 %v1466
        %2895 = vmatpush1.msra.mxu0 %v1465
        %2896 = vmatprep.subr.mxu0 %v1462
        %2897 = vmatpush1.msra.mxu0 %v1461
        %2898 = vmatprep.subr.mxu0 %v1458
        %2899 = vmatpush1.msra.mxu0 %v1457
        %2900 = vmatprep.subr.mxu0 0.0
        %2901 = vmatpush2.msra.mxu0 0.0
        %2902 = vmatprep.subr.mxu0 0.0
        %2903 = vmatpush2.msra.mxu0 0.0
        %2904 = vmatprep.subr.mxu0 0.0
        %2905 = vmatpush2.msra.mxu0 0.0
        %2906 = vmatprep.subr.mxu0 0.0
        %2907 = vmatpush2.msra.mxu0 0.0
        %2908 = vmatprep.subr.mxu0 0.0
        %2909 = vmatpush2.msra.mxu0 0.0
        %2910 = vmatprep.subr.mxu0 0.0
        %2911 = vmatpush2.msra.mxu0 0.0
        %2912 = vmatprep.subr.mxu0 0.0
        %2913 = vmatpush2.msra.mxu0 0.0
        %2914 = vmatprep.subr.mxu0 0.0
        %2915 = vmatpush2.msra.mxu0 0.0
        %2916 = vmatprep.subr.mxu0 0.0
        %2917 = vmatpush2.msra.mxu0 0.0
        %2918 = vmatprep.subr.mxu0 0.0
        %2919 = vmatpush2.msra.mxu0 0.0
        %2920 = vmatprep.subr.mxu0 0.0
        %2921 = vmatpush2.msra.mxu0 0.0
        %2922 = vmatprep.subr.mxu0 0.0
        %2923 = vmatpush2.msra.mxu0 0.0
        %2924 = vmatprep.subr.mxu0 0.0
        %2925 = vmatpush2.msra.mxu0 0.0
        %2926 = vmatprep.subr.mxu0 0.0
        %2927 = vmatpush2.msra.mxu0 0.0
        %2928 = vmatprep.subr.mxu0 0.0
        %2929 = vmatpush2.msra.mxu0 0.0
        %2930 = vmatprep.subr.mxu0 0.0
        %2931 = vmatpush2.msra.mxu0 0.0
        %2932 = vmatprep.mubr.f32.mxu0 0.0
        %2933 = vmatmul.mubr.f32.gmra.mxu0 %v302
        %v2934 = vpop.f32.mrf.mxu0
        %v2935 = vadd.f32 %v2864, %v2934
        %v2936 = vpop.f32.mrf.mxu0
        %v2937 = vadd.f32 %v2866, %v2936
        %2938 = vdwg.mxu0
        %v2939 = vadd.f32 %v280, %v2225
        %v2940 = vadd.f32 %v281, %v2227
        %v2941 = vadd.f32 %v282, %v2935
        %v2942 = vadd.f32 %v283, %v2937
        %2943 = vst [vmem:[%s270] sm:$0xff] %v2939
        %2944 = vst [vmem:[%s270 + $0x8] sm:$0xff] %v2940
        %2945 = vst [vmem:[%s270 + $0x10] sm:$0xff] %v2941
        %2946 = vst [vmem:[%s270 + $0x18] sm:$0xff] %v2942
        %p2947 = scmp.eq.s32.totalorder %s25, 2
        // Predicated region
        $region45: #{net_forward.2} parent=31 // pred_check
          %p2948 = pneg %p2947
        $region46: #{net_forward.2} parent=31 // pred_check_branch
          %2950 = sbr.rel (%p2948) target = $region48
        $region47: #{net_forward.2} parent=31 // pred_region
          %v2951 = vld [vmem:[%s270] sm:$0xff]
          %v2952 = vld [vmem:[%s270 + $0x8] sm:$0xff]
          %v2953 = vld [vmem:[%s270 + $0x10] sm:$0xff]
          %v2954 = vld [vmem:[%s270 + $0x18] sm:$0xff]
          %v2955 = vld [vmem:[%s224] sm:$0xf]
          %v2957 = vlaneseq
          %v2958 = vshrl.u32 %v2957, 7
          %v2959 = vsub.s32 0, %v2958
          %v2960 = vrot.slane %v2955, %v2959
          %v2961 = vlaneseq
          %v2962 = vshrl.u32 %v2961, 7
          %v2963 = vsub.s32 1, %v2962
          %v2964 = vrot.slane %v2955, %v2963
          %v2965 = vlaneseq
          %v2966 = vshrl.u32 %v2965, 7
          %v2967 = vsub.s32 2, %v2966
          %v2968 = vrot.slane %v2955, %v2967
          %v2969 = vlaneseq
          %v2970 = vshrl.u32 %v2969, 7
          %v2971 = vsub.s32 3, %v2970
          %v2972 = vrot.slane %v2955, %v2971
          %v2977 = vadd.f32 %v2951, %v2960
          %v2978 = vadd.f32 %v2952, %v2964
          %v2979 = vadd.f32 %v2953, %v2968
          %v2980 = vadd.f32 %v2954, %v2972
          %v2981 = vmax.f32 %v2977, 0.0
          %v2982 = vmax.f32 %v2978, 0.0
          %v2983 = vmax.f32 %v2979, 0.0
          %v2984 = vmax.f32 %v2980, 0.0
          %2985 = vst [vmem:[%s270] sm:$0xff] %v2981
          %2986 = vst [vmem:[%s270 + $0x8] sm:$0xff] %v2982
          %2987 = vst [vmem:[%s270 + $0x10] sm:$0xff] %v2983
          %2988 = vst [vmem:[%s270 + $0x18] sm:$0xff] %v2984
        $region48: #{net_forward.2} parent=31 // pred_fallthru
          _
        %s2989 = smul.u32 4, %s24
        %p2990 = scmp.lt.s32.totalorder %s2989, 7
        %s2991 = scalar_select %p2990, %s2989, 7
        %s2992 = smul.addr %s2991, 8
        %s2993 = scalar_lea.vmem %s3, %s2992
        // Predicated region
        $region49: #{net_forward.2} parent=31 // pred_check
          %p2994 = pneg %p130
        $region50: #{net_forward.2} parent=31 // pred_check_branch
          %2996 = sbr.rel (%p2994) target = $region52
        $region51: #{net_forward.2} parent=31 // pred_region
          %s2997 = smul.u32 4, %s24
        $region52: #{net_forward.2} parent=31 // pred_fallthru
          _
      $region32: #{net_forward.2} parent=5 // pred_fallthru
        _
      %p2998 = scmp.le.s32.totalorder 2, %s15
      // Predicated region
      $region53: #{net_forward.2} parent=5 // pred_check
        %p2999 = pneg %p2998
      $region54: #{net_forward.2} parent=5 // pred_check_branch
        %3001 = sbr.rel (%p2999) target = $region56
      $region55: #{net_forward.2} parent=5 // pred_region
        %s3002 = ssub.s32 %s15, 2
        // Predicated region
        $region57: #{net_forward.2} parent=55 // pred_check
          %p3003 = pneg %p136
        $region58: #{net_forward.2} parent=55 // pred_check_branch
          %3005 = sbr.rel (%p3003) target = $region60
        $region59: #{net_forward.2} parent=55 // pred_region
          %s3006 = smul.u32 4, %s26
          %p3007 = scmp.lt.s32.totalorder %s3006, 7
          %s3008 = scalar_select %p3007, %s3006, 7
          %s3009 = smul.addr %s3008, 8
          %s3010 = scalar_lea.vmem %s3, %s3009
        $region60: #{net_forward.2} parent=55 // pred_fallthru
          _
      $region56: #{net_forward.2} parent=5 // pred_fallthru
        _
    $region6: #{net_forward.2} parent=1 // loop_footer
      %s19 = sadd.s32 1, %s15
    $region7: #{net_forward.2} parent=1 // loop_footer_branch
      %14 = sbr.rel target = $region3
    $region8: #{net_forward.2} parent=1 // loop_exit
      _
    %3011 = vsyncpa [#allocation3], 1
    %s3012 = scalar_lea.sflag [#allocation3], 1
    %3013 = vsyncpa %s3012, 1
    %3014 = vsyncpa [#allocation5], 1
    %s3015 = scalar_lea.sflag [#allocation5], 1
    %3016 = vsyncpa %s3015, 1

</llo_original>
